<compile_context>
chip_gen: v7x
topology: tpu7x:2x2x1
jax: 0.10.0
libtpu: 0.0.40
codegen_flags: <defaults>
</compile_context>

<pallas_src>
import functools

import jax
import jax.numpy as jnp
from jax.experimental import pallas as pl
from jax.experimental.pallas import tpu as pltpu


# ------------------------------- helpers ------------------------------------

def _pick_tile(n, pref=512):
    """Largest lane tile in {pref, 256, 128} dividing n, preferring >=2 tiles
    (so both v7x TensorCores get work); falls back to the full extent."""
    cands = [c for c in (pref, 256, 128) if c <= n and n % c == 0]
    for c in cands:
        if n // c >= 2:
            return c
    return cands[0] if cands else n


# --------------------------- Pallas GEMM kernels -----------------------------

def _gemm_kernel(l_ref, r_ref, o_ref):
    o_ref[...] = jnp.dot(l_ref[...], r_ref[...],
                         preferred_element_type=jnp.float32).astype(o_ref.dtype)


def _gemm_bias_tanh_kernel(l_ref, r_ref, b_ref, o_ref):
    acc = jnp.dot(l_ref[...], r_ref[...], preferred_element_type=jnp.float32)
    o_ref[...] = jnp.tanh(acc + b_ref[...]).astype(o_ref.dtype)


def resident_lhs_matmul(lhs, rhs, bias_tanh=None, tile=512):
    """out = lhs @ rhs   (or tanh(lhs @ rhs + bias) when `bias_tanh` is given).

    lhs (M, K) is small and fully VMEM-resident (constant index_map); rhs and
    out are tiled only along their last (lane) dimension, so K is fully
    resident: no reduction grid axis, no accumulator scratch, one lane-dense
    store per tile.  Operands are cast to bf16; accumulation is f32.
    """
    M, K = lhs.shape
    K2, R = rhs.shape
    assert K == K2
    tn = _pick_tile(R, tile)
    in_specs = [pl.BlockSpec((M, K), lambda j: (0, 0)),
                pl.BlockSpec((K, tn), lambda j: (0, j))]
    args = [lhs.astype(jnp.bfloat16), rhs.astype(jnp.bfloat16)]
    if bias_tanh is None:
        kernel = _gemm_kernel
    else:
        kernel = _gemm_bias_tanh_kernel
        in_specs.append(pl.BlockSpec((M, 1), lambda j: (0, 0)))
        args.append(bias_tanh.reshape(M, 1).astype(jnp.float32))
    return pl.pallas_call(
        kernel,
        out_shape=jax.ShapeDtypeStruct((M, R), jnp.float32),
        grid_spec=pltpu.PrefetchScalarGridSpec(
            num_scalar_prefetch=0,
            grid=(R // tn,),
            in_specs=in_specs,
            out_specs=pl.BlockSpec((M, tn), lambda j: (0, j))),
        compiler_params=pltpu.CompilerParams(
            dimension_semantics=("parallel",)),
    )(*args)


# ----------------------------- BatchNorm kernels -----------------------------

def _bn_stats_kernel(x_ref, s1_ref, s2_ref):
    @pl.when(pl.program_id(0) == 0)
    def _():
        s1_ref[...] = jnp.zeros_like(s1_ref)
        s2_ref[...] = jnp.zeros_like(s2_ref)
    x = x_ref[...].astype(jnp.float32)
    s1_ref[...] += jnp.sum(x, axis=1, keepdims=True)
    s2_ref[...] += jnp.sum(x * x, axis=1, keepdims=True)


def channel_stats(x2d, tile=512):
    """Per-channel sum / sum-of-squares of a channel-major (C, R) slab,
    accumulated across lane tiles (pass 1 of the two-pass BatchNorm2d)."""
    C, R = x2d.shape
    tn = _pick_tile(R, tile)
    s1, s2 = pl.pallas_call(
        _bn_stats_kernel,
        out_shape=(jax.ShapeDtypeStruct((C, 1), jnp.float32),
                   jax.ShapeDtypeStruct((C, 1), jnp.float32)),
        grid_spec=pltpu.PrefetchScalarGridSpec(
            num_scalar_prefetch=0,
            grid=(R // tn,),
            in_specs=[pl.BlockSpec((C, tn), lambda j: (0, j))],
            out_specs=(pl.BlockSpec((C, 1), lambda j: (0, 0)),
                       pl.BlockSpec((C, 1), lambda j: (0, 0)))),
        compiler_params=pltpu.CompilerParams(
            dimension_semantics=("arbitrary",)),
    )(x2d)
    mean = s1[:, 0] / R
    var = jnp.maximum(s2[:, 0] / R - mean * mean, 0.0)
    return mean, var


def _affine_relu_kernel(x_ref, s_ref, b_ref, o_ref):
    y = x_ref[...].astype(jnp.float32) * s_ref[...] + b_ref[...]
    o_ref[...] = jnp.maximum(y, 0.0).astype(o_ref.dtype)


def channel_affine_relu(x2d, scale, shift, tile=512):
    """relu(x * scale + shift) with per-channel (row) scale/shift, tiled along
    lanes (pass 2 of the two-pass BatchNorm2d).  bf16 output for the next GEMM."""
    C, R = x2d.shape
    tn = _pick_tile(R, tile)
    return pl.pallas_call(
        _affine_relu_kernel,
        out_shape=jax.ShapeDtypeStruct((C, R), jnp.bfloat16),
        grid_spec=pltpu.PrefetchScalarGridSpec(
            num_scalar_prefetch=0,
            grid=(R // tn,),
            in_specs=[pl.BlockSpec((C, tn), lambda j: (0, j)),
                      pl.BlockSpec((C, 1), lambda j: (0, 0)),
                      pl.BlockSpec((C, 1), lambda j: (0, 0))],
            out_specs=pl.BlockSpec((C, tn), lambda j: (0, j))),
        compiler_params=pltpu.CompilerParams(
            dimension_semantics=("parallel",)),
    )(x2d, scale.reshape(C, 1).astype(jnp.float32),
      shift.reshape(C, 1).astype(jnp.float32))


def _bn1d_relu_kernel(x_ref, g_ref, b_ref, o_ref):
    x = x_ref[...].astype(jnp.float32)
    mean = jnp.mean(x, axis=0, keepdims=True)
    var = jnp.mean(jnp.square(x - mean), axis=0, keepdims=True)
    y = (x - mean) * jax.lax.rsqrt(var + 1e-5) * g_ref[...] + b_ref[...]
    o_ref[...] = jnp.maximum(y, 0.0).astype(o_ref.dtype)


def batchnorm1d_relu(x2d, gamma, beta, tile=512):
    """Training-mode BatchNorm1d (+ReLU) on an (N, F) slab.  Stats are
    per-feature (per column), so each lane tile is self-contained: one tiled pass."""
    N, F = x2d.shape
    tn = _pick_tile(F, tile)
    return pl.pallas_call(
        _bn1d_relu_kernel,
        out_shape=jax.ShapeDtypeStruct((N, F), jnp.bfloat16),
        grid_spec=pltpu.PrefetchScalarGridSpec(
            num_scalar_prefetch=0,
            grid=(F // tn,),
            in_specs=[pl.BlockSpec((N, tn), lambda j: (0, j)),
                      pl.BlockSpec((1, tn), lambda j: (0, j)),
                      pl.BlockSpec((1, tn), lambda j: (0, j))],
            out_specs=pl.BlockSpec((N, tn), lambda j: (0, j))),
        compiler_params=pltpu.CompilerParams(
            dimension_semantics=("parallel",)),
    )(x2d, gamma.reshape(1, F), beta.reshape(1, F))


# ------------------ ConvTranspose2d via sub-pixel decomposition --------------

def conv_transpose_5x5_s2(x_cm, w_t, bias_tanh=None):
    """ConvTranspose2d(kernel=5, stride=2, padding=2, output_padding=1).

    Sub-pixel decomposition: the stride-2 deconv is exactly four stride-1
    convolutions (3x3, 3x2, 2x3, 2x2 taps), one per output parity (oh%2, ow%2),
    each computed as a channel-major GEMM  out = W_par(Cout,K) @ A^T(K, N*H*W).

    x_cm : channel-major activation (Cin, N, H, W)   (bf16)
    w_t  : PyTorch-layout weight   (Cin, Cout, 5, 5)
    Returns channel-major output (Cout, N, 2H, 2W), f32.  When `bias_tanh` is
    given, tanh(. + bias) is fused into the GEMM epilogue.
    """
    Cin, N, H, W = x_cm.shape
    Cout = w_t.shape[1]
    # equivalent forward-conv weight: flip spatially, swap in/out channels
    w_conv = jnp.flip(w_t, axis=(2, 3)).transpose(1, 0, 2, 3)   # (Cout,Cin,5,5)
    # a one-pixel spatial halo is all the sub-pixel taps ever touch
    xp = jnp.pad(x_cm, ((0, 0), (0, 0), (1, 1), (1, 1)))

    planes = []
    for ph in (0, 1):
        for pw in (0, 1):
            w_sub = w_conv[:, :, ph::2, pw::2]                  # (Cout,Cin,kh,kw)
            nkh, nkw = w_sub.shape[2], w_sub.shape[3]
            lhs = w_sub.transpose(0, 2, 3, 1).reshape(Cout, nkh * nkw * Cin)
            # TODO(synk): the shifted-window extraction below is still XLA glue;
            # reading `xp` directly inside the GEMM kernel would avoid
            # materializing this (K, R) slab in HBM.
            taps = [xp[:, :, ph + dh:ph + dh + H, pw + dw:pw + dw + W]
                    for dh in range(nkh) for dw in range(nkw)]
            rhs = jnp.stack(taps, axis=0).reshape(nkh * nkw * Cin, N * H * W)
            y = resident_lhs_matmul(lhs, rhs, bias_tanh=bias_tanh)
            planes.append(y.reshape(Cout, N, H, W))
    # interleave parities: out[:, :, 2i+ph, 2j+pw] = planes[2*ph+pw][:, :, i, j]
    y = jnp.stack(planes, axis=0).reshape(2, 2, Cout, N, H, W)
    y = y.transpose(2, 3, 4, 0, 5, 1).reshape(Cout, N, 2 * H, 2 * W)
    return y


# --------------------------------- Generator ---------------------------------

def init_params(key, in_dim, out_dim):
    """Deterministic synthetic parameters (shapes match the PyTorch module)."""
    ks = jax.random.split(key, 16)
    p = {}
    f1 = out_dim * 8 * 4 * 4
    # Linear(in_dim, f1, bias=False): stored as (in_dim, f1) for x @ W
    p["w1"] = jax.random.normal(ks[0], (in_dim, f1), jnp.float32) * 0.05
    p["bn1_g"] = 1.0 + 0.1 * jax.random.normal(ks[1], (f1,), jnp.float32)
    p["bn1_b"] = 0.1 * jax.random.normal(ks[2], (f1,), jnp.float32)
    chans = [out_dim * 8, out_dim * 4, out_dim * 2, out_dim]
    for i in range(3):
        cin, cout = chans[i], chans[i + 1]
        p[f"wd{i}"] = jax.random.normal(
            ks[3 + 3 * i], (cin, cout, 5, 5), jnp.float32) * 0.05
        p[f"bnd{i}_g"] = 1.0 + 0.1 * jax.random.normal(
            ks[4 + 3 * i], (cout,), jnp.float32)
        p[f"bnd{i}_b"] = 0.1 * jax.random.normal(
            ks[5 + 3 * i], (cout,), jnp.float32)
    # final ConvTranspose2d(out_dim, 3) with bias
    p["w_out"] = jax.random.normal(ks[12], (out_dim, 3, 5, 5), jnp.float32) * 0.05
    p["b_out"] = 0.1 * jax.random.normal(ks[13], (3,), jnp.float32)
    return p


def generator_forward(params, x, out_dim):
    """x: (N, in_dim)  ->  (N, 3, 64, 64), float32 (PyTorch NCHW output)."""
    N = x.shape[0]
    c8 = out_dim * 8

    # l1: Linear(bias=False) -> BatchNorm1d -> ReLU   ((N, f1): f1 lane-dense)
    y = resident_lhs_matmul(x, params["w1"])                    # (N, f1) f32
    y = batchnorm1d_relu(y, params["bn1_g"], params["bn1_b"])   # bf16

    # switch to channel-major once; stay channel-major until the very end
    y = y.reshape(N, c8, 4, 4).transpose(1, 0, 2, 3)            # (C, N, 4, 4)

    # three dconv_bn_relu blocks: 4 -> 8 -> 16 -> 32
    for i in range(3):
        y = conv_transpose_5x5_s2(y, params[f"wd{i}"])          # (C',N,2H,2W) f32
        C2, n, oh, ow = y.shape
        y2 = y.reshape(C2, n * oh * ow)
        mean, var = channel_stats(y2)                           # BN2d batch stats
        scale = params[f"bnd{i}_g"] * jax.lax.rsqrt(var + 1e-5)
        shift = params[f"bnd{i}_b"] - mean * scale
        y = channel_affine_relu(y2, scale, shift).reshape(C2, n, oh, ow)

    # final ConvTranspose2d(out_dim, 3, bias=True) + Tanh (fused GEMM epilogue)
    y = conv_transpose_5x5_s2(y, params["w_out"], bias_tanh=params["b_out"])
    return y.transpose(1, 0, 2, 3)                              # NCHW, once


if __name__ == "__main__":
    # Small but structurally faithful config: out_dim=16 -> output (N, 3, 64, 64)
    batch, in_dim, out_dim = 2, 32, 16

    key = jax.random.PRNGKey(0)
    kx, kp = jax.random.split(key)
    params = init_params(kp, in_dim, out_dim)
    x = jax.random.normal(kx, (batch, in_dim), jnp.float32)

    fwd = jax.jit(functools.partial(generator_forward, out_dim=out_dim))
    y = jax.block_until_ready(fwd(params, x))

    assert y.shape == (batch, 3, 64, 64), y.shape
    assert y.dtype == jnp.float32
    assert bool(jnp.all(jnp.isfinite(y)))
    assert bool(jnp.all(jnp.abs(y) <= 1.0))   # tanh range
    print("KERNEL_OK")
</pallas_src>

<mosaic_0001>
module attributes {stable_mosaic.version = 11 : i64} {
  func.func @_gemm_kernel(%arg0: i32, %arg1: memref<2x32xbf16, #tpu.memory_space<vmem>>, %arg2: memref<32x512xbf16, #tpu.memory_space<vmem>>, %arg3: memref<2x512xf32, #tpu.memory_space<vmem>>) attributes {dimension_semantics = [#tpu.dimension_semantics<parallel>], iteration_bounds = array<i64: 4>, scalar_prefetch = 0 : i64, scratch_operands = 0 : i64, tpu.core_type = #tpu.core_type<tc>, window_params = [{pipeline_mode = #tpu.pipeline_mode<synchronous>, transform_indices = @transform_0, window_bounds = array<i64: 2, 32>}, {transform_indices = @transform_1, window_bounds = array<i64: 32, 512>}, {transform_indices = @transform_2, window_bounds = array<i64: 2, 512>}]} {
    %c0 = arith.constant 0 : index
    %c0_0 = arith.constant 0 : index
    %0 = vector.load %arg1[%c0, %c0_0] : memref<2x32xbf16, #tpu.memory_space<vmem>>, vector<2x32xbf16>
    %c0_1 = arith.constant 0 : index
    %c0_2 = arith.constant 0 : index
    %1 = vector.load %arg2[%c0_1, %c0_2] : memref<32x512xbf16, #tpu.memory_space<vmem>>, vector<32x512xbf16>
    %cst = arith.constant dense<0.000000e+00> : vector<2x512xf32>
    %2 = tpu.matmul %0, %1, %cst {dimension_numbers = #tpu.dot_dimension_numbers<[1], [0], [0], [1], [0, 0, 1, 1], [], []>} : vector<2x32xbf16>, vector<32x512xbf16>, vector<2x512xf32> -> vector<2x512xf32>
    %c0_3 = arith.constant 0 : index
    %c0_4 = arith.constant 0 : index
    %3 = vector.load %arg3[%c0_3, %c0_4] : memref<2x512xf32, #tpu.memory_space<vmem>>, vector<2x512xf32>
    tpu.vector_store %arg3[%c0_3, %c0_4], %2 {strides = array<i32>} : memref<2x512xf32, #tpu.memory_space<vmem>>, vector<2x512xf32>,
    return
  }
  func.func @transform_0(%arg0: i32) -> (i32, i32) {
    %c0_i32 = arith.constant 0 : i32
    %c0_i32_0 = arith.constant 0 : i32
    %c0_i32_1 = arith.constant 0 : i32
    return %c0_i32, %c0_i32_0 : i32, i32
  }
  func.func @transform_1(%arg0: i32) -> (i32, i32) {
    %c0_i32 = arith.constant 0 : i32
    %c0_i32_0 = arith.constant 0 : i32
    return %c0_i32, %arg0 : i32, i32
  }
  func.func @transform_2(%arg0: i32) -> (i32, i32) {
    %c0_i32 = arith.constant 0 : i32
    %c0_i32_0 = arith.constant 0 : i32
    return %c0_i32, %arg0 : i32, i32
  }
}

module attributes {stable_mosaic.version = 11 : i64} {
  func.func @_bn1d_relu_kernel(%arg0: i32, %arg1: memref<2x512xf32, #tpu.memory_space<vmem>>, %arg2: memref<1x512xf32, #tpu.memory_space<vmem>>, %arg3: memref<1x512xf32, #tpu.memory_space<vmem>>, %arg4: memref<2x512xbf16, #tpu.memory_space<vmem>>) attributes {dimension_semantics = [#tpu.dimension_semantics<parallel>], iteration_bounds = array<i64: 4>, scalar_prefetch = 0 : i64, scratch_operands = 0 : i64, tpu.core_type = #tpu.core_type<tc>, window_params = [{transform_indices = @transform_0, window_bounds = array<i64: 2, 512>}, {transform_indices = @transform_1, window_bounds = array<i64: 1, 512>}, {transform_indices = @transform_2, window_bounds = array<i64: 1, 512>}, {transform_indices = @transform_3, window_bounds = array<i64: 2, 512>}]} {
    %c0 = arith.constant 0 : index
    %c0_0 = arith.constant 0 : index
    %0 = vector.load %arg1[%c0, %c0_0] : memref<2x512xf32, #tpu.memory_space<vmem>>, vector<2x512xf32>
    %cst = arith.constant dense<0.000000e+00> : vector<512xf32>
    %1 = vector.multi_reduction <add>, %0, %cst [0] : vector<2x512xf32> to vector<512xf32>
    %2 = vector.shape_cast %1 : vector<512xf32> to vector<1x512xf32>
    %cst_1 = arith.constant 2.000000e+00 : f32
    %3 = vector.broadcast %cst_1 : f32 to vector<1x512xf32>
    %4 = arith.divf %2, %3 : vector<1x512xf32>
    %5 = vector.broadcast %4 : vector<1x512xf32> to vector<2x512xf32>
    %6 = arith.subf %0, %5 : vector<2x512xf32>
    %7 = arith.mulf %6, %6 : vector<2x512xf32>
    %cst_2 = arith.constant dense<0.000000e+00> : vector<512xf32>
    %8 = vector.multi_reduction <add>, %7, %cst_2 [0] : vector<2x512xf32> to vector<512xf32>
    %9 = vector.shape_cast %8 : vector<512xf32> to vector<1x512xf32>
    %cst_3 = arith.constant 2.000000e+00 : f32
    %10 = vector.broadcast %cst_3 : f32 to vector<1x512xf32>
    %11 = arith.divf %9, %10 : vector<1x512xf32>
    %12 = vector.broadcast %4 : vector<1x512xf32> to vector<2x512xf32>
    %13 = arith.subf %0, %12 : vector<2x512xf32>
    %cst_4 = arith.constant 9.99999974E-6 : f32
    %14 = vector.broadcast %cst_4 : f32 to vector<1x512xf32>
    %15 = arith.addf %11, %14 : vector<1x512xf32>
    %16 = math.rsqrt %15 : vector<1x512xf32>
    %17 = vector.broadcast %16 : vector<1x512xf32> to vector<2x512xf32>
    %18 = arith.mulf %13, %17 : vector<2x512xf32>
    %c0_5 = arith.constant 0 : index
    %c0_6 = arith.constant 0 : index
    %19 = vector.load %arg2[%c0_5, %c0_6] : memref<1x512xf32, #tpu.memory_space<vmem>>, vector<1x512xf32>
    %20 = vector.broadcast %19 : vector<1x512xf32> to vector<2x512xf32>
    %21 = arith.mulf %18, %20 : vector<2x512xf32>
    %c0_7 = arith.constant 0 : index
    %c0_8 = arith.constant 0 : index
    %22 = vector.load %arg3[%c0_7, %c0_8] : memref<1x512xf32, #tpu.memory_space<vmem>>, vector<1x512xf32>
    %23 = vector.broadcast %22 : vector<1x512xf32> to vector<2x512xf32>
    %24 = arith.addf %21, %23 : vector<2x512xf32>
    %cst_9 = arith.constant 0.000000e+00 : f32
    %25 = vector.broadcast %cst_9 : f32 to vector<2x512xf32>
    %26 = arith.maximumf %24, %25 : vector<2x512xf32>
    %27 = arith.truncf %26 : vector<2x512xf32> to vector<2x512xbf16>
    %c0_10 = arith.constant 0 : index
    %c0_11 = arith.constant 0 : index
    %28 = vector.load %arg4[%c0_10, %c0_11] : memref<2x512xbf16, #tpu.memory_space<vmem>>, vector<2x512xbf16>
    tpu.vector_store %arg4[%c0_10, %c0_11], %27 {strides = array<i32>} : memref<2x512xbf16, #tpu.memory_space<vmem>>, vector<2x512xbf16>,
    return
  }
  func.func @transform_0(%arg0: i32) -> (i32, i32) {
    %c0_i32 = arith.constant 0 : i32
    %c0_i32_0 = arith.constant 0 : i32
    return %c0_i32, %arg0 : i32, i32
  }
  func.func @transform_1(%arg0: i32) -> (i32, i32) {
    %c0_i32 = arith.constant 0 : i32
    %c0_i32_0 = arith.constant 0 : i32
    return %c0_i32, %arg0 : i32, i32
  }
  func.func @transform_2(%arg0: i32) -> (i32, i32) {
    %c0_i32 = arith.constant 0 : i32
    %c0_i32_0 = arith.constant 0 : i32
    return %c0_i32, %arg0 : i32, i32
  }
  func.func @transform_3(%arg0: i32) -> (i32, i32) {
    %c0_i32 = arith.constant 0 : i32
    %c0_i32_0 = arith.constant 0 : i32
    return %c0_i32, %arg0 : i32, i32
  }
}

module attributes {stable_mosaic.version = 11 : i64} {
  func.func @_gemm_kernel(%arg0: i32, %arg1: memref<64x1152xbf16, #tpu.memory_space<vmem>>, %arg2: memref<1152x32xbf16, #tpu.memory_space<vmem>>, %arg3: memref<64x32xf32, #tpu.memory_space<vmem>>) attributes {dimension_semantics = [#tpu.dimension_semantics<parallel>], iteration_bounds = array<i64: 1>, scalar_prefetch = 0 : i64, scratch_operands = 0 : i64, tpu.core_type = #tpu.core_type<tc>, window_params = [{pipeline_mode = #tpu.pipeline_mode<synchronous>, transform_indices = @transform_0, window_bounds = array<i64: 64, 1152>}, {transform_indices = @transform_1, window_bounds = array<i64: 1152, 32>}, {transform_indices = @transform_2, window_bounds = array<i64: 64, 32>}]} {
    %c0 = arith.constant 0 : index
    %c0_0 = arith.constant 0 : index
    %0 = vector.load %arg1[%c0, %c0_0] : memref<64x1152xbf16, #tpu.memory_space<vmem>>, vector<64x1152xbf16>
    %c0_1 = arith.constant 0 : index
    %c0_2 = arith.constant 0 : index
    %1 = vector.load %arg2[%c0_1, %c0_2] : memref<1152x32xbf16, #tpu.memory_space<vmem>>, vector<1152x32xbf16>
    %cst = arith.constant dense<0.000000e+00> : vector<64x32xf32>
    %2 = tpu.matmul %0, %1, %cst {dimension_numbers = #tpu.dot_dimension_numbers<[1], [0], [0], [1], [0, 0, 1, 1], [], []>} : vector<64x1152xbf16>, vector<1152x32xbf16>, vector<64x32xf32> -> vector<64x32xf32>
    %c0_3 = arith.constant 0 : index
    %c0_4 = arith.constant 0 : index
    %3 = vector.load %arg3[%c0_3, %c0_4] : memref<64x32xf32, #tpu.memory_space<vmem>>, vector<64x32xf32>
    tpu.vector_store %arg3[%c0_3, %c0_4], %2 {strides = array<i32>} : memref<64x32xf32, #tpu.memory_space<vmem>>, vector<64x32xf32>,
    return
  }
  func.func @transform_0(%arg0: i32) -> (i32, i32) {
    %c0_i32 = arith.constant 0 : i32
    %c0_i32_0 = arith.constant 0 : i32
    %c0_i32_1 = arith.constant 0 : i32
    return %c0_i32, %c0_i32_0 : i32, i32
  }
  func.func @transform_1(%arg0: i32) -> (i32, i32) {
    %c0_i32 = arith.constant 0 : i32
    %c0_i32_0 = arith.constant 0 : i32
    return %c0_i32, %arg0 : i32, i32
  }
  func.func @transform_2(%arg0: i32) -> (i32, i32) {
    %c0_i32 = arith.constant 0 : i32
    %c0_i32_0 = arith.constant 0 : i32
    return %c0_i32, %arg0 : i32, i32
  }
}

module attributes {stable_mosaic.version = 11 : i64} {
  func.func @_gemm_kernel(%arg0: i32, %arg1: memref<64x768xbf16, #tpu.memory_space<vmem>>, %arg2: memref<768x32xbf16, #tpu.memory_space<vmem>>, %arg3: memref<64x32xf32, #tpu.memory_space<vmem>>) attributes {dimension_semantics = [#tpu.dimension_semantics<parallel>], iteration_bounds = array<i64: 1>, scalar_prefetch = 0 : i64, scratch_operands = 0 : i64, tpu.core_type = #tpu.core_type<tc>, window_params = [{pipeline_mode = #tpu.pipeline_mode<synchronous>, transform_indices = @transform_0, window_bounds = array<i64: 64, 768>}, {transform_indices = @transform_1, window_bounds = array<i64: 768, 32>}, {transform_indices = @transform_2, window_bounds = array<i64: 64, 32>}]} {
    %c0 = arith.constant 0 : index
    %c0_0 = arith.constant 0 : index
    %0 = vector.load %arg1[%c0, %c0_0] : memref<64x768xbf16, #tpu.memory_space<vmem>>, vector<64x768xbf16>
    %c0_1 = arith.constant 0 : index
    %c0_2 = arith.constant 0 : index
    %1 = vector.load %arg2[%c0_1, %c0_2] : memref<768x32xbf16, #tpu.memory_space<vmem>>, vector<768x32xbf16>
    %cst = arith.constant dense<0.000000e+00> : vector<64x32xf32>
    %2 = tpu.matmul %0, %1, %cst {dimension_numbers = #tpu.dot_dimension_numbers<[1], [0], [0], [1], [0, 0, 1, 1], [], []>} : vector<64x768xbf16>, vector<768x32xbf16>, vector<64x32xf32> -> vector<64x32xf32>
    %c0_3 = arith.constant 0 : index
    %c0_4 = arith.constant 0 : index
    %3 = vector.load %arg3[%c0_3, %c0_4] : memref<64x32xf32, #tpu.memory_space<vmem>>, vector<64x32xf32>
    tpu.vector_store %arg3[%c0_3, %c0_4], %2 {strides = array<i32>} : memref<64x32xf32, #tpu.memory_space<vmem>>, vector<64x32xf32>,
    return
  }
  func.func @transform_0(%arg0: i32) -> (i32, i32) {
    %c0_i32 = arith.constant 0 : i32
    %c0_i32_0 = arith.constant 0 : i32
    %c0_i32_1 = arith.constant 0 : i32
    return %c0_i32, %c0_i32_0 : i32, i32
  }
  func.func @transform_1(%arg0: i32) -> (i32, i32) {
    %c0_i32 = arith.constant 0 : i32
    %c0_i32_0 = arith.constant 0 : i32
    return %c0_i32, %arg0 : i32, i32
  }
  func.func @transform_2(%arg0: i32) -> (i32, i32) {
    %c0_i32 = arith.constant 0 : i32
    %c0_i32_0 = arith.constant 0 : i32
    return %c0_i32, %arg0 : i32, i32
  }
}

module attributes {stable_mosaic.version = 11 : i64} {
  func.func @_gemm_kernel(%arg0: i32, %arg1: memref<64x512xbf16, #tpu.memory_space<vmem>>, %arg2: memref<512x32xbf16, #tpu.memory_space<vmem>>, %arg3: memref<64x32xf32, #tpu.memory_space<vmem>>) attributes {dimension_semantics = [#tpu.dimension_semantics<parallel>], iteration_bounds = array<i64: 1>, scalar_prefetch = 0 : i64, scratch_operands = 0 : i64, tpu.core_type = #tpu.core_type<tc>, window_params = [{pipeline_mode = #tpu.pipeline_mode<synchronous>, transform_indices = @transform_0, window_bounds = array<i64: 64, 512>}, {transform_indices = @transform_1, window_bounds = array<i64: 512, 32>}, {transform_indices = @transform_2, window_bounds = array<i64: 64, 32>}]} {
    %c0 = arith.constant 0 : index
    %c0_0 = arith.constant 0 : index
    %0 = vector.load %arg1[%c0, %c0_0] : memref<64x512xbf16, #tpu.memory_space<vmem>>, vector<64x512xbf16>
    %c0_1 = arith.constant 0 : index
    %c0_2 = arith.constant 0 : index
    %1 = vector.load %arg2[%c0_1, %c0_2] : memref<512x32xbf16, #tpu.memory_space<vmem>>, vector<512x32xbf16>
    %cst = arith.constant dense<0.000000e+00> : vector<64x32xf32>
    %2 = tpu.matmul %0, %1, %cst {dimension_numbers = #tpu.dot_dimension_numbers<[1], [0], [0], [1], [0, 0, 1, 1], [], []>} : vector<64x512xbf16>, vector<512x32xbf16>, vector<64x32xf32> -> vector<64x32xf32>
    %c0_3 = arith.constant 0 : index
    %c0_4 = arith.constant 0 : index
    %3 = vector.load %arg3[%c0_3, %c0_4] : memref<64x32xf32, #tpu.memory_space<vmem>>, vector<64x32xf32>
    tpu.vector_store %arg3[%c0_3, %c0_4], %2 {strides = array<i32>} : memref<64x32xf32, #tpu.memory_space<vmem>>, vector<64x32xf32>,
    return
  }
  func.func @transform_0(%arg0: i32) -> (i32, i32) {
    %c0_i32 = arith.constant 0 : i32
    %c0_i32_0 = arith.constant 0 : i32
    %c0_i32_1 = arith.constant 0 : i32
    return %c0_i32, %c0_i32_0 : i32, i32
  }
  func.func @transform_1(%arg0: i32) -> (i32, i32) {
    %c0_i32 = arith.constant 0 : i32
    %c0_i32_0 = arith.constant 0 : i32
    return %c0_i32, %arg0 : i32, i32
  }
  func.func @transform_2(%arg0: i32) -> (i32, i32) {
    %c0_i32 = arith.constant 0 : i32
    %c0_i32_0 = arith.constant 0 : i32
    return %c0_i32, %arg0 : i32, i32
  }
}

module attributes {stable_mosaic.version = 11 : i64} {
  func.func @_bn_stats_kernel(%arg0: i32, %arg1: memref<64x128xf32, #tpu.memory_space<vmem>>, %arg2: memref<64x1xf32, #tpu.memory_space<vmem>>, %arg3: memref<64x1xf32, #tpu.memory_space<vmem>>) attributes {dimension_semantics = [#tpu.dimension_semantics<arbitrary>], iteration_bounds = array<i64: 1>, scalar_prefetch = 0 : i64, scratch_operands = 0 : i64, tpu.core_type = #tpu.core_type<tc>, window_params = [{transform_indices = @transform_0, window_bounds = array<i64: 64, 128>}, {pipeline_mode = #tpu.pipeline_mode<synchronous>, transform_indices = @transform_1, window_bounds = array<i64: 64, 1>}, {pipeline_mode = #tpu.pipeline_mode<synchronous>, transform_indices = @transform_2, window_bounds = array<i64: 64, 1>}]} {
    %c0_i32 = arith.constant 0 : i32
    %0 = arith.cmpi eq, %arg0, %c0_i32 : i32
    %1 = arith.extui %0 : i1 to i32
    %c0_i32_0 = arith.constant 0 : i32
    %2 = arith.cmpi ne, %1, %c0_i32_0 : i32
    scf.if %2 {
      %cst_11 = arith.constant 0.000000e+00 : f32
      %15 = vector.broadcast %cst_11 : f32 to vector<64x1xf32>
      %c0_12 = arith.constant 0 : index
      %c0_13 = arith.constant 0 : index
      %16 = vector.load %arg2[%c0_12, %c0_13] : memref<64x1xf32, #tpu.memory_space<vmem>>, vector<64x1xf32>
      tpu.vector_store %arg2[%c0_12, %c0_13], %15 {strides = array<i32>} : memref<64x1xf32, #tpu.memory_space<vmem>>, vector<64x1xf32>,
      %cst_14 = arith.constant 0.000000e+00 : f32
      %17 = vector.broadcast %cst_14 : f32 to vector<64x1xf32>
      %c0_15 = arith.constant 0 : index
      %c0_16 = arith.constant 0 : index
      %18 = vector.load %arg3[%c0_15, %c0_16] : memref<64x1xf32, #tpu.memory_space<vmem>>, vector<64x1xf32>
      tpu.vector_store %arg3[%c0_15, %c0_16], %17 {strides = array<i32>} : memref<64x1xf32, #tpu.memory_space<vmem>>, vector<64x1xf32>,
    } else {
    }
    %c0 = arith.constant 0 : index
    %c0_1 = arith.constant 0 : index
    %3 = vector.load %arg1[%c0, %c0_1] : memref<64x128xf32, #tpu.memory_space<vmem>>, vector<64x128xf32>
    %c0_2 = arith.constant 0 : index
    %c0_3 = arith.constant 0 : index
    %4 = vector.load %arg2[%c0_2, %c0_3] : memref<64x1xf32, #tpu.memory_space<vmem>>, vector<64x1xf32>
    %cst = arith.constant dense<0.000000e+00> : vector<64xf32>
    %5 = vector.multi_reduction <add>, %3, %cst [1] : vector<64x128xf32> to vector<64xf32>
    %6 = vector.shape_cast %5 : vector<64xf32> to vector<64x1xf32>
    %7 = arith.addf %4, %6 : vector<64x1xf32>
    %c0_4 = arith.constant 0 : index
    %c0_5 = arith.constant 0 : index
    %8 = vector.load %arg2[%c0_4, %c0_5] : memref<64x1xf32, #tpu.memory_space<vmem>>, vector<64x1xf32>
    tpu.vector_store %arg2[%c0_4, %c0_5], %7 {strides = array<i32>} : memref<64x1xf32, #tpu.memory_space<vmem>>, vector<64x1xf32>,
    %c0_6 = arith.constant 0 : index
    %c0_7 = arith.constant 0 : index
    %9 = vector.load %arg3[%c0_6, %c0_7] : memref<64x1xf32, #tpu.memory_space<vmem>>, vector<64x1xf32>
    %10 = arith.mulf %3, %3 : vector<64x128xf32>
    %cst_8 = arith.constant dense<0.000000e+00> : vector<64xf32>
    %11 = vector.multi_reduction <add>, %10, %cst_8 [1] : vector<64x128xf32> to vector<64xf32>
    %12 = vector.shape_cast %11 : vector<64xf32> to vector<64x1xf32>
    %13 = arith.addf %9, %12 : vector<64x1xf32>
    %c0_9 = arith.constant 0 : index
    %c0_10 = arith.constant 0 : index
    %14 = vector.load %arg3[%c0_9, %c0_10] : memref<64x1xf32, #tpu.memory_space<vmem>>, vector<64x1xf32>
    tpu.vector_store %arg3[%c0_9, %c0_10], %13 {strides = array<i32>} : memref<64x1xf32, #tpu.memory_space<vmem>>, vector<64x1xf32>,
    return
  }
  func.func @transform_0(%arg0: i32) -> (i32, i32) {
    %c0_i32 = arith.constant 0 : i32
    %c0_i32_0 = arith.constant 0 : i32
    return %c0_i32, %arg0 : i32, i32
  }
  func.func @transform_1(%arg0: i32) -> (i32, i32) {
    %c0_i32 = arith.constant 0 : i32
    %c0_i32_0 = arith.constant 0 : i32
    %c0_i32_1 = arith.constant 0 : i32
    return %c0_i32, %c0_i32_0 : i32, i32
  }
  func.func @transform_2(%arg0: i32) -> (i32, i32) {
    %c0_i32 = arith.constant 0 : i32
    %c0_i32_0 = arith.constant 0 : i32
    %c0_i32_1 = arith.constant 0 : i32
    return %c0_i32, %c0_i32_0 : i32, i32
  }
}

module attributes {stable_mosaic.version = 11 : i64} {
  func.func @_affine_relu_kernel(%arg0: i32, %arg1: memref<64x128xf32, #tpu.memory_space<vmem>>, %arg2: memref<64x1xf32, #tpu.memory_space<vmem>>, %arg3: memref<64x1xf32, #tpu.memory_space<vmem>>, %arg4: memref<64x128xbf16, #tpu.memory_space<vmem>>) attributes {dimension_semantics = [#tpu.dimension_semantics<parallel>], iteration_bounds = array<i64: 1>, scalar_prefetch = 0 : i64, scratch_operands = 0 : i64, tpu.core_type = #tpu.core_type<tc>, window_params = [{transform_indices = @transform_0, window_bounds = array<i64: 64, 128>}, {pipeline_mode = #tpu.pipeline_mode<synchronous>, transform_indices = @transform_1, window_bounds = array<i64: 64, 1>}, {pipeline_mode = #tpu.pipeline_mode<synchronous>, transform_indices = @transform_2, window_bounds = array<i64: 64, 1>}, {transform_indices = @transform_3, window_bounds = array<i64: 64, 128>}]} {
    %c0 = arith.constant 0 : index
    %c0_0 = arith.constant 0 : index
    %0 = vector.load %arg1[%c0, %c0_0] : memref<64x128xf32, #tpu.memory_space<vmem>>, vector<64x128xf32>
    %c0_1 = arith.constant 0 : index
    %c0_2 = arith.constant 0 : index
    %1 = vector.load %arg2[%c0_1, %c0_2] : memref<64x1xf32, #tpu.memory_space<vmem>>, vector<64x1xf32>
    %2 = vector.broadcast %1 : vector<64x1xf32> to vector<64x128xf32>
    %3 = arith.mulf %0, %2 : vector<64x128xf32>
    %c0_3 = arith.constant 0 : index
    %c0_4 = arith.constant 0 : index
    %4 = vector.load %arg3[%c0_3, %c0_4] : memref<64x1xf32, #tpu.memory_space<vmem>>, vector<64x1xf32>
    %5 = vector.broadcast %4 : vector<64x1xf32> to vector<64x128xf32>
    %6 = arith.addf %3, %5 : vector<64x128xf32>
    %cst = arith.constant 0.000000e+00 : f32
    %7 = vector.broadcast %cst : f32 to vector<64x128xf32>
    %8 = arith.maximumf %6, %7 : vector<64x128xf32>
    %9 = arith.truncf %8 : vector<64x128xf32> to vector<64x128xbf16>
    %c0_5 = arith.constant 0 : index
    %c0_6 = arith.constant 0 : index
    %10 = vector.load %arg4[%c0_5, %c0_6] : memref<64x128xbf16, #tpu.memory_space<vmem>>, vector<64x128xbf16>
    tpu.vector_store %arg4[%c0_5, %c0_6], %9 {strides = array<i32>} : memref<64x128xbf16, #tpu.memory_space<vmem>>, vector<64x128xbf16>,
    return
  }
  func.func @transform_0(%arg0: i32) -> (i32, i32) {
    %c0_i32 = arith.constant 0 : i32
    %c0_i32_0 = arith.constant 0 : i32
    return %c0_i32, %arg0 : i32, i32
  }
  func.func @transform_1(%arg0: i32) -> (i32, i32) {
    %c0_i32 = arith.constant 0 : i32
    %c0_i32_0 = arith.constant 0 : i32
    %c0_i32_1 = arith.constant 0 : i32
    return %c0_i32, %c0_i32_0 : i32, i32
  }
  func.func @transform_2(%arg0: i32) -> (i32, i32) {
    %c0_i32 = arith.constant 0 : i32
    %c0_i32_0 = arith.constant 0 : i32
    %c0_i32_1 = arith.constant 0 : i32
    return %c0_i32, %c0_i32_0 : i32, i32
  }
  func.func @transform_3(%arg0: i32) -> (i32, i32) {
    %c0_i32 = arith.constant 0 : i32
    %c0_i32_0 = arith.constant 0 : i32
    return %c0_i32, %arg0 : i32, i32
  }
}

module attributes {stable_mosaic.version = 11 : i64} {
  func.func @_gemm_kernel(%arg0: i32, %arg1: memref<32x576xbf16, #tpu.memory_space<vmem>>, %arg2: memref<576x128xbf16, #tpu.memory_space<vmem>>, %arg3: memref<32x128xf32, #tpu.memory_space<vmem>>) attributes {dimension_semantics = [#tpu.dimension_semantics<parallel>], iteration_bounds = array<i64: 1>, scalar_prefetch = 0 : i64, scratch_operands = 0 : i64, tpu.core_type = #tpu.core_type<tc>, window_params = [{pipeline_mode = #tpu.pipeline_mode<synchronous>, transform_indices = @transform_0, window_bounds = array<i64: 32, 576>}, {transform_indices = @transform_1, window_bounds = array<i64: 576, 128>}, {transform_indices = @transform_2, window_bounds = array<i64: 32, 128>}]} {
    %c0 = arith.constant 0 : index
    %c0_0 = arith.constant 0 : index
    %0 = vector.load %arg1[%c0, %c0_0] : memref<32x576xbf16, #tpu.memory_space<vmem>>, vector<32x576xbf16>
    %c0_1 = arith.constant 0 : index
    %c0_2 = arith.constant 0 : index
    %1 = vector.load %arg2[%c0_1, %c0_2] : memref<576x128xbf16, #tpu.memory_space<vmem>>, vector<576x128xbf16>
    %cst = arith.constant dense<0.000000e+00> : vector<32x128xf32>
    %2 = tpu.matmul %0, %1, %cst {dimension_numbers = #tpu.dot_dimension_numbers<[1], [0], [0], [1], [0, 0, 1, 1], [], []>} : vector<32x576xbf16>, vector<576x128xbf16>, vector<32x128xf32> -> vector<32x128xf32>
    %c0_3 = arith.constant 0 : index
    %c0_4 = arith.constant 0 : index
    %3 = vector.load %arg3[%c0_3, %c0_4] : memref<32x128xf32, #tpu.memory_space<vmem>>, vector<32x128xf32>
    tpu.vector_store %arg3[%c0_3, %c0_4], %2 {strides = array<i32>} : memref<32x128xf32, #tpu.memory_space<vmem>>, vector<32x128xf32>,
    return
  }
  func.func @transform_0(%arg0: i32) -> (i32, i32) {
    %c0_i32 = arith.constant 0 : i32
    %c0_i32_0 = arith.constant 0 : i32
    %c0_i32_1 = arith.constant 0 : i32
    return %c0_i32, %c0_i32_0 : i32, i32
  }
  func.func @transform_1(%arg0: i32) -> (i32, i32) {
    %c0_i32 = arith.constant 0 : i32
    %c0_i32_0 = arith.constant 0 : i32
    return %c0_i32, %arg0 : i32, i32
  }
  func.func @transform_2(%arg0: i32) -> (i32, i32) {
    %c0_i32 = arith.constant 0 : i32
    %c0_i32_0 = arith.constant 0 : i32
    return %c0_i32, %arg0 : i32, i32
  }
}

module attributes {stable_mosaic.version = 11 : i64} {
  func.func @_gemm_kernel(%arg0: i32, %arg1: memref<32x384xbf16, #tpu.memory_space<vmem>>, %arg2: memref<384x128xbf16, #tpu.memory_space<vmem>>, %arg3: memref<32x128xf32, #tpu.memory_space<vmem>>) attributes {dimension_semantics = [#tpu.dimension_semantics<parallel>], iteration_bounds = array<i64: 1>, scalar_prefetch = 0 : i64, scratch_operands = 0 : i64, tpu.core_type = #tpu.core_type<tc>, window_params = [{pipeline_mode = #tpu.pipeline_mode<synchronous>, transform_indices = @transform_0, window_bounds = array<i64: 32, 384>}, {transform_indices = @transform_1, window_bounds = array<i64: 384, 128>}, {transform_indices = @transform_2, window_bounds = array<i64: 32, 128>}]} {
    %c0 = arith.constant 0 : index
    %c0_0 = arith.constant 0 : index
    %0 = vector.load %arg1[%c0, %c0_0] : memref<32x384xbf16, #tpu.memory_space<vmem>>, vector<32x384xbf16>
    %c0_1 = arith.constant 0 : index
    %c0_2 = arith.constant 0 : index
    %1 = vector.load %arg2[%c0_1, %c0_2] : memref<384x128xbf16, #tpu.memory_space<vmem>>, vector<384x128xbf16>
    %cst = arith.constant dense<0.000000e+00> : vector<32x128xf32>
    %2 = tpu.matmul %0, %1, %cst {dimension_numbers = #tpu.dot_dimension_numbers<[1], [0], [0], [1], [0, 0, 1, 1], [], []>} : vector<32x384xbf16>, vector<384x128xbf16>, vector<32x128xf32> -> vector<32x128xf32>
    %c0_3 = arith.constant 0 : index
    %c0_4 = arith.constant 0 : index
    %3 = vector.load %arg3[%c0_3, %c0_4] : memref<32x128xf32, #tpu.memory_space<vmem>>, vector<32x128xf32>
    tpu.vector_store %arg3[%c0_3, %c0_4], %2 {strides = array<i32>} : memref<32x128xf32, #tpu.memory_space<vmem>>, vector<32x128xf32>,
    return
  }
  func.func @transform_0(%arg0: i32) -> (i32, i32) {
    %c0_i32 = arith.constant 0 : i32
    %c0_i32_0 = arith.constant 0 : i32
    %c0_i32_1 = arith.constant 0 : i32
    return %c0_i32, %c0_i32_0 : i32, i32
  }
  func.func @transform_1(%arg0: i32) -> (i32, i32) {
    %c0_i32 = arith.constant 0 : i32
    %c0_i32_0 = arith.constant 0 : i32
    return %c0_i32, %arg0 : i32, i32
  }
  func.func @transform_2(%arg0: i32) -> (i32, i32) {
    %c0_i32 = arith.constant 0 : i32
    %c0_i32_0 = arith.constant 0 : i32
    return %c0_i32, %arg0 : i32, i32
  }
}

module attributes {stable_mosaic.version = 11 : i64} {
  func.func @_gemm_kernel(%arg0: i32, %arg1: memref<32x256xbf16, #tpu.memory_space<vmem>>, %arg2: memref<256x128xbf16, #tpu.memory_space<vmem>>, %arg3: memref<32x128xf32, #tpu.memory_space<vmem>>) attributes {dimension_semantics = [#tpu.dimension_semantics<parallel>], iteration_bounds = array<i64: 1>, scalar_prefetch = 0 : i64, scratch_operands = 0 : i64, tpu.core_type = #tpu.core_type<tc>, window_params = [{pipeline_mode = #tpu.pipeline_mode<synchronous>, transform_indices = @transform_0, window_bounds = array<i64: 32, 256>}, {transform_indices = @transform_1, window_bounds = array<i64: 256, 128>}, {transform_indices = @transform_2, window_bounds = array<i64: 32, 128>}]} {
    %c0 = arith.constant 0 : index
    %c0_0 = arith.constant 0 : index
    %0 = vector.load %arg1[%c0, %c0_0] : memref<32x256xbf16, #tpu.memory_space<vmem>>, vector<32x256xbf16>
    %c0_1 = arith.constant 0 : index
    %c0_2 = arith.constant 0 : index
    %1 = vector.load %arg2[%c0_1, %c0_2] : memref<256x128xbf16, #tpu.memory_space<vmem>>, vector<256x128xbf16>
    %cst = arith.constant dense<0.000000e+00> : vector<32x128xf32>
    %2 = tpu.matmul %0, %1, %cst {dimension_numbers = #tpu.dot_dimension_numbers<[1], [0], [0], [1], [0, 0, 1, 1], [], []>} : vector<32x256xbf16>, vector<256x128xbf16>, vector<32x128xf32> -> vector<32x128xf32>
    %c0_3 = arith.constant 0 : index
    %c0_4 = arith.constant 0 : index
    %3 = vector.load %arg3[%c0_3, %c0_4] : memref<32x128xf32, #tpu.memory_space<vmem>>, vector<32x128xf32>
    tpu.vector_store %arg3[%c0_3, %c0_4], %2 {strides = array<i32>} : memref<32x128xf32, #tpu.memory_space<vmem>>, vector<32x128xf32>,
    return
  }
  func.func @transform_0(%arg0: i32) -> (i32, i32) {
    %c0_i32 = arith.constant 0 : i32
    %c0_i32_0 = arith.constant 0 : i32
    %c0_i32_1 = arith.constant 0 : i32
    return %c0_i32, %c0_i32_0 : i32, i32
  }
  func.func @transform_1(%arg0: i32) -> (i32, i32) {
    %c0_i32 = arith.constant 0 : i32
    %c0_i32_0 = arith.constant 0 : i32
    return %c0_i32, %arg0 : i32, i32
  }
  func.func @transform_2(%arg0: i32) -> (i32, i32) {
    %c0_i32 = arith.constant 0 : i32
    %c0_i32_0 = arith.constant 0 : i32
    return %c0_i32, %arg0 : i32, i32
  }
}

module attributes {stable_mosaic.version = 11 : i64} {
  func.func @_bn_stats_kernel(%arg0: i32, %arg1: memref<32x256xf32, #tpu.memory_space<vmem>>, %arg2: memref<32x1xf32, #tpu.memory_space<vmem>>, %arg3: memref<32x1xf32, #tpu.memory_space<vmem>>) attributes {dimension_semantics = [#tpu.dimension_semantics<arbitrary>], iteration_bounds = array<i64: 2>, scalar_prefetch = 0 : i64, scratch_operands = 0 : i64, tpu.core_type = #tpu.core_type<tc>, window_params = [{transform_indices = @transform_0, window_bounds = array<i64: 32, 256>}, {pipeline_mode = #tpu.pipeline_mode<synchronous>, transform_indices = @transform_1, window_bounds = array<i64: 32, 1>}, {pipeline_mode = #tpu.pipeline_mode<synchronous>, transform_indices = @transform_2, window_bounds = array<i64: 32, 1>}]} {
    %c0_i32 = arith.constant 0 : i32
    %0 = arith.cmpi eq, %arg0, %c0_i32 : i32
    %1 = arith.extui %0 : i1 to i32
    %c0_i32_0 = arith.constant 0 : i32
    %2 = arith.cmpi ne, %1, %c0_i32_0 : i32
    scf.if %2 {
      %cst_11 = arith.constant 0.000000e+00 : f32
      %15 = vector.broadcast %cst_11 : f32 to vector<32x1xf32>
      %c0_12 = arith.constant 0 : index
      %c0_13 = arith.constant 0 : index
      %16 = vector.load %arg2[%c0_12, %c0_13] : memref<32x1xf32, #tpu.memory_space<vmem>>, vector<32x1xf32>
      tpu.vector_store %arg2[%c0_12, %c0_13], %15 {strides = array<i32>} : memref<32x1xf32, #tpu.memory_space<vmem>>, vector<32x1xf32>,
      %cst_14 = arith.constant 0.000000e+00 : f32
      %17 = vector.broadcast %cst_14 : f32 to vector<32x1xf32>
      %c0_15 = arith.constant 0 : index
      %c0_16 = arith.constant 0 : index
      %18 = vector.load %arg3[%c0_15, %c0_16] : memref<32x1xf32, #tpu.memory_space<vmem>>, vector<32x1xf32>
      tpu.vector_store %arg3[%c0_15, %c0_16], %17 {strides = array<i32>} : memref<32x1xf32, #tpu.memory_space<vmem>>, vector<32x1xf32>,
    } else {
    }
    %c0 = arith.constant 0 : index
    %c0_1 = arith.constant 0 : index
    %3 = vector.load %arg1[%c0, %c0_1] : memref<32x256xf32, #tpu.memory_space<vmem>>, vector<32x256xf32>
    %c0_2 = arith.constant 0 : index
    %c0_3 = arith.constant 0 : index
    %4 = vector.load %arg2[%c0_2, %c0_3] : memref<32x1xf32, #tpu.memory_space<vmem>>, vector<32x1xf32>
    %cst = arith.constant dense<0.000000e+00> : vector<32xf32>
    %5 = vector.multi_reduction <add>, %3, %cst [1] : vector<32x256xf32> to vector<32xf32>
    %6 = vector.shape_cast %5 : vector<32xf32> to vector<32x1xf32>
    %7 = arith.addf %4, %6 : vector<32x1xf32>
    %c0_4 = arith.constant 0 : index
    %c0_5 = arith.constant 0 : index
    %8 = vector.load %arg2[%c0_4, %c0_5] : memref<32x1xf32, #tpu.memory_space<vmem>>, vector<32x1xf32>
    tpu.vector_store %arg2[%c0_4, %c0_5], %7 {strides = array<i32>} : memref<32x1xf32, #tpu.memory_space<vmem>>, vector<32x1xf32>,
    %c0_6 = arith.constant 0 : index
    %c0_7 = arith.constant 0 : index
    %9 = vector.load %arg3[%c0_6, %c0_7] : memref<32x1xf32, #tpu.memory_space<vmem>>, vector<32x1xf32>
    %10 = arith.mulf %3, %3 : vector<32x256xf32>
    %cst_8 = arith.constant dense<0.000000e+00> : vector<32xf32>
    %11 = vector.multi_reduction <add>, %10, %cst_8 [1] : vector<32x256xf32> to vector<32xf32>
    %12 = vector.shape_cast %11 : vector<32xf32> to vector<32x1xf32>
    %13 = arith.addf %9, %12 : vector<32x1xf32>
    %c0_9 = arith.constant 0 : index
    %c0_10 = arith.constant 0 : index
    %14 = vector.load %arg3[%c0_9, %c0_10] : memref<32x1xf32, #tpu.memory_space<vmem>>, vector<32x1xf32>
    tpu.vector_store %arg3[%c0_9, %c0_10], %13 {strides = array<i32>} : memref<32x1xf32, #tpu.memory_space<vmem>>, vector<32x1xf32>,
    return
  }
  func.func @transform_0(%arg0: i32) -> (i32, i32) {
    %c0_i32 = arith.constant 0 : i32
    %c0_i32_0 = arith.constant 0 : i32
    return %c0_i32, %arg0 : i32, i32
  }
  func.func @transform_1(%arg0: i32) -> (i32, i32) {
    %c0_i32 = arith.constant 0 : i32
    %c0_i32_0 = arith.constant 0 : i32
    %c0_i32_1 = arith.constant 0 : i32
    return %c0_i32, %c0_i32_0 : i32, i32
  }
  func.func @transform_2(%arg0: i32) -> (i32, i32) {
    %c0_i32 = arith.constant 0 : i32
    %c0_i32_0 = arith.constant 0 : i32
    %c0_i32_1 = arith.constant 0 : i32
    return %c0_i32, %c0_i32_0 : i32, i32
  }
}

module attributes {stable_mosaic.version = 11 : i64} {
  func.func @_affine_relu_kernel(%arg0: i32, %arg1: memref<32x256xf32, #tpu.memory_space<vmem>>, %arg2: memref<32x1xf32, #tpu.memory_space<vmem>>, %arg3: memref<32x1xf32, #tpu.memory_space<vmem>>, %arg4: memref<32x256xbf16, #tpu.memory_space<vmem>>) attributes {dimension_semantics = [#tpu.dimension_semantics<parallel>], iteration_bounds = array<i64: 2>, scalar_prefetch = 0 : i64, scratch_operands = 0 : i64, tpu.core_type = #tpu.core_type<tc>, window_params = [{transform_indices = @transform_0, window_bounds = array<i64: 32, 256>}, {pipeline_mode = #tpu.pipeline_mode<synchronous>, transform_indices = @transform_1, window_bounds = array<i64: 32, 1>}, {pipeline_mode = #tpu.pipeline_mode<synchronous>, transform_indices = @transform_2, window_bounds = array<i64: 32, 1>}, {transform_indices = @transform_3, window_bounds = array<i64: 32, 256>}]} {
    %c0 = arith.constant 0 : index
    %c0_0 = arith.constant 0 : index
    %0 = vector.load %arg1[%c0, %c0_0] : memref<32x256xf32, #tpu.memory_space<vmem>>, vector<32x256xf32>
    %c0_1 = arith.constant 0 : index
    %c0_2 = arith.constant 0 : index
    %1 = vector.load %arg2[%c0_1, %c0_2] : memref<32x1xf32, #tpu.memory_space<vmem>>, vector<32x1xf32>
    %2 = vector.broadcast %1 : vector<32x1xf32> to vector<32x256xf32>
    %3 = arith.mulf %0, %2 : vector<32x256xf32>
    %c0_3 = arith.constant 0 : index
    %c0_4 = arith.constant 0 : index
    %4 = vector.load %arg3[%c0_3, %c0_4] : memref<32x1xf32, #tpu.memory_space<vmem>>, vector<32x1xf32>
    %5 = vector.broadcast %4 : vector<32x1xf32> to vector<32x256xf32>
    %6 = arith.addf %3, %5 : vector<32x256xf32>
    %cst = arith.constant 0.000000e+00 : f32
    %7 = vector.broadcast %cst : f32 to vector<32x256xf32>
    %8 = arith.maximumf %6, %7 : vector<32x256xf32>
    %9 = arith.truncf %8 : vector<32x256xf32> to vector<32x256xbf16>
    %c0_5 = arith.constant 0 : index
    %c0_6 = arith.constant 0 : index
    %10 = vector.load %arg4[%c0_5, %c0_6] : memref<32x256xbf16, #tpu.memory_space<vmem>>, vector<32x256xbf16>
    tpu.vector_store %arg4[%c0_5, %c0_6], %9 {strides = array<i32>} : memref<32x256xbf16, #tpu.memory_space<vmem>>, vector<32x256xbf16>,
    return
  }
  func.func @transform_0(%arg0: i32) -> (i32, i32) {
    %c0_i32 = arith.constant 0 : i32
    %c0_i32_0 = arith.constant 0 : i32
    return %c0_i32, %arg0 : i32, i32
  }
  func.func @transform_1(%arg0: i32) -> (i32, i32) {
    %c0_i32 = arith.constant 0 : i32
    %c0_i32_0 = arith.constant 0 : i32
    %c0_i32_1 = arith.constant 0 : i32
    return %c0_i32, %c0_i32_0 : i32, i32
  }
  func.func @transform_2(%arg0: i32) -> (i32, i32) {
    %c0_i32 = arith.constant 0 : i32
    %c0_i32_0 = arith.constant 0 : i32
    %c0_i32_1 = arith.constant 0 : i32
    return %c0_i32, %c0_i32_0 : i32, i32
  }
  func.func @transform_3(%arg0: i32) -> (i32, i32) {
    %c0_i32 = arith.constant 0 : i32
    %c0_i32_0 = arith.constant 0 : i32
    return %c0_i32, %arg0 : i32, i32
  }
}

module attributes {stable_mosaic.version = 11 : i64} {
  func.func @_gemm_kernel(%arg0: i32, %arg1: memref<16x288xbf16, #tpu.memory_space<vmem>>, %arg2: memref<288x256xbf16, #tpu.memory_space<vmem>>, %arg3: memref<16x256xf32, #tpu.memory_space<vmem>>) attributes {dimension_semantics = [#tpu.dimension_semantics<parallel>], iteration_bounds = array<i64: 2>, scalar_prefetch = 0 : i64, scratch_operands = 0 : i64, tpu.core_type = #tpu.core_type<tc>, window_params = [{pipeline_mode = #tpu.pipeline_mode<synchronous>, transform_indices = @transform_0, window_bounds = array<i64: 16, 288>}, {transform_indices = @transform_1, window_bounds = array<i64: 288, 256>}, {transform_indices = @transform_2, window_bounds = array<i64: 16, 256>}]} {
    %c0 = arith.constant 0 : index
    %c0_0 = arith.constant 0 : index
    %0 = vector.load %arg1[%c0, %c0_0] : memref<16x288xbf16, #tpu.memory_space<vmem>>, vector<16x288xbf16>
    %c0_1 = arith.constant 0 : index
    %c0_2 = arith.constant 0 : index
    %1 = vector.load %arg2[%c0_1, %c0_2] : memref<288x256xbf16, #tpu.memory_space<vmem>>, vector<288x256xbf16>
    %cst = arith.constant dense<0.000000e+00> : vector<16x256xf32>
    %2 = tpu.matmul %0, %1, %cst {dimension_numbers = #tpu.dot_dimension_numbers<[1], [0], [0], [1], [0, 0, 1, 1], [], []>} : vector<16x288xbf16>, vector<288x256xbf16>, vector<16x256xf32> -> vector<16x256xf32>
    %c0_3 = arith.constant 0 : index
    %c0_4 = arith.constant 0 : index
    %3 = vector.load %arg3[%c0_3, %c0_4] : memref<16x256xf32, #tpu.memory_space<vmem>>, vector<16x256xf32>
    tpu.vector_store %arg3[%c0_3, %c0_4], %2 {strides = array<i32>} : memref<16x256xf32, #tpu.memory_space<vmem>>, vector<16x256xf32>,
    return
  }
  func.func @transform_0(%arg0: i32) -> (i32, i32) {
    %c0_i32 = arith.constant 0 : i32
    %c0_i32_0 = arith.constant 0 : i32
    %c0_i32_1 = arith.constant 0 : i32
    return %c0_i32, %c0_i32_0 : i32, i32
  }
  func.func @transform_1(%arg0: i32) -> (i32, i32) {
    %c0_i32 = arith.constant 0 : i32
    %c0_i32_0 = arith.constant 0 : i32
    return %c0_i32, %arg0 : i32, i32
  }
  func.func @transform_2(%arg0: i32) -> (i32, i32) {
    %c0_i32 = arith.constant 0 : i32
    %c0_i32_0 = arith.constant 0 : i32
    return %c0_i32, %arg0 : i32, i32
  }
}

module attributes {stable_mosaic.version = 11 : i64} {
  func.func @_gemm_kernel(%arg0: i32, %arg1: memref<16x192xbf16, #tpu.memory_space<vmem>>, %arg2: memref<192x256xbf16, #tpu.memory_space<vmem>>, %arg3: memref<16x256xf32, #tpu.memory_space<vmem>>) attributes {dimension_semantics = [#tpu.dimension_semantics<parallel>], iteration_bounds = array<i64: 2>, scalar_prefetch = 0 : i64, scratch_operands = 0 : i64, tpu.core_type = #tpu.core_type<tc>, window_params = [{pipeline_mode = #tpu.pipeline_mode<synchronous>, transform_indices = @transform_0, window_bounds = array<i64: 16, 192>}, {transform_indices = @transform_1, window_bounds = array<i64: 192, 256>}, {transform_indices = @transform_2, window_bounds = array<i64: 16, 256>}]} {
    %c0 = arith.constant 0 : index
    %c0_0 = arith.constant 0 : index
    %0 = vector.load %arg1[%c0, %c0_0] : memref<16x192xbf16, #tpu.memory_space<vmem>>, vector<16x192xbf16>
    %c0_1 = arith.constant 0 : index
    %c0_2 = arith.constant 0 : index
    %1 = vector.load %arg2[%c0_1, %c0_2] : memref<192x256xbf16, #tpu.memory_space<vmem>>, vector<192x256xbf16>
    %cst = arith.constant dense<0.000000e+00> : vector<16x256xf32>
    %2 = tpu.matmul %0, %1, %cst {dimension_numbers = #tpu.dot_dimension_numbers<[1], [0], [0], [1], [0, 0, 1, 1], [], []>} : vector<16x192xbf16>, vector<192x256xbf16>, vector<16x256xf32> -> vector<16x256xf32>
    %c0_3 = arith.constant 0 : index
    %c0_4 = arith.constant 0 : index
    %3 = vector.load %arg3[%c0_3, %c0_4] : memref<16x256xf32, #tpu.memory_space<vmem>>, vector<16x256xf32>
    tpu.vector_store %arg3[%c0_3, %c0_4], %2 {strides = array<i32>} : memref<16x256xf32, #tpu.memory_space<vmem>>, vector<16x256xf32>,
    return
  }
  func.func @transform_0(%arg0: i32) -> (i32, i32) {
    %c0_i32 = arith.constant 0 : i32
    %c0_i32_0 = arith.constant 0 : i32
    %c0_i32_1 = arith.constant 0 : i32
    return %c0_i32, %c0_i32_0 : i32, i32
  }
  func.func @transform_1(%arg0: i32) -> (i32, i32) {
    %c0_i32 = arith.constant 0 : i32
    %c0_i32_0 = arith.constant 0 : i32
    return %c0_i32, %arg0 : i32, i32
  }
  func.func @transform_2(%arg0: i32) -> (i32, i32) {
    %c0_i32 = arith.constant 0 : i32
    %c0_i32_0 = arith.constant 0 : i32
    return %c0_i32, %arg0 : i32, i32
  }
}

module attributes {stable_mosaic.version = 11 : i64} {
  func.func @_gemm_kernel(%arg0: i32, %arg1: memref<16x128xbf16, #tpu.memory_space<vmem>>, %arg2: memref<128x256xbf16, #tpu.memory_space<vmem>>, %arg3: memref<16x256xf32, #tpu.memory_space<vmem>>) attributes {dimension_semantics = [#tpu.dimension_semantics<parallel>], iteration_bounds = array<i64: 2>, scalar_prefetch = 0 : i64, scratch_operands = 0 : i64, tpu.core_type = #tpu.core_type<tc>, window_params = [{pipeline_mode = #tpu.pipeline_mode<synchronous>, transform_indices = @transform_0, window_bounds = array<i64: 16, 128>}, {transform_indices = @transform_1, window_bounds = array<i64: 128, 256>}, {transform_indices = @transform_2, window_bounds = array<i64: 16, 256>}]} {
    %c0 = arith.constant 0 : index
    %c0_0 = arith.constant 0 : index
    %0 = vector.load %arg1[%c0, %c0_0] : memref<16x128xbf16, #tpu.memory_space<vmem>>, vector<16x128xbf16>
    %c0_1 = arith.constant 0 : index
    %c0_2 = arith.constant 0 : index
    %1 = vector.load %arg2[%c0_1, %c0_2] : memref<128x256xbf16, #tpu.memory_space<vmem>>, vector<128x256xbf16>
    %cst = arith.constant dense<0.000000e+00> : vector<16x256xf32>
    %2 = tpu.matmul %0, %1, %cst {dimension_numbers = #tpu.dot_dimension_numbers<[1], [0], [0], [1], [0, 0, 1, 1], [], []>} : vector<16x128xbf16>, vector<128x256xbf16>, vector<16x256xf32> -> vector<16x256xf32>
    %c0_3 = arith.constant 0 : index
    %c0_4 = arith.constant 0 : index
    %3 = vector.load %arg3[%c0_3, %c0_4] : memref<16x256xf32, #tpu.memory_space<vmem>>, vector<16x256xf32>
    tpu.vector_store %arg3[%c0_3, %c0_4], %2 {strides = array<i32>} : memref<16x256xf32, #tpu.memory_space<vmem>>, vector<16x256xf32>,
    return
  }
  func.func @transform_0(%arg0: i32) -> (i32, i32) {
    %c0_i32 = arith.constant 0 : i32
    %c0_i32_0 = arith.constant 0 : i32
    %c0_i32_1 = arith.constant 0 : i32
    return %c0_i32, %c0_i32_0 : i32, i32
  }
  func.func @transform_1(%arg0: i32) -> (i32, i32) {
    %c0_i32 = arith.constant 0 : i32
    %c0_i32_0 = arith.constant 0 : i32
    return %c0_i32, %arg0 : i32, i32
  }
  func.func @transform_2(%arg0: i32) -> (i32, i32) {
    %c0_i32 = arith.constant 0 : i32
    %c0_i32_0 = arith.constant 0 : i32
    return %c0_i32, %arg0 : i32, i32
  }
}

module attributes {stable_mosaic.version = 11 : i64} {
  func.func @_bn_stats_kernel(%arg0: i32, %arg1: memref<16x512xf32, #tpu.memory_space<vmem>>, %arg2: memref<16x1xf32, #tpu.memory_space<vmem>>, %arg3: memref<16x1xf32, #tpu.memory_space<vmem>>) attributes {dimension_semantics = [#tpu.dimension_semantics<arbitrary>], iteration_bounds = array<i64: 4>, scalar_prefetch = 0 : i64, scratch_operands = 0 : i64, tpu.core_type = #tpu.core_type<tc>, window_params = [{transform_indices = @transform_0, window_bounds = array<i64: 16, 512>}, {pipeline_mode = #tpu.pipeline_mode<synchronous>, transform_indices = @transform_1, window_bounds = array<i64: 16, 1>}, {pipeline_mode = #tpu.pipeline_mode<synchronous>, transform_indices = @transform_2, window_bounds = array<i64: 16, 1>}]} {
    %c0_i32 = arith.constant 0 : i32
    %0 = arith.cmpi eq, %arg0, %c0_i32 : i32
    %1 = arith.extui %0 : i1 to i32
    %c0_i32_0 = arith.constant 0 : i32
    %2 = arith.cmpi ne, %1, %c0_i32_0 : i32
    scf.if %2 {
      %cst_11 = arith.constant 0.000000e+00 : f32
      %15 = vector.broadcast %cst_11 : f32 to vector<16x1xf32>
      %c0_12 = arith.constant 0 : index
      %c0_13 = arith.constant 0 : index
      %16 = vector.load %arg2[%c0_12, %c0_13] : memref<16x1xf32, #tpu.memory_space<vmem>>, vector<16x1xf32>
      tpu.vector_store %arg2[%c0_12, %c0_13], %15 {strides = array<i32>} : memref<16x1xf32, #tpu.memory_space<vmem>>, vector<16x1xf32>,
      %cst_14 = arith.constant 0.000000e+00 : f32
      %17 = vector.broadcast %cst_14 : f32 to vector<16x1xf32>
      %c0_15 = arith.constant 0 : index
      %c0_16 = arith.constant 0 : index
      %18 = vector.load %arg3[%c0_15, %c0_16] : memref<16x1xf32, #tpu.memory_space<vmem>>, vector<16x1xf32>
      tpu.vector_store %arg3[%c0_15, %c0_16], %17 {strides = array<i32>} : memref<16x1xf32, #tpu.memory_space<vmem>>, vector<16x1xf32>,
    } else {
    }
    %c0 = arith.constant 0 : index
    %c0_1 = arith.constant 0 : index
    %3 = vector.load %arg1[%c0, %c0_1] : memref<16x512xf32, #tpu.memory_space<vmem>>, vector<16x512xf32>
    %c0_2 = arith.constant 0 : index
    %c0_3 = arith.constant 0 : index
    %4 = vector.load %arg2[%c0_2, %c0_3] : memref<16x1xf32, #tpu.memory_space<vmem>>, vector<16x1xf32>
    %cst = arith.constant dense<0.000000e+00> : vector<16xf32>
    %5 = vector.multi_reduction <add>, %3, %cst [1] : vector<16x512xf32> to vector<16xf32>
    %6 = vector.shape_cast %5 : vector<16xf32> to vector<16x1xf32>
    %7 = arith.addf %4, %6 : vector<16x1xf32>
    %c0_4 = arith.constant 0 : index
    %c0_5 = arith.constant 0 : index
    %8 = vector.load %arg2[%c0_4, %c0_5] : memref<16x1xf32, #tpu.memory_space<vmem>>, vector<16x1xf32>
    tpu.vector_store %arg2[%c0_4, %c0_5], %7 {strides = array<i32>} : memref<16x1xf32, #tpu.memory_space<vmem>>, vector<16x1xf32>,
    %c0_6 = arith.constant 0 : index
    %c0_7 = arith.constant 0 : index
    %9 = vector.load %arg3[%c0_6, %c0_7] : memref<16x1xf32, #tpu.memory_space<vmem>>, vector<16x1xf32>
    %10 = arith.mulf %3, %3 : vector<16x512xf32>
    %cst_8 = arith.constant dense<0.000000e+00> : vector<16xf32>
    %11 = vector.multi_reduction <add>, %10, %cst_8 [1] : vector<16x512xf32> to vector<16xf32>
    %12 = vector.shape_cast %11 : vector<16xf32> to vector<16x1xf32>
    %13 = arith.addf %9, %12 : vector<16x1xf32>
    %c0_9 = arith.constant 0 : index
    %c0_10 = arith.constant 0 : index
    %14 = vector.load %arg3[%c0_9, %c0_10] : memref<16x1xf32, #tpu.memory_space<vmem>>, vector<16x1xf32>
    tpu.vector_store %arg3[%c0_9, %c0_10], %13 {strides = array<i32>} : memref<16x1xf32, #tpu.memory_space<vmem>>, vector<16x1xf32>,
    return
  }
  func.func @transform_0(%arg0: i32) -> (i32, i32) {
    %c0_i32 = arith.constant 0 : i32
    %c0_i32_0 = arith.constant 0 : i32
    return %c0_i32, %arg0 : i32, i32
  }
  func.func @transform_1(%arg0: i32) -> (i32, i32) {
    %c0_i32 = arith.constant 0 : i32
    %c0_i32_0 = arith.constant 0 : i32
    %c0_i32_1 = arith.constant 0 : i32
    return %c0_i32, %c0_i32_0 : i32, i32
  }
  func.func @transform_2(%arg0: i32) -> (i32, i32) {
    %c0_i32 = arith.constant 0 : i32
    %c0_i32_0 = arith.constant 0 : i32
    %c0_i32_1 = arith.constant 0 : i32
    return %c0_i32, %c0_i32_0 : i32, i32
  }
}

module attributes {stable_mosaic.version = 11 : i64} {
  func.func @_affine_relu_kernel(%arg0: i32, %arg1: memref<16x512xf32, #tpu.memory_space<vmem>>, %arg2: memref<16x1xf32, #tpu.memory_space<vmem>>, %arg3: memref<16x1xf32, #tpu.memory_space<vmem>>, %arg4: memref<16x512xbf16, #tpu.memory_space<vmem>>) attributes {dimension_semantics = [#tpu.dimension_semantics<parallel>], iteration_bounds = array<i64: 4>, scalar_prefetch = 0 : i64, scratch_operands = 0 : i64, tpu.core_type = #tpu.core_type<tc>, window_params = [{transform_indices = @transform_0, window_bounds = array<i64: 16, 512>}, {pipeline_mode = #tpu.pipeline_mode<synchronous>, transform_indices = @transform_1, window_bounds = array<i64: 16, 1>}, {pipeline_mode = #tpu.pipeline_mode<synchronous>, transform_indices = @transform_2, window_bounds = array<i64: 16, 1>}, {transform_indices = @transform_3, window_bounds = array<i64: 16, 512>}]} {
    %c0 = arith.constant 0 : index
    %c0_0 = arith.constant 0 : index
    %0 = vector.load %arg1[%c0, %c0_0] : memref<16x512xf32, #tpu.memory_space<vmem>>, vector<16x512xf32>
    %c0_1 = arith.constant 0 : index
    %c0_2 = arith.constant 0 : index
    %1 = vector.load %arg2[%c0_1, %c0_2] : memref<16x1xf32, #tpu.memory_space<vmem>>, vector<16x1xf32>
    %2 = vector.broadcast %1 : vector<16x1xf32> to vector<16x512xf32>
    %3 = arith.mulf %0, %2 : vector<16x512xf32>
    %c0_3 = arith.constant 0 : index
    %c0_4 = arith.constant 0 : index
    %4 = vector.load %arg3[%c0_3, %c0_4] : memref<16x1xf32, #tpu.memory_space<vmem>>, vector<16x1xf32>
    %5 = vector.broadcast %4 : vector<16x1xf32> to vector<16x512xf32>
    %6 = arith.addf %3, %5 : vector<16x512xf32>
    %cst = arith.constant 0.000000e+00 : f32
    %7 = vector.broadcast %cst : f32 to vector<16x512xf32>
    %8 = arith.maximumf %6, %7 : vector<16x512xf32>
    %9 = arith.truncf %8 : vector<16x512xf32> to vector<16x512xbf16>
    %c0_5 = arith.constant 0 : index
    %c0_6 = arith.constant 0 : index
    %10 = vector.load %arg4[%c0_5, %c0_6] : memref<16x512xbf16, #tpu.memory_space<vmem>>, vector<16x512xbf16>
    tpu.vector_store %arg4[%c0_5, %c0_6], %9 {strides = array<i32>} : memref<16x512xbf16, #tpu.memory_space<vmem>>, vector<16x512xbf16>,
    return
  }
  func.func @transform_0(%arg0: i32) -> (i32, i32) {
    %c0_i32 = arith.constant 0 : i32
    %c0_i32_0 = arith.constant 0 : i32
    return %c0_i32, %arg0 : i32, i32
  }
  func.func @transform_1(%arg0: i32) -> (i32, i32) {
    %c0_i32 = arith.constant 0 : i32
    %c0_i32_0 = arith.constant 0 : i32
    %c0_i32_1 = arith.constant 0 : i32
    return %c0_i32, %c0_i32_0 : i32, i32
  }
  func.func @transform_2(%arg0: i32) -> (i32, i32) {
    %c0_i32 = arith.constant 0 : i32
    %c0_i32_0 = arith.constant 0 : i32
    %c0_i32_1 = arith.constant 0 : i32
    return %c0_i32, %c0_i32_0 : i32, i32
  }
  func.func @transform_3(%arg0: i32) -> (i32, i32) {
    %c0_i32 = arith.constant 0 : i32
    %c0_i32_0 = arith.constant 0 : i32
    return %c0_i32, %arg0 : i32, i32
  }
}

module attributes {stable_mosaic.version = 11 : i64} {
  func.func @_gemm_bias_tanh_kernel(%arg0: i32, %arg1: memref<3x144xbf16, #tpu.memory_space<vmem>>, %arg2: memref<144x512xbf16, #tpu.memory_space<vmem>>, %arg3: memref<3x1xf32, #tpu.memory_space<vmem>>, %arg4: memref<3x512xf32, #tpu.memory_space<vmem>>) attributes {dimension_semantics = [#tpu.dimension_semantics<parallel>], iteration_bounds = array<i64: 4>, scalar_prefetch = 0 : i64, scratch_operands = 0 : i64, tpu.core_type = #tpu.core_type<tc>, window_params = [{pipeline_mode = #tpu.pipeline_mode<synchronous>, transform_indices = @transform_0, window_bounds = array<i64: 3, 144>}, {transform_indices = @transform_1, window_bounds = array<i64: 144, 512>}, {pipeline_mode = #tpu.pipeline_mode<synchronous>, transform_indices = @transform_2, window_bounds = array<i64: 3, 1>}, {transform_indices = @transform_3, window_bounds = array<i64: 3, 512>}]} {
    %c0 = arith.constant 0 : index
    %c0_0 = arith.constant 0 : index
    %0 = vector.load %arg1[%c0, %c0_0] : memref<3x144xbf16, #tpu.memory_space<vmem>>, vector<3x144xbf16>
    %c0_1 = arith.constant 0 : index
    %c0_2 = arith.constant 0 : index
    %1 = vector.load %arg2[%c0_1, %c0_2] : memref<144x512xbf16, #tpu.memory_space<vmem>>, vector<144x512xbf16>
    %cst = arith.constant dense<0.000000e+00> : vector<3x512xf32>
    %2 = tpu.matmul %0, %1, %cst {dimension_numbers = #tpu.dot_dimension_numbers<[1], [0], [0], [1], [0, 0, 1, 1], [], []>} : vector<3x144xbf16>, vector<144x512xbf16>, vector<3x512xf32> -> vector<3x512xf32>
    %c0_3 = arith.constant 0 : index
    %c0_4 = arith.constant 0 : index
    %3 = vector.load %arg3[%c0_3, %c0_4] : memref<3x1xf32, #tpu.memory_space<vmem>>, vector<3x1xf32>
    %4 = vector.broadcast %3 : vector<3x1xf32> to vector<3x512xf32>
    %5 = arith.addf %2, %4 : vector<3x512xf32>
    %6 = math.tanh %5 : vector<3x512xf32>
    %c0_5 = arith.constant 0 : index
    %c0_6 = arith.constant 0 : index
    %7 = vector.load %arg4[%c0_5, %c0_6] : memref<3x512xf32, #tpu.memory_space<vmem>>, vector<3x512xf32>
    tpu.vector_store %arg4[%c0_5, %c0_6], %6 {strides = array<i32>} : memref<3x512xf32, #tpu.memory_space<vmem>>, vector<3x512xf32>,
    return
  }
  func.func @transform_0(%arg0: i32) -> (i32, i32) {
    %c0_i32 = arith.constant 0 : i32
    %c0_i32_0 = arith.constant 0 : i32
    %c0_i32_1 = arith.constant 0 : i32
    return %c0_i32, %c0_i32_0 : i32, i32
  }
  func.func @transform_1(%arg0: i32) -> (i32, i32) {
    %c0_i32 = arith.constant 0 : i32
    %c0_i32_0 = arith.constant 0 : i32
    return %c0_i32, %arg0 : i32, i32
  }
  func.func @transform_2(%arg0: i32) -> (i32, i32) {
    %c0_i32 = arith.constant 0 : i32
    %c0_i32_0 = arith.constant 0 : i32
    %c0_i32_1 = arith.constant 0 : i32
    return %c0_i32, %c0_i32_0 : i32, i32
  }
  func.func @transform_3(%arg0: i32) -> (i32, i32) {
    %c0_i32 = arith.constant 0 : i32
    %c0_i32_0 = arith.constant 0 : i32
    return %c0_i32, %arg0 : i32, i32
  }
}

module attributes {stable_mosaic.version = 11 : i64} {
  func.func @_gemm_bias_tanh_kernel(%arg0: i32, %arg1: memref<3x96xbf16, #tpu.memory_space<vmem>>, %arg2: memref<96x512xbf16, #tpu.memory_space<vmem>>, %arg3: memref<3x1xf32, #tpu.memory_space<vmem>>, %arg4: memref<3x512xf32, #tpu.memory_space<vmem>>) attributes {dimension_semantics = [#tpu.dimension_semantics<parallel>], iteration_bounds = array<i64: 4>, scalar_prefetch = 0 : i64, scratch_operands = 0 : i64, tpu.core_type = #tpu.core_type<tc>, window_params = [{pipeline_mode = #tpu.pipeline_mode<synchronous>, transform_indices = @transform_0, window_bounds = array<i64: 3, 96>}, {transform_indices = @transform_1, window_bounds = array<i64: 96, 512>}, {pipeline_mode = #tpu.pipeline_mode<synchronous>, transform_indices = @transform_2, window_bounds = array<i64: 3, 1>}, {transform_indices = @transform_3, window_bounds = array<i64: 3, 512>}]} {
    %c0 = arith.constant 0 : index
    %c0_0 = arith.constant 0 : index
    %0 = vector.load %arg1[%c0, %c0_0] : memref<3x96xbf16, #tpu.memory_space<vmem>>, vector<3x96xbf16>
    %c0_1 = arith.constant 0 : index
    %c0_2 = arith.constant 0 : index
    %1 = vector.load %arg2[%c0_1, %c0_2] : memref<96x512xbf16, #tpu.memory_space<vmem>>, vector<96x512xbf16>
    %cst = arith.constant dense<0.000000e+00> : vector<3x512xf32>
    %2 = tpu.matmul %0, %1, %cst {dimension_numbers = #tpu.dot_dimension_numbers<[1], [0], [0], [1], [0, 0, 1, 1], [], []>} : vector<3x96xbf16>, vector<96x512xbf16>, vector<3x512xf32> -> vector<3x512xf32>
    %c0_3 = arith.constant 0 : index
    %c0_4 = arith.constant 0 : index
    %3 = vector.load %arg3[%c0_3, %c0_4] : memref<3x1xf32, #tpu.memory_space<vmem>>, vector<3x1xf32>
    %4 = vector.broadcast %3 : vector<3x1xf32> to vector<3x512xf32>
    %5 = arith.addf %2, %4 : vector<3x512xf32>
    %6 = math.tanh %5 : vector<3x512xf32>
    %c0_5 = arith.constant 0 : index
    %c0_6 = arith.constant 0 : index
    %7 = vector.load %arg4[%c0_5, %c0_6] : memref<3x512xf32, #tpu.memory_space<vmem>>, vector<3x512xf32>
    tpu.vector_store %arg4[%c0_5, %c0_6], %6 {strides = array<i32>} : memref<3x512xf32, #tpu.memory_space<vmem>>, vector<3x512xf32>,
    return
  }
  func.func @transform_0(%arg0: i32) -> (i32, i32) {
    %c0_i32 = arith.constant 0 : i32
    %c0_i32_0 = arith.constant 0 : i32
    %c0_i32_1 = arith.constant 0 : i32
    return %c0_i32, %c0_i32_0 : i32, i32
  }
  func.func @transform_1(%arg0: i32) -> (i32, i32) {
    %c0_i32 = arith.constant 0 : i32
    %c0_i32_0 = arith.constant 0 : i32
    return %c0_i32, %arg0 : i32, i32
  }
  func.func @transform_2(%arg0: i32) -> (i32, i32) {
    %c0_i32 = arith.constant 0 : i32
    %c0_i32_0 = arith.constant 0 : i32
    %c0_i32_1 = arith.constant 0 : i32
    return %c0_i32, %c0_i32_0 : i32, i32
  }
  func.func @transform_3(%arg0: i32) -> (i32, i32) {
    %c0_i32 = arith.constant 0 : i32
    %c0_i32_0 = arith.constant 0 : i32
    return %c0_i32, %arg0 : i32, i32
  }
}

module attributes {stable_mosaic.version = 11 : i64} {
  func.func @_gemm_bias_tanh_kernel(%arg0: i32, %arg1: memref<3x64xbf16, #tpu.memory_space<vmem>>, %arg2: memref<64x512xbf16, #tpu.memory_space<vmem>>, %arg3: memref<3x1xf32, #tpu.memory_space<vmem>>, %arg4: memref<3x512xf32, #tpu.memory_space<vmem>>) attributes {dimension_semantics = [#tpu.dimension_semantics<parallel>], iteration_bounds = array<i64: 4>, scalar_prefetch = 0 : i64, scratch_operands = 0 : i64, tpu.core_type = #tpu.core_type<tc>, window_params = [{pipeline_mode = #tpu.pipeline_mode<synchronous>, transform_indices = @transform_0, window_bounds = array<i64: 3, 64>}, {transform_indices = @transform_1, window_bounds = array<i64: 64, 512>}, {pipeline_mode = #tpu.pipeline_mode<synchronous>, transform_indices = @transform_2, window_bounds = array<i64: 3, 1>}, {transform_indices = @transform_3, window_bounds = array<i64: 3, 512>}]} {
    %c0 = arith.constant 0 : index
    %c0_0 = arith.constant 0 : index
    %0 = vector.load %arg1[%c0, %c0_0] : memref<3x64xbf16, #tpu.memory_space<vmem>>, vector<3x64xbf16>
    %c0_1 = arith.constant 0 : index
    %c0_2 = arith.constant 0 : index
    %1 = vector.load %arg2[%c0_1, %c0_2] : memref<64x512xbf16, #tpu.memory_space<vmem>>, vector<64x512xbf16>
    %cst = arith.constant dense<0.000000e+00> : vector<3x512xf32>
    %2 = tpu.matmul %0, %1, %cst {dimension_numbers = #tpu.dot_dimension_numbers<[1], [0], [0], [1], [0, 0, 1, 1], [], []>} : vector<3x64xbf16>, vector<64x512xbf16>, vector<3x512xf32> -> vector<3x512xf32>
    %c0_3 = arith.constant 0 : index
    %c0_4 = arith.constant 0 : index
    %3 = vector.load %arg3[%c0_3, %c0_4] : memref<3x1xf32, #tpu.memory_space<vmem>>, vector<3x1xf32>
    %4 = vector.broadcast %3 : vector<3x1xf32> to vector<3x512xf32>
    %5 = arith.addf %2, %4 : vector<3x512xf32>
    %6 = math.tanh %5 : vector<3x512xf32>
    %c0_5 = arith.constant 0 : index
    %c0_6 = arith.constant 0 : index
    %7 = vector.load %arg4[%c0_5, %c0_6] : memref<3x512xf32, #tpu.memory_space<vmem>>, vector<3x512xf32>
    tpu.vector_store %arg4[%c0_5, %c0_6], %6 {strides = array<i32>} : memref<3x512xf32, #tpu.memory_space<vmem>>, vector<3x512xf32>,
    return
  }
  func.func @transform_0(%arg0: i32) -> (i32, i32) {
    %c0_i32 = arith.constant 0 : i32
    %c0_i32_0 = arith.constant 0 : i32
    %c0_i32_1 = arith.constant 0 : i32
    return %c0_i32, %c0_i32_0 : i32, i32
  }
  func.func @transform_1(%arg0: i32) -> (i32, i32) {
    %c0_i32 = arith.constant 0 : i32
    %c0_i32_0 = arith.constant 0 : i32
    return %c0_i32, %arg0 : i32, i32
  }
  func.func @transform_2(%arg0: i32) -> (i32, i32) {
    %c0_i32 = arith.constant 0 : i32
    %c0_i32_0 = arith.constant 0 : i32
    %c0_i32_1 = arith.constant 0 : i32
    return %c0_i32, %c0_i32_0 : i32, i32
  }
  func.func @transform_3(%arg0: i32) -> (i32, i32) {
    %c0_i32 = arith.constant 0 : i32
    %c0_i32_0 = arith.constant 0 : i32
    return %c0_i32, %arg0 : i32, i32
  }
}

</mosaic_0001>

<llo_original>
// kernel: generator_forward.25
$region0: #{generator_forward.25}
  #allocation0 [shape = 'u32[]', space=smem, size = 0x4, offset = 0x4, fixed_abs, tag = 'smem constant byte address 0x4 - core index']
  #allocation1 [shape = 'u32[144,128]{1,0:T(1,128)}', space=vmem, size = 0x12000, scoped, tag = 'internal scratch']
  %s0 = inlined_call_operand.vmem [shape: f32[2,2048], index: 0, kind: input, shape index: {}]
  %s1 = inlined_call_operand.hbm [shape: f32[1,2048], index: 1, kind: input, shape index: {}]
  %s2 = inlined_call_operand.hbm [shape: f32[1,2048], index: 2, kind: input, shape index: {}]
  %s3 = inlined_call_operand.vmem [shape: bf16[2,2048], index: 3, kind: output, shape index: {}]
  %s4 = sld [smem:[#allocation0]]
  $region53: #{generator_forward.25} parent=0
    _
  %s6 = ssub.s32 1, %s4
  %s7 = scalar_select 0, %s6, %s4
  $region1: #{generator_forward.25} parent=0
    #allocation2 [shape = 'u8[4096]{0}', space=vmem, size = 0x1000, scoped, tag = 'input window, operand 1']
    #allocation3 [shape = 's32[2]{0}', space=sflag, size = 0x8, scoped, tag = 'scoped memory for generator_forward.25']
    #allocation4 [shape = 'u8[4096]{0}', space=vmem, size = 0x1000, scoped, tag = 'input window, operand 2']
    #allocation5 [shape = 's32[2]{0}', space=sflag, size = 0x8, scoped, tag = 'scoped memory for generator_forward.25']
    %8 = vsyncpa [#allocation3], 0
    %s9 = scalar_lea.sflag [#allocation3], 1
    %10 = vsyncpa %s9, 0
    %11 = vsyncpa [#allocation5], 0
    %s12 = scalar_lea.sflag [#allocation5], 1
    %13 = vsyncpa %s12, 0
    loop: start=0, step=1, limit=6
    $region2: #{generator_forward.25} parent=1 // loop_pre_header
      _
    $region3: #{generator_forward.25} parent=1 // loop_header
      %s15 = sphi 0, %s19
      %p16 = scmp.ge.s32.totalorder %s15, 6
      %s25 = sphi 0, %s27
      %s28 = sphi 0, %s25
      %s29 = sphi 0, %s28
      %s45 = sphi 0, %s29
      %s51 = sphi 0, %s53
      %s54 = sphi 0, %s51
      %s55 = sphi 0, %s54
      %s71 = sphi 0, %s55
      %s77 = sphi 0, %s79
      %s80 = sphi 0, %s77
      %s81 = sphi 0, %s80
      %s97 = sphi 0, %s81
      %s103 = sphi 0, %s105
      %s106 = sphi 0, %s103
      %s107 = sphi 0, %s106
      %s123 = sphi 0, %s107
    $region4: #{generator_forward.25} parent=1 // loop_header_branch
      %18 = sbr.rel (%p16) target = $region8
    $region5: #{generator_forward.25} parent=1 // loop_body
      %s20 = ssub.s32 %s15, 1
      %s21 = ssub.s32 %s15, 2
      %s22 = sadd.s32 %s15, 1
      %s23 = ssub.s32 %s15, %s22
      %p24 = scmp.eq.s32.totalorder %s23, 0
      %s26 = sadd.s32 %s25, 1
      %s27 = scalar_select %p24, %s25, %s26
      %p30 = pneg %p24
      %p31 = scmp.eq.s32.totalorder %s15, 3
      %p32 = por %p30, %p31
      %p33 = scmp.ne.s32.totalorder %s25, %s28
      %p34 = scmp.eq.s32.totalorder %s15, 0
      %p35 = por %p33, %p34
      %p36 = scmp.ne.s32.totalorder %s25, %s28
      %p37 = scmp.eq.s32.totalorder %s20, 3
      %p38 = por %p36, %p37
      %p39 = scmp.ne.s32.totalorder %s28, %s29
      %p40 = scmp.eq.s32.totalorder %s20, 0
      %p41 = por %p39, %p40
      %p42 = scmp.ne.s32.totalorder %s28, %s29
      %p43 = scmp.eq.s32.totalorder %s21, 3
      %p44 = por %p42, %p43
      %p46 = scmp.ne.s32.totalorder %s29, %s45
      %p47 = scmp.eq.s32.totalorder %s21, 0
      %p48 = por %p46, %p47
      %s49 = ssub.s32 %s15, %s22
      %p50 = scmp.eq.s32.totalorder %s49, 0
      %s52 = sadd.s32 %s51, 1
      %s53 = scalar_select %p50, %s51, %s52
      %p56 = pneg %p50
      %p57 = scmp.eq.s32.totalorder %s15, 3
      %p58 = por %p56, %p57
      %p59 = scmp.ne.s32.totalorder %s51, %s54
      %p60 = scmp.eq.s32.totalorder %s15, 0
      %p61 = por %p59, %p60
      %p62 = scmp.ne.s32.totalorder %s51, %s54
      %p63 = scmp.eq.s32.totalorder %s20, 3
      %p64 = por %p62, %p63
      %p65 = scmp.ne.s32.totalorder %s54, %s55
      %p66 = scmp.eq.s32.totalorder %s20, 0
      %p67 = por %p65, %p66
      %p68 = scmp.ne.s32.totalorder %s54, %s55
      %p69 = scmp.eq.s32.totalorder %s21, 3
      %p70 = por %p68, %p69
      %p72 = scmp.ne.s32.totalorder %s55, %s71
      %p73 = scmp.eq.s32.totalorder %s21, 0
      %p74 = por %p72, %p73
      %s75 = ssub.s32 %s15, %s22
      %p76 = scmp.eq.s32.totalorder %s75, 0
      %s78 = sadd.s32 %s77, 1
      %s79 = scalar_select %p76, %s77, %s78
      %p82 = pneg %p76
      %p83 = scmp.eq.s32.totalorder %s15, 3
      %p84 = por %p82, %p83
      %p85 = scmp.ne.s32.totalorder %s77, %s80
      %p86 = scmp.eq.s32.totalorder %s15, 0
      %p87 = por %p85, %p86
      %p88 = scmp.ne.s32.totalorder %s77, %s80
      %p89 = scmp.eq.s32.totalorder %s20, 3
      %p90 = por %p88, %p89
      %p91 = scmp.ne.s32.totalorder %s80, %s81
      %p92 = scmp.eq.s32.totalorder %s20, 0
      %p93 = por %p91, %p92
      %p94 = scmp.ne.s32.totalorder %s80, %s81
      %p95 = scmp.eq.s32.totalorder %s21, 3
      %p96 = por %p94, %p95
      %p98 = scmp.ne.s32.totalorder %s81, %s97
      %p99 = scmp.eq.s32.totalorder %s21, 0
      %p100 = por %p98, %p99
      %s101 = ssub.s32 %s15, %s22
      %p102 = scmp.eq.s32.totalorder %s101, 0
      %s104 = sadd.s32 %s103, 1
      %s105 = scalar_select %p102, %s103, %s104
      %p108 = pneg %p102
      %p109 = scmp.eq.s32.totalorder %s15, 3
      %p110 = por %p108, %p109
      %p111 = scmp.ne.s32.totalorder %s103, %s106
      %p112 = scmp.eq.s32.totalorder %s15, 0
      %p113 = por %p111, %p112
      %p114 = scmp.ne.s32.totalorder %s103, %s106
      %p115 = scmp.eq.s32.totalorder %s20, 3
      %p116 = por %p114, %p115
      %p117 = scmp.ne.s32.totalorder %s106, %s107
      %p118 = scmp.eq.s32.totalorder %s20, 0
      %p119 = por %p117, %p118
      %p120 = scmp.ne.s32.totalorder %s106, %s107
      %p121 = scmp.eq.s32.totalorder %s21, 3
      %p122 = por %p120, %p121
      %p124 = scmp.ne.s32.totalorder %s107, %s123
      %p125 = scmp.eq.s32.totalorder %s21, 0
      %p126 = por %p124, %p125
      %p127 = scmp.le.s32.totalorder 1, %s15
      %p128 = scmp.lt.s32.totalorder %s15, 5
      %p129 = pnand %p127, %p128
      %p130 = pneg %p129
      // Predicated region
      $region9: #{generator_forward.25} parent=5 // pred_check
        _
      $region10: #{generator_forward.25} parent=5 // pred_check_branch
        %132 = sbr.rel (%p129) target = $region12
      $region11: #{generator_forward.25} parent=5 // pred_region
        %s133 = ssub.s32 %s15, 1
      $region12: #{generator_forward.25} parent=5 // pred_fallthru
        _
      %p134 = scmp.lt.s32.totalorder %s15, 4
      // Predicated region
      $region13: #{generator_forward.25} parent=5 // pred_check
        %p135 = pneg %p134
      $region14: #{generator_forward.25} parent=5 // pred_check_branch
        %137 = sbr.rel (%p135) target = $region16
      $region15: #{generator_forward.25} parent=5 // pred_region
        // Predicated region
        $region17: #{generator_forward.25} parent=15 // pred_check
          %p138 = pneg %p35
        $region18: #{generator_forward.25} parent=15 // pred_check_branch
          %140 = sbr.rel (%p138) target = $region20
        $region19: #{generator_forward.25} parent=15 // pred_region
          %s141 = smul.u32 4, %s15
          %p142 = scmp.lt.s32.totalorder %s141, 15
          %s143 = scalar_select %p142, %s141, 15
          %s144 = smul.addr %s143, 2
          %s145 = scalar_lea.vmem %s0, %s144
          %s146 = smul.u32 4, %s15
        $region20: #{generator_forward.25} parent=15 // pred_fallthru
          _
        // Predicated region
        $region21: #{generator_forward.25} parent=15 // pred_check
          %p147 = pneg %p61
        $region22: #{generator_forward.25} parent=15 // pred_check_branch
          %149 = sbr.rel (%p147) target = $region24
        $region23: #{generator_forward.25} parent=15 // pred_region
          %s150 = sand.u32 %s51, 1
          %s151 = scalar_lea.sflag [#allocation3], %s150
          %s152 = sand.u32 %s51, 1
          %s153 = smul.addr %s152, 4
          %s154 = scalar_lea.vmem [#allocation2], %s153
          %s155 = smul.u32 4, %s15
          %s157 = ssub.s32 64, 64
          %158 = vsyncadd %s151, %s157
          %s159 = smul.addr %s155, 16
          %s160 = scalar_lea.hbm %s1, %s159
          %s162 = sshll.u32 %s154, 4
          %s163 = int_to_ptr.vmem [resolvable:$true] %s162
          %165 = dma.hbm_to_vmem [thread:$0]  %s160, 64, %s163, %s151
        $region24: #{generator_forward.25} parent=15 // pred_fallthru
          _
        // Predicated region
        $region25: #{generator_forward.25} parent=15 // pred_check
          %p166 = pneg %p87
        $region26: #{generator_forward.25} parent=15 // pred_check_branch
          %168 = sbr.rel (%p166) target = $region28
        $region27: #{generator_forward.25} parent=15 // pred_region
          %s169 = sand.u32 %s77, 1
          %s170 = scalar_lea.sflag [#allocation5], %s169
          %s171 = sand.u32 %s77, 1
          %s172 = smul.addr %s171, 4
          %s173 = scalar_lea.vmem [#allocation4], %s172
          %s174 = smul.u32 4, %s15
          %s176 = ssub.s32 64, 64
          %177 = vsyncadd %s170, %s176
          %s178 = smul.addr %s174, 16
          %s179 = scalar_lea.hbm %s2, %s178
          %s181 = sshll.u32 %s173, 4
          %s182 = int_to_ptr.vmem [resolvable:$true] %s181
          %184 = dma.hbm_to_vmem [thread:$0]  %s179, 64, %s182, %s170
        $region28: #{generator_forward.25} parent=15 // pred_fallthru
          _
      $region16: #{generator_forward.25} parent=5 // pred_fallthru
        _
      %p185 = scmp.le.s32.totalorder 1, %s15
      %p186 = scmp.lt.s32.totalorder %s15, 5
      %p187 = pnand %p185, %p186
      %p188 = pneg %p187
      // Predicated region
      $region29: #{generator_forward.25} parent=5 // pred_check
        _
      $region30: #{generator_forward.25} parent=5 // pred_check_branch
        %190 = sbr.rel (%p187) target = $region32
      $region31: #{generator_forward.25} parent=5 // pred_region
        %s191 = ssub.s32 %s15, 1
        %s192 = sand.u32 %s54, 1
        %s193 = scalar_lea.sflag [#allocation3], %s192
        %s194 = sand.u32 %s54, 1
        %s195 = smul.addr %s194, 4
        %s196 = scalar_lea.vmem [#allocation2], %s195
        // Predicated region
        $region33: #{generator_forward.25} parent=31 // pred_check
          %p197 = pneg %p67
        $region34: #{generator_forward.25} parent=31 // pred_check_branch
          %199 = sbr.rel (%p197) target = $region36
        $region35: #{generator_forward.25} parent=31 // pred_region
          %200 = dma.done %s193, 64
        $region36: #{generator_forward.25} parent=31 // pred_fallthru
          _
        %s201 = sand.u32 %s80, 1
        %s202 = scalar_lea.sflag [#allocation5], %s201
        %s203 = sand.u32 %s80, 1
        %s204 = smul.addr %s203, 4
        %s205 = scalar_lea.vmem [#allocation4], %s204
        // Predicated region
        $region37: #{generator_forward.25} parent=31 // pred_check
          %p206 = pneg %p93
        $region38: #{generator_forward.25} parent=31 // pred_check_branch
          %208 = sbr.rel (%p206) target = $region40
        $region39: #{generator_forward.25} parent=31 // pred_region
          %209 = dma.done %s202, 64
        $region40: #{generator_forward.25} parent=31 // pred_fallthru
          _
        %s210 = smul.u32 4, %s20
        %p211 = scmp.lt.s32.totalorder %s210, 15
        %s212 = scalar_select %p211, %s210, 15
        %s213 = smul.addr %s212, 2
        %s214 = scalar_lea.vmem %s0, %s213
        %p215 = pneg %p41
        %p216 = pneg %p38
        %s217 = sand.u32 %s54, 1
        %s218 = scalar_lea.sflag [#allocation3], %s217
        %s219 = sand.u32 %s54, 1
        %s220 = smul.addr %s219, 4
        %s221 = scalar_lea.vmem [#allocation2], %s220
        %p222 = pneg %p67
        %p223 = pneg %p64
        %s224 = sand.u32 %s80, 1
        %s225 = scalar_lea.sflag [#allocation5], %s224
        %s226 = sand.u32 %s80, 1
        %s227 = smul.addr %s226, 4
        %s228 = scalar_lea.vmem [#allocation4], %s227
        %p229 = pneg %p93
        %p230 = pneg %p90
        %p231 = pneg %p119
        %p232 = pneg %p116
        %s233 = smul.u32 4, %s20
        %p234 = scmp.lt.s32.totalorder %s233, 15
        %s235 = scalar_select %p234, %s233, 15
        %s236 = scalar_lea.vmem %s3, %s235
        %s237 = smul.u32 4, %s20
        %p238 = scmp.lt.s32.totalorder %s237, 15
        %s239 = scalar_select %p238, %s237, 15
        %s240 = smul.addr %s239, 2
        %s241 = scalar_lea.vmem %s0, %s240
        %s242 = smul.u32 4, %s20
        %s243 = smul.u32 4, %s20
        %s244 = smul.u32 4, %s20
        %s245 = smul.u32 4, %s20
        %p246 = scmp.lt.s32.totalorder %s245, 15
        %s247 = scalar_select %p246, %s245, 15
        %s248 = scalar_lea.vmem %s3, %s247
        %s249 = smul.u32 4, %s20
        %v250 = vld [vmem:[%s241] sm:$0xff]
        %v252 = vcombine.high %v250, %v250
        %v254 = vunpack.c.l.s4 1983009808
        %v255 = vunpack.c.0.s8 %v254
        %v256 = vlaneseq
        %v257 = vshrl.u32 %v256, 7
        %v258 = vsub.s32 %v255, %v257
        %v259 = vrot.slane %v250, %v258
        %v261 = vunpack.c.l.s4 1983009808
        %v262 = vunpack.c.0.s8 %v261
        %v263 = vlaneseq
        %v264 = vshrl.u32 %v263, 7
        %v265 = vsub.s32 %v262, %v264
        %v266 = vrot.slane %v252, %v265
        %v267 = vcombine.high %v259, %v259
        %v268 = vcombine.high %v266, %v266
        %vm273 = vcmask 1041408
        %v274 = vsel %vm273, %v259, 0.0
        %v275 = vrot.slane %v274, 4
        %v276 = vadd.f32 %v274, %v275
        %v277 = vrot.slane %v276, 2
        %v278 = vadd.f32 %v276, %v277
        %v279 = vrot.slane %v278, 1
        %v280 = vadd.f32 %v278, %v279
        %v281 = vsel %vm273, %v267, 0.0
        %v282 = vrot.slane %v281, 4
        %v283 = vadd.f32 %v281, %v282
        %v284 = vrot.slane %v283, 2
        %v285 = vadd.f32 %v283, %v284
        %v286 = vrot.slane %v285, 1
        %v287 = vadd.f32 %v285, %v286
        %v288 = vsel %vm273, %v266, 0.0
        %v289 = vrot.slane %v288, 4
        %v290 = vadd.f32 %v288, %v289
        %v291 = vrot.slane %v290, 2
        %v292 = vadd.f32 %v290, %v291
        %v293 = vrot.slane %v292, 1
        %v294 = vadd.f32 %v292, %v293
        %v295 = vsel %vm273, %v268, 0.0
        %v296 = vrot.slane %v295, 4
        %v297 = vadd.f32 %v295, %v296
        %v298 = vrot.slane %v297, 2
        %v299 = vadd.f32 %v297, %v298
        %v300 = vrot.slane %v299, 1
        %v301 = vadd.f32 %v299, %v300
        %v302 = vrcp.pop 2.0
        %v303 = vmul.f32 %v280, %v302
        %v304 = vmul.f32 %v287, %v302
        %v305 = vmul.f32 %v294, %v302
        %v306 = vmul.f32 %v301, %v302
        %v311 = vcombine.low %v303, %v304
        %v312 = vcombine.low %v305, %v306
        %v314 = vunpack.c.l.s4 1983009808
        %v315 = vunpack.c.0.s8 %v314
        %v316 = vlaneseq
        %v317 = vshrl.u32 %v316, 7
        %v318 = vsub.s32 %v315, %v317
        %v319 = vrot.slane %v311, %v318
        %v321 = vunpack.c.l.s4 1983009808
        %v322 = vunpack.c.0.s8 %v321
        %v323 = vlaneseq
        %v324 = vshrl.u32 %v323, 7
        %v325 = vsub.s32 %v322, %v324
        %v326 = vrot.slane %v312, %v325
        %v327 = vcombine.low %v319, %v326
        %v329 = vsub.f32 %v250, %v327
        %v330 = vmul.f32 %v329, %v329
        %v332 = vcombine.high %v330, %v330
        %v334 = vunpack.c.l.s4 1983009808
        %v335 = vunpack.c.0.s8 %v334
        %v336 = vlaneseq
        %v337 = vshrl.u32 %v336, 7
        %v338 = vsub.s32 %v335, %v337
        %v339 = vrot.slane %v330, %v338
        %v341 = vunpack.c.l.s4 1983009808
        %v342 = vunpack.c.0.s8 %v341
        %v343 = vlaneseq
        %v344 = vshrl.u32 %v343, 7
        %v345 = vsub.s32 %v342, %v344
        %v346 = vrot.slane %v332, %v345
        %v347 = vcombine.high %v339, %v339
        %v348 = vcombine.high %v346, %v346
        %v353 = vsel %vm273, %v339, 0.0
        %v354 = vrot.slane %v353, 4
        %v355 = vadd.f32 %v353, %v354
        %v356 = vrot.slane %v355, 2
        %v357 = vadd.f32 %v355, %v356
        %v358 = vrot.slane %v357, 1
        %v359 = vadd.f32 %v357, %v358
        %v360 = vsel %vm273, %v347, 0.0
        %v361 = vrot.slane %v360, 4
        %v362 = vadd.f32 %v360, %v361
        %v363 = vrot.slane %v362, 2
        %v364 = vadd.f32 %v362, %v363
        %v365 = vrot.slane %v364, 1
        %v366 = vadd.f32 %v364, %v365
        %v367 = vsel %vm273, %v346, 0.0
        %v368 = vrot.slane %v367, 4
        %v369 = vadd.f32 %v367, %v368
        %v370 = vrot.slane %v369, 2
        %v371 = vadd.f32 %v369, %v370
        %v372 = vrot.slane %v371, 1
        %v373 = vadd.f32 %v371, %v372
        %v374 = vsel %vm273, %v348, 0.0
        %v375 = vrot.slane %v374, 4
        %v376 = vadd.f32 %v374, %v375
        %v377 = vrot.slane %v376, 2
        %v378 = vadd.f32 %v376, %v377
        %v379 = vrot.slane %v378, 1
        %v380 = vadd.f32 %v378, %v379
        %v381 = vmul.f32 %v359, %v302
        %v382 = vmul.f32 %v366, %v302
        %v383 = vmul.f32 %v373, %v302
        %v384 = vmul.f32 %v380, %v302
        %v385 = vadd.f32 %v381, 1e-05
        %v386 = vadd.f32 %v382, 1e-05
        %v387 = vadd.f32 %v383, 1e-05
        %v388 = vadd.f32 %v384, 1e-05
        %v389 = vrsqrt.pop %v385
        %v390 = vrsqrt.pop %v386
        %v391 = vrsqrt.pop %v387
        %v392 = vrsqrt.pop %v388
        %v397 = vcombine.low %v389, %v390
        %v398 = vcombine.low %v391, %v392
        %v400 = vunpack.c.l.s4 1983009808
        %v401 = vunpack.c.0.s8 %v400
        %v402 = vlaneseq
        %v403 = vshrl.u32 %v402, 7
        %v404 = vsub.s32 %v401, %v403
        %v405 = vrot.slane %v397, %v404
        %v407 = vunpack.c.l.s4 1983009808
        %v408 = vunpack.c.0.s8 %v407
        %v409 = vlaneseq
        %v410 = vshrl.u32 %v409, 7
        %v411 = vsub.s32 %v408, %v410
        %v412 = vrot.slane %v398, %v411
        %v413 = vcombine.low %v405, %v412
        %v415 = vmul.f32 %v329, %v413
        %v416 = vld [vmem:[%s196] sm:$0xf]
        %v418 = vlaneseq
        %v419 = vshrl.u32 %v418, 7
        %v420 = vsub.s32 0, %v419
        %v421 = vrot.slane %v416, %v420
        %v422 = vlaneseq
        %v423 = vshrl.u32 %v422, 7
        %v424 = vsub.s32 1, %v423
        %v425 = vrot.slane %v416, %v424
        %v426 = vlaneseq
        %v427 = vshrl.u32 %v426, 7
        %v428 = vsub.s32 2, %v427
        %v429 = vrot.slane %v416, %v428
        %v430 = vlaneseq
        %v431 = vshrl.u32 %v430, 7
        %v432 = vsub.s32 3, %v431
        %v433 = vrot.slane %v416, %v432
        %v434 = vcombine.low %v421, %v425
        %v435 = vcombine.low %v429, %v433
        %v437 = vunpack.c.l.s4 1983009808
        %v438 = vunpack.c.0.s8 %v437
        %v439 = vlaneseq
        %v440 = vshrl.u32 %v439, 7
        %v441 = vsub.s32 %v438, %v440
        %v442 = vrot.slane %v434, %v441
        %v444 = vunpack.c.l.s4 1983009808
        %v445 = vunpack.c.0.s8 %v444
        %v446 = vlaneseq
        %v447 = vshrl.u32 %v446, 7
        %v448 = vsub.s32 %v445, %v447
        %v449 = vrot.slane %v435, %v448
        %v450 = vcombine.low %v442, %v449
        %v452 = vmul.f32 %v415, %v450
        %v453 = vld [vmem:[%s205] sm:$0xf]
        %v455 = vlaneseq
        %v456 = vshrl.u32 %v455, 7
        %v457 = vsub.s32 0, %v456
        %v458 = vrot.slane %v453, %v457
        %v459 = vlaneseq
        %v460 = vshrl.u32 %v459, 7
        %v461 = vsub.s32 1, %v460
        %v462 = vrot.slane %v453, %v461
        %v463 = vlaneseq
        %v464 = vshrl.u32 %v463, 7
        %v465 = vsub.s32 2, %v464
        %v466 = vrot.slane %v453, %v465
        %v467 = vlaneseq
        %v468 = vshrl.u32 %v467, 7
        %v469 = vsub.s32 3, %v468
        %v470 = vrot.slane %v453, %v469
        %v471 = vcombine.low %v458, %v462
        %v472 = vcombine.low %v466, %v470
        %v474 = vunpack.c.l.s4 1983009808
        %v475 = vunpack.c.0.s8 %v474
        %v476 = vlaneseq
        %v477 = vshrl.u32 %v476, 7
        %v478 = vsub.s32 %v475, %v477
        %v479 = vrot.slane %v471, %v478
        %v481 = vunpack.c.l.s4 1983009808
        %v482 = vunpack.c.0.s8 %v481
        %v483 = vlaneseq
        %v484 = vshrl.u32 %v483, 7
        %v485 = vsub.s32 %v482, %v484
        %v486 = vrot.slane %v472, %v485
        %v487 = vcombine.low %v479, %v486
        %v489 = vadd.f32 %v452, %v487
        %v490 = vmax.f32 %v489, 0.0
        %v492 = vcombine.high %v490, %v490
        %v494 = vunpack.c.l.s4 1983009808
        %v495 = vunpack.c.0.s8 %v494
        %v496 = vlaneseq
        %v497 = vshrl.u32 %v496, 7
        %v498 = vsub.s32 %v495, %v497
        %v499 = vrot.slane %v490, %v498
        %v501 = vunpack.c.l.s4 1983009808
        %v502 = vunpack.c.0.s8 %v501
        %v503 = vlaneseq
        %v504 = vshrl.u32 %v503, 7
        %v505 = vsub.s32 %v502, %v504
        %v506 = vrot.slane %v492, %v505
        %v507 = vcombine.high %v499, %v499
        %v508 = vcombine.high %v506, %v506
        %v513 = vpack.c.bf16 %v499, %v499
        %v514 = vpack.c.bf16 %v507, %v507
        %v515 = vpack.c.bf16 %v506, %v506
        %v516 = vpack.c.bf16 %v508, %v508
        %v521 = vcombine.low %v513, %v514
        %v522 = vcombine.low %v515, %v516
        %v524 = vunpack.c.l.s4 1966171168
        %v525 = vunpack.c.0.s8 %v524
        %v526 = vlaneseq
        %v527 = vshrl.u32 %v526, 7
        %v528 = vsub.s32 %v525, %v527
        %v529 = vrot.slane %v521, %v528
        %v531 = vunpack.c.l.s4 1966171168
        %v532 = vunpack.c.0.s8 %v531
        %v533 = vlaneseq
        %v534 = vshrl.u32 %v533, 7
        %v535 = vsub.s32 %v532, %v534
        %v536 = vrot.slane %v522, %v535
        %v537 = vcombine.low %v529, %v536
        %v539 = vunpack.c.l.s4 1966171168
        %v540 = vunpack.c.0.s8 %v539
        %v541 = vlaneseq
        %v542 = vshrl.u32 %v541, 7
        %v543 = vsub.s32 %v540, %v542
        %v544 = vrot.slane %v537, %v543
        %546 = vst [vmem:[%s248] sm:$0xf] %v544
        %s547 = smul.u32 4, %s20
        %p548 = scmp.lt.s32.totalorder %s547, 15
        %s549 = scalar_select %p548, %s547, 15
        %s550 = scalar_lea.vmem %s3, %s549
        // Predicated region
        $region41: #{generator_forward.25} parent=31 // pred_check
          %p551 = pneg %p116
        $region42: #{generator_forward.25} parent=31 // pred_check_branch
          %553 = sbr.rel (%p551) target = $region44
        $region43: #{generator_forward.25} parent=31 // pred_region
          %s554 = smul.u32 4, %s20
        $region44: #{generator_forward.25} parent=31 // pred_fallthru
          _
      $region32: #{generator_forward.25} parent=5 // pred_fallthru
        _
      %p555 = scmp.le.s32.totalorder 2, %s15
      // Predicated region
      $region45: #{generator_forward.25} parent=5 // pred_check
        %p556 = pneg %p555
      $region46: #{generator_forward.25} parent=5 // pred_check_branch
        %558 = sbr.rel (%p556) target = $region48
      $region47: #{generator_forward.25} parent=5 // pred_region
        %s559 = ssub.s32 %s15, 2
        // Predicated region
        $region49: #{generator_forward.25} parent=47 // pred_check
          %p560 = pneg %p122
        $region50: #{generator_forward.25} parent=47 // pred_check_branch
          %562 = sbr.rel (%p560) target = $region52
        $region51: #{generator_forward.25} parent=47 // pred_region
          %s563 = smul.u32 4, %s21
          %p564 = scmp.lt.s32.totalorder %s563, 15
          %s565 = scalar_select %p564, %s563, 15
          %s566 = scalar_lea.vmem %s3, %s565
        $region52: #{generator_forward.25} parent=47 // pred_fallthru
          _
      $region48: #{generator_forward.25} parent=5 // pred_fallthru
        _
    $region6: #{generator_forward.25} parent=1 // loop_footer
      %s19 = sadd.s32 1, %s15
    $region7: #{generator_forward.25} parent=1 // loop_footer_branch
      %14 = sbr.rel target = $region3
    $region8: #{generator_forward.25} parent=1 // loop_exit
      _
    %567 = vsyncpa [#allocation3], 1
    %s568 = scalar_lea.sflag [#allocation3], 1
    %569 = vsyncpa %s568, 1
    %570 = vsyncpa [#allocation5], 1
    %s571 = scalar_lea.sflag [#allocation5], 1
    %572 = vsyncpa %s571, 1

// kernel: generator_forward.24
$region0: #{generator_forward.24}
  #allocation0 [shape = 'u32[]', space=smem, size = 0x4, offset = 0x4, fixed_abs, tag = 'smem constant byte address 0x4 - core index']
  #allocation1 [shape = 'u32[144,128]{1,0:T(1,128)}', space=vmem, size = 0x12000, scoped, tag = 'internal scratch']
  %s0 = inlined_call_operand.vmem [shape: bf16[2,32], index: 0, kind: input, shape index: {}]
  %s1 = inlined_call_operand.vmem [shape: bf16[32,2048], index: 1, kind: input, shape index: {}]
  %s2 = inlined_call_operand.vmem [shape: f32[2,2048], index: 2, kind: output, shape index: {}]
  %s3 = sld [smem:[#allocation0]]
  $region64: #{generator_forward.24} parent=0
    _
  %s5 = ssub.s32 1, %s3
  %s6 = scalar_select 0, %s5, %s3
  $region1: #{generator_forward.24} parent=0
    #allocation2 [shape = 'u8[65536]{0}', space=vmem, size = 0x10000, scoped, tag = 'input window, operand 1']
    loop: start=0, step=1, limit=6
    $region2: #{generator_forward.24} parent=1 // loop_pre_header
      _
    $region3: #{generator_forward.24} parent=1 // loop_header
      %s8 = sphi 0, %s12
      %p9 = scmp.ge.s32.totalorder %s8, 6
      %s16 = sphi 0, %s16
      %s18 = sphi 0, %s16
      %s19 = sphi 0, %s18
      %s33 = sphi 0, %s19
      %s39 = sphi 0, %s41
      %s42 = sphi 0, %s39
      %s43 = sphi 0, %s42
      %s59 = sphi 0, %s43
      %s65 = sphi 0, %s67
      %s68 = sphi 0, %s65
      %s69 = sphi 0, %s68
      %s85 = sphi 0, %s69
    $region4: #{generator_forward.24} parent=1 // loop_header_branch
      %11 = sbr.rel (%p9) target = $region8
    $region5: #{generator_forward.24} parent=1 // loop_body
      %s13 = ssub.s32 %s8, 1
      %s14 = ssub.s32 %s8, 2
      %s15 = sadd.s32 %s8, 1
      %s17 = sadd.s32 %s16, 1
      %p20 = scmp.eq.s32.totalorder %s8, 3
      %p21 = scmp.ne.s32.totalorder %s16, %s18
      %p22 = scmp.eq.s32.totalorder %s8, 0
      %p23 = por %p21, %p22
      %p24 = scmp.ne.s32.totalorder %s16, %s18
      %p25 = scmp.eq.s32.totalorder %s13, 3
      %p26 = por %p24, %p25
      %p27 = scmp.ne.s32.totalorder %s18, %s19
      %p28 = scmp.eq.s32.totalorder %s13, 0
      %p29 = por %p27, %p28
      %p30 = scmp.ne.s32.totalorder %s18, %s19
      %p31 = scmp.eq.s32.totalorder %s14, 3
      %p32 = por %p30, %p31
      %p34 = scmp.ne.s32.totalorder %s19, %s33
      %p35 = scmp.eq.s32.totalorder %s14, 0
      %p36 = por %p34, %p35
      %s37 = ssub.s32 %s8, %s15
      %p38 = scmp.eq.s32.totalorder %s37, 0
      %s40 = sadd.s32 %s39, 1
      %s41 = scalar_select %p38, %s39, %s40
      %p44 = pneg %p38
      %p45 = scmp.eq.s32.totalorder %s8, 3
      %p46 = por %p44, %p45
      %p47 = scmp.ne.s32.totalorder %s39, %s42
      %p48 = scmp.eq.s32.totalorder %s8, 0
      %p49 = por %p47, %p48
      %p50 = scmp.ne.s32.totalorder %s39, %s42
      %p51 = scmp.eq.s32.totalorder %s13, 3
      %p52 = por %p50, %p51
      %p53 = scmp.ne.s32.totalorder %s42, %s43
      %p54 = scmp.eq.s32.totalorder %s13, 0
      %p55 = por %p53, %p54
      %p56 = scmp.ne.s32.totalorder %s42, %s43
      %p57 = scmp.eq.s32.totalorder %s14, 3
      %p58 = por %p56, %p57
      %p60 = scmp.ne.s32.totalorder %s43, %s59
      %p61 = scmp.eq.s32.totalorder %s14, 0
      %p62 = por %p60, %p61
      %s63 = ssub.s32 %s8, %s15
      %p64 = scmp.eq.s32.totalorder %s63, 0
      %s66 = sadd.s32 %s65, 1
      %s67 = scalar_select %p64, %s65, %s66
      %p70 = pneg %p64
      %p71 = scmp.eq.s32.totalorder %s8, 3
      %p72 = por %p70, %p71
      %p73 = scmp.ne.s32.totalorder %s65, %s68
      %p74 = scmp.eq.s32.totalorder %s8, 0
      %p75 = por %p73, %p74
      %p76 = scmp.ne.s32.totalorder %s65, %s68
      %p77 = scmp.eq.s32.totalorder %s13, 3
      %p78 = por %p76, %p77
      %p79 = scmp.ne.s32.totalorder %s68, %s69
      %p80 = scmp.eq.s32.totalorder %s13, 0
      %p81 = por %p79, %p80
      %p82 = scmp.ne.s32.totalorder %s68, %s69
      %p83 = scmp.eq.s32.totalorder %s14, 3
      %p84 = por %p82, %p83
      %p86 = scmp.ne.s32.totalorder %s69, %s85
      %p87 = scmp.eq.s32.totalorder %s14, 0
      %p88 = por %p86, %p87
      %p89 = scmp.le.s32.totalorder 1, %s8
      %p90 = scmp.lt.s32.totalorder %s8, 5
      %p91 = pnand %p89, %p90
      %p92 = pneg %p91
      // Predicated region
      $region9: #{generator_forward.24} parent=5 // pred_check
        _
      $region10: #{generator_forward.24} parent=5 // pred_check_branch
        %94 = sbr.rel (%p91) target = $region12
      $region11: #{generator_forward.24} parent=5 // pred_region
        %s95 = ssub.s32 %s8, 1
        // Predicated region
        $region13: #{generator_forward.24} parent=11 // pred_check
          %p96 = pneg %p29
        $region14: #{generator_forward.24} parent=11 // pred_check_branch
          %98 = sbr.rel (%p96) target = $region16
        $region15: #{generator_forward.24} parent=11 // pred_region
          _
        $region16: #{generator_forward.24} parent=11 // pred_fallthru
          _
      $region12: #{generator_forward.24} parent=5 // pred_fallthru
        _
      %p99 = scmp.lt.s32.totalorder %s8, 4
      // Predicated region
      $region17: #{generator_forward.24} parent=5 // pred_check
        %p100 = pneg %p99
      $region18: #{generator_forward.24} parent=5 // pred_check_branch
        %102 = sbr.rel (%p100) target = $region20
      $region19: #{generator_forward.24} parent=5 // pred_region
        // Predicated region
        $region21: #{generator_forward.24} parent=19 // pred_check
          %p103 = pneg %p49
        $region22: #{generator_forward.24} parent=19 // pred_check_branch
          %105 = sbr.rel (%p103) target = $region24
        $region23: #{generator_forward.24} parent=19 // pred_region
          %s106 = sand.u32 %s39, 1
          %s107 = sand.u32 %s39, 1
          %s108 = smul.addr %s107, 64
          %s109 = scalar_lea.vmem [#allocation2], %s108
          %s110 = smul.u32 4, %s8
          %s111 = smul.addr %s110, 4
          %s112 = scalar_lea.vmem %s1, %s111
          // Predicated region
          $region25: #{generator_forward.24} parent=23 // pred_check
            _
          $region26: #{generator_forward.24} parent=23 // pred_check_branch
            %114 = sbr.rel (0) target = $region28
          $region27: #{generator_forward.24} parent=23 // pred_region
            // Predicated region
            $region29: #{generator_forward.24} parent=27 // pred_check
              _
            $region30: #{generator_forward.24} parent=27 // pred_check_branch
              %116 = sbr.rel (0) target = $region32
            $region31: #{generator_forward.24} parent=27 // pred_region
              loop: start=0, step=1, limit=1
              $region33: #{generator_forward.24} parent=31 // loop_pre_header
                _
              $region34: #{generator_forward.24} parent=31 // loop_header
                %s118 = sphi 0, %s122
                %p119 = scmp.ge.s32.totalorder %s118, 1
                %s123 = sphi %s112, %s112
                %s124 = sphi %s109, %s109
              $region35: #{generator_forward.24} parent=31 // loop_header_branch
                %121 = sbr.rel (%p119) target = $region39
              $region36: #{generator_forward.24} parent=31 // loop_body
                %v125 = vld [vmem:[%s123] sm:$0xff]
                %126 = vst [vmem:[%s124] sm:$0xff] %v125
                %v127 = vld [vmem:[%s123 + $0x8] sm:$0xff]
                %128 = vst [vmem:[%s124 + $0x8] sm:$0xff] %v127
                %v129 = vld [vmem:[%s123 + $0x40] sm:$0xff]
                %130 = vst [vmem:[%s124 + $0x10] sm:$0xff] %v129
                %v131 = vld [vmem:[%s123 + $0x48] sm:$0xff]
                %132 = vst [vmem:[%s124 + $0x18] sm:$0xff] %v131
                %v133 = vld [vmem:[%s123 + $0x80] sm:$0xff]
                %134 = vst [vmem:[%s124 + $0x20] sm:$0xff] %v133
                %v135 = vld [vmem:[%s123 + $0x88] sm:$0xff]
                %136 = vst [vmem:[%s124 + $0x28] sm:$0xff] %v135
                %v137 = vld [vmem:[%s123 + $0xc0] sm:$0xff]
                %138 = vst [vmem:[%s124 + $0x30] sm:$0xff] %v137
                %v139 = vld [vmem:[%s123 + $0xc8] sm:$0xff]
                %140 = vst [vmem:[%s124 + $0x38] sm:$0xff] %v139
              $region37: #{generator_forward.24} parent=31 // loop_footer
                %s122 = sadd.s32 1, %s118
              $region38: #{generator_forward.24} parent=31 // loop_footer_branch
                %117 = sbr.rel target = $region34
              $region39: #{generator_forward.24} parent=31 // loop_exit
                _
            $region32: #{generator_forward.24} parent=27 // pred_fallthru
              _
            // Predicated region
            $region40: #{generator_forward.24} parent=27 // pred_check
              _
            $region41: #{generator_forward.24} parent=27 // pred_check_branch
              %142 = sbr.rel target = $region43
            $region42: #{generator_forward.24} parent=27 // pred_region
              _
            $region43: #{generator_forward.24} parent=27 // pred_fallthru
              _
          $region28: #{generator_forward.24} parent=23 // pred_fallthru
            _
          %143 = vnop
        $region24: #{generator_forward.24} parent=19 // pred_fallthru
          _
      $region20: #{generator_forward.24} parent=5 // pred_fallthru
        _
      %p144 = scmp.le.s32.totalorder 1, %s8
      %p145 = scmp.lt.s32.totalorder %s8, 5
      %p146 = pnand %p144, %p145
      %p147 = pneg %p146
      // Predicated region
      $region44: #{generator_forward.24} parent=5 // pred_check
        _
      $region45: #{generator_forward.24} parent=5 // pred_check_branch
        %149 = sbr.rel (%p146) target = $region47
      $region46: #{generator_forward.24} parent=5 // pred_region
        %s150 = ssub.s32 %s8, 1
        %s151 = sand.u32 %s42, 1
        %s152 = sand.u32 %s42, 1
        %s153 = smul.addr %s152, 64
        %s154 = scalar_lea.vmem [#allocation2], %s153
        // Predicated region
        $region48: #{generator_forward.24} parent=46 // pred_check
          %p155 = pneg %p55
        $region49: #{generator_forward.24} parent=46 // pred_check_branch
          %157 = sbr.rel (%p155) target = $region51
        $region50: #{generator_forward.24} parent=46 // pred_region
          _
        $region51: #{generator_forward.24} parent=46 // pred_fallthru
          _
        %p158 = pneg %p29
        %p159 = pneg %p26
        %s160 = sand.u32 %s42, 1
        %s161 = sand.u32 %s42, 1
        %s162 = smul.addr %s161, 64
        %s163 = scalar_lea.vmem [#allocation2], %s162
        %p164 = pneg %p55
        %p165 = pneg %p52
        %p166 = pneg %p81
        %p167 = pneg %p78
        %s168 = smul.u32 4, %s13
        %p169 = scmp.lt.s32.totalorder %s168, 15
        %s170 = scalar_select %p169, %s168, 15
        %s171 = smul.addr %s170, 2
        %s172 = scalar_lea.vmem %s2, %s171
        %s173 = smul.u32 4, %s13
        %s174 = smul.u32 4, %s13
        %p175 = scmp.lt.s32.totalorder %s174, 15
        %s176 = scalar_select %p175, %s174, 15
        %s177 = smul.addr %s176, 2
        %s178 = scalar_lea.vmem %s2, %s177
        %s179 = smul.u32 4, %s13
        %v181 = vld [vmem:[%s0] sm:$0x1]
        %v182 = vld [vmem:[%s154] sm:$0xff]
        %v183 = vld [vmem:[%s154 + $0x8] sm:$0xff]
        %v184 = vld [vmem:[%s154 + $0x10] sm:$0xff]
        %v185 = vld [vmem:[%s154 + $0x18] sm:$0xff]
        %v186 = vld [vmem:[%s154 + $0x20] sm:$0xff]
        %v187 = vld [vmem:[%s154 + $0x28] sm:$0xff]
        %v188 = vld [vmem:[%s154 + $0x30] sm:$0xff]
        %v189 = vld [vmem:[%s154 + $0x38] sm:$0xff]
        %v198 = vunpack.c.l.b16 %v182
        %v199 = vunpack.c.h.b16 %v182
        %v200 = vunpack.c.l.b16 %v183
        %v201 = vunpack.c.h.b16 %v183
        %v202 = vunpack.c.l.b16 %v184
        %v203 = vunpack.c.h.b16 %v184
        %v204 = vunpack.c.l.b16 %v185
        %v205 = vunpack.c.h.b16 %v185
        %v206 = vunpack.c.l.b16 %v186
        %v207 = vunpack.c.h.b16 %v186
        %v208 = vunpack.c.l.b16 %v187
        %v209 = vunpack.c.h.b16 %v187
        %v210 = vunpack.c.l.b16 %v188
        %v211 = vunpack.c.h.b16 %v188
        %v212 = vunpack.c.l.b16 %v189
        %v213 = vunpack.c.h.b16 %v189
        %v214 = vpack.c.b16 %v202, %v198
        %v215 = vpack.c.b16 %v203, %v199
        %v216 = vpack.c.b16 %v204, %v200
        %v217 = vpack.c.b16 %v205, %v201
        %v218 = vpack.c.b16 %v210, %v206
        %v219 = vpack.c.b16 %v211, %v207
        %v220 = vpack.c.b16 %v212, %v208
        %v221 = vpack.c.b16 %v213, %v209
        %vm230 = vcmask 261120
        %v232 = vsel %vm230, %v181, 0
        %234 = vmatprep.subr.bf16.mxu0 %v215
        %235 = vmatpush1.bf16.msra.mxu0 %v214
        %236 = vmatprep.subr.bf16.mxu0 %v219
        %237 = vmatpush1.bf16.msra.mxu0 %v218
        %238 = vmatprep.subr.bf16.mxu0 0
        %239 = vmatpush1.bf16.msra.mxu0 0
        %240 = vmatprep.subr.bf16.mxu0 0
        %241 = vmatpush1.bf16.msra.mxu0 0
        %242 = vmatprep.subr.bf16.mxu0 0
        %243 = vmatpush1.bf16.msra.mxu0 0
        %244 = vmatprep.subr.bf16.mxu0 0
        %245 = vmatpush1.bf16.msra.mxu0 0
        %246 = vmatprep.subr.bf16.mxu0 0
        %247 = vmatpush1.bf16.msra.mxu0 0
        %248 = vmatprep.subr.bf16.mxu0 0
        %249 = vmatpush1.bf16.msra.mxu0 0
        %250 = vmatprep.subr.bf16.mxu0 0
        %251 = vmatpush1.bf16.msra.mxu0 0
        %252 = vmatprep.subr.bf16.mxu0 0
        %253 = vmatpush1.bf16.msra.mxu0 0
        %254 = vmatprep.subr.bf16.mxu0 0
        %255 = vmatpush1.bf16.msra.mxu0 0
        %256 = vmatprep.subr.bf16.mxu0 0
        %257 = vmatpush1.bf16.msra.mxu0 0
        %258 = vmatprep.subr.bf16.mxu0 0
        %259 = vmatpush1.bf16.msra.mxu0 0
        %260 = vmatprep.subr.bf16.mxu0 0
        %261 = vmatpush1.bf16.msra.mxu0 0
        %262 = vmatprep.subr.bf16.mxu0 0
        %263 = vmatpush1.bf16.msra.mxu0 0
        %264 = vmatprep.subr.bf16.mxu0 0
        %265 = vmatpush1.bf16.msra.mxu0 0
        %266 = vmatprep.mubr.bf16.mxu0 0
        %267 = vmatmul.mubr.bf16.gmra.mrb[0].mxu0 %v232
        %v268 = vpop.f32.mrb[0].mxu0
        %v269 = vadd.f32 0.0, %v268
        %v270 = vpop.f32.mrb[0].mxu0
        %v271 = vadd.f32 0.0, %v270
        %v272 = vpop.f32.mrb[0].mxu0
        %v273 = vpop.f32.mrb[0].mxu0
        %274 = vdwg.mxu0
        %275 = vmatprep.subr.bf16.mxu0 %v217
        %276 = vmatpush1.bf16.msra.mxu0 %v216
        %277 = vmatprep.subr.bf16.mxu0 %v221
        %278 = vmatpush1.bf16.msra.mxu0 %v220
        %279 = vmatprep.subr.bf16.mxu0 0
        %280 = vmatpush1.bf16.msra.mxu0 0
        %281 = vmatprep.subr.bf16.mxu0 0
        %282 = vmatpush1.bf16.msra.mxu0 0
        %283 = vmatprep.subr.bf16.mxu0 0
        %284 = vmatpush1.bf16.msra.mxu0 0
        %285 = vmatprep.subr.bf16.mxu0 0
        %286 = vmatpush1.bf16.msra.mxu0 0
        %287 = vmatprep.subr.bf16.mxu0 0
        %288 = vmatpush1.bf16.msra.mxu0 0
        %289 = vmatprep.subr.bf16.mxu0 0
        %290 = vmatpush1.bf16.msra.mxu0 0
        %291 = vmatprep.subr.bf16.mxu0 0
        %292 = vmatpush1.bf16.msra.mxu0 0
        %293 = vmatprep.subr.bf16.mxu0 0
        %294 = vmatpush1.bf16.msra.mxu0 0
        %295 = vmatprep.subr.bf16.mxu0 0
        %296 = vmatpush1.bf16.msra.mxu0 0
        %297 = vmatprep.subr.bf16.mxu0 0
        %298 = vmatpush1.bf16.msra.mxu0 0
        %299 = vmatprep.subr.bf16.mxu0 0
        %300 = vmatpush1.bf16.msra.mxu0 0
        %301 = vmatprep.subr.bf16.mxu0 0
        %302 = vmatpush1.bf16.msra.mxu0 0
        %303 = vmatprep.subr.bf16.mxu0 0
        %304 = vmatpush1.bf16.msra.mxu0 0
        %305 = vmatprep.subr.bf16.mxu0 0
        %306 = vmatpush1.bf16.msra.mxu0 0
        %307 = vmatprep.mubr.bf16.mxu0 0
        %308 = vmatmul.mubr.bf16.gmra.mrb[0].mxu0 %v232
        %v309 = vpop.f32.mrb[0].mxu0
        %v310 = vadd.f32 0.0, %v309
        %v311 = vpop.f32.mrb[0].mxu0
        %v312 = vadd.f32 0.0, %v311
        %v313 = vpop.f32.mrb[0].mxu0
        %v314 = vpop.f32.mrb[0].mxu0
        %315 = vdwg.mxu0
        %v320 = vcombine.low %v269, %v271
        %v321 = vcombine.low %v310, %v312
        %v323 = vunpack.c.l.s4 1983009808
        %v324 = vunpack.c.0.s8 %v323
        %v325 = vlaneseq
        %v326 = vshrl.u32 %v325, 7
        %v327 = vsub.s32 %v324, %v326
        %v328 = vrot.slane %v320, %v327
        %v330 = vunpack.c.l.s4 1983009808
        %v331 = vunpack.c.0.s8 %v330
        %v332 = vlaneseq
        %v333 = vshrl.u32 %v332, 7
        %v334 = vsub.s32 %v331, %v333
        %v335 = vrot.slane %v321, %v334
        %v336 = vcombine.low %v328, %v335
        %338 = vst [vmem:[%s178] sm:$0xff] %v336
        %s339 = smul.u32 4, %s13
        %p340 = scmp.lt.s32.totalorder %s339, 15
        %s341 = scalar_select %p340, %s339, 15
        %s342 = smul.addr %s341, 2
        %s343 = scalar_lea.vmem %s2, %s342
        // Predicated region
        $region52: #{generator_forward.24} parent=46 // pred_check
          %p344 = pneg %p78
        $region53: #{generator_forward.24} parent=46 // pred_check_branch
          %346 = sbr.rel (%p344) target = $region55
        $region54: #{generator_forward.24} parent=46 // pred_region
          %s347 = smul.u32 4, %s13
        $region55: #{generator_forward.24} parent=46 // pred_fallthru
          _
      $region47: #{generator_forward.24} parent=5 // pred_fallthru
        _
      %p348 = scmp.le.s32.totalorder 2, %s8
      // Predicated region
      $region56: #{generator_forward.24} parent=5 // pred_check
        %p349 = pneg %p348
      $region57: #{generator_forward.24} parent=5 // pred_check_branch
        %351 = sbr.rel (%p349) target = $region59
      $region58: #{generator_forward.24} parent=5 // pred_region
        %s352 = ssub.s32 %s8, 2
        // Predicated region
        $region60: #{generator_forward.24} parent=58 // pred_check
          %p353 = pneg %p84
        $region61: #{generator_forward.24} parent=58 // pred_check_branch
          %355 = sbr.rel (%p353) target = $region63
        $region62: #{generator_forward.24} parent=58 // pred_region
          %s356 = smul.u32 4, %s14
          %p357 = scmp.lt.s32.totalorder %s356, 15
          %s358 = scalar_select %p357, %s356, 15
          %s359 = smul.addr %s358, 2
          %s360 = scalar_lea.vmem %s2, %s359
        $region63: #{generator_forward.24} parent=58 // pred_fallthru
          _
      $region59: #{generator_forward.24} parent=5 // pred_fallthru
        _
    $region6: #{generator_forward.24} parent=1 // loop_footer
      %s12 = sadd.s32 1, %s8
    $region7: #{generator_forward.24} parent=1 // loop_footer_branch
      %7 = sbr.rel target = $region3
    $region8: #{generator_forward.24} parent=1 // loop_exit
      _

// kernel: generator_forward.26
$region0: #{generator_forward.26}
  #allocation0 [shape = 'u32[]', space=smem, size = 0x4, offset = 0x4, fixed_abs, tag = 'smem constant byte address 0x4 - core index']
  #allocation1 [shape = 'u32[144,128]{1,0:T(1,128)}', space=vmem, size = 0x12000, scoped, tag = 'internal scratch']
  %s0 = inlined_call_operand.vmem [shape: bf16[64,1152], index: 0, kind: input, shape index: {}]
  %s1 = inlined_call_operand.vmem [shape: bf16[1152,32], index: 1, kind: input, shape index: {}]
  %s2 = inlined_call_operand.vmem [shape: f32[64,32], index: 2, kind: output, shape index: {}]
  %s3 = sld [smem:[#allocation0]]
  $region18: #{generator_forward.26} parent=0
    _
  %s5 = ssub.s32 1, %s3
  %s6 = scalar_select 0, %s5, %s3
  // Predicated region
  $region2: #{generator_forward.26} parent=0 // pred_check
    _
  $region3: #{generator_forward.26} parent=0 // pred_check_branch
    %8 = sbr.rel (0) target = $region5
  $region4: #{generator_forward.26} parent=0 // pred_region
    _
  $region5: #{generator_forward.26} parent=0 // pred_fallthru
    _
  // Predicated region
  $region6: #{generator_forward.26} parent=0 // pred_check
    _
  $region7: #{generator_forward.26} parent=0 // pred_check_branch
    %10 = sbr.rel (0) target = $region9
  $region8: #{generator_forward.26} parent=0 // pred_region
    _
  $region9: #{generator_forward.26} parent=0 // pred_fallthru
    _
  %v12 = vld [vmem:[%s0] sm:$0xff]
  %v13 = vld [vmem:[%s0 + $0x8] sm:$0xff]
  %v14 = vld [vmem:[%s0 + $0x10] sm:$0xff]
  %v15 = vld [vmem:[%s0 + $0x18] sm:$0xff]
  %v16 = vld [vmem:[%s0 + $0x20] sm:$0xf]
  %v17 = vld [vmem:[%s0 + $0x24] sm:$0xff]
  %v18 = vld [vmem:[%s0 + $0x2c] sm:$0xff]
  %v19 = vld [vmem:[%s0 + $0x34] sm:$0xff]
  %v20 = vld [vmem:[%s0 + $0x3c] sm:$0xff]
  %v21 = vld [vmem:[%s0 + $0x44] sm:$0xf]
  %v22 = vld [vmem:[%s0 + $0x48] sm:$0xff]
  %v23 = vld [vmem:[%s0 + $0x50] sm:$0xff]
  %v24 = vld [vmem:[%s0 + $0x58] sm:$0xff]
  %v25 = vld [vmem:[%s0 + $0x60] sm:$0xff]
  %v26 = vld [vmem:[%s0 + $0x68] sm:$0xf]
  %v27 = vld [vmem:[%s0 + $0x6c] sm:$0xff]
  %v28 = vld [vmem:[%s0 + $0x74] sm:$0xff]
  %v29 = vld [vmem:[%s0 + $0x7c] sm:$0xff]
  %v30 = vld [vmem:[%s0 + $0x84] sm:$0xff]
  %v31 = vld [vmem:[%s0 + $0x8c] sm:$0xf]
  %v32 = vld [vmem:[%s0 + $0x90] sm:$0xff]
  %v33 = vld [vmem:[%s0 + $0x98] sm:$0xff]
  %v34 = vld [vmem:[%s0 + $0xa0] sm:$0xff]
  %v35 = vld [vmem:[%s0 + $0xa8] sm:$0xff]
  %v36 = vld [vmem:[%s0 + $0xb0] sm:$0xf]
  %v37 = vld [vmem:[%s0 + $0xb4] sm:$0xff]
  %v38 = vld [vmem:[%s0 + $0xbc] sm:$0xff]
  %v39 = vld [vmem:[%s0 + $0xc4] sm:$0xff]
  %v40 = vld [vmem:[%s0 + $0xcc] sm:$0xff]
  %v41 = vld [vmem:[%s0 + $0xd4] sm:$0xf]
  %v42 = vld [vmem:[%s0 + $0xd8] sm:$0xff]
  %v43 = vld [vmem:[%s0 + $0xe0] sm:$0xff]
  %v44 = vld [vmem:[%s0 + $0xe8] sm:$0xff]
  %v45 = vld [vmem:[%s0 + $0xf0] sm:$0xff]
  %v46 = vld [vmem:[%s0 + $0xf8] sm:$0xf]
  %v47 = vld [vmem:[%s0 + $0xfc] sm:$0xff]
  %v48 = vld [vmem:[%s0 + $0x104] sm:$0xff]
  %v49 = vld [vmem:[%s0 + $0x10c] sm:$0xff]
  %v50 = vld [vmem:[%s0 + $0x114] sm:$0xff]
  %v51 = vld [vmem:[%s0 + $0x11c] sm:$0xf]
  %v52 = vld [vmem:[%s1] sm:$0xf]
  %v53 = vld [vmem:[%s1 + $0x4] sm:$0xf]
  %v54 = vld [vmem:[%s1 + $0x8] sm:$0xf]
  %v55 = vld [vmem:[%s1 + $0xc] sm:$0xf]
  %v56 = vld [vmem:[%s1 + $0x10] sm:$0xf]
  %v57 = vld [vmem:[%s1 + $0x14] sm:$0xf]
  %v58 = vld [vmem:[%s1 + $0x18] sm:$0xf]
  %v59 = vld [vmem:[%s1 + $0x1c] sm:$0xf]
  %v60 = vld [vmem:[%s1 + $0x20] sm:$0xf]
  %v61 = vld [vmem:[%s1 + $0x24] sm:$0xf]
  %v62 = vld [vmem:[%s1 + $0x28] sm:$0xf]
  %v63 = vld [vmem:[%s1 + $0x2c] sm:$0xf]
  %v64 = vld [vmem:[%s1 + $0x30] sm:$0xf]
  %v65 = vld [vmem:[%s1 + $0x34] sm:$0xf]
  %v66 = vld [vmem:[%s1 + $0x38] sm:$0xf]
  %v67 = vld [vmem:[%s1 + $0x3c] sm:$0xf]
  %v68 = vld [vmem:[%s1 + $0x40] sm:$0xf]
  %v69 = vld [vmem:[%s1 + $0x44] sm:$0xf]
  %v70 = vld [vmem:[%s1 + $0x48] sm:$0xf]
  %v71 = vld [vmem:[%s1 + $0x4c] sm:$0xf]
  %v72 = vld [vmem:[%s1 + $0x50] sm:$0xf]
  %v73 = vld [vmem:[%s1 + $0x54] sm:$0xf]
  %v74 = vld [vmem:[%s1 + $0x58] sm:$0xf]
  %v75 = vld [vmem:[%s1 + $0x5c] sm:$0xf]
  %v76 = vld [vmem:[%s1 + $0x60] sm:$0xf]
  %v77 = vld [vmem:[%s1 + $0x64] sm:$0xf]
  %v78 = vld [vmem:[%s1 + $0x68] sm:$0xf]
  %v79 = vld [vmem:[%s1 + $0x6c] sm:$0xf]
  %v80 = vld [vmem:[%s1 + $0x70] sm:$0xf]
  %v81 = vld [vmem:[%s1 + $0x74] sm:$0xf]
  %v82 = vld [vmem:[%s1 + $0x78] sm:$0xf]
  %v83 = vld [vmem:[%s1 + $0x7c] sm:$0xf]
  %v84 = vld [vmem:[%s1 + $0x80] sm:$0xf]
  %v85 = vld [vmem:[%s1 + $0x84] sm:$0xf]
  %v86 = vld [vmem:[%s1 + $0x88] sm:$0xf]
  %v87 = vld [vmem:[%s1 + $0x8c] sm:$0xf]
  %v88 = vld [vmem:[%s1 + $0x90] sm:$0xf]
  %v89 = vld [vmem:[%s1 + $0x94] sm:$0xf]
  %v90 = vld [vmem:[%s1 + $0x98] sm:$0xf]
  %v91 = vld [vmem:[%s1 + $0x9c] sm:$0xf]
  %v92 = vld [vmem:[%s1 + $0xa0] sm:$0xf]
  %v93 = vld [vmem:[%s1 + $0xa4] sm:$0xf]
  %v94 = vld [vmem:[%s1 + $0xa8] sm:$0xf]
  %v95 = vld [vmem:[%s1 + $0xac] sm:$0xf]
  %v96 = vld [vmem:[%s1 + $0xb0] sm:$0xf]
  %v97 = vld [vmem:[%s1 + $0xb4] sm:$0xf]
  %v98 = vld [vmem:[%s1 + $0xb8] sm:$0xf]
  %v99 = vld [vmem:[%s1 + $0xbc] sm:$0xf]
  %v100 = vld [vmem:[%s1 + $0xc0] sm:$0xf]
  %v101 = vld [vmem:[%s1 + $0xc4] sm:$0xf]
  %v102 = vld [vmem:[%s1 + $0xc8] sm:$0xf]
  %v103 = vld [vmem:[%s1 + $0xcc] sm:$0xf]
  %v104 = vld [vmem:[%s1 + $0xd0] sm:$0xf]
  %v105 = vld [vmem:[%s1 + $0xd4] sm:$0xf]
  %v106 = vld [vmem:[%s1 + $0xd8] sm:$0xf]
  %v107 = vld [vmem:[%s1 + $0xdc] sm:$0xf]
  %v108 = vld [vmem:[%s1 + $0xe0] sm:$0xf]
  %v109 = vld [vmem:[%s1 + $0xe4] sm:$0xf]
  %v110 = vld [vmem:[%s1 + $0xe8] sm:$0xf]
  %v111 = vld [vmem:[%s1 + $0xec] sm:$0xf]
  %v112 = vld [vmem:[%s1 + $0xf0] sm:$0xf]
  %v113 = vld [vmem:[%s1 + $0xf4] sm:$0xf]
  %v114 = vld [vmem:[%s1 + $0xf8] sm:$0xf]
  %v115 = vld [vmem:[%s1 + $0xfc] sm:$0xf]
  %v116 = vld [vmem:[%s1 + $0x100] sm:$0xf]
  %v117 = vld [vmem:[%s1 + $0x104] sm:$0xf]
  %v118 = vld [vmem:[%s1 + $0x108] sm:$0xf]
  %v119 = vld [vmem:[%s1 + $0x10c] sm:$0xf]
  %v120 = vld [vmem:[%s1 + $0x110] sm:$0xf]
  %v121 = vld [vmem:[%s1 + $0x114] sm:$0xf]
  %v122 = vld [vmem:[%s1 + $0x118] sm:$0xf]
  %v123 = vld [vmem:[%s1 + $0x11c] sm:$0xf]
  %v124 = vld [vmem:[%s1 + $0x120] sm:$0xf]
  %v125 = vld [vmem:[%s1 + $0x124] sm:$0xf]
  %v126 = vld [vmem:[%s1 + $0x128] sm:$0xf]
  %v127 = vld [vmem:[%s1 + $0x12c] sm:$0xf]
  %v128 = vld [vmem:[%s1 + $0x130] sm:$0xf]
  %v129 = vld [vmem:[%s1 + $0x134] sm:$0xf]
  %v130 = vld [vmem:[%s1 + $0x138] sm:$0xf]
  %v131 = vld [vmem:[%s1 + $0x13c] sm:$0xf]
  %v132 = vld [vmem:[%s1 + $0x140] sm:$0xf]
  %v133 = vld [vmem:[%s1 + $0x144] sm:$0xf]
  %v134 = vld [vmem:[%s1 + $0x148] sm:$0xf]
  %v135 = vld [vmem:[%s1 + $0x14c] sm:$0xf]
  %v136 = vld [vmem:[%s1 + $0x150] sm:$0xf]
  %v137 = vld [vmem:[%s1 + $0x154] sm:$0xf]
  %v138 = vld [vmem:[%s1 + $0x158] sm:$0xf]
  %v139 = vld [vmem:[%s1 + $0x15c] sm:$0xf]
  %v140 = vld [vmem:[%s1 + $0x160] sm:$0xf]
  %v141 = vld [vmem:[%s1 + $0x164] sm:$0xf]
  %v142 = vld [vmem:[%s1 + $0x168] sm:$0xf]
  %v143 = vld [vmem:[%s1 + $0x16c] sm:$0xf]
  %v144 = vld [vmem:[%s1 + $0x170] sm:$0xf]
  %v145 = vld [vmem:[%s1 + $0x174] sm:$0xf]
  %v146 = vld [vmem:[%s1 + $0x178] sm:$0xf]
  %v147 = vld [vmem:[%s1 + $0x17c] sm:$0xf]
  %v148 = vld [vmem:[%s1 + $0x180] sm:$0xf]
  %v149 = vld [vmem:[%s1 + $0x184] sm:$0xf]
  %v150 = vld [vmem:[%s1 + $0x188] sm:$0xf]
  %v151 = vld [vmem:[%s1 + $0x18c] sm:$0xf]
  %v152 = vld [vmem:[%s1 + $0x190] sm:$0xf]
  %v153 = vld [vmem:[%s1 + $0x194] sm:$0xf]
  %v154 = vld [vmem:[%s1 + $0x198] sm:$0xf]
  %v155 = vld [vmem:[%s1 + $0x19c] sm:$0xf]
  %v156 = vld [vmem:[%s1 + $0x1a0] sm:$0xf]
  %v157 = vld [vmem:[%s1 + $0x1a4] sm:$0xf]
  %v158 = vld [vmem:[%s1 + $0x1a8] sm:$0xf]
  %v159 = vld [vmem:[%s1 + $0x1ac] sm:$0xf]
  %v160 = vld [vmem:[%s1 + $0x1b0] sm:$0xf]
  %v161 = vld [vmem:[%s1 + $0x1b4] sm:$0xf]
  %v162 = vld [vmem:[%s1 + $0x1b8] sm:$0xf]
  %v163 = vld [vmem:[%s1 + $0x1bc] sm:$0xf]
  %v164 = vld [vmem:[%s1 + $0x1c0] sm:$0xf]
  %v165 = vld [vmem:[%s1 + $0x1c4] sm:$0xf]
  %v166 = vld [vmem:[%s1 + $0x1c8] sm:$0xf]
  %v167 = vld [vmem:[%s1 + $0x1cc] sm:$0xf]
  %v168 = vld [vmem:[%s1 + $0x1d0] sm:$0xf]
  %v169 = vld [vmem:[%s1 + $0x1d4] sm:$0xf]
  %v170 = vld [vmem:[%s1 + $0x1d8] sm:$0xf]
  %v171 = vld [vmem:[%s1 + $0x1dc] sm:$0xf]
  %v172 = vld [vmem:[%s1 + $0x1e0] sm:$0xf]
  %v173 = vld [vmem:[%s1 + $0x1e4] sm:$0xf]
  %v174 = vld [vmem:[%s1 + $0x1e8] sm:$0xf]
  %v175 = vld [vmem:[%s1 + $0x1ec] sm:$0xf]
  %v176 = vld [vmem:[%s1 + $0x1f0] sm:$0xf]
  %v177 = vld [vmem:[%s1 + $0x1f4] sm:$0xf]
  %v178 = vld [vmem:[%s1 + $0x1f8] sm:$0xf]
  %v179 = vld [vmem:[%s1 + $0x1fc] sm:$0xf]
  %v180 = vld [vmem:[%s1 + $0x200] sm:$0xf]
  %v181 = vld [vmem:[%s1 + $0x204] sm:$0xf]
  %v182 = vld [vmem:[%s1 + $0x208] sm:$0xf]
  %v183 = vld [vmem:[%s1 + $0x20c] sm:$0xf]
  %v184 = vld [vmem:[%s1 + $0x210] sm:$0xf]
  %v185 = vld [vmem:[%s1 + $0x214] sm:$0xf]
  %v186 = vld [vmem:[%s1 + $0x218] sm:$0xf]
  %v187 = vld [vmem:[%s1 + $0x21c] sm:$0xf]
  %v188 = vld [vmem:[%s1 + $0x220] sm:$0xf]
  %v189 = vld [vmem:[%s1 + $0x224] sm:$0xf]
  %v190 = vld [vmem:[%s1 + $0x228] sm:$0xf]
  %v191 = vld [vmem:[%s1 + $0x22c] sm:$0xf]
  %v192 = vld [vmem:[%s1 + $0x230] sm:$0xf]
  %v193 = vld [vmem:[%s1 + $0x234] sm:$0xf]
  %v194 = vld [vmem:[%s1 + $0x238] sm:$0xf]
  %v195 = vld [vmem:[%s1 + $0x23c] sm:$0xf]
  %v236 = vunpack.c.l.b16 %v12
  %v237 = vunpack.c.h.b16 %v12
  %v238 = vunpack.c.l.b16 %v13
  %v239 = vunpack.c.h.b16 %v13
  %v240 = vunpack.c.l.b16 %v14
  %v241 = vunpack.c.h.b16 %v14
  %v242 = vunpack.c.l.b16 %v15
  %v243 = vunpack.c.h.b16 %v15
  %v244 = vunpack.c.l.b16 %v16
  %v245 = vunpack.c.l.b16 %v17
  %v246 = vunpack.c.h.b16 %v17
  %v247 = vunpack.c.l.b16 %v18
  %v248 = vunpack.c.h.b16 %v18
  %v249 = vunpack.c.l.b16 %v19
  %v250 = vunpack.c.h.b16 %v19
  %v251 = vunpack.c.l.b16 %v20
  %v252 = vunpack.c.h.b16 %v20
  %v253 = vunpack.c.l.b16 %v21
  %v254 = vunpack.c.l.b16 %v22
  %v255 = vunpack.c.h.b16 %v22
  %v256 = vunpack.c.l.b16 %v23
  %v257 = vunpack.c.h.b16 %v23
  %v258 = vunpack.c.l.b16 %v24
  %v259 = vunpack.c.h.b16 %v24
  %v260 = vunpack.c.l.b16 %v25
  %v261 = vunpack.c.h.b16 %v25
  %v262 = vunpack.c.l.b16 %v26
  %v263 = vunpack.c.l.b16 %v27
  %v264 = vunpack.c.h.b16 %v27
  %v265 = vunpack.c.l.b16 %v28
  %v266 = vunpack.c.h.b16 %v28
  %v267 = vunpack.c.l.b16 %v29
  %v268 = vunpack.c.h.b16 %v29
  %v269 = vunpack.c.l.b16 %v30
  %v270 = vunpack.c.h.b16 %v30
  %v271 = vunpack.c.l.b16 %v31
  %v272 = vunpack.c.l.b16 %v32
  %v273 = vunpack.c.h.b16 %v32
  %v274 = vunpack.c.l.b16 %v33
  %v275 = vunpack.c.h.b16 %v33
  %v276 = vunpack.c.l.b16 %v34
  %v277 = vunpack.c.h.b16 %v34
  %v278 = vunpack.c.l.b16 %v35
  %v279 = vunpack.c.h.b16 %v35
  %v280 = vunpack.c.l.b16 %v36
  %v281 = vunpack.c.l.b16 %v37
  %v282 = vunpack.c.h.b16 %v37
  %v283 = vunpack.c.l.b16 %v38
  %v284 = vunpack.c.h.b16 %v38
  %v285 = vunpack.c.l.b16 %v39
  %v286 = vunpack.c.h.b16 %v39
  %v287 = vunpack.c.l.b16 %v40
  %v288 = vunpack.c.h.b16 %v40
  %v289 = vunpack.c.l.b16 %v41
  %v290 = vunpack.c.l.b16 %v42
  %v291 = vunpack.c.h.b16 %v42
  %v292 = vunpack.c.l.b16 %v43
  %v293 = vunpack.c.h.b16 %v43
  %v294 = vunpack.c.l.b16 %v44
  %v295 = vunpack.c.h.b16 %v44
  %v296 = vunpack.c.l.b16 %v45
  %v297 = vunpack.c.h.b16 %v45
  %v298 = vunpack.c.l.b16 %v46
  %v299 = vunpack.c.l.b16 %v47
  %v300 = vunpack.c.h.b16 %v47
  %v301 = vunpack.c.l.b16 %v48
  %v302 = vunpack.c.h.b16 %v48
  %v303 = vunpack.c.l.b16 %v49
  %v304 = vunpack.c.h.b16 %v49
  %v305 = vunpack.c.l.b16 %v50
  %v306 = vunpack.c.h.b16 %v50
  %v307 = vunpack.c.l.b16 %v51
  %v308 = vpack.c.b16 %v245, %v236
  %v309 = vpack.c.b16 %v246, %v237
  %v310 = vpack.c.b16 %v247, %v238
  %v311 = vpack.c.b16 %v248, %v239
  %v312 = vpack.c.b16 %v249, %v240
  %v313 = vpack.c.b16 %v250, %v241
  %v314 = vpack.c.b16 %v251, %v242
  %v315 = vpack.c.b16 %v252, %v243
  %v316 = vpack.c.b16 %v253, %v244
  %v317 = vpack.c.b16 %v263, %v254
  %v318 = vpack.c.b16 %v264, %v255
  %v319 = vpack.c.b16 %v265, %v256
  %v320 = vpack.c.b16 %v266, %v257
  %v321 = vpack.c.b16 %v267, %v258
  %v322 = vpack.c.b16 %v268, %v259
  %v323 = vpack.c.b16 %v269, %v260
  %v324 = vpack.c.b16 %v270, %v261
  %v325 = vpack.c.b16 %v271, %v262
  %v326 = vpack.c.b16 %v281, %v272
  %v327 = vpack.c.b16 %v282, %v273
  %v328 = vpack.c.b16 %v283, %v274
  %v329 = vpack.c.b16 %v284, %v275
  %v330 = vpack.c.b16 %v285, %v276
  %v331 = vpack.c.b16 %v286, %v277
  %v332 = vpack.c.b16 %v287, %v278
  %v333 = vpack.c.b16 %v288, %v279
  %v334 = vpack.c.b16 %v289, %v280
  %v335 = vpack.c.b16 %v299, %v290
  %v336 = vpack.c.b16 %v300, %v291
  %v337 = vpack.c.b16 %v301, %v292
  %v338 = vpack.c.b16 %v302, %v293
  %v339 = vpack.c.b16 %v303, %v294
  %v340 = vpack.c.b16 %v304, %v295
  %v341 = vpack.c.b16 %v305, %v296
  %v342 = vpack.c.b16 %v306, %v297
  %v343 = vpack.c.b16 %v307, %v298
  %v524 = vunpack.c.l.b16 %v52
  %v525 = vunpack.c.l.b16 %v53
  %v526 = vunpack.c.l.b16 %v54
  %v527 = vunpack.c.l.b16 %v55
  %v528 = vunpack.c.l.b16 %v56
  %v529 = vunpack.c.l.b16 %v57
  %v530 = vunpack.c.l.b16 %v58
  %v531 = vunpack.c.l.b16 %v59
  %v532 = vunpack.c.l.b16 %v60
  %v533 = vunpack.c.l.b16 %v61
  %v534 = vunpack.c.l.b16 %v62
  %v535 = vunpack.c.l.b16 %v63
  %v536 = vunpack.c.l.b16 %v64
  %v537 = vunpack.c.l.b16 %v65
  %v538 = vunpack.c.l.b16 %v66
  %v539 = vunpack.c.l.b16 %v67
  %v540 = vunpack.c.l.b16 %v68
  %v541 = vunpack.c.l.b16 %v69
  %v542 = vunpack.c.l.b16 %v70
  %v543 = vunpack.c.l.b16 %v71
  %v544 = vunpack.c.l.b16 %v72
  %v545 = vunpack.c.l.b16 %v73
  %v546 = vunpack.c.l.b16 %v74
  %v547 = vunpack.c.l.b16 %v75
  %v548 = vunpack.c.l.b16 %v76
  %v549 = vunpack.c.l.b16 %v77
  %v550 = vunpack.c.l.b16 %v78
  %v551 = vunpack.c.l.b16 %v79
  %v552 = vunpack.c.l.b16 %v80
  %v553 = vunpack.c.l.b16 %v81
  %v554 = vunpack.c.l.b16 %v82
  %v555 = vunpack.c.l.b16 %v83
  %v556 = vunpack.c.l.b16 %v84
  %v557 = vunpack.c.l.b16 %v85
  %v558 = vunpack.c.l.b16 %v86
  %v559 = vunpack.c.l.b16 %v87
  %v560 = vunpack.c.l.b16 %v88
  %v561 = vunpack.c.l.b16 %v89
  %v562 = vunpack.c.l.b16 %v90
  %v563 = vunpack.c.l.b16 %v91
  %v564 = vunpack.c.l.b16 %v92
  %v565 = vunpack.c.l.b16 %v93
  %v566 = vunpack.c.l.b16 %v94
  %v567 = vunpack.c.l.b16 %v95
  %v568 = vunpack.c.l.b16 %v96
  %v569 = vunpack.c.l.b16 %v97
  %v570 = vunpack.c.l.b16 %v98
  %v571 = vunpack.c.l.b16 %v99
  %v572 = vunpack.c.l.b16 %v100
  %v573 = vunpack.c.l.b16 %v101
  %v574 = vunpack.c.l.b16 %v102
  %v575 = vunpack.c.l.b16 %v103
  %v576 = vunpack.c.l.b16 %v104
  %v577 = vunpack.c.l.b16 %v105
  %v578 = vunpack.c.l.b16 %v106
  %v579 = vunpack.c.l.b16 %v107
  %v580 = vunpack.c.l.b16 %v108
  %v581 = vunpack.c.l.b16 %v109
  %v582 = vunpack.c.l.b16 %v110
  %v583 = vunpack.c.l.b16 %v111
  %v584 = vunpack.c.l.b16 %v112
  %v585 = vunpack.c.l.b16 %v113
  %v586 = vunpack.c.l.b16 %v114
  %v587 = vunpack.c.l.b16 %v115
  %v588 = vunpack.c.l.b16 %v116
  %v589 = vunpack.c.l.b16 %v117
  %v590 = vunpack.c.l.b16 %v118
  %v591 = vunpack.c.l.b16 %v119
  %v592 = vunpack.c.l.b16 %v120
  %v593 = vunpack.c.l.b16 %v121
  %v594 = vunpack.c.l.b16 %v122
  %v595 = vunpack.c.l.b16 %v123
  %v596 = vunpack.c.l.b16 %v124
  %v597 = vunpack.c.l.b16 %v125
  %v598 = vunpack.c.l.b16 %v126
  %v599 = vunpack.c.l.b16 %v127
  %v600 = vunpack.c.l.b16 %v128
  %v601 = vunpack.c.l.b16 %v129
  %v602 = vunpack.c.l.b16 %v130
  %v603 = vunpack.c.l.b16 %v131
  %v604 = vunpack.c.l.b16 %v132
  %v605 = vunpack.c.l.b16 %v133
  %v606 = vunpack.c.l.b16 %v134
  %v607 = vunpack.c.l.b16 %v135
  %v608 = vunpack.c.l.b16 %v136
  %v609 = vunpack.c.l.b16 %v137
  %v610 = vunpack.c.l.b16 %v138
  %v611 = vunpack.c.l.b16 %v139
  %v612 = vunpack.c.l.b16 %v140
  %v613 = vunpack.c.l.b16 %v141
  %v614 = vunpack.c.l.b16 %v142
  %v615 = vunpack.c.l.b16 %v143
  %v616 = vunpack.c.l.b16 %v144
  %v617 = vunpack.c.l.b16 %v145
  %v618 = vunpack.c.l.b16 %v146
  %v619 = vunpack.c.l.b16 %v147
  %v620 = vunpack.c.l.b16 %v148
  %v621 = vunpack.c.l.b16 %v149
  %v622 = vunpack.c.l.b16 %v150
  %v623 = vunpack.c.l.b16 %v151
  %v624 = vunpack.c.l.b16 %v152
  %v625 = vunpack.c.l.b16 %v153
  %v626 = vunpack.c.l.b16 %v154
  %v627 = vunpack.c.l.b16 %v155
  %v628 = vunpack.c.l.b16 %v156
  %v629 = vunpack.c.l.b16 %v157
  %v630 = vunpack.c.l.b16 %v158
  %v631 = vunpack.c.l.b16 %v159
  %v632 = vunpack.c.l.b16 %v160
  %v633 = vunpack.c.l.b16 %v161
  %v634 = vunpack.c.l.b16 %v162
  %v635 = vunpack.c.l.b16 %v163
  %v636 = vunpack.c.l.b16 %v164
  %v637 = vunpack.c.l.b16 %v165
  %v638 = vunpack.c.l.b16 %v166
  %v639 = vunpack.c.l.b16 %v167
  %v640 = vunpack.c.l.b16 %v168
  %v641 = vunpack.c.l.b16 %v169
  %v642 = vunpack.c.l.b16 %v170
  %v643 = vunpack.c.l.b16 %v171
  %v644 = vunpack.c.l.b16 %v172
  %v645 = vunpack.c.l.b16 %v173
  %v646 = vunpack.c.l.b16 %v174
  %v647 = vunpack.c.l.b16 %v175
  %v648 = vunpack.c.l.b16 %v176
  %v649 = vunpack.c.l.b16 %v177
  %v650 = vunpack.c.l.b16 %v178
  %v651 = vunpack.c.l.b16 %v179
  %v652 = vunpack.c.l.b16 %v180
  %v653 = vunpack.c.l.b16 %v181
  %v654 = vunpack.c.l.b16 %v182
  %v655 = vunpack.c.l.b16 %v183
  %v656 = vunpack.c.l.b16 %v184
  %v657 = vunpack.c.l.b16 %v185
  %v658 = vunpack.c.l.b16 %v186
  %v659 = vunpack.c.l.b16 %v187
  %v660 = vunpack.c.l.b16 %v188
  %v661 = vunpack.c.l.b16 %v189
  %v662 = vunpack.c.l.b16 %v190
  %v663 = vunpack.c.l.b16 %v191
  %v664 = vunpack.c.l.b16 %v192
  %v665 = vunpack.c.l.b16 %v193
  %v666 = vunpack.c.l.b16 %v194
  %v667 = vunpack.c.l.b16 %v195
  %v668 = vpack.c.b16 %v525, %v524
  %v669 = vpack.c.b16 %v527, %v526
  %v670 = vpack.c.b16 %v529, %v528
  %v671 = vpack.c.b16 %v531, %v530
  %v672 = vpack.c.b16 %v533, %v532
  %v673 = vpack.c.b16 %v535, %v534
  %v674 = vpack.c.b16 %v537, %v536
  %v675 = vpack.c.b16 %v539, %v538
  %v676 = vpack.c.b16 %v541, %v540
  %v677 = vpack.c.b16 %v543, %v542
  %v678 = vpack.c.b16 %v545, %v544
  %v679 = vpack.c.b16 %v547, %v546
  %v680 = vpack.c.b16 %v549, %v548
  %v681 = vpack.c.b16 %v551, %v550
  %v682 = vpack.c.b16 %v553, %v552
  %v683 = vpack.c.b16 %v555, %v554
  %v684 = vpack.c.b16 %v557, %v556
  %v685 = vpack.c.b16 %v559, %v558
  %v686 = vpack.c.b16 %v561, %v560
  %v687 = vpack.c.b16 %v563, %v562
  %v688 = vpack.c.b16 %v565, %v564
  %v689 = vpack.c.b16 %v567, %v566
  %v690 = vpack.c.b16 %v569, %v568
  %v691 = vpack.c.b16 %v571, %v570
  %v692 = vpack.c.b16 %v573, %v572
  %v693 = vpack.c.b16 %v575, %v574
  %v694 = vpack.c.b16 %v577, %v576
  %v695 = vpack.c.b16 %v579, %v578
  %v696 = vpack.c.b16 %v581, %v580
  %v697 = vpack.c.b16 %v583, %v582
  %v698 = vpack.c.b16 %v585, %v584
  %v699 = vpack.c.b16 %v587, %v586
  %v700 = vpack.c.b16 %v589, %v588
  %v701 = vpack.c.b16 %v591, %v590
  %v702 = vpack.c.b16 %v593, %v592
  %v703 = vpack.c.b16 %v595, %v594
  %v704 = vpack.c.b16 %v597, %v596
  %v705 = vpack.c.b16 %v599, %v598
  %v706 = vpack.c.b16 %v601, %v600
  %v707 = vpack.c.b16 %v603, %v602
  %v708 = vpack.c.b16 %v605, %v604
  %v709 = vpack.c.b16 %v607, %v606
  %v710 = vpack.c.b16 %v609, %v608
  %v711 = vpack.c.b16 %v611, %v610
  %v712 = vpack.c.b16 %v613, %v612
  %v713 = vpack.c.b16 %v615, %v614
  %v714 = vpack.c.b16 %v617, %v616
  %v715 = vpack.c.b16 %v619, %v618
  %v716 = vpack.c.b16 %v621, %v620
  %v717 = vpack.c.b16 %v623, %v622
  %v718 = vpack.c.b16 %v625, %v624
  %v719 = vpack.c.b16 %v627, %v626
  %v720 = vpack.c.b16 %v629, %v628
  %v721 = vpack.c.b16 %v631, %v630
  %v722 = vpack.c.b16 %v633, %v632
  %v723 = vpack.c.b16 %v635, %v634
  %v724 = vpack.c.b16 %v637, %v636
  %v725 = vpack.c.b16 %v639, %v638
  %v726 = vpack.c.b16 %v641, %v640
  %v727 = vpack.c.b16 %v643, %v642
  %v728 = vpack.c.b16 %v645, %v644
  %v729 = vpack.c.b16 %v647, %v646
  %v730 = vpack.c.b16 %v649, %v648
  %v731 = vpack.c.b16 %v651, %v650
  %v732 = vpack.c.b16 %v653, %v652
  %v733 = vpack.c.b16 %v655, %v654
  %v734 = vpack.c.b16 %v657, %v656
  %v735 = vpack.c.b16 %v659, %v658
  %v736 = vpack.c.b16 %v661, %v660
  %v737 = vpack.c.b16 %v663, %v662
  %v738 = vpack.c.b16 %v665, %v664
  %v739 = vpack.c.b16 %v667, %v666
  %812 = vmatprep.subr.bf16.mxu0 0
  %813 = vmatpush1.bf16.msra.mxu0 %v668
  %814 = vmatprep.subr.bf16.mxu0 0
  %815 = vmatpush1.bf16.msra.mxu0 %v669
  %816 = vmatprep.subr.bf16.mxu0 0
  %817 = vmatpush1.bf16.msra.mxu0 %v670
  %818 = vmatprep.subr.bf16.mxu0 0
  %819 = vmatpush1.bf16.msra.mxu0 %v671
  %820 = vmatprep.subr.bf16.mxu0 0
  %821 = vmatpush1.bf16.msra.mxu0 %v672
  %822 = vmatprep.subr.bf16.mxu0 0
  %823 = vmatpush1.bf16.msra.mxu0 %v673
  %824 = vmatprep.subr.bf16.mxu0 0
  %825 = vmatpush1.bf16.msra.mxu0 %v674
  %826 = vmatprep.subr.bf16.mxu0 0
  %827 = vmatpush1.bf16.msra.mxu0 %v675
  %828 = vmatprep.subr.bf16.mxu0 0
  %829 = vmatpush1.bf16.msra.mxu0 %v676
  %830 = vmatprep.subr.bf16.mxu0 0
  %831 = vmatpush1.bf16.msra.mxu0 %v677
  %832 = vmatprep.subr.bf16.mxu0 0
  %833 = vmatpush1.bf16.msra.mxu0 %v678
  %834 = vmatprep.subr.bf16.mxu0 0
  %835 = vmatpush1.bf16.msra.mxu0 %v679
  %836 = vmatprep.subr.bf16.mxu0 0
  %837 = vmatpush1.bf16.msra.mxu0 %v680
  %838 = vmatprep.subr.bf16.mxu0 0
  %839 = vmatpush1.bf16.msra.mxu0 %v681
  %840 = vmatprep.subr.bf16.mxu0 0
  %841 = vmatpush1.bf16.msra.mxu0 %v682
  %842 = vmatprep.subr.bf16.mxu0 0
  %843 = vmatpush1.bf16.msra.mxu0 %v683
  %844 = vmatprep.mubr.bf16.mxu0 %v309
  %845 = vmatmul.mubr.bf16.gmra.mrb[0].mxu0 %v308
  %v846 = vpop.f32.mrb[0].mxu0
  %v847 = vadd.f32 0.0, %v846
  %v848 = vpop.f32.mrb[0].mxu0
  %v849 = vpop.f32.mrb[0].mxu0
  %v850 = vadd.f32 0.0, %v849
  %v851 = vpop.f32.mrb[0].mxu0
  %852 = vmatprep.mubr.bf16.mxu0 %v318
  %853 = vmatmul.mubr.bf16.gmra.mrb[0].mxu0 %v317
  %v854 = vpop.f32.mrb[0].mxu0
  %v855 = vadd.f32 0.0, %v854
  %v856 = vpop.f32.mrb[0].mxu0
  %v857 = vpop.f32.mrb[0].mxu0
  %v858 = vadd.f32 0.0, %v857
  %v859 = vpop.f32.mrb[0].mxu0
  %860 = vmatprep.mubr.bf16.mxu0 %v327
  %861 = vmatmul.mubr.bf16.gmra.mrb[0].mxu0 %v326
  %v862 = vpop.f32.mrb[0].mxu0
  %v863 = vadd.f32 0.0, %v862
  %v864 = vpop.f32.mrb[0].mxu0
  %v865 = vpop.f32.mrb[0].mxu0
  %v866 = vadd.f32 0.0, %v865
  %v867 = vpop.f32.mrb[0].mxu0
  %868 = vmatprep.mubr.bf16.mxu0 %v336
  %869 = vmatmul.mubr.bf16.gmra.mrb[0].mxu0 %v335
  %v870 = vpop.f32.mrb[0].mxu0
  %v871 = vadd.f32 0.0, %v870
  %v872 = vpop.f32.mrb[0].mxu0
  %v873 = vpop.f32.mrb[0].mxu0
  %v874 = vadd.f32 0.0, %v873
  %v875 = vpop.f32.mrb[0].mxu0
  %876 = vdwg.mxu0
  %877 = vmatprep.subr.bf16.mxu0 0
  %878 = vmatpush1.bf16.msra.mxu0 %v684
  %879 = vmatprep.subr.bf16.mxu0 0
  %880 = vmatpush1.bf16.msra.mxu0 %v685
  %881 = vmatprep.subr.bf16.mxu0 0
  %882 = vmatpush1.bf16.msra.mxu0 %v686
  %883 = vmatprep.subr.bf16.mxu0 0
  %884 = vmatpush1.bf16.msra.mxu0 %v687
  %885 = vmatprep.subr.bf16.mxu0 0
  %886 = vmatpush1.bf16.msra.mxu0 %v688
  %887 = vmatprep.subr.bf16.mxu0 0
  %888 = vmatpush1.bf16.msra.mxu0 %v689
  %889 = vmatprep.subr.bf16.mxu0 0
  %890 = vmatpush1.bf16.msra.mxu0 %v690
  %891 = vmatprep.subr.bf16.mxu0 0
  %892 = vmatpush1.bf16.msra.mxu0 %v691
  %893 = vmatprep.subr.bf16.mxu0 0
  %894 = vmatpush1.bf16.msra.mxu0 %v692
  %895 = vmatprep.subr.bf16.mxu0 0
  %896 = vmatpush1.bf16.msra.mxu0 %v693
  %897 = vmatprep.subr.bf16.mxu0 0
  %898 = vmatpush1.bf16.msra.mxu0 %v694
  %899 = vmatprep.subr.bf16.mxu0 0
  %900 = vmatpush1.bf16.msra.mxu0 %v695
  %901 = vmatprep.subr.bf16.mxu0 0
  %902 = vmatpush1.bf16.msra.mxu0 %v696
  %903 = vmatprep.subr.bf16.mxu0 0
  %904 = vmatpush1.bf16.msra.mxu0 %v697
  %905 = vmatprep.subr.bf16.mxu0 0
  %906 = vmatpush1.bf16.msra.mxu0 %v698
  %907 = vmatprep.subr.bf16.mxu0 0
  %908 = vmatpush1.bf16.msra.mxu0 %v699
  %909 = vmatprep.mubr.bf16.mxu0 %v311
  %910 = vmatmul.mubr.bf16.gmra.mrb[0].mxu0 %v310
  %v911 = vpop.f32.mrb[0].mxu0
  %v912 = vadd.f32 %v847, %v911
  %v913 = vpop.f32.mrb[0].mxu0
  %v914 = vpop.f32.mrb[0].mxu0
  %v915 = vadd.f32 %v850, %v914
  %v916 = vpop.f32.mrb[0].mxu0
  %917 = vmatprep.mubr.bf16.mxu0 %v320
  %918 = vmatmul.mubr.bf16.gmra.mrb[0].mxu0 %v319
  %v919 = vpop.f32.mrb[0].mxu0
  %v920 = vadd.f32 %v855, %v919
  %v921 = vpop.f32.mrb[0].mxu0
  %v922 = vpop.f32.mrb[0].mxu0
  %v923 = vadd.f32 %v858, %v922
  %v924 = vpop.f32.mrb[0].mxu0
  %925 = vmatprep.mubr.bf16.mxu0 %v329
  %926 = vmatmul.mubr.bf16.gmra.mrb[0].mxu0 %v328
  %v927 = vpop.f32.mrb[0].mxu0
  %v928 = vadd.f32 %v863, %v927
  %v929 = vpop.f32.mrb[0].mxu0
  %v930 = vpop.f32.mrb[0].mxu0
  %v931 = vadd.f32 %v866, %v930
  %v932 = vpop.f32.mrb[0].mxu0
  %933 = vmatprep.mubr.bf16.mxu0 %v338
  %934 = vmatmul.mubr.bf16.gmra.mrb[0].mxu0 %v337
  %v935 = vpop.f32.mrb[0].mxu0
  %v936 = vadd.f32 %v871, %v935
  %v937 = vpop.f32.mrb[0].mxu0
  %v938 = vpop.f32.mrb[0].mxu0
  %v939 = vadd.f32 %v874, %v938
  %v940 = vpop.f32.mrb[0].mxu0
  %941 = vdwg.mxu0
  %942 = vmatprep.subr.bf16.mxu0 0
  %943 = vmatpush1.bf16.msra.mxu0 %v700
  %944 = vmatprep.subr.bf16.mxu0 0
  %945 = vmatpush1.bf16.msra.mxu0 %v701
  %946 = vmatprep.subr.bf16.mxu0 0
  %947 = vmatpush1.bf16.msra.mxu0 %v702
  %948 = vmatprep.subr.bf16.mxu0 0
  %949 = vmatpush1.bf16.msra.mxu0 %v703
  %950 = vmatprep.subr.bf16.mxu0 0
  %951 = vmatpush1.bf16.msra.mxu0 %v704
  %952 = vmatprep.subr.bf16.mxu0 0
  %953 = vmatpush1.bf16.msra.mxu0 %v705
  %954 = vmatprep.subr.bf16.mxu0 0
  %955 = vmatpush1.bf16.msra.mxu0 %v706
  %956 = vmatprep.subr.bf16.mxu0 0
  %957 = vmatpush1.bf16.msra.mxu0 %v707
  %958 = vmatprep.subr.bf16.mxu0 0
  %959 = vmatpush1.bf16.msra.mxu0 %v708
  %960 = vmatprep.subr.bf16.mxu0 0
  %961 = vmatpush1.bf16.msra.mxu0 %v709
  %962 = vmatprep.subr.bf16.mxu0 0
  %963 = vmatpush1.bf16.msra.mxu0 %v710
  %964 = vmatprep.subr.bf16.mxu0 0
  %965 = vmatpush1.bf16.msra.mxu0 %v711
  %966 = vmatprep.subr.bf16.mxu0 0
  %967 = vmatpush1.bf16.msra.mxu0 %v712
  %968 = vmatprep.subr.bf16.mxu0 0
  %969 = vmatpush1.bf16.msra.mxu0 %v713
  %970 = vmatprep.subr.bf16.mxu0 0
  %971 = vmatpush1.bf16.msra.mxu0 %v714
  %972 = vmatprep.subr.bf16.mxu0 0
  %973 = vmatpush1.bf16.msra.mxu0 %v715
  %974 = vmatprep.mubr.bf16.mxu0 %v313
  %975 = vmatmul.mubr.bf16.gmra.mrb[0].mxu0 %v312
  %v976 = vpop.f32.mrb[0].mxu0
  %v977 = vadd.f32 %v912, %v976
  %v978 = vpop.f32.mrb[0].mxu0
  %v979 = vpop.f32.mrb[0].mxu0
  %v980 = vadd.f32 %v915, %v979
  %v981 = vpop.f32.mrb[0].mxu0
  %982 = vmatprep.mubr.bf16.mxu0 %v322
  %983 = vmatmul.mubr.bf16.gmra.mrb[0].mxu0 %v321
  %v984 = vpop.f32.mrb[0].mxu0
  %v985 = vadd.f32 %v920, %v984
  %v986 = vpop.f32.mrb[0].mxu0
  %v987 = vpop.f32.mrb[0].mxu0
  %v988 = vadd.f32 %v923, %v987
  %v989 = vpop.f32.mrb[0].mxu0
  %990 = vmatprep.mubr.bf16.mxu0 %v331
  %991 = vmatmul.mubr.bf16.gmra.mrb[0].mxu0 %v330
  %v992 = vpop.f32.mrb[0].mxu0
  %v993 = vadd.f32 %v928, %v992
  %v994 = vpop.f32.mrb[0].mxu0
  %v995 = vpop.f32.mrb[0].mxu0
  %v996 = vadd.f32 %v931, %v995
  %v997 = vpop.f32.mrb[0].mxu0
  %998 = vmatprep.mubr.bf16.mxu0 %v340
  %999 = vmatmul.mubr.bf16.gmra.mrb[0].mxu0 %v339
  %v1000 = vpop.f32.mrb[0].mxu0
  %v1001 = vadd.f32 %v936, %v1000
  %v1002 = vpop.f32.mrb[0].mxu0
  %v1003 = vpop.f32.mrb[0].mxu0
  %v1004 = vadd.f32 %v939, %v1003
  %v1005 = vpop.f32.mrb[0].mxu0
  %1006 = vdwg.mxu0
  %1007 = vmatprep.subr.bf16.mxu0 0
  %1008 = vmatpush1.bf16.msra.mxu0 %v716
  %1009 = vmatprep.subr.bf16.mxu0 0
  %1010 = vmatpush1.bf16.msra.mxu0 %v717
  %1011 = vmatprep.subr.bf16.mxu0 0
  %1012 = vmatpush1.bf16.msra.mxu0 %v718
  %1013 = vmatprep.subr.bf16.mxu0 0
  %1014 = vmatpush1.bf16.msra.mxu0 %v719
  %1015 = vmatprep.subr.bf16.mxu0 0
  %1016 = vmatpush1.bf16.msra.mxu0 %v720
  %1017 = vmatprep.subr.bf16.mxu0 0
  %1018 = vmatpush1.bf16.msra.mxu0 %v721
  %1019 = vmatprep.subr.bf16.mxu0 0
  %1020 = vmatpush1.bf16.msra.mxu0 %v722
  %1021 = vmatprep.subr.bf16.mxu0 0
  %1022 = vmatpush1.bf16.msra.mxu0 %v723
  %1023 = vmatprep.subr.bf16.mxu0 0
  %1024 = vmatpush1.bf16.msra.mxu0 %v724
  %1025 = vmatprep.subr.bf16.mxu0 0
  %1026 = vmatpush1.bf16.msra.mxu0 %v725
  %1027 = vmatprep.subr.bf16.mxu0 0
  %1028 = vmatpush1.bf16.msra.mxu0 %v726
  %1029 = vmatprep.subr.bf16.mxu0 0
  %1030 = vmatpush1.bf16.msra.mxu0 %v727
  %1031 = vmatprep.subr.bf16.mxu0 0
  %1032 = vmatpush1.bf16.msra.mxu0 %v728
  %1033 = vmatprep.subr.bf16.mxu0 0
  %1034 = vmatpush1.bf16.msra.mxu0 %v729
  %1035 = vmatprep.subr.bf16.mxu0 0
  %1036 = vmatpush1.bf16.msra.mxu0 %v730
  %1037 = vmatprep.subr.bf16.mxu0 0
  %1038 = vmatpush1.bf16.msra.mxu0 %v731
  %1039 = vmatprep.mubr.bf16.mxu0 %v315
  %1040 = vmatmul.mubr.bf16.gmra.mrb[0].mxu0 %v314
  %v1041 = vpop.f32.mrb[0].mxu0
  %v1042 = vadd.f32 %v977, %v1041
  %v1043 = vpop.f32.mrb[0].mxu0
  %v1044 = vpop.f32.mrb[0].mxu0
  %v1045 = vadd.f32 %v980, %v1044
  %v1046 = vpop.f32.mrb[0].mxu0
  %1047 = vmatprep.mubr.bf16.mxu0 %v324
  %1048 = vmatmul.mubr.bf16.gmra.mrb[0].mxu0 %v323
  %v1049 = vpop.f32.mrb[0].mxu0
  %v1050 = vadd.f32 %v985, %v1049
  %v1051 = vpop.f32.mrb[0].mxu0
  %v1052 = vpop.f32.mrb[0].mxu0
  %v1053 = vadd.f32 %v988, %v1052
  %v1054 = vpop.f32.mrb[0].mxu0
  %1055 = vmatprep.mubr.bf16.mxu0 %v333
  %1056 = vmatmul.mubr.bf16.gmra.mrb[0].mxu0 %v332
  %v1057 = vpop.f32.mrb[0].mxu0
  %v1058 = vadd.f32 %v993, %v1057
  %v1059 = vpop.f32.mrb[0].mxu0
  %v1060 = vpop.f32.mrb[0].mxu0
  %v1061 = vadd.f32 %v996, %v1060
  %v1062 = vpop.f32.mrb[0].mxu0
  %1063 = vmatprep.mubr.bf16.mxu0 %v342
  %1064 = vmatmul.mubr.bf16.gmra.mrb[0].mxu0 %v341
  %v1065 = vpop.f32.mrb[0].mxu0
  %v1066 = vadd.f32 %v1001, %v1065
  %v1067 = vpop.f32.mrb[0].mxu0
  %v1068 = vpop.f32.mrb[0].mxu0
  %v1069 = vadd.f32 %v1004, %v1068
  %v1070 = vpop.f32.mrb[0].mxu0
  %1071 = vdwg.mxu0
  %1072 = vmatprep.subr.bf16.mxu0 0
  %1073 = vmatpush1.bf16.msra.mxu0 %v732
  %1074 = vmatprep.subr.bf16.mxu0 0
  %1075 = vmatpush1.bf16.msra.mxu0 %v733
  %1076 = vmatprep.subr.bf16.mxu0 0
  %1077 = vmatpush1.bf16.msra.mxu0 %v734
  %1078 = vmatprep.subr.bf16.mxu0 0
  %1079 = vmatpush1.bf16.msra.mxu0 %v735
  %1080 = vmatprep.subr.bf16.mxu0 0
  %1081 = vmatpush1.bf16.msra.mxu0 %v736
  %1082 = vmatprep.subr.bf16.mxu0 0
  %1083 = vmatpush1.bf16.msra.mxu0 %v737
  %1084 = vmatprep.subr.bf16.mxu0 0
  %1085 = vmatpush1.bf16.msra.mxu0 %v738
  %1086 = vmatprep.subr.bf16.mxu0 0
  %1087 = vmatpush1.bf16.msra.mxu0 %v739
  %1088 = vmatprep.subr.bf16.mxu0 0
  %1089 = vmatpush1.bf16.msra.mxu0 0
  %1090 = vmatprep.subr.bf16.mxu0 0
  %1091 = vmatpush1.bf16.msra.mxu0 0
  %1092 = vmatprep.subr.bf16.mxu0 0
  %1093 = vmatpush1.bf16.msra.mxu0 0
  %1094 = vmatprep.subr.bf16.mxu0 0
  %1095 = vmatpush1.bf16.msra.mxu0 0
  %1096 = vmatprep.subr.bf16.mxu0 0
  %1097 = vmatpush1.bf16.msra.mxu0 0
  %1098 = vmatprep.subr.bf16.mxu0 0
  %1099 = vmatpush1.bf16.msra.mxu0 0
  %1100 = vmatprep.subr.bf16.mxu0 0
  %1101 = vmatpush1.bf16.msra.mxu0 0
  %1102 = vmatprep.subr.bf16.mxu0 0
  %1103 = vmatpush1.bf16.msra.mxu0 0
  %1104 = vmatprep.mubr.bf16.mxu0 0
  %1105 = vmatmul.mubr.bf16.gmra.mrb[0].mxu0 %v316
  %v1106 = vpop.f32.mrb[0].mxu0
  %v1107 = vadd.f32 %v1042, %v1106
  %v1108 = vpop.f32.mrb[0].mxu0
  %v1109 = vpop.f32.mrb[0].mxu0
  %v1110 = vadd.f32 %v1045, %v1109
  %v1111 = vpop.f32.mrb[0].mxu0
  %1112 = vmatprep.mubr.bf16.mxu0 0
  %1113 = vmatmul.mubr.bf16.gmra.mrb[0].mxu0 %v325
  %v1114 = vpop.f32.mrb[0].mxu0
  %v1115 = vadd.f32 %v1050, %v1114
  %v1116 = vpop.f32.mrb[0].mxu0
  %v1117 = vpop.f32.mrb[0].mxu0
  %v1118 = vadd.f32 %v1053, %v1117
  %v1119 = vpop.f32.mrb[0].mxu0
  %1120 = vmatprep.mubr.bf16.mxu0 0
  %1121 = vmatmul.mubr.bf16.gmra.mrb[0].mxu0 %v334
  %v1122 = vpop.f32.mrb[0].mxu0
  %v1123 = vadd.f32 %v1058, %v1122
  %v1124 = vpop.f32.mrb[0].mxu0
  %v1125 = vpop.f32.mrb[0].mxu0
  %v1126 = vadd.f32 %v1061, %v1125
  %v1127 = vpop.f32.mrb[0].mxu0
  %1128 = vmatprep.mubr.bf16.mxu0 0
  %1129 = vmatmul.mubr.bf16.gmra.mrb[0].mxu0 %v343
  %v1130 = vpop.f32.mrb[0].mxu0
  %v1131 = vadd.f32 %v1066, %v1130
  %v1132 = vpop.f32.mrb[0].mxu0
  %v1133 = vpop.f32.mrb[0].mxu0
  %v1134 = vadd.f32 %v1069, %v1133
  %v1135 = vpop.f32.mrb[0].mxu0
  %1136 = vdwg.mxu0
  %vm1137 = vcmask 261120
  %1138 = vst.msk [vmem:[%s2] sm:$0xff] %vm1137, %v1107
  %1139 = vst.msk [vmem:[%s2 + $0x8] sm:$0xff] %vm1137, %v1110
  %1140 = vst.msk [vmem:[%s2 + $0x10] sm:$0xff] %vm1137, %v1115
  %1141 = vst.msk [vmem:[%s2 + $0x18] sm:$0xff] %vm1137, %v1118
  %1142 = vst.msk [vmem:[%s2 + $0x20] sm:$0xff] %vm1137, %v1123
  %1143 = vst.msk [vmem:[%s2 + $0x28] sm:$0xff] %vm1137, %v1126
  %1144 = vst.msk [vmem:[%s2 + $0x30] sm:$0xff] %vm1137, %v1131
  %1145 = vst.msk [vmem:[%s2 + $0x38] sm:$0xff] %vm1137, %v1134
  // Predicated region
  $region10: #{generator_forward.26} parent=0 // pred_check
    _
  $region11: #{generator_forward.26} parent=0 // pred_check_branch
    %1147 = sbr.rel (0) target = $region13
  $region12: #{generator_forward.26} parent=0 // pred_region
    _
  $region13: #{generator_forward.26} parent=0 // pred_fallthru
    _
  // Predicated region
  $region14: #{generator_forward.26} parent=0 // pred_check
    _
  $region15: #{generator_forward.26} parent=0 // pred_check_branch
    %1149 = sbr.rel (0) target = $region17
  $region16: #{generator_forward.26} parent=0 // pred_region
    _
  $region17: #{generator_forward.26} parent=0 // pred_fallthru
    _

// kernel: generator_forward.27
$region0: #{generator_forward.27}
  #allocation0 [shape = 'u32[]', space=smem, size = 0x4, offset = 0x4, fixed_abs, tag = 'smem constant byte address 0x4 - core index']
  #allocation1 [shape = 'u32[144,128]{1,0:T(1,128)}', space=vmem, size = 0x12000, scoped, tag = 'internal scratch']
  %s0 = inlined_call_operand.vmem [shape: bf16[64,768], index: 0, kind: input, shape index: {}]
  %s1 = inlined_call_operand.vmem [shape: bf16[768,32], index: 1, kind: input, shape index: {}]
  %s2 = inlined_call_operand.vmem [shape: f32[64,32], index: 2, kind: output, shape index: {}]
  %s3 = sld [smem:[#allocation0]]
  $region18: #{generator_forward.27} parent=0
    _
  %s5 = ssub.s32 1, %s3
  %s6 = scalar_select 0, %s5, %s3
  // Predicated region
  $region2: #{generator_forward.27} parent=0 // pred_check
    _
  $region3: #{generator_forward.27} parent=0 // pred_check_branch
    %8 = sbr.rel (0) target = $region5
  $region4: #{generator_forward.27} parent=0 // pred_region
    _
  $region5: #{generator_forward.27} parent=0 // pred_fallthru
    _
  // Predicated region
  $region6: #{generator_forward.27} parent=0 // pred_check
    _
  $region7: #{generator_forward.27} parent=0 // pred_check_branch
    %10 = sbr.rel (0) target = $region9
  $region8: #{generator_forward.27} parent=0 // pred_region
    _
  $region9: #{generator_forward.27} parent=0 // pred_fallthru
    _
  %v12 = vld [vmem:[%s0] sm:$0xff]
  %v13 = vld [vmem:[%s0 + $0x8] sm:$0xff]
  %v14 = vld [vmem:[%s0 + $0x10] sm:$0xff]
  %v15 = vld [vmem:[%s0 + $0x18] sm:$0xff]
  %v16 = vld [vmem:[%s0 + $0x20] sm:$0xff]
  %v17 = vld [vmem:[%s0 + $0x28] sm:$0xff]
  %v18 = vld [vmem:[%s0 + $0x30] sm:$0xff]
  %v19 = vld [vmem:[%s0 + $0x38] sm:$0xff]
  %v20 = vld [vmem:[%s0 + $0x40] sm:$0xff]
  %v21 = vld [vmem:[%s0 + $0x48] sm:$0xff]
  %v22 = vld [vmem:[%s0 + $0x50] sm:$0xff]
  %v23 = vld [vmem:[%s0 + $0x58] sm:$0xff]
  %v24 = vld [vmem:[%s0 + $0x60] sm:$0xff]
  %v25 = vld [vmem:[%s0 + $0x68] sm:$0xff]
  %v26 = vld [vmem:[%s0 + $0x70] sm:$0xff]
  %v27 = vld [vmem:[%s0 + $0x78] sm:$0xff]
  %v28 = vld [vmem:[%s0 + $0x80] sm:$0xff]
  %v29 = vld [vmem:[%s0 + $0x88] sm:$0xff]
  %v30 = vld [vmem:[%s0 + $0x90] sm:$0xff]
  %v31 = vld [vmem:[%s0 + $0x98] sm:$0xff]
  %v32 = vld [vmem:[%s0 + $0xa0] sm:$0xff]
  %v33 = vld [vmem:[%s0 + $0xa8] sm:$0xff]
  %v34 = vld [vmem:[%s0 + $0xb0] sm:$0xff]
  %v35 = vld [vmem:[%s0 + $0xb8] sm:$0xff]
  %v36 = vld [vmem:[%s1] sm:$0xf]
  %v37 = vld [vmem:[%s1 + $0x4] sm:$0xf]
  %v38 = vld [vmem:[%s1 + $0x8] sm:$0xf]
  %v39 = vld [vmem:[%s1 + $0xc] sm:$0xf]
  %v40 = vld [vmem:[%s1 + $0x10] sm:$0xf]
  %v41 = vld [vmem:[%s1 + $0x14] sm:$0xf]
  %v42 = vld [vmem:[%s1 + $0x18] sm:$0xf]
  %v43 = vld [vmem:[%s1 + $0x1c] sm:$0xf]
  %v44 = vld [vmem:[%s1 + $0x20] sm:$0xf]
  %v45 = vld [vmem:[%s1 + $0x24] sm:$0xf]
  %v46 = vld [vmem:[%s1 + $0x28] sm:$0xf]
  %v47 = vld [vmem:[%s1 + $0x2c] sm:$0xf]
  %v48 = vld [vmem:[%s1 + $0x30] sm:$0xf]
  %v49 = vld [vmem:[%s1 + $0x34] sm:$0xf]
  %v50 = vld [vmem:[%s1 + $0x38] sm:$0xf]
  %v51 = vld [vmem:[%s1 + $0x3c] sm:$0xf]
  %v52 = vld [vmem:[%s1 + $0x40] sm:$0xf]
  %v53 = vld [vmem:[%s1 + $0x44] sm:$0xf]
  %v54 = vld [vmem:[%s1 + $0x48] sm:$0xf]
  %v55 = vld [vmem:[%s1 + $0x4c] sm:$0xf]
  %v56 = vld [vmem:[%s1 + $0x50] sm:$0xf]
  %v57 = vld [vmem:[%s1 + $0x54] sm:$0xf]
  %v58 = vld [vmem:[%s1 + $0x58] sm:$0xf]
  %v59 = vld [vmem:[%s1 + $0x5c] sm:$0xf]
  %v60 = vld [vmem:[%s1 + $0x60] sm:$0xf]
  %v61 = vld [vmem:[%s1 + $0x64] sm:$0xf]
  %v62 = vld [vmem:[%s1 + $0x68] sm:$0xf]
  %v63 = vld [vmem:[%s1 + $0x6c] sm:$0xf]
  %v64 = vld [vmem:[%s1 + $0x70] sm:$0xf]
  %v65 = vld [vmem:[%s1 + $0x74] sm:$0xf]
  %v66 = vld [vmem:[%s1 + $0x78] sm:$0xf]
  %v67 = vld [vmem:[%s1 + $0x7c] sm:$0xf]
  %v68 = vld [vmem:[%s1 + $0x80] sm:$0xf]
  %v69 = vld [vmem:[%s1 + $0x84] sm:$0xf]
  %v70 = vld [vmem:[%s1 + $0x88] sm:$0xf]
  %v71 = vld [vmem:[%s1 + $0x8c] sm:$0xf]
  %v72 = vld [vmem:[%s1 + $0x90] sm:$0xf]
  %v73 = vld [vmem:[%s1 + $0x94] sm:$0xf]
  %v74 = vld [vmem:[%s1 + $0x98] sm:$0xf]
  %v75 = vld [vmem:[%s1 + $0x9c] sm:$0xf]
  %v76 = vld [vmem:[%s1 + $0xa0] sm:$0xf]
  %v77 = vld [vmem:[%s1 + $0xa4] sm:$0xf]
  %v78 = vld [vmem:[%s1 + $0xa8] sm:$0xf]
  %v79 = vld [vmem:[%s1 + $0xac] sm:$0xf]
  %v80 = vld [vmem:[%s1 + $0xb0] sm:$0xf]
  %v81 = vld [vmem:[%s1 + $0xb4] sm:$0xf]
  %v82 = vld [vmem:[%s1 + $0xb8] sm:$0xf]
  %v83 = vld [vmem:[%s1 + $0xbc] sm:$0xf]
  %v84 = vld [vmem:[%s1 + $0xc0] sm:$0xf]
  %v85 = vld [vmem:[%s1 + $0xc4] sm:$0xf]
  %v86 = vld [vmem:[%s1 + $0xc8] sm:$0xf]
  %v87 = vld [vmem:[%s1 + $0xcc] sm:$0xf]
  %v88 = vld [vmem:[%s1 + $0xd0] sm:$0xf]
  %v89 = vld [vmem:[%s1 + $0xd4] sm:$0xf]
  %v90 = vld [vmem:[%s1 + $0xd8] sm:$0xf]
  %v91 = vld [vmem:[%s1 + $0xdc] sm:$0xf]
  %v92 = vld [vmem:[%s1 + $0xe0] sm:$0xf]
  %v93 = vld [vmem:[%s1 + $0xe4] sm:$0xf]
  %v94 = vld [vmem:[%s1 + $0xe8] sm:$0xf]
  %v95 = vld [vmem:[%s1 + $0xec] sm:$0xf]
  %v96 = vld [vmem:[%s1 + $0xf0] sm:$0xf]
  %v97 = vld [vmem:[%s1 + $0xf4] sm:$0xf]
  %v98 = vld [vmem:[%s1 + $0xf8] sm:$0xf]
  %v99 = vld [vmem:[%s1 + $0xfc] sm:$0xf]
  %v100 = vld [vmem:[%s1 + $0x100] sm:$0xf]
  %v101 = vld [vmem:[%s1 + $0x104] sm:$0xf]
  %v102 = vld [vmem:[%s1 + $0x108] sm:$0xf]
  %v103 = vld [vmem:[%s1 + $0x10c] sm:$0xf]
  %v104 = vld [vmem:[%s1 + $0x110] sm:$0xf]
  %v105 = vld [vmem:[%s1 + $0x114] sm:$0xf]
  %v106 = vld [vmem:[%s1 + $0x118] sm:$0xf]
  %v107 = vld [vmem:[%s1 + $0x11c] sm:$0xf]
  %v108 = vld [vmem:[%s1 + $0x120] sm:$0xf]
  %v109 = vld [vmem:[%s1 + $0x124] sm:$0xf]
  %v110 = vld [vmem:[%s1 + $0x128] sm:$0xf]
  %v111 = vld [vmem:[%s1 + $0x12c] sm:$0xf]
  %v112 = vld [vmem:[%s1 + $0x130] sm:$0xf]
  %v113 = vld [vmem:[%s1 + $0x134] sm:$0xf]
  %v114 = vld [vmem:[%s1 + $0x138] sm:$0xf]
  %v115 = vld [vmem:[%s1 + $0x13c] sm:$0xf]
  %v116 = vld [vmem:[%s1 + $0x140] sm:$0xf]
  %v117 = vld [vmem:[%s1 + $0x144] sm:$0xf]
  %v118 = vld [vmem:[%s1 + $0x148] sm:$0xf]
  %v119 = vld [vmem:[%s1 + $0x14c] sm:$0xf]
  %v120 = vld [vmem:[%s1 + $0x150] sm:$0xf]
  %v121 = vld [vmem:[%s1 + $0x154] sm:$0xf]
  %v122 = vld [vmem:[%s1 + $0x158] sm:$0xf]
  %v123 = vld [vmem:[%s1 + $0x15c] sm:$0xf]
  %v124 = vld [vmem:[%s1 + $0x160] sm:$0xf]
  %v125 = vld [vmem:[%s1 + $0x164] sm:$0xf]
  %v126 = vld [vmem:[%s1 + $0x168] sm:$0xf]
  %v127 = vld [vmem:[%s1 + $0x16c] sm:$0xf]
  %v128 = vld [vmem:[%s1 + $0x170] sm:$0xf]
  %v129 = vld [vmem:[%s1 + $0x174] sm:$0xf]
  %v130 = vld [vmem:[%s1 + $0x178] sm:$0xf]
  %v131 = vld [vmem:[%s1 + $0x17c] sm:$0xf]
  %v156 = vunpack.c.l.b16 %v12
  %v157 = vunpack.c.h.b16 %v12
  %v158 = vunpack.c.l.b16 %v13
  %v159 = vunpack.c.h.b16 %v13
  %v160 = vunpack.c.l.b16 %v14
  %v161 = vunpack.c.h.b16 %v14
  %v162 = vunpack.c.l.b16 %v15
  %v163 = vunpack.c.h.b16 %v15
  %v164 = vunpack.c.l.b16 %v16
  %v165 = vunpack.c.h.b16 %v16
  %v166 = vunpack.c.l.b16 %v17
  %v167 = vunpack.c.h.b16 %v17
  %v168 = vunpack.c.l.b16 %v18
  %v169 = vunpack.c.h.b16 %v18
  %v170 = vunpack.c.l.b16 %v19
  %v171 = vunpack.c.h.b16 %v19
  %v172 = vunpack.c.l.b16 %v20
  %v173 = vunpack.c.h.b16 %v20
  %v174 = vunpack.c.l.b16 %v21
  %v175 = vunpack.c.h.b16 %v21
  %v176 = vunpack.c.l.b16 %v22
  %v177 = vunpack.c.h.b16 %v22
  %v178 = vunpack.c.l.b16 %v23
  %v179 = vunpack.c.h.b16 %v23
  %v180 = vunpack.c.l.b16 %v24
  %v181 = vunpack.c.h.b16 %v24
  %v182 = vunpack.c.l.b16 %v25
  %v183 = vunpack.c.h.b16 %v25
  %v184 = vunpack.c.l.b16 %v26
  %v185 = vunpack.c.h.b16 %v26
  %v186 = vunpack.c.l.b16 %v27
  %v187 = vunpack.c.h.b16 %v27
  %v188 = vunpack.c.l.b16 %v28
  %v189 = vunpack.c.h.b16 %v28
  %v190 = vunpack.c.l.b16 %v29
  %v191 = vunpack.c.h.b16 %v29
  %v192 = vunpack.c.l.b16 %v30
  %v193 = vunpack.c.h.b16 %v30
  %v194 = vunpack.c.l.b16 %v31
  %v195 = vunpack.c.h.b16 %v31
  %v196 = vunpack.c.l.b16 %v32
  %v197 = vunpack.c.h.b16 %v32
  %v198 = vunpack.c.l.b16 %v33
  %v199 = vunpack.c.h.b16 %v33
  %v200 = vunpack.c.l.b16 %v34
  %v201 = vunpack.c.h.b16 %v34
  %v202 = vunpack.c.l.b16 %v35
  %v203 = vunpack.c.h.b16 %v35
  %v204 = vpack.c.b16 %v162, %v156
  %v205 = vpack.c.b16 %v163, %v157
  %v206 = vpack.c.b16 %v164, %v158
  %v207 = vpack.c.b16 %v165, %v159
  %v208 = vpack.c.b16 %v166, %v160
  %v209 = vpack.c.b16 %v167, %v161
  %v210 = vpack.c.b16 %v174, %v168
  %v211 = vpack.c.b16 %v175, %v169
  %v212 = vpack.c.b16 %v176, %v170
  %v213 = vpack.c.b16 %v177, %v171
  %v214 = vpack.c.b16 %v178, %v172
  %v215 = vpack.c.b16 %v179, %v173
  %v216 = vpack.c.b16 %v186, %v180
  %v217 = vpack.c.b16 %v187, %v181
  %v218 = vpack.c.b16 %v188, %v182
  %v219 = vpack.c.b16 %v189, %v183
  %v220 = vpack.c.b16 %v190, %v184
  %v221 = vpack.c.b16 %v191, %v185
  %v222 = vpack.c.b16 %v198, %v192
  %v223 = vpack.c.b16 %v199, %v193
  %v224 = vpack.c.b16 %v200, %v194
  %v225 = vpack.c.b16 %v201, %v195
  %v226 = vpack.c.b16 %v202, %v196
  %v227 = vpack.c.b16 %v203, %v197
  %v348 = vunpack.c.l.b16 %v36
  %v349 = vunpack.c.l.b16 %v37
  %v350 = vunpack.c.l.b16 %v38
  %v351 = vunpack.c.l.b16 %v39
  %v352 = vunpack.c.l.b16 %v40
  %v353 = vunpack.c.l.b16 %v41
  %v354 = vunpack.c.l.b16 %v42
  %v355 = vunpack.c.l.b16 %v43
  %v356 = vunpack.c.l.b16 %v44
  %v357 = vunpack.c.l.b16 %v45
  %v358 = vunpack.c.l.b16 %v46
  %v359 = vunpack.c.l.b16 %v47
  %v360 = vunpack.c.l.b16 %v48
  %v361 = vunpack.c.l.b16 %v49
  %v362 = vunpack.c.l.b16 %v50
  %v363 = vunpack.c.l.b16 %v51
  %v364 = vunpack.c.l.b16 %v52
  %v365 = vunpack.c.l.b16 %v53
  %v366 = vunpack.c.l.b16 %v54
  %v367 = vunpack.c.l.b16 %v55
  %v368 = vunpack.c.l.b16 %v56
  %v369 = vunpack.c.l.b16 %v57
  %v370 = vunpack.c.l.b16 %v58
  %v371 = vunpack.c.l.b16 %v59
  %v372 = vunpack.c.l.b16 %v60
  %v373 = vunpack.c.l.b16 %v61
  %v374 = vunpack.c.l.b16 %v62
  %v375 = vunpack.c.l.b16 %v63
  %v376 = vunpack.c.l.b16 %v64
  %v377 = vunpack.c.l.b16 %v65
  %v378 = vunpack.c.l.b16 %v66
  %v379 = vunpack.c.l.b16 %v67
  %v380 = vunpack.c.l.b16 %v68
  %v381 = vunpack.c.l.b16 %v69
  %v382 = vunpack.c.l.b16 %v70
  %v383 = vunpack.c.l.b16 %v71
  %v384 = vunpack.c.l.b16 %v72
  %v385 = vunpack.c.l.b16 %v73
  %v386 = vunpack.c.l.b16 %v74
  %v387 = vunpack.c.l.b16 %v75
  %v388 = vunpack.c.l.b16 %v76
  %v389 = vunpack.c.l.b16 %v77
  %v390 = vunpack.c.l.b16 %v78
  %v391 = vunpack.c.l.b16 %v79
  %v392 = vunpack.c.l.b16 %v80
  %v393 = vunpack.c.l.b16 %v81
  %v394 = vunpack.c.l.b16 %v82
  %v395 = vunpack.c.l.b16 %v83
  %v396 = vunpack.c.l.b16 %v84
  %v397 = vunpack.c.l.b16 %v85
  %v398 = vunpack.c.l.b16 %v86
  %v399 = vunpack.c.l.b16 %v87
  %v400 = vunpack.c.l.b16 %v88
  %v401 = vunpack.c.l.b16 %v89
  %v402 = vunpack.c.l.b16 %v90
  %v403 = vunpack.c.l.b16 %v91
  %v404 = vunpack.c.l.b16 %v92
  %v405 = vunpack.c.l.b16 %v93
  %v406 = vunpack.c.l.b16 %v94
  %v407 = vunpack.c.l.b16 %v95
  %v408 = vunpack.c.l.b16 %v96
  %v409 = vunpack.c.l.b16 %v97
  %v410 = vunpack.c.l.b16 %v98
  %v411 = vunpack.c.l.b16 %v99
  %v412 = vunpack.c.l.b16 %v100
  %v413 = vunpack.c.l.b16 %v101
  %v414 = vunpack.c.l.b16 %v102
  %v415 = vunpack.c.l.b16 %v103
  %v416 = vunpack.c.l.b16 %v104
  %v417 = vunpack.c.l.b16 %v105
  %v418 = vunpack.c.l.b16 %v106
  %v419 = vunpack.c.l.b16 %v107
  %v420 = vunpack.c.l.b16 %v108
  %v421 = vunpack.c.l.b16 %v109
  %v422 = vunpack.c.l.b16 %v110
  %v423 = vunpack.c.l.b16 %v111
  %v424 = vunpack.c.l.b16 %v112
  %v425 = vunpack.c.l.b16 %v113
  %v426 = vunpack.c.l.b16 %v114
  %v427 = vunpack.c.l.b16 %v115
  %v428 = vunpack.c.l.b16 %v116
  %v429 = vunpack.c.l.b16 %v117
  %v430 = vunpack.c.l.b16 %v118
  %v431 = vunpack.c.l.b16 %v119
  %v432 = vunpack.c.l.b16 %v120
  %v433 = vunpack.c.l.b16 %v121
  %v434 = vunpack.c.l.b16 %v122
  %v435 = vunpack.c.l.b16 %v123
  %v436 = vunpack.c.l.b16 %v124
  %v437 = vunpack.c.l.b16 %v125
  %v438 = vunpack.c.l.b16 %v126
  %v439 = vunpack.c.l.b16 %v127
  %v440 = vunpack.c.l.b16 %v128
  %v441 = vunpack.c.l.b16 %v129
  %v442 = vunpack.c.l.b16 %v130
  %v443 = vunpack.c.l.b16 %v131
  %v444 = vpack.c.b16 %v349, %v348
  %v445 = vpack.c.b16 %v351, %v350
  %v446 = vpack.c.b16 %v353, %v352
  %v447 = vpack.c.b16 %v355, %v354
  %v448 = vpack.c.b16 %v357, %v356
  %v449 = vpack.c.b16 %v359, %v358
  %v450 = vpack.c.b16 %v361, %v360
  %v451 = vpack.c.b16 %v363, %v362
  %v452 = vpack.c.b16 %v365, %v364
  %v453 = vpack.c.b16 %v367, %v366
  %v454 = vpack.c.b16 %v369, %v368
  %v455 = vpack.c.b16 %v371, %v370
  %v456 = vpack.c.b16 %v373, %v372
  %v457 = vpack.c.b16 %v375, %v374
  %v458 = vpack.c.b16 %v377, %v376
  %v459 = vpack.c.b16 %v379, %v378
  %v460 = vpack.c.b16 %v381, %v380
  %v461 = vpack.c.b16 %v383, %v382
  %v462 = vpack.c.b16 %v385, %v384
  %v463 = vpack.c.b16 %v387, %v386
  %v464 = vpack.c.b16 %v389, %v388
  %v465 = vpack.c.b16 %v391, %v390
  %v466 = vpack.c.b16 %v393, %v392
  %v467 = vpack.c.b16 %v395, %v394
  %v468 = vpack.c.b16 %v397, %v396
  %v469 = vpack.c.b16 %v399, %v398
  %v470 = vpack.c.b16 %v401, %v400
  %v471 = vpack.c.b16 %v403, %v402
  %v472 = vpack.c.b16 %v405, %v404
  %v473 = vpack.c.b16 %v407, %v406
  %v474 = vpack.c.b16 %v409, %v408
  %v475 = vpack.c.b16 %v411, %v410
  %v476 = vpack.c.b16 %v413, %v412
  %v477 = vpack.c.b16 %v415, %v414
  %v478 = vpack.c.b16 %v417, %v416
  %v479 = vpack.c.b16 %v419, %v418
  %v480 = vpack.c.b16 %v421, %v420
  %v481 = vpack.c.b16 %v423, %v422
  %v482 = vpack.c.b16 %v425, %v424
  %v483 = vpack.c.b16 %v427, %v426
  %v484 = vpack.c.b16 %v429, %v428
  %v485 = vpack.c.b16 %v431, %v430
  %v486 = vpack.c.b16 %v433, %v432
  %v487 = vpack.c.b16 %v435, %v434
  %v488 = vpack.c.b16 %v437, %v436
  %v489 = vpack.c.b16 %v439, %v438
  %v490 = vpack.c.b16 %v441, %v440
  %v491 = vpack.c.b16 %v443, %v442
  %540 = vmatprep.subr.bf16.mxu0 0
  %541 = vmatpush1.bf16.msra.mxu0 %v444
  %542 = vmatprep.subr.bf16.mxu0 0
  %543 = vmatpush1.bf16.msra.mxu0 %v445
  %544 = vmatprep.subr.bf16.mxu0 0
  %545 = vmatpush1.bf16.msra.mxu0 %v446
  %546 = vmatprep.subr.bf16.mxu0 0
  %547 = vmatpush1.bf16.msra.mxu0 %v447
  %548 = vmatprep.subr.bf16.mxu0 0
  %549 = vmatpush1.bf16.msra.mxu0 %v448
  %550 = vmatprep.subr.bf16.mxu0 0
  %551 = vmatpush1.bf16.msra.mxu0 %v449
  %552 = vmatprep.subr.bf16.mxu0 0
  %553 = vmatpush1.bf16.msra.mxu0 %v450
  %554 = vmatprep.subr.bf16.mxu0 0
  %555 = vmatpush1.bf16.msra.mxu0 %v451
  %556 = vmatprep.subr.bf16.mxu0 0
  %557 = vmatpush1.bf16.msra.mxu0 %v452
  %558 = vmatprep.subr.bf16.mxu0 0
  %559 = vmatpush1.bf16.msra.mxu0 %v453
  %560 = vmatprep.subr.bf16.mxu0 0
  %561 = vmatpush1.bf16.msra.mxu0 %v454
  %562 = vmatprep.subr.bf16.mxu0 0
  %563 = vmatpush1.bf16.msra.mxu0 %v455
  %564 = vmatprep.subr.bf16.mxu0 0
  %565 = vmatpush1.bf16.msra.mxu0 %v456
  %566 = vmatprep.subr.bf16.mxu0 0
  %567 = vmatpush1.bf16.msra.mxu0 %v457
  %568 = vmatprep.subr.bf16.mxu0 0
  %569 = vmatpush1.bf16.msra.mxu0 %v458
  %570 = vmatprep.subr.bf16.mxu0 0
  %571 = vmatpush1.bf16.msra.mxu0 %v459
  %572 = vmatprep.mubr.bf16.mxu0 %v205
  %573 = vmatmul.mubr.bf16.gmra.mrb[0].mxu0 %v204
  %v574 = vpop.f32.mrb[0].mxu0
  %v575 = vadd.f32 0.0, %v574
  %v576 = vpop.f32.mrb[0].mxu0
  %v577 = vpop.f32.mrb[0].mxu0
  %v578 = vadd.f32 0.0, %v577
  %v579 = vpop.f32.mrb[0].mxu0
  %580 = vmatprep.mubr.bf16.mxu0 %v211
  %581 = vmatmul.mubr.bf16.gmra.mrb[0].mxu0 %v210
  %v582 = vpop.f32.mrb[0].mxu0
  %v583 = vadd.f32 0.0, %v582
  %v584 = vpop.f32.mrb[0].mxu0
  %v585 = vpop.f32.mrb[0].mxu0
  %v586 = vadd.f32 0.0, %v585
  %v587 = vpop.f32.mrb[0].mxu0
  %588 = vmatprep.mubr.bf16.mxu0 %v217
  %589 = vmatmul.mubr.bf16.gmra.mrb[0].mxu0 %v216
  %v590 = vpop.f32.mrb[0].mxu0
  %v591 = vadd.f32 0.0, %v590
  %v592 = vpop.f32.mrb[0].mxu0
  %v593 = vpop.f32.mrb[0].mxu0
  %v594 = vadd.f32 0.0, %v593
  %v595 = vpop.f32.mrb[0].mxu0
  %596 = vmatprep.mubr.bf16.mxu0 %v223
  %597 = vmatmul.mubr.bf16.gmra.mrb[0].mxu0 %v222
  %v598 = vpop.f32.mrb[0].mxu0
  %v599 = vadd.f32 0.0, %v598
  %v600 = vpop.f32.mrb[0].mxu0
  %v601 = vpop.f32.mrb[0].mxu0
  %v602 = vadd.f32 0.0, %v601
  %v603 = vpop.f32.mrb[0].mxu0
  %604 = vdwg.mxu0
  %605 = vmatprep.subr.bf16.mxu0 0
  %606 = vmatpush1.bf16.msra.mxu0 %v460
  %607 = vmatprep.subr.bf16.mxu0 0
  %608 = vmatpush1.bf16.msra.mxu0 %v461
  %609 = vmatprep.subr.bf16.mxu0 0
  %610 = vmatpush1.bf16.msra.mxu0 %v462
  %611 = vmatprep.subr.bf16.mxu0 0
  %612 = vmatpush1.bf16.msra.mxu0 %v463
  %613 = vmatprep.subr.bf16.mxu0 0
  %614 = vmatpush1.bf16.msra.mxu0 %v464
  %615 = vmatprep.subr.bf16.mxu0 0
  %616 = vmatpush1.bf16.msra.mxu0 %v465
  %617 = vmatprep.subr.bf16.mxu0 0
  %618 = vmatpush1.bf16.msra.mxu0 %v466
  %619 = vmatprep.subr.bf16.mxu0 0
  %620 = vmatpush1.bf16.msra.mxu0 %v467
  %621 = vmatprep.subr.bf16.mxu0 0
  %622 = vmatpush1.bf16.msra.mxu0 %v468
  %623 = vmatprep.subr.bf16.mxu0 0
  %624 = vmatpush1.bf16.msra.mxu0 %v469
  %625 = vmatprep.subr.bf16.mxu0 0
  %626 = vmatpush1.bf16.msra.mxu0 %v470
  %627 = vmatprep.subr.bf16.mxu0 0
  %628 = vmatpush1.bf16.msra.mxu0 %v471
  %629 = vmatprep.subr.bf16.mxu0 0
  %630 = vmatpush1.bf16.msra.mxu0 %v472
  %631 = vmatprep.subr.bf16.mxu0 0
  %632 = vmatpush1.bf16.msra.mxu0 %v473
  %633 = vmatprep.subr.bf16.mxu0 0
  %634 = vmatpush1.bf16.msra.mxu0 %v474
  %635 = vmatprep.subr.bf16.mxu0 0
  %636 = vmatpush1.bf16.msra.mxu0 %v475
  %637 = vmatprep.mubr.bf16.mxu0 %v207
  %638 = vmatmul.mubr.bf16.gmra.mrb[0].mxu0 %v206
  %v639 = vpop.f32.mrb[0].mxu0
  %v640 = vadd.f32 %v575, %v639
  %v641 = vpop.f32.mrb[0].mxu0
  %v642 = vpop.f32.mrb[0].mxu0
  %v643 = vadd.f32 %v578, %v642
  %v644 = vpop.f32.mrb[0].mxu0
  %645 = vmatprep.mubr.bf16.mxu0 %v213
  %646 = vmatmul.mubr.bf16.gmra.mrb[0].mxu0 %v212
  %v647 = vpop.f32.mrb[0].mxu0
  %v648 = vadd.f32 %v583, %v647
  %v649 = vpop.f32.mrb[0].mxu0
  %v650 = vpop.f32.mrb[0].mxu0
  %v651 = vadd.f32 %v586, %v650
  %v652 = vpop.f32.mrb[0].mxu0
  %653 = vmatprep.mubr.bf16.mxu0 %v219
  %654 = vmatmul.mubr.bf16.gmra.mrb[0].mxu0 %v218
  %v655 = vpop.f32.mrb[0].mxu0
  %v656 = vadd.f32 %v591, %v655
  %v657 = vpop.f32.mrb[0].mxu0
  %v658 = vpop.f32.mrb[0].mxu0
  %v659 = vadd.f32 %v594, %v658
  %v660 = vpop.f32.mrb[0].mxu0
  %661 = vmatprep.mubr.bf16.mxu0 %v225
  %662 = vmatmul.mubr.bf16.gmra.mrb[0].mxu0 %v224
  %v663 = vpop.f32.mrb[0].mxu0
  %v664 = vadd.f32 %v599, %v663
  %v665 = vpop.f32.mrb[0].mxu0
  %v666 = vpop.f32.mrb[0].mxu0
  %v667 = vadd.f32 %v602, %v666
  %v668 = vpop.f32.mrb[0].mxu0
  %669 = vdwg.mxu0
  %670 = vmatprep.subr.bf16.mxu0 0
  %671 = vmatpush1.bf16.msra.mxu0 %v476
  %672 = vmatprep.subr.bf16.mxu0 0
  %673 = vmatpush1.bf16.msra.mxu0 %v477
  %674 = vmatprep.subr.bf16.mxu0 0
  %675 = vmatpush1.bf16.msra.mxu0 %v478
  %676 = vmatprep.subr.bf16.mxu0 0
  %677 = vmatpush1.bf16.msra.mxu0 %v479
  %678 = vmatprep.subr.bf16.mxu0 0
  %679 = vmatpush1.bf16.msra.mxu0 %v480
  %680 = vmatprep.subr.bf16.mxu0 0
  %681 = vmatpush1.bf16.msra.mxu0 %v481
  %682 = vmatprep.subr.bf16.mxu0 0
  %683 = vmatpush1.bf16.msra.mxu0 %v482
  %684 = vmatprep.subr.bf16.mxu0 0
  %685 = vmatpush1.bf16.msra.mxu0 %v483
  %686 = vmatprep.subr.bf16.mxu0 0
  %687 = vmatpush1.bf16.msra.mxu0 %v484
  %688 = vmatprep.subr.bf16.mxu0 0
  %689 = vmatpush1.bf16.msra.mxu0 %v485
  %690 = vmatprep.subr.bf16.mxu0 0
  %691 = vmatpush1.bf16.msra.mxu0 %v486
  %692 = vmatprep.subr.bf16.mxu0 0
  %693 = vmatpush1.bf16.msra.mxu0 %v487
  %694 = vmatprep.subr.bf16.mxu0 0
  %695 = vmatpush1.bf16.msra.mxu0 %v488
  %696 = vmatprep.subr.bf16.mxu0 0
  %697 = vmatpush1.bf16.msra.mxu0 %v489
  %698 = vmatprep.subr.bf16.mxu0 0
  %699 = vmatpush1.bf16.msra.mxu0 %v490
  %700 = vmatprep.subr.bf16.mxu0 0
  %701 = vmatpush1.bf16.msra.mxu0 %v491
  %702 = vmatprep.mubr.bf16.mxu0 %v209
  %703 = vmatmul.mubr.bf16.gmra.mrb[0].mxu0 %v208
  %v704 = vpop.f32.mrb[0].mxu0
  %v705 = vadd.f32 %v640, %v704
  %v706 = vpop.f32.mrb[0].mxu0
  %v707 = vpop.f32.mrb[0].mxu0
  %v708 = vadd.f32 %v643, %v707
  %v709 = vpop.f32.mrb[0].mxu0
  %710 = vmatprep.mubr.bf16.mxu0 %v215
  %711 = vmatmul.mubr.bf16.gmra.mrb[0].mxu0 %v214
  %v712 = vpop.f32.mrb[0].mxu0
  %v713 = vadd.f32 %v648, %v712
  %v714 = vpop.f32.mrb[0].mxu0
  %v715 = vpop.f32.mrb[0].mxu0
  %v716 = vadd.f32 %v651, %v715
  %v717 = vpop.f32.mrb[0].mxu0
  %718 = vmatprep.mubr.bf16.mxu0 %v221
  %719 = vmatmul.mubr.bf16.gmra.mrb[0].mxu0 %v220
  %v720 = vpop.f32.mrb[0].mxu0
  %v721 = vadd.f32 %v656, %v720
  %v722 = vpop.f32.mrb[0].mxu0
  %v723 = vpop.f32.mrb[0].mxu0
  %v724 = vadd.f32 %v659, %v723
  %v725 = vpop.f32.mrb[0].mxu0
  %726 = vmatprep.mubr.bf16.mxu0 %v227
  %727 = vmatmul.mubr.bf16.gmra.mrb[0].mxu0 %v226
  %v728 = vpop.f32.mrb[0].mxu0
  %v729 = vadd.f32 %v664, %v728
  %v730 = vpop.f32.mrb[0].mxu0
  %v731 = vpop.f32.mrb[0].mxu0
  %v732 = vadd.f32 %v667, %v731
  %v733 = vpop.f32.mrb[0].mxu0
  %734 = vdwg.mxu0
  %vm735 = vcmask 261120
  %736 = vst.msk [vmem:[%s2] sm:$0xff] %vm735, %v705
  %737 = vst.msk [vmem:[%s2 + $0x8] sm:$0xff] %vm735, %v708
  %738 = vst.msk [vmem:[%s2 + $0x10] sm:$0xff] %vm735, %v713
  %739 = vst.msk [vmem:[%s2 + $0x18] sm:$0xff] %vm735, %v716
  %740 = vst.msk [vmem:[%s2 + $0x20] sm:$0xff] %vm735, %v721
  %741 = vst.msk [vmem:[%s2 + $0x28] sm:$0xff] %vm735, %v724
  %742 = vst.msk [vmem:[%s2 + $0x30] sm:$0xff] %vm735, %v729
  %743 = vst.msk [vmem:[%s2 + $0x38] sm:$0xff] %vm735, %v732
  // Predicated region
  $region10: #{generator_forward.27} parent=0 // pred_check
    _
  $region11: #{generator_forward.27} parent=0 // pred_check_branch
    %745 = sbr.rel (0) target = $region13
  $region12: #{generator_forward.27} parent=0 // pred_region
    _
  $region13: #{generator_forward.27} parent=0 // pred_fallthru
    _
  // Predicated region
  $region14: #{generator_forward.27} parent=0 // pred_check
    _
  $region15: #{generator_forward.27} parent=0 // pred_check_branch
    %747 = sbr.rel (0) target = $region17
  $region16: #{generator_forward.27} parent=0 // pred_region
    _
  $region17: #{generator_forward.27} parent=0 // pred_fallthru
    _

// kernel: generator_forward.29
$region0: #{generator_forward.29}
  #allocation0 [shape = 'u32[]', space=smem, size = 0x4, offset = 0x4, fixed_abs, tag = 'smem constant byte address 0x4 - core index']
  #allocation1 [shape = 'u32[144,128]{1,0:T(1,128)}', space=vmem, size = 0x12000, scoped, tag = 'internal scratch']
  %s0 = inlined_call_operand.vmem [shape: bf16[64,512], index: 0, kind: input, shape index: {}]
  %s1 = inlined_call_operand.vmem [shape: bf16[512,32], index: 1, kind: input, shape index: {}]
  %s2 = inlined_call_operand.vmem [shape: f32[64,32], index: 2, kind: output, shape index: {}]
  %s3 = sld [smem:[#allocation0]]
  $region18: #{generator_forward.29} parent=0
    _
  %s5 = ssub.s32 1, %s3
  %s6 = scalar_select 0, %s5, %s3
  // Predicated region
  $region2: #{generator_forward.29} parent=0 // pred_check
    _
  $region3: #{generator_forward.29} parent=0 // pred_check_branch
    %8 = sbr.rel (0) target = $region5
  $region4: #{generator_forward.29} parent=0 // pred_region
    _
  $region5: #{generator_forward.29} parent=0 // pred_fallthru
    _
  // Predicated region
  $region6: #{generator_forward.29} parent=0 // pred_check
    _
  $region7: #{generator_forward.29} parent=0 // pred_check_branch
    %10 = sbr.rel (0) target = $region9
  $region8: #{generator_forward.29} parent=0 // pred_region
    _
  $region9: #{generator_forward.29} parent=0 // pred_fallthru
    _
  %v12 = vld [vmem:[%s0] sm:$0xff]
  %v13 = vld [vmem:[%s0 + $0x8] sm:$0xff]
  %v14 = vld [vmem:[%s0 + $0x10] sm:$0xff]
  %v15 = vld [vmem:[%s0 + $0x18] sm:$0xff]
  %v16 = vld [vmem:[%s0 + $0x20] sm:$0xff]
  %v17 = vld [vmem:[%s0 + $0x28] sm:$0xff]
  %v18 = vld [vmem:[%s0 + $0x30] sm:$0xff]
  %v19 = vld [vmem:[%s0 + $0x38] sm:$0xff]
  %v20 = vld [vmem:[%s0 + $0x40] sm:$0xff]
  %v21 = vld [vmem:[%s0 + $0x48] sm:$0xff]
  %v22 = vld [vmem:[%s0 + $0x50] sm:$0xff]
  %v23 = vld [vmem:[%s0 + $0x58] sm:$0xff]
  %v24 = vld [vmem:[%s0 + $0x60] sm:$0xff]
  %v25 = vld [vmem:[%s0 + $0x68] sm:$0xff]
  %v26 = vld [vmem:[%s0 + $0x70] sm:$0xff]
  %v27 = vld [vmem:[%s0 + $0x78] sm:$0xff]
  %v28 = vld [vmem:[%s1] sm:$0xf]
  %v29 = vld [vmem:[%s1 + $0x4] sm:$0xf]
  %v30 = vld [vmem:[%s1 + $0x8] sm:$0xf]
  %v31 = vld [vmem:[%s1 + $0xc] sm:$0xf]
  %v32 = vld [vmem:[%s1 + $0x10] sm:$0xf]
  %v33 = vld [vmem:[%s1 + $0x14] sm:$0xf]
  %v34 = vld [vmem:[%s1 + $0x18] sm:$0xf]
  %v35 = vld [vmem:[%s1 + $0x1c] sm:$0xf]
  %v36 = vld [vmem:[%s1 + $0x20] sm:$0xf]
  %v37 = vld [vmem:[%s1 + $0x24] sm:$0xf]
  %v38 = vld [vmem:[%s1 + $0x28] sm:$0xf]
  %v39 = vld [vmem:[%s1 + $0x2c] sm:$0xf]
  %v40 = vld [vmem:[%s1 + $0x30] sm:$0xf]
  %v41 = vld [vmem:[%s1 + $0x34] sm:$0xf]
  %v42 = vld [vmem:[%s1 + $0x38] sm:$0xf]
  %v43 = vld [vmem:[%s1 + $0x3c] sm:$0xf]
  %v44 = vld [vmem:[%s1 + $0x40] sm:$0xf]
  %v45 = vld [vmem:[%s1 + $0x44] sm:$0xf]
  %v46 = vld [vmem:[%s1 + $0x48] sm:$0xf]
  %v47 = vld [vmem:[%s1 + $0x4c] sm:$0xf]
  %v48 = vld [vmem:[%s1 + $0x50] sm:$0xf]
  %v49 = vld [vmem:[%s1 + $0x54] sm:$0xf]
  %v50 = vld [vmem:[%s1 + $0x58] sm:$0xf]
  %v51 = vld [vmem:[%s1 + $0x5c] sm:$0xf]
  %v52 = vld [vmem:[%s1 + $0x60] sm:$0xf]
  %v53 = vld [vmem:[%s1 + $0x64] sm:$0xf]
  %v54 = vld [vmem:[%s1 + $0x68] sm:$0xf]
  %v55 = vld [vmem:[%s1 + $0x6c] sm:$0xf]
  %v56 = vld [vmem:[%s1 + $0x70] sm:$0xf]
  %v57 = vld [vmem:[%s1 + $0x74] sm:$0xf]
  %v58 = vld [vmem:[%s1 + $0x78] sm:$0xf]
  %v59 = vld [vmem:[%s1 + $0x7c] sm:$0xf]
  %v60 = vld [vmem:[%s1 + $0x80] sm:$0xf]
  %v61 = vld [vmem:[%s1 + $0x84] sm:$0xf]
  %v62 = vld [vmem:[%s1 + $0x88] sm:$0xf]
  %v63 = vld [vmem:[%s1 + $0x8c] sm:$0xf]
  %v64 = vld [vmem:[%s1 + $0x90] sm:$0xf]
  %v65 = vld [vmem:[%s1 + $0x94] sm:$0xf]
  %v66 = vld [vmem:[%s1 + $0x98] sm:$0xf]
  %v67 = vld [vmem:[%s1 + $0x9c] sm:$0xf]
  %v68 = vld [vmem:[%s1 + $0xa0] sm:$0xf]
  %v69 = vld [vmem:[%s1 + $0xa4] sm:$0xf]
  %v70 = vld [vmem:[%s1 + $0xa8] sm:$0xf]
  %v71 = vld [vmem:[%s1 + $0xac] sm:$0xf]
  %v72 = vld [vmem:[%s1 + $0xb0] sm:$0xf]
  %v73 = vld [vmem:[%s1 + $0xb4] sm:$0xf]
  %v74 = vld [vmem:[%s1 + $0xb8] sm:$0xf]
  %v75 = vld [vmem:[%s1 + $0xbc] sm:$0xf]
  %v76 = vld [vmem:[%s1 + $0xc0] sm:$0xf]
  %v77 = vld [vmem:[%s1 + $0xc4] sm:$0xf]
  %v78 = vld [vmem:[%s1 + $0xc8] sm:$0xf]
  %v79 = vld [vmem:[%s1 + $0xcc] sm:$0xf]
  %v80 = vld [vmem:[%s1 + $0xd0] sm:$0xf]
  %v81 = vld [vmem:[%s1 + $0xd4] sm:$0xf]
  %v82 = vld [vmem:[%s1 + $0xd8] sm:$0xf]
  %v83 = vld [vmem:[%s1 + $0xdc] sm:$0xf]
  %v84 = vld [vmem:[%s1 + $0xe0] sm:$0xf]
  %v85 = vld [vmem:[%s1 + $0xe4] sm:$0xf]
  %v86 = vld [vmem:[%s1 + $0xe8] sm:$0xf]
  %v87 = vld [vmem:[%s1 + $0xec] sm:$0xf]
  %v88 = vld [vmem:[%s1 + $0xf0] sm:$0xf]
  %v89 = vld [vmem:[%s1 + $0xf4] sm:$0xf]
  %v90 = vld [vmem:[%s1 + $0xf8] sm:$0xf]
  %v91 = vld [vmem:[%s1 + $0xfc] sm:$0xf]
  %v108 = vunpack.c.l.b16 %v12
  %v109 = vunpack.c.h.b16 %v12
  %v110 = vunpack.c.l.b16 %v13
  %v111 = vunpack.c.h.b16 %v13
  %v112 = vunpack.c.l.b16 %v14
  %v113 = vunpack.c.h.b16 %v14
  %v114 = vunpack.c.l.b16 %v15
  %v115 = vunpack.c.h.b16 %v15
  %v116 = vunpack.c.l.b16 %v16
  %v117 = vunpack.c.h.b16 %v16
  %v118 = vunpack.c.l.b16 %v17
  %v119 = vunpack.c.h.b16 %v17
  %v120 = vunpack.c.l.b16 %v18
  %v121 = vunpack.c.h.b16 %v18
  %v122 = vunpack.c.l.b16 %v19
  %v123 = vunpack.c.h.b16 %v19
  %v124 = vunpack.c.l.b16 %v20
  %v125 = vunpack.c.h.b16 %v20
  %v126 = vunpack.c.l.b16 %v21
  %v127 = vunpack.c.h.b16 %v21
  %v128 = vunpack.c.l.b16 %v22
  %v129 = vunpack.c.h.b16 %v22
  %v130 = vunpack.c.l.b16 %v23
  %v131 = vunpack.c.h.b16 %v23
  %v132 = vunpack.c.l.b16 %v24
  %v133 = vunpack.c.h.b16 %v24
  %v134 = vunpack.c.l.b16 %v25
  %v135 = vunpack.c.h.b16 %v25
  %v136 = vunpack.c.l.b16 %v26
  %v137 = vunpack.c.h.b16 %v26
  %v138 = vunpack.c.l.b16 %v27
  %v139 = vunpack.c.h.b16 %v27
  %v140 = vpack.c.b16 %v112, %v108
  %v141 = vpack.c.b16 %v113, %v109
  %v142 = vpack.c.b16 %v114, %v110
  %v143 = vpack.c.b16 %v115, %v111
  %v144 = vpack.c.b16 %v120, %v116
  %v145 = vpack.c.b16 %v121, %v117
  %v146 = vpack.c.b16 %v122, %v118
  %v147 = vpack.c.b16 %v123, %v119
  %v148 = vpack.c.b16 %v128, %v124
  %v149 = vpack.c.b16 %v129, %v125
  %v150 = vpack.c.b16 %v130, %v126
  %v151 = vpack.c.b16 %v131, %v127
  %v152 = vpack.c.b16 %v136, %v132
  %v153 = vpack.c.b16 %v137, %v133
  %v154 = vpack.c.b16 %v138, %v134
  %v155 = vpack.c.b16 %v139, %v135
  %v236 = vunpack.c.l.b16 %v28
  %v237 = vunpack.c.l.b16 %v29
  %v238 = vunpack.c.l.b16 %v30
  %v239 = vunpack.c.l.b16 %v31
  %v240 = vunpack.c.l.b16 %v32
  %v241 = vunpack.c.l.b16 %v33
  %v242 = vunpack.c.l.b16 %v34
  %v243 = vunpack.c.l.b16 %v35
  %v244 = vunpack.c.l.b16 %v36
  %v245 = vunpack.c.l.b16 %v37
  %v246 = vunpack.c.l.b16 %v38
  %v247 = vunpack.c.l.b16 %v39
  %v248 = vunpack.c.l.b16 %v40
  %v249 = vunpack.c.l.b16 %v41
  %v250 = vunpack.c.l.b16 %v42
  %v251 = vunpack.c.l.b16 %v43
  %v252 = vunpack.c.l.b16 %v44
  %v253 = vunpack.c.l.b16 %v45
  %v254 = vunpack.c.l.b16 %v46
  %v255 = vunpack.c.l.b16 %v47
  %v256 = vunpack.c.l.b16 %v48
  %v257 = vunpack.c.l.b16 %v49
  %v258 = vunpack.c.l.b16 %v50
  %v259 = vunpack.c.l.b16 %v51
  %v260 = vunpack.c.l.b16 %v52
  %v261 = vunpack.c.l.b16 %v53
  %v262 = vunpack.c.l.b16 %v54
  %v263 = vunpack.c.l.b16 %v55
  %v264 = vunpack.c.l.b16 %v56
  %v265 = vunpack.c.l.b16 %v57
  %v266 = vunpack.c.l.b16 %v58
  %v267 = vunpack.c.l.b16 %v59
  %v268 = vunpack.c.l.b16 %v60
  %v269 = vunpack.c.l.b16 %v61
  %v270 = vunpack.c.l.b16 %v62
  %v271 = vunpack.c.l.b16 %v63
  %v272 = vunpack.c.l.b16 %v64
  %v273 = vunpack.c.l.b16 %v65
  %v274 = vunpack.c.l.b16 %v66
  %v275 = vunpack.c.l.b16 %v67
  %v276 = vunpack.c.l.b16 %v68
  %v277 = vunpack.c.l.b16 %v69
  %v278 = vunpack.c.l.b16 %v70
  %v279 = vunpack.c.l.b16 %v71
  %v280 = vunpack.c.l.b16 %v72
  %v281 = vunpack.c.l.b16 %v73
  %v282 = vunpack.c.l.b16 %v74
  %v283 = vunpack.c.l.b16 %v75
  %v284 = vunpack.c.l.b16 %v76
  %v285 = vunpack.c.l.b16 %v77
  %v286 = vunpack.c.l.b16 %v78
  %v287 = vunpack.c.l.b16 %v79
  %v288 = vunpack.c.l.b16 %v80
  %v289 = vunpack.c.l.b16 %v81
  %v290 = vunpack.c.l.b16 %v82
  %v291 = vunpack.c.l.b16 %v83
  %v292 = vunpack.c.l.b16 %v84
  %v293 = vunpack.c.l.b16 %v85
  %v294 = vunpack.c.l.b16 %v86
  %v295 = vunpack.c.l.b16 %v87
  %v296 = vunpack.c.l.b16 %v88
  %v297 = vunpack.c.l.b16 %v89
  %v298 = vunpack.c.l.b16 %v90
  %v299 = vunpack.c.l.b16 %v91
  %v300 = vpack.c.b16 %v237, %v236
  %v301 = vpack.c.b16 %v239, %v238
  %v302 = vpack.c.b16 %v241, %v240
  %v303 = vpack.c.b16 %v243, %v242
  %v304 = vpack.c.b16 %v245, %v244
  %v305 = vpack.c.b16 %v247, %v246
  %v306 = vpack.c.b16 %v249, %v248
  %v307 = vpack.c.b16 %v251, %v250
  %v308 = vpack.c.b16 %v253, %v252
  %v309 = vpack.c.b16 %v255, %v254
  %v310 = vpack.c.b16 %v257, %v256
  %v311 = vpack.c.b16 %v259, %v258
  %v312 = vpack.c.b16 %v261, %v260
  %v313 = vpack.c.b16 %v263, %v262
  %v314 = vpack.c.b16 %v265, %v264
  %v315 = vpack.c.b16 %v267, %v266
  %v316 = vpack.c.b16 %v269, %v268
  %v317 = vpack.c.b16 %v271, %v270
  %v318 = vpack.c.b16 %v273, %v272
  %v319 = vpack.c.b16 %v275, %v274
  %v320 = vpack.c.b16 %v277, %v276
  %v321 = vpack.c.b16 %v279, %v278
  %v322 = vpack.c.b16 %v281, %v280
  %v323 = vpack.c.b16 %v283, %v282
  %v324 = vpack.c.b16 %v285, %v284
  %v325 = vpack.c.b16 %v287, %v286
  %v326 = vpack.c.b16 %v289, %v288
  %v327 = vpack.c.b16 %v291, %v290
  %v328 = vpack.c.b16 %v293, %v292
  %v329 = vpack.c.b16 %v295, %v294
  %v330 = vpack.c.b16 %v297, %v296
  %v331 = vpack.c.b16 %v299, %v298
  %364 = vmatprep.subr.bf16.mxu0 0
  %365 = vmatpush1.bf16.msra.mxu0 %v300
  %366 = vmatprep.subr.bf16.mxu0 0
  %367 = vmatpush1.bf16.msra.mxu0 %v301
  %368 = vmatprep.subr.bf16.mxu0 0
  %369 = vmatpush1.bf16.msra.mxu0 %v302
  %370 = vmatprep.subr.bf16.mxu0 0
  %371 = vmatpush1.bf16.msra.mxu0 %v303
  %372 = vmatprep.subr.bf16.mxu0 0
  %373 = vmatpush1.bf16.msra.mxu0 %v304
  %374 = vmatprep.subr.bf16.mxu0 0
  %375 = vmatpush1.bf16.msra.mxu0 %v305
  %376 = vmatprep.subr.bf16.mxu0 0
  %377 = vmatpush1.bf16.msra.mxu0 %v306
  %378 = vmatprep.subr.bf16.mxu0 0
  %379 = vmatpush1.bf16.msra.mxu0 %v307
  %380 = vmatprep.subr.bf16.mxu0 0
  %381 = vmatpush1.bf16.msra.mxu0 %v308
  %382 = vmatprep.subr.bf16.mxu0 0
  %383 = vmatpush1.bf16.msra.mxu0 %v309
  %384 = vmatprep.subr.bf16.mxu0 0
  %385 = vmatpush1.bf16.msra.mxu0 %v310
  %386 = vmatprep.subr.bf16.mxu0 0
  %387 = vmatpush1.bf16.msra.mxu0 %v311
  %388 = vmatprep.subr.bf16.mxu0 0
  %389 = vmatpush1.bf16.msra.mxu0 %v312
  %390 = vmatprep.subr.bf16.mxu0 0
  %391 = vmatpush1.bf16.msra.mxu0 %v313
  %392 = vmatprep.subr.bf16.mxu0 0
  %393 = vmatpush1.bf16.msra.mxu0 %v314
  %394 = vmatprep.subr.bf16.mxu0 0
  %395 = vmatpush1.bf16.msra.mxu0 %v315
  %396 = vmatprep.mubr.bf16.mxu0 %v141
  %397 = vmatmul.mubr.bf16.gmra.mrb[0].mxu0 %v140
  %v398 = vpop.f32.mrb[0].mxu0
  %v399 = vadd.f32 0.0, %v398
  %v400 = vpop.f32.mrb[0].mxu0
  %v401 = vpop.f32.mrb[0].mxu0
  %v402 = vadd.f32 0.0, %v401
  %v403 = vpop.f32.mrb[0].mxu0
  %404 = vmatprep.mubr.bf16.mxu0 %v145
  %405 = vmatmul.mubr.bf16.gmra.mrb[0].mxu0 %v144
  %v406 = vpop.f32.mrb[0].mxu0
  %v407 = vadd.f32 0.0, %v406
  %v408 = vpop.f32.mrb[0].mxu0
  %v409 = vpop.f32.mrb[0].mxu0
  %v410 = vadd.f32 0.0, %v409
  %v411 = vpop.f32.mrb[0].mxu0
  %412 = vmatprep.mubr.bf16.mxu0 %v149
  %413 = vmatmul.mubr.bf16.gmra.mrb[0].mxu0 %v148
  %v414 = vpop.f32.mrb[0].mxu0
  %v415 = vadd.f32 0.0, %v414
  %v416 = vpop.f32.mrb[0].mxu0
  %v417 = vpop.f32.mrb[0].mxu0
  %v418 = vadd.f32 0.0, %v417
  %v419 = vpop.f32.mrb[0].mxu0
  %420 = vmatprep.mubr.bf16.mxu0 %v153
  %421 = vmatmul.mubr.bf16.gmra.mrb[0].mxu0 %v152
  %v422 = vpop.f32.mrb[0].mxu0
  %v423 = vadd.f32 0.0, %v422
  %v424 = vpop.f32.mrb[0].mxu0
  %v425 = vpop.f32.mrb[0].mxu0
  %v426 = vadd.f32 0.0, %v425
  %v427 = vpop.f32.mrb[0].mxu0
  %428 = vdwg.mxu0
  %429 = vmatprep.subr.bf16.mxu0 0
  %430 = vmatpush1.bf16.msra.mxu0 %v316
  %431 = vmatprep.subr.bf16.mxu0 0
  %432 = vmatpush1.bf16.msra.mxu0 %v317
  %433 = vmatprep.subr.bf16.mxu0 0
  %434 = vmatpush1.bf16.msra.mxu0 %v318
  %435 = vmatprep.subr.bf16.mxu0 0
  %436 = vmatpush1.bf16.msra.mxu0 %v319
  %437 = vmatprep.subr.bf16.mxu0 0
  %438 = vmatpush1.bf16.msra.mxu0 %v320
  %439 = vmatprep.subr.bf16.mxu0 0
  %440 = vmatpush1.bf16.msra.mxu0 %v321
  %441 = vmatprep.subr.bf16.mxu0 0
  %442 = vmatpush1.bf16.msra.mxu0 %v322
  %443 = vmatprep.subr.bf16.mxu0 0
  %444 = vmatpush1.bf16.msra.mxu0 %v323
  %445 = vmatprep.subr.bf16.mxu0 0
  %446 = vmatpush1.bf16.msra.mxu0 %v324
  %447 = vmatprep.subr.bf16.mxu0 0
  %448 = vmatpush1.bf16.msra.mxu0 %v325
  %449 = vmatprep.subr.bf16.mxu0 0
  %450 = vmatpush1.bf16.msra.mxu0 %v326
  %451 = vmatprep.subr.bf16.mxu0 0
  %452 = vmatpush1.bf16.msra.mxu0 %v327
  %453 = vmatprep.subr.bf16.mxu0 0
  %454 = vmatpush1.bf16.msra.mxu0 %v328
  %455 = vmatprep.subr.bf16.mxu0 0
  %456 = vmatpush1.bf16.msra.mxu0 %v329
  %457 = vmatprep.subr.bf16.mxu0 0
  %458 = vmatpush1.bf16.msra.mxu0 %v330
  %459 = vmatprep.subr.bf16.mxu0 0
  %460 = vmatpush1.bf16.msra.mxu0 %v331
  %461 = vmatprep.mubr.bf16.mxu0 %v143
  %462 = vmatmul.mubr.bf16.gmra.mrb[0].mxu0 %v142
  %v463 = vpop.f32.mrb[0].mxu0
  %v464 = vadd.f32 %v399, %v463
  %v465 = vpop.f32.mrb[0].mxu0
  %v466 = vpop.f32.mrb[0].mxu0
  %v467 = vadd.f32 %v402, %v466
  %v468 = vpop.f32.mrb[0].mxu0
  %469 = vmatprep.mubr.bf16.mxu0 %v147
  %470 = vmatmul.mubr.bf16.gmra.mrb[0].mxu0 %v146
  %v471 = vpop.f32.mrb[0].mxu0
  %v472 = vadd.f32 %v407, %v471
  %v473 = vpop.f32.mrb[0].mxu0
  %v474 = vpop.f32.mrb[0].mxu0
  %v475 = vadd.f32 %v410, %v474
  %v476 = vpop.f32.mrb[0].mxu0
  %477 = vmatprep.mubr.bf16.mxu0 %v151
  %478 = vmatmul.mubr.bf16.gmra.mrb[0].mxu0 %v150
  %v479 = vpop.f32.mrb[0].mxu0
  %v480 = vadd.f32 %v415, %v479
  %v481 = vpop.f32.mrb[0].mxu0
  %v482 = vpop.f32.mrb[0].mxu0
  %v483 = vadd.f32 %v418, %v482
  %v484 = vpop.f32.mrb[0].mxu0
  %485 = vmatprep.mubr.bf16.mxu0 %v155
  %486 = vmatmul.mubr.bf16.gmra.mrb[0].mxu0 %v154
  %v487 = vpop.f32.mrb[0].mxu0
  %v488 = vadd.f32 %v423, %v487
  %v489 = vpop.f32.mrb[0].mxu0
  %v490 = vpop.f32.mrb[0].mxu0
  %v491 = vadd.f32 %v426, %v490
  %v492 = vpop.f32.mrb[0].mxu0
  %493 = vdwg.mxu0
  %vm494 = vcmask 261120
  %495 = vst.msk [vmem:[%s2] sm:$0xff] %vm494, %v464
  %496 = vst.msk [vmem:[%s2 + $0x8] sm:$0xff] %vm494, %v467
  %497 = vst.msk [vmem:[%s2 + $0x10] sm:$0xff] %vm494, %v472
  %498 = vst.msk [vmem:[%s2 + $0x18] sm:$0xff] %vm494, %v475
  %499 = vst.msk [vmem:[%s2 + $0x20] sm:$0xff] %vm494, %v480
  %500 = vst.msk [vmem:[%s2 + $0x28] sm:$0xff] %vm494, %v483
  %501 = vst.msk [vmem:[%s2 + $0x30] sm:$0xff] %vm494, %v488
  %502 = vst.msk [vmem:[%s2 + $0x38] sm:$0xff] %vm494, %v491
  // Predicated region
  $region10: #{generator_forward.29} parent=0 // pred_check
    _
  $region11: #{generator_forward.29} parent=0 // pred_check_branch
    %504 = sbr.rel (0) target = $region13
  $region12: #{generator_forward.29} parent=0 // pred_region
    _
  $region13: #{generator_forward.29} parent=0 // pred_fallthru
    _
  // Predicated region
  $region14: #{generator_forward.29} parent=0 // pred_check
    _
  $region15: #{generator_forward.29} parent=0 // pred_check_branch
    %506 = sbr.rel (0) target = $region17
  $region16: #{generator_forward.29} parent=0 // pred_region
    _
  $region17: #{generator_forward.29} parent=0 // pred_fallthru
    _

// kernel: generator_forward.30
$region0: #{generator_forward.30}
  #allocation0 [shape = 'u32[]', space=smem, size = 0x4, offset = 0x4, fixed_abs, tag = 'smem constant byte address 0x4 - core index']
  #allocation1 [shape = 'u32[144,128]{1,0:T(1,128)}', space=vmem, size = 0x12000, scoped, tag = 'internal scratch']
  %s0 = inlined_call_operand.vmem [shape: f32[64,128], index: 0, kind: input, shape index: {}]
  %s1 = inlined_call_operand.vmem [shape: f32[64,1], index: 1, kind: output, shape index: {0}]
  %s2 = inlined_call_operand.vmem [shape: f32[64,1], index: 2, kind: output, shape index: {1}]
  %3 = xla_tuple %s1, %s2
  %s4 = sld [smem:[#allocation0]]
  $region26: #{generator_forward.30} parent=0
    _
  %s6 = ssub.s32 1, %s4
  %s7 = scalar_select 0, %s6, %s4
  // Predicated region
  $region2: #{generator_forward.30} parent=0 // pred_check
    _
  $region3: #{generator_forward.30} parent=0 // pred_check_branch
    %9 = sbr.rel (0) target = $region5
  $region4: #{generator_forward.30} parent=0 // pred_region
    _
  $region5: #{generator_forward.30} parent=0 // pred_fallthru
    _
  %p10 = scmp.eq.s32.totalorder 0, 0
  // Predicated region
  $region6: #{generator_forward.30} parent=0 // pred_check
    %p11 = pneg %p10
  $region7: #{generator_forward.30} parent=0 // pred_check_branch
    %13 = sbr.rel (%p11) target = $region9
  $region8: #{generator_forward.30} parent=0 // pred_region
    %vm14 = vcmask 7168
    %15 = vst.msk [vmem:[%s1] sm:$0xff] %vm14, 0.0
    %16 = vst.msk [vmem:[%s1 + $0x8] sm:$0xff] %vm14, 0.0
    %17 = vst.msk [vmem:[%s1 + $0x10] sm:$0xff] %vm14, 0.0
    %18 = vst.msk [vmem:[%s1 + $0x18] sm:$0xff] %vm14, 0.0
    %19 = vst.msk [vmem:[%s1 + $0x20] sm:$0xff] %vm14, 0.0
    %20 = vst.msk [vmem:[%s1 + $0x28] sm:$0xff] %vm14, 0.0
    %21 = vst.msk [vmem:[%s1 + $0x30] sm:$0xff] %vm14, 0.0
    %22 = vst.msk [vmem:[%s1 + $0x38] sm:$0xff] %vm14, 0.0
    %23 = vst.msk [vmem:[%s2] sm:$0xff] %vm14, 0.0
    %24 = vst.msk [vmem:[%s2 + $0x8] sm:$0xff] %vm14, 0.0
    %25 = vst.msk [vmem:[%s2 + $0x10] sm:$0xff] %vm14, 0.0
    %26 = vst.msk [vmem:[%s2 + $0x18] sm:$0xff] %vm14, 0.0
    %27 = vst.msk [vmem:[%s2 + $0x20] sm:$0xff] %vm14, 0.0
    %28 = vst.msk [vmem:[%s2 + $0x28] sm:$0xff] %vm14, 0.0
    %29 = vst.msk [vmem:[%s2 + $0x30] sm:$0xff] %vm14, 0.0
    %30 = vst.msk [vmem:[%s2 + $0x38] sm:$0xff] %vm14, 0.0
  $region9: #{generator_forward.30} parent=0 // pred_fallthru
    _
  %v31 = vld [vmem:[%s0] sm:$0xff]
  %v32 = vld [vmem:[%s0 + $0x8] sm:$0xff]
  %v33 = vld [vmem:[%s0 + $0x10] sm:$0xff]
  %v34 = vld [vmem:[%s0 + $0x18] sm:$0xff]
  %v35 = vld [vmem:[%s0 + $0x20] sm:$0xff]
  %v36 = vld [vmem:[%s0 + $0x28] sm:$0xff]
  %v37 = vld [vmem:[%s0 + $0x30] sm:$0xff]
  %v38 = vld [vmem:[%s0 + $0x38] sm:$0xff]
  %v39 = vld [vmem:[%s1] sm:$0xff]
  %v40 = vld [vmem:[%s1 + $0x8] sm:$0xff]
  %v41 = vld [vmem:[%s1 + $0x10] sm:$0xff]
  %v42 = vld [vmem:[%s1 + $0x18] sm:$0xff]
  %v43 = vld [vmem:[%s1 + $0x20] sm:$0xff]
  %v44 = vld [vmem:[%s1 + $0x28] sm:$0xff]
  %v45 = vld [vmem:[%s1 + $0x30] sm:$0xff]
  %v46 = vld [vmem:[%s1 + $0x38] sm:$0xff]
  %47 = vadd.xlane.f32.xlu0 %v31
  %v48 = vpop.xlane.xlu0 %47
  %49 = vadd.xlane.f32.xlu0 %v32
  %v50 = vpop.xlane.xlu0 %49
  %51 = vadd.xlane.f32.xlu0 %v33
  %v52 = vpop.xlane.xlu0 %51
  %53 = vadd.xlane.f32.xlu0 %v34
  %v54 = vpop.xlane.xlu0 %53
  %55 = vadd.xlane.f32.xlu0 %v35
  %v56 = vpop.xlane.xlu0 %55
  %57 = vadd.xlane.f32.xlu0 %v36
  %v58 = vpop.xlane.xlu0 %57
  %59 = vadd.xlane.f32.xlu0 %v37
  %v60 = vpop.xlane.xlu0 %59
  %61 = vadd.xlane.f32.xlu0 %v38
  %v62 = vpop.xlane.xlu0 %61
  %v63 = vadd.f32 %v39, %v48
  %v64 = vadd.f32 %v40, %v50
  %v65 = vadd.f32 %v41, %v52
  %v66 = vadd.f32 %v42, %v54
  %v67 = vadd.f32 %v43, %v56
  %v68 = vadd.f32 %v44, %v58
  %v69 = vadd.f32 %v45, %v60
  %v70 = vadd.f32 %v46, %v62
  %vm71 = vcmask 7168
  %72 = vst.msk [vmem:[%s1] sm:$0xff] %vm71, %v63
  %73 = vst.msk [vmem:[%s1 + $0x8] sm:$0xff] %vm71, %v64
  %74 = vst.msk [vmem:[%s1 + $0x10] sm:$0xff] %vm71, %v65
  %75 = vst.msk [vmem:[%s1 + $0x18] sm:$0xff] %vm71, %v66
  %76 = vst.msk [vmem:[%s1 + $0x20] sm:$0xff] %vm71, %v67
  %77 = vst.msk [vmem:[%s1 + $0x28] sm:$0xff] %vm71, %v68
  %78 = vst.msk [vmem:[%s1 + $0x30] sm:$0xff] %vm71, %v69
  %79 = vst.msk [vmem:[%s1 + $0x38] sm:$0xff] %vm71, %v70
  %v80 = vld [vmem:[%s2] sm:$0xff]
  %v81 = vld [vmem:[%s2 + $0x8] sm:$0xff]
  %v82 = vld [vmem:[%s2 + $0x10] sm:$0xff]
  %v83 = vld [vmem:[%s2 + $0x18] sm:$0xff]
  %v84 = vld [vmem:[%s2 + $0x20] sm:$0xff]
  %v85 = vld [vmem:[%s2 + $0x28] sm:$0xff]
  %v86 = vld [vmem:[%s2 + $0x30] sm:$0xff]
  %v87 = vld [vmem:[%s2 + $0x38] sm:$0xff]
  %v88 = vmul.f32 %v31, %v31
  %v89 = vmul.f32 %v32, %v32
  %v90 = vmul.f32 %v33, %v33
  %v91 = vmul.f32 %v34, %v34
  %v92 = vmul.f32 %v35, %v35
  %v93 = vmul.f32 %v36, %v36
  %v94 = vmul.f32 %v37, %v37
  %v95 = vmul.f32 %v38, %v38
  %96 = vadd.xlane.f32.xlu0 %v88
  %v97 = vpop.xlane.xlu0 %96
  %98 = vadd.xlane.f32.xlu0 %v89
  %v99 = vpop.xlane.xlu0 %98
  %100 = vadd.xlane.f32.xlu0 %v90
  %v101 = vpop.xlane.xlu0 %100
  %102 = vadd.xlane.f32.xlu0 %v91
  %v103 = vpop.xlane.xlu0 %102
  %104 = vadd.xlane.f32.xlu0 %v92
  %v105 = vpop.xlane.xlu0 %104
  %106 = vadd.xlane.f32.xlu0 %v93
  %v107 = vpop.xlane.xlu0 %106
  %108 = vadd.xlane.f32.xlu0 %v94
  %v109 = vpop.xlane.xlu0 %108
  %110 = vadd.xlane.f32.xlu0 %v95
  %v111 = vpop.xlane.xlu0 %110
  %v112 = vadd.f32 %v80, %v97
  %v113 = vadd.f32 %v81, %v99
  %v114 = vadd.f32 %v82, %v101
  %v115 = vadd.f32 %v83, %v103
  %v116 = vadd.f32 %v84, %v105
  %v117 = vadd.f32 %v85, %v107
  %v118 = vadd.f32 %v86, %v109
  %v119 = vadd.f32 %v87, %v111
  %120 = vst.msk [vmem:[%s2] sm:$0xff] %vm71, %v112
  %121 = vst.msk [vmem:[%s2 + $0x8] sm:$0xff] %vm71, %v113
  %122 = vst.msk [vmem:[%s2 + $0x10] sm:$0xff] %vm71, %v114
  %123 = vst.msk [vmem:[%s2 + $0x18] sm:$0xff] %vm71, %v115
  %124 = vst.msk [vmem:[%s2 + $0x20] sm:$0xff] %vm71, %v116
  %125 = vst.msk [vmem:[%s2 + $0x28] sm:$0xff] %vm71, %v117
  %126 = vst.msk [vmem:[%s2 + $0x30] sm:$0xff] %vm71, %v118
  %127 = vst.msk [vmem:[%s2 + $0x38] sm:$0xff] %vm71, %v119
  // Predicated region
  $region10: #{generator_forward.30} parent=0 // pred_check
    _
  $region11: #{generator_forward.30} parent=0 // pred_check_branch
    %129 = sbr.rel (0) target = $region13
  $region12: #{generator_forward.30} parent=0 // pred_region
    _
  $region13: #{generator_forward.30} parent=0 // pred_fallthru
    _
  // Predicated region
  $region14: #{generator_forward.30} parent=0 // pred_check
    _
  $region15: #{generator_forward.30} parent=0 // pred_check_branch
    %131 = sbr.rel (0) target = $region17
  $region16: #{generator_forward.30} parent=0 // pred_region
    _
  $region17: #{generator_forward.30} parent=0 // pred_fallthru
    _
  // Predicated region
  $region18: #{generator_forward.30} parent=0 // pred_check
    _
  $region19: #{generator_forward.30} parent=0 // pred_check_branch
    %133 = sbr.rel (0) target = $region21
  $region20: #{generator_forward.30} parent=0 // pred_region
    _
  $region21: #{generator_forward.30} parent=0 // pred_fallthru
    _
  // Predicated region
  $region22: #{generator_forward.30} parent=0 // pred_check
    _
  $region23: #{generator_forward.30} parent=0 // pred_check_branch
    %135 = sbr.rel (0) target = $region25
  $region24: #{generator_forward.30} parent=0 // pred_region
    _
  $region25: #{generator_forward.30} parent=0 // pred_fallthru
    _

// kernel: generator_forward.31
$region0: #{generator_forward.31}
  #allocation0 [shape = 'u32[]', space=smem, size = 0x4, offset = 0x4, fixed_abs, tag = 'smem constant byte address 0x4 - core index']
  #allocation1 [shape = 'u32[144,128]{1,0:T(1,128)}', space=vmem, size = 0x12000, scoped, tag = 'internal scratch']
  %s0 = inlined_call_operand.vmem [shape: f32[64,128], index: 0, kind: input, shape index: {}]
  %s1 = inlined_call_operand.vmem [shape: f32[64,1], index: 1, kind: input, shape index: {}]
  %s2 = inlined_call_operand.vmem [shape: f32[64,1], index: 2, kind: input, shape index: {}]
  %s3 = inlined_call_operand.vmem [shape: bf16[64,128], index: 3, kind: output, shape index: {}]
  %s4 = sld [smem:[#allocation0]]
  $region22: #{generator_forward.31} parent=0
    _
  %s6 = ssub.s32 1, %s4
  %s7 = scalar_select 0, %s6, %s4
  // Predicated region
  $region2: #{generator_forward.31} parent=0 // pred_check
    _
  $region3: #{generator_forward.31} parent=0 // pred_check_branch
    %9 = sbr.rel (0) target = $region5
  $region4: #{generator_forward.31} parent=0 // pred_region
    _
  $region5: #{generator_forward.31} parent=0 // pred_fallthru
    _
  // Predicated region
  $region6: #{generator_forward.31} parent=0 // pred_check
    _
  $region7: #{generator_forward.31} parent=0 // pred_check_branch
    %11 = sbr.rel (0) target = $region9
  $region8: #{generator_forward.31} parent=0 // pred_region
    _
  $region9: #{generator_forward.31} parent=0 // pred_fallthru
    _
  // Predicated region
  $region10: #{generator_forward.31} parent=0 // pred_check
    _
  $region11: #{generator_forward.31} parent=0 // pred_check_branch
    %13 = sbr.rel (0) target = $region13
  $region12: #{generator_forward.31} parent=0 // pred_region
    _
  $region13: #{generator_forward.31} parent=0 // pred_fallthru
    _
  %v14 = vld [vmem:[%s0] sm:$0xff]
  %v15 = vld [vmem:[%s0 + $0x8] sm:$0xff]
  %v16 = vld [vmem:[%s0 + $0x10] sm:$0xff]
  %v17 = vld [vmem:[%s0 + $0x18] sm:$0xff]
  %v18 = vld [vmem:[%s0 + $0x20] sm:$0xff]
  %v19 = vld [vmem:[%s0 + $0x28] sm:$0xff]
  %v20 = vld [vmem:[%s0 + $0x30] sm:$0xff]
  %v21 = vld [vmem:[%s0 + $0x38] sm:$0xff]
  %v22 = vld [vmem:[%s1] sm:$0xff]
  %v23 = vld [vmem:[%s1 + $0x8] sm:$0xff]
  %v24 = vld [vmem:[%s1 + $0x10] sm:$0xff]
  %v25 = vld [vmem:[%s1 + $0x18] sm:$0xff]
  %v26 = vld [vmem:[%s1 + $0x20] sm:$0xff]
  %v27 = vld [vmem:[%s1 + $0x28] sm:$0xff]
  %v28 = vld [vmem:[%s1 + $0x30] sm:$0xff]
  %v29 = vld [vmem:[%s1 + $0x38] sm:$0xff]
  %31 = vset.pattern.permute.xlu0 0
  %32 = vperm.xlu0 %31, %v22
  %v33 = vpop.permute.xlu0 %32
  %36 = vset.pattern.permute.xlu0 0
  %37 = vperm.xlu0 %36, %v23
  %v38 = vpop.permute.xlu0 %37
  %41 = vset.pattern.permute.xlu0 0
  %42 = vperm.xlu0 %41, %v24
  %v43 = vpop.permute.xlu0 %42
  %46 = vset.pattern.permute.xlu0 0
  %47 = vperm.xlu0 %46, %v25
  %v48 = vpop.permute.xlu0 %47
  %51 = vset.pattern.permute.xlu0 0
  %52 = vperm.xlu0 %51, %v26
  %v53 = vpop.permute.xlu0 %52
  %56 = vset.pattern.permute.xlu0 0
  %57 = vperm.xlu0 %56, %v27
  %v58 = vpop.permute.xlu0 %57
  %61 = vset.pattern.permute.xlu0 0
  %62 = vperm.xlu0 %61, %v28
  %v63 = vpop.permute.xlu0 %62
  %66 = vset.pattern.permute.xlu0 0
  %67 = vperm.xlu0 %66, %v29
  %v68 = vpop.permute.xlu0 %67
  %v70 = vmul.f32 %v14, %v33
  %v71 = vmul.f32 %v15, %v38
  %v72 = vmul.f32 %v16, %v43
  %v73 = vmul.f32 %v17, %v48
  %v74 = vmul.f32 %v18, %v53
  %v75 = vmul.f32 %v19, %v58
  %v76 = vmul.f32 %v20, %v63
  %v77 = vmul.f32 %v21, %v68
  %v78 = vld [vmem:[%s2] sm:$0xff]
  %v79 = vld [vmem:[%s2 + $0x8] sm:$0xff]
  %v80 = vld [vmem:[%s2 + $0x10] sm:$0xff]
  %v81 = vld [vmem:[%s2 + $0x18] sm:$0xff]
  %v82 = vld [vmem:[%s2 + $0x20] sm:$0xff]
  %v83 = vld [vmem:[%s2 + $0x28] sm:$0xff]
  %v84 = vld [vmem:[%s2 + $0x30] sm:$0xff]
  %v85 = vld [vmem:[%s2 + $0x38] sm:$0xff]
  %87 = vset.pattern.permute.xlu0 0
  %88 = vperm.xlu0 %87, %v78
  %v89 = vpop.permute.xlu0 %88
  %92 = vset.pattern.permute.xlu0 0
  %93 = vperm.xlu0 %92, %v79
  %v94 = vpop.permute.xlu0 %93
  %97 = vset.pattern.permute.xlu0 0
  %98 = vperm.xlu0 %97, %v80
  %v99 = vpop.permute.xlu0 %98
  %102 = vset.pattern.permute.xlu0 0
  %103 = vperm.xlu0 %102, %v81
  %v104 = vpop.permute.xlu0 %103
  %107 = vset.pattern.permute.xlu0 0
  %108 = vperm.xlu0 %107, %v82
  %v109 = vpop.permute.xlu0 %108
  %112 = vset.pattern.permute.xlu0 0
  %113 = vperm.xlu0 %112, %v83
  %v114 = vpop.permute.xlu0 %113
  %117 = vset.pattern.permute.xlu0 0
  %118 = vperm.xlu0 %117, %v84
  %v119 = vpop.permute.xlu0 %118
  %122 = vset.pattern.permute.xlu0 0
  %123 = vperm.xlu0 %122, %v85
  %v124 = vpop.permute.xlu0 %123
  %v126 = vadd.f32 %v70, %v89
  %v127 = vadd.f32 %v71, %v94
  %v128 = vadd.f32 %v72, %v99
  %v129 = vadd.f32 %v73, %v104
  %v130 = vadd.f32 %v74, %v109
  %v131 = vadd.f32 %v75, %v114
  %v132 = vadd.f32 %v76, %v119
  %v133 = vadd.f32 %v77, %v124
  %v134 = vmax.f32 %v126, 0.0
  %v135 = vmax.f32 %v127, 0.0
  %v136 = vmax.f32 %v128, 0.0
  %v137 = vmax.f32 %v129, 0.0
  %v138 = vmax.f32 %v130, 0.0
  %v139 = vmax.f32 %v131, 0.0
  %v140 = vmax.f32 %v132, 0.0
  %v141 = vmax.f32 %v133, 0.0
  %v142 = vpack.c.bf16 %v135, %v134
  %v143 = vpack.c.bf16 %v137, %v136
  %v144 = vpack.c.bf16 %v139, %v138
  %v145 = vpack.c.bf16 %v141, %v140
  %v150 = vunpack.c.l.b16 %v142
  %v151 = vunpack.c.h.b16 %v142
  %v152 = vunpack.c.l.b16 %v143
  %v153 = vunpack.c.h.b16 %v143
  %v154 = vunpack.c.l.b16 %v144
  %v155 = vunpack.c.h.b16 %v144
  %v156 = vunpack.c.l.b16 %v145
  %v157 = vunpack.c.h.b16 %v145
  %v158 = vpack.c.b16 %v150, %v150
  %v159 = vpack.c.b16 %v151, %v151
  %v160 = vpack.c.b16 %v152, %v152
  %v161 = vpack.c.b16 %v153, %v153
  %v162 = vpack.c.b16 %v154, %v154
  %v163 = vpack.c.b16 %v155, %v155
  %v164 = vpack.c.b16 %v156, %v156
  %v165 = vpack.c.b16 %v157, %v157
  %174 = vst [vmem:[%s3] sm:$0xf] %v158
  %175 = vst [vmem:[%s3 + $0x4] sm:$0xf] %v159
  %176 = vst [vmem:[%s3 + $0x8] sm:$0xf] %v160
  %177 = vst [vmem:[%s3 + $0xc] sm:$0xf] %v161
  %178 = vst [vmem:[%s3 + $0x10] sm:$0xf] %v162
  %179 = vst [vmem:[%s3 + $0x14] sm:$0xf] %v163
  %180 = vst [vmem:[%s3 + $0x18] sm:$0xf] %v164
  %181 = vst [vmem:[%s3 + $0x1c] sm:$0xf] %v165
  // Predicated region
  $region14: #{generator_forward.31} parent=0 // pred_check
    _
  $region15: #{generator_forward.31} parent=0 // pred_check_branch
    %183 = sbr.rel (0) target = $region17
  $region16: #{generator_forward.31} parent=0 // pred_region
    _
  $region17: #{generator_forward.31} parent=0 // pred_fallthru
    _
  // Predicated region
  $region18: #{generator_forward.31} parent=0 // pred_check
    _
  $region19: #{generator_forward.31} parent=0 // pred_check_branch
    %185 = sbr.rel (0) target = $region21
  $region20: #{generator_forward.31} parent=0 // pred_region
    _
  $region21: #{generator_forward.31} parent=0 // pred_fallthru
    _

// kernel: generator_forward.32
$region0: #{generator_forward.32}
  #allocation0 [shape = 'u32[]', space=smem, size = 0x4, offset = 0x4, fixed_abs, tag = 'smem constant byte address 0x4 - core index']
  #allocation1 [shape = 'u32[144,128]{1,0:T(1,128)}', space=vmem, size = 0x12000, scoped, tag = 'internal scratch']
  %s0 = inlined_call_operand.vmem [shape: bf16[32,576], index: 0, kind: input, shape index: {}]
  %s1 = inlined_call_operand.vmem [shape: bf16[576,128], index: 1, kind: input, shape index: {}]
  %s2 = inlined_call_operand.vmem [shape: f32[32,128], index: 2, kind: output, shape index: {}]
  %s3 = sld [smem:[#allocation0]]
  $region18: #{generator_forward.32} parent=0
    _
  %s5 = ssub.s32 1, %s3
  %s6 = scalar_select 0, %s5, %s3
  // Predicated region
  $region2: #{generator_forward.32} parent=0 // pred_check
    _
  $region3: #{generator_forward.32} parent=0 // pred_check_branch
    %8 = sbr.rel (0) target = $region5
  $region4: #{generator_forward.32} parent=0 // pred_region
    _
  $region5: #{generator_forward.32} parent=0 // pred_fallthru
    _
  // Predicated region
  $region6: #{generator_forward.32} parent=0 // pred_check
    _
  $region7: #{generator_forward.32} parent=0 // pred_check_branch
    %10 = sbr.rel (0) target = $region9
  $region8: #{generator_forward.32} parent=0 // pred_region
    _
  $region9: #{generator_forward.32} parent=0 // pred_fallthru
    _
  %v12 = vld [vmem:[%s0] sm:$0xff]
  %v13 = vld [vmem:[%s0 + $0x8] sm:$0xff]
  %v14 = vld [vmem:[%s0 + $0x10] sm:$0xf]
  %v15 = vld [vmem:[%s0 + $0x14] sm:$0xff]
  %v16 = vld [vmem:[%s0 + $0x1c] sm:$0xff]
  %v17 = vld [vmem:[%s0 + $0x24] sm:$0xf]
  %v18 = vld [vmem:[%s0 + $0x28] sm:$0xff]
  %v19 = vld [vmem:[%s0 + $0x30] sm:$0xff]
  %v20 = vld [vmem:[%s0 + $0x38] sm:$0xf]
  %v21 = vld [vmem:[%s0 + $0x3c] sm:$0xff]
  %v22 = vld [vmem:[%s0 + $0x44] sm:$0xff]
  %v23 = vld [vmem:[%s0 + $0x4c] sm:$0xf]
  %v24 = vld [vmem:[%s1] sm:$0xf]
  %v25 = vld [vmem:[%s1 + $0x4] sm:$0xf]
  %v26 = vld [vmem:[%s1 + $0x8] sm:$0xf]
  %v27 = vld [vmem:[%s1 + $0xc] sm:$0xf]
  %v28 = vld [vmem:[%s1 + $0x10] sm:$0xf]
  %v29 = vld [vmem:[%s1 + $0x14] sm:$0xf]
  %v30 = vld [vmem:[%s1 + $0x18] sm:$0xf]
  %v31 = vld [vmem:[%s1 + $0x1c] sm:$0xf]
  %v32 = vld [vmem:[%s1 + $0x20] sm:$0xf]
  %v33 = vld [vmem:[%s1 + $0x24] sm:$0xf]
  %v34 = vld [vmem:[%s1 + $0x28] sm:$0xf]
  %v35 = vld [vmem:[%s1 + $0x2c] sm:$0xf]
  %v36 = vld [vmem:[%s1 + $0x30] sm:$0xf]
  %v37 = vld [vmem:[%s1 + $0x34] sm:$0xf]
  %v38 = vld [vmem:[%s1 + $0x38] sm:$0xf]
  %v39 = vld [vmem:[%s1 + $0x3c] sm:$0xf]
  %v40 = vld [vmem:[%s1 + $0x40] sm:$0xf]
  %v41 = vld [vmem:[%s1 + $0x44] sm:$0xf]
  %v42 = vld [vmem:[%s1 + $0x48] sm:$0xf]
  %v43 = vld [vmem:[%s1 + $0x4c] sm:$0xf]
  %v44 = vld [vmem:[%s1 + $0x50] sm:$0xf]
  %v45 = vld [vmem:[%s1 + $0x54] sm:$0xf]
  %v46 = vld [vmem:[%s1 + $0x58] sm:$0xf]
  %v47 = vld [vmem:[%s1 + $0x5c] sm:$0xf]
  %v48 = vld [vmem:[%s1 + $0x60] sm:$0xf]
  %v49 = vld [vmem:[%s1 + $0x64] sm:$0xf]
  %v50 = vld [vmem:[%s1 + $0x68] sm:$0xf]
  %v51 = vld [vmem:[%s1 + $0x6c] sm:$0xf]
  %v52 = vld [vmem:[%s1 + $0x70] sm:$0xf]
  %v53 = vld [vmem:[%s1 + $0x74] sm:$0xf]
  %v54 = vld [vmem:[%s1 + $0x78] sm:$0xf]
  %v55 = vld [vmem:[%s1 + $0x7c] sm:$0xf]
  %v56 = vld [vmem:[%s1 + $0x80] sm:$0xf]
  %v57 = vld [vmem:[%s1 + $0x84] sm:$0xf]
  %v58 = vld [vmem:[%s1 + $0x88] sm:$0xf]
  %v59 = vld [vmem:[%s1 + $0x8c] sm:$0xf]
  %v60 = vld [vmem:[%s1 + $0x90] sm:$0xf]
  %v61 = vld [vmem:[%s1 + $0x94] sm:$0xf]
  %v62 = vld [vmem:[%s1 + $0x98] sm:$0xf]
  %v63 = vld [vmem:[%s1 + $0x9c] sm:$0xf]
  %v64 = vld [vmem:[%s1 + $0xa0] sm:$0xf]
  %v65 = vld [vmem:[%s1 + $0xa4] sm:$0xf]
  %v66 = vld [vmem:[%s1 + $0xa8] sm:$0xf]
  %v67 = vld [vmem:[%s1 + $0xac] sm:$0xf]
  %v68 = vld [vmem:[%s1 + $0xb0] sm:$0xf]
  %v69 = vld [vmem:[%s1 + $0xb4] sm:$0xf]
  %v70 = vld [vmem:[%s1 + $0xb8] sm:$0xf]
  %v71 = vld [vmem:[%s1 + $0xbc] sm:$0xf]
  %v72 = vld [vmem:[%s1 + $0xc0] sm:$0xf]
  %v73 = vld [vmem:[%s1 + $0xc4] sm:$0xf]
  %v74 = vld [vmem:[%s1 + $0xc8] sm:$0xf]
  %v75 = vld [vmem:[%s1 + $0xcc] sm:$0xf]
  %v76 = vld [vmem:[%s1 + $0xd0] sm:$0xf]
  %v77 = vld [vmem:[%s1 + $0xd4] sm:$0xf]
  %v78 = vld [vmem:[%s1 + $0xd8] sm:$0xf]
  %v79 = vld [vmem:[%s1 + $0xdc] sm:$0xf]
  %v80 = vld [vmem:[%s1 + $0xe0] sm:$0xf]
  %v81 = vld [vmem:[%s1 + $0xe4] sm:$0xf]
  %v82 = vld [vmem:[%s1 + $0xe8] sm:$0xf]
  %v83 = vld [vmem:[%s1 + $0xec] sm:$0xf]
  %v84 = vld [vmem:[%s1 + $0xf0] sm:$0xf]
  %v85 = vld [vmem:[%s1 + $0xf4] sm:$0xf]
  %v86 = vld [vmem:[%s1 + $0xf8] sm:$0xf]
  %v87 = vld [vmem:[%s1 + $0xfc] sm:$0xf]
  %v88 = vld [vmem:[%s1 + $0x100] sm:$0xf]
  %v89 = vld [vmem:[%s1 + $0x104] sm:$0xf]
  %v90 = vld [vmem:[%s1 + $0x108] sm:$0xf]
  %v91 = vld [vmem:[%s1 + $0x10c] sm:$0xf]
  %v92 = vld [vmem:[%s1 + $0x110] sm:$0xf]
  %v93 = vld [vmem:[%s1 + $0x114] sm:$0xf]
  %v94 = vld [vmem:[%s1 + $0x118] sm:$0xf]
  %v95 = vld [vmem:[%s1 + $0x11c] sm:$0xf]
  %v108 = vunpack.c.l.b16 %v12
  %v109 = vunpack.c.h.b16 %v12
  %v110 = vunpack.c.l.b16 %v13
  %v111 = vunpack.c.h.b16 %v13
  %v112 = vunpack.c.l.b16 %v14
  %v113 = vunpack.c.l.b16 %v15
  %v114 = vunpack.c.h.b16 %v15
  %v115 = vunpack.c.l.b16 %v16
  %v116 = vunpack.c.h.b16 %v16
  %v117 = vunpack.c.l.b16 %v17
  %v118 = vunpack.c.l.b16 %v18
  %v119 = vunpack.c.h.b16 %v18
  %v120 = vunpack.c.l.b16 %v19
  %v121 = vunpack.c.h.b16 %v19
  %v122 = vunpack.c.l.b16 %v20
  %v123 = vunpack.c.l.b16 %v21
  %v124 = vunpack.c.h.b16 %v21
  %v125 = vunpack.c.l.b16 %v22
  %v126 = vunpack.c.h.b16 %v22
  %v127 = vunpack.c.l.b16 %v23
  %v128 = vpack.c.b16 %v113, %v108
  %v129 = vpack.c.b16 %v114, %v109
  %v130 = vpack.c.b16 %v115, %v110
  %v131 = vpack.c.b16 %v116, %v111
  %v132 = vpack.c.b16 %v117, %v112
  %v133 = vpack.c.b16 %v123, %v118
  %v134 = vpack.c.b16 %v124, %v119
  %v135 = vpack.c.b16 %v125, %v120
  %v136 = vpack.c.b16 %v126, %v121
  %v137 = vpack.c.b16 %v127, %v122
  %v218 = vunpack.c.l.b16 %v24
  %v219 = vunpack.c.l.b16 %v25
  %v220 = vunpack.c.l.b16 %v26
  %v221 = vunpack.c.l.b16 %v27
  %v222 = vunpack.c.l.b16 %v28
  %v223 = vunpack.c.l.b16 %v29
  %v224 = vunpack.c.l.b16 %v30
  %v225 = vunpack.c.l.b16 %v31
  %v226 = vunpack.c.l.b16 %v32
  %v227 = vunpack.c.l.b16 %v33
  %v228 = vunpack.c.l.b16 %v34
  %v229 = vunpack.c.l.b16 %v35
  %v230 = vunpack.c.l.b16 %v36
  %v231 = vunpack.c.l.b16 %v37
  %v232 = vunpack.c.l.b16 %v38
  %v233 = vunpack.c.l.b16 %v39
  %v234 = vunpack.c.l.b16 %v40
  %v235 = vunpack.c.l.b16 %v41
  %v236 = vunpack.c.l.b16 %v42
  %v237 = vunpack.c.l.b16 %v43
  %v238 = vunpack.c.l.b16 %v44
  %v239 = vunpack.c.l.b16 %v45
  %v240 = vunpack.c.l.b16 %v46
  %v241 = vunpack.c.l.b16 %v47
  %v242 = vunpack.c.l.b16 %v48
  %v243 = vunpack.c.l.b16 %v49
  %v244 = vunpack.c.l.b16 %v50
  %v245 = vunpack.c.l.b16 %v51
  %v246 = vunpack.c.l.b16 %v52
  %v247 = vunpack.c.l.b16 %v53
  %v248 = vunpack.c.l.b16 %v54
  %v249 = vunpack.c.l.b16 %v55
  %v250 = vunpack.c.l.b16 %v56
  %v251 = vunpack.c.l.b16 %v57
  %v252 = vunpack.c.l.b16 %v58
  %v253 = vunpack.c.l.b16 %v59
  %v254 = vunpack.c.l.b16 %v60
  %v255 = vunpack.c.l.b16 %v61
  %v256 = vunpack.c.l.b16 %v62
  %v257 = vunpack.c.l.b16 %v63
  %v258 = vunpack.c.l.b16 %v64
  %v259 = vunpack.c.l.b16 %v65
  %v260 = vunpack.c.l.b16 %v66
  %v261 = vunpack.c.l.b16 %v67
  %v262 = vunpack.c.l.b16 %v68
  %v263 = vunpack.c.l.b16 %v69
  %v264 = vunpack.c.l.b16 %v70
  %v265 = vunpack.c.l.b16 %v71
  %v266 = vunpack.c.l.b16 %v72
  %v267 = vunpack.c.l.b16 %v73
  %v268 = vunpack.c.l.b16 %v74
  %v269 = vunpack.c.l.b16 %v75
  %v270 = vunpack.c.l.b16 %v76
  %v271 = vunpack.c.l.b16 %v77
  %v272 = vunpack.c.l.b16 %v78
  %v273 = vunpack.c.l.b16 %v79
  %v274 = vunpack.c.l.b16 %v80
  %v275 = vunpack.c.l.b16 %v81
  %v276 = vunpack.c.l.b16 %v82
  %v277 = vunpack.c.l.b16 %v83
  %v278 = vunpack.c.l.b16 %v84
  %v279 = vunpack.c.l.b16 %v85
  %v280 = vunpack.c.l.b16 %v86
  %v281 = vunpack.c.l.b16 %v87
  %v282 = vunpack.c.l.b16 %v88
  %v283 = vunpack.c.l.b16 %v89
  %v284 = vunpack.c.l.b16 %v90
  %v285 = vunpack.c.l.b16 %v91
  %v286 = vunpack.c.l.b16 %v92
  %v287 = vunpack.c.l.b16 %v93
  %v288 = vunpack.c.l.b16 %v94
  %v289 = vunpack.c.l.b16 %v95
  %v290 = vpack.c.b16 %v219, %v218
  %v291 = vpack.c.b16 %v221, %v220
  %v292 = vpack.c.b16 %v223, %v222
  %v293 = vpack.c.b16 %v225, %v224
  %v294 = vpack.c.b16 %v227, %v226
  %v295 = vpack.c.b16 %v229, %v228
  %v296 = vpack.c.b16 %v231, %v230
  %v297 = vpack.c.b16 %v233, %v232
  %v298 = vpack.c.b16 %v235, %v234
  %v299 = vpack.c.b16 %v237, %v236
  %v300 = vpack.c.b16 %v239, %v238
  %v301 = vpack.c.b16 %v241, %v240
  %v302 = vpack.c.b16 %v243, %v242
  %v303 = vpack.c.b16 %v245, %v244
  %v304 = vpack.c.b16 %v247, %v246
  %v305 = vpack.c.b16 %v249, %v248
  %v306 = vpack.c.b16 %v251, %v250
  %v307 = vpack.c.b16 %v253, %v252
  %v308 = vpack.c.b16 %v255, %v254
  %v309 = vpack.c.b16 %v257, %v256
  %v310 = vpack.c.b16 %v259, %v258
  %v311 = vpack.c.b16 %v261, %v260
  %v312 = vpack.c.b16 %v263, %v262
  %v313 = vpack.c.b16 %v265, %v264
  %v314 = vpack.c.b16 %v267, %v266
  %v315 = vpack.c.b16 %v269, %v268
  %v316 = vpack.c.b16 %v271, %v270
  %v317 = vpack.c.b16 %v273, %v272
  %v318 = vpack.c.b16 %v275, %v274
  %v319 = vpack.c.b16 %v277, %v276
  %v320 = vpack.c.b16 %v279, %v278
  %v321 = vpack.c.b16 %v281, %v280
  %v322 = vpack.c.b16 %v283, %v282
  %v323 = vpack.c.b16 %v285, %v284
  %v324 = vpack.c.b16 %v287, %v286
  %v325 = vpack.c.b16 %v289, %v288
  %vm362 = vcmask 523264
  %v364 = vsel %vm362, %v132, 0
  %v367 = vsel %vm362, %v137, 0
  %369 = vmatprep.subr.bf16.mxu0 0
  %370 = vmatpush1.bf16.msra.mxu0 %v290
  %371 = vmatprep.subr.bf16.mxu0 0
  %372 = vmatpush1.bf16.msra.mxu0 %v291
  %373 = vmatprep.subr.bf16.mxu0 0
  %374 = vmatpush1.bf16.msra.mxu0 %v292
  %375 = vmatprep.subr.bf16.mxu0 0
  %376 = vmatpush1.bf16.msra.mxu0 %v293
  %377 = vmatprep.subr.bf16.mxu0 0
  %378 = vmatpush1.bf16.msra.mxu0 %v294
  %379 = vmatprep.subr.bf16.mxu0 0
  %380 = vmatpush1.bf16.msra.mxu0 %v295
  %381 = vmatprep.subr.bf16.mxu0 0
  %382 = vmatpush1.bf16.msra.mxu0 %v296
  %383 = vmatprep.subr.bf16.mxu0 0
  %384 = vmatpush1.bf16.msra.mxu0 %v297
  %385 = vmatprep.subr.bf16.mxu0 0
  %386 = vmatpush1.bf16.msra.mxu0 %v298
  %387 = vmatprep.subr.bf16.mxu0 0
  %388 = vmatpush1.bf16.msra.mxu0 %v299
  %389 = vmatprep.subr.bf16.mxu0 0
  %390 = vmatpush1.bf16.msra.mxu0 %v300
  %391 = vmatprep.subr.bf16.mxu0 0
  %392 = vmatpush1.bf16.msra.mxu0 %v301
  %393 = vmatprep.subr.bf16.mxu0 0
  %394 = vmatpush1.bf16.msra.mxu0 %v302
  %395 = vmatprep.subr.bf16.mxu0 0
  %396 = vmatpush1.bf16.msra.mxu0 %v303
  %397 = vmatprep.subr.bf16.mxu0 0
  %398 = vmatpush1.bf16.msra.mxu0 %v304
  %399 = vmatprep.subr.bf16.mxu0 0
  %400 = vmatpush1.bf16.msra.mxu0 %v305
  %401 = vmatprep.mubr.bf16.mxu0 %v129
  %402 = vmatmul.mubr.bf16.gmra.mrb[0].mxu0 %v128
  %v403 = vpop.f32.mrb[0].mxu0
  %v404 = vadd.f32 0.0, %v403
  %v405 = vpop.f32.mrb[0].mxu0
  %v406 = vpop.f32.mrb[0].mxu0
  %v407 = vadd.f32 0.0, %v406
  %v408 = vpop.f32.mrb[0].mxu0
  %409 = vmatprep.mubr.bf16.mxu0 %v134
  %410 = vmatmul.mubr.bf16.gmra.mrb[0].mxu0 %v133
  %v411 = vpop.f32.mrb[0].mxu0
  %v412 = vadd.f32 0.0, %v411
  %v413 = vpop.f32.mrb[0].mxu0
  %v414 = vpop.f32.mrb[0].mxu0
  %v415 = vadd.f32 0.0, %v414
  %v416 = vpop.f32.mrb[0].mxu0
  %417 = vdwg.mxu0
  %418 = vmatprep.subr.bf16.mxu0 0
  %419 = vmatpush1.bf16.msra.mxu0 %v306
  %420 = vmatprep.subr.bf16.mxu0 0
  %421 = vmatpush1.bf16.msra.mxu0 %v307
  %422 = vmatprep.subr.bf16.mxu0 0
  %423 = vmatpush1.bf16.msra.mxu0 %v308
  %424 = vmatprep.subr.bf16.mxu0 0
  %425 = vmatpush1.bf16.msra.mxu0 %v309
  %426 = vmatprep.subr.bf16.mxu0 0
  %427 = vmatpush1.bf16.msra.mxu0 %v310
  %428 = vmatprep.subr.bf16.mxu0 0
  %429 = vmatpush1.bf16.msra.mxu0 %v311
  %430 = vmatprep.subr.bf16.mxu0 0
  %431 = vmatpush1.bf16.msra.mxu0 %v312
  %432 = vmatprep.subr.bf16.mxu0 0
  %433 = vmatpush1.bf16.msra.mxu0 %v313
  %434 = vmatprep.subr.bf16.mxu0 0
  %435 = vmatpush1.bf16.msra.mxu0 %v314
  %436 = vmatprep.subr.bf16.mxu0 0
  %437 = vmatpush1.bf16.msra.mxu0 %v315
  %438 = vmatprep.subr.bf16.mxu0 0
  %439 = vmatpush1.bf16.msra.mxu0 %v316
  %440 = vmatprep.subr.bf16.mxu0 0
  %441 = vmatpush1.bf16.msra.mxu0 %v317
  %442 = vmatprep.subr.bf16.mxu0 0
  %443 = vmatpush1.bf16.msra.mxu0 %v318
  %444 = vmatprep.subr.bf16.mxu0 0
  %445 = vmatpush1.bf16.msra.mxu0 %v319
  %446 = vmatprep.subr.bf16.mxu0 0
  %447 = vmatpush1.bf16.msra.mxu0 %v320
  %448 = vmatprep.subr.bf16.mxu0 0
  %449 = vmatpush1.bf16.msra.mxu0 %v321
  %450 = vmatprep.mubr.bf16.mxu0 %v131
  %451 = vmatmul.mubr.bf16.gmra.mrb[0].mxu0 %v130
  %v452 = vpop.f32.mrb[0].mxu0
  %v453 = vadd.f32 %v404, %v452
  %v454 = vpop.f32.mrb[0].mxu0
  %v455 = vpop.f32.mrb[0].mxu0
  %v456 = vadd.f32 %v407, %v455
  %v457 = vpop.f32.mrb[0].mxu0
  %458 = vmatprep.mubr.bf16.mxu0 %v136
  %459 = vmatmul.mubr.bf16.gmra.mrb[0].mxu0 %v135
  %v460 = vpop.f32.mrb[0].mxu0
  %v461 = vadd.f32 %v412, %v460
  %v462 = vpop.f32.mrb[0].mxu0
  %v463 = vpop.f32.mrb[0].mxu0
  %v464 = vadd.f32 %v415, %v463
  %v465 = vpop.f32.mrb[0].mxu0
  %466 = vdwg.mxu0
  %467 = vmatprep.subr.bf16.mxu0 0
  %468 = vmatpush1.bf16.msra.mxu0 %v322
  %469 = vmatprep.subr.bf16.mxu0 0
  %470 = vmatpush1.bf16.msra.mxu0 %v323
  %471 = vmatprep.subr.bf16.mxu0 0
  %472 = vmatpush1.bf16.msra.mxu0 %v324
  %473 = vmatprep.subr.bf16.mxu0 0
  %474 = vmatpush1.bf16.msra.mxu0 %v325
  %475 = vmatprep.subr.bf16.mxu0 0
  %476 = vmatpush1.bf16.msra.mxu0 0
  %477 = vmatprep.subr.bf16.mxu0 0
  %478 = vmatpush1.bf16.msra.mxu0 0
  %479 = vmatprep.subr.bf16.mxu0 0
  %480 = vmatpush1.bf16.msra.mxu0 0
  %481 = vmatprep.subr.bf16.mxu0 0
  %482 = vmatpush1.bf16.msra.mxu0 0
  %483 = vmatprep.subr.bf16.mxu0 0
  %484 = vmatpush1.bf16.msra.mxu0 0
  %485 = vmatprep.subr.bf16.mxu0 0
  %486 = vmatpush1.bf16.msra.mxu0 0
  %487 = vmatprep.subr.bf16.mxu0 0
  %488 = vmatpush1.bf16.msra.mxu0 0
  %489 = vmatprep.subr.bf16.mxu0 0
  %490 = vmatpush1.bf16.msra.mxu0 0
  %491 = vmatprep.subr.bf16.mxu0 0
  %492 = vmatpush1.bf16.msra.mxu0 0
  %493 = vmatprep.subr.bf16.mxu0 0
  %494 = vmatpush1.bf16.msra.mxu0 0
  %495 = vmatprep.subr.bf16.mxu0 0
  %496 = vmatpush1.bf16.msra.mxu0 0
  %497 = vmatprep.subr.bf16.mxu0 0
  %498 = vmatpush1.bf16.msra.mxu0 0
  %499 = vmatprep.mubr.bf16.mxu0 0
  %500 = vmatmul.mubr.bf16.gmra.mrb[0].mxu0 %v364
  %v501 = vpop.f32.mrb[0].mxu0
  %v502 = vadd.f32 %v453, %v501
  %v503 = vpop.f32.mrb[0].mxu0
  %v504 = vpop.f32.mrb[0].mxu0
  %v505 = vadd.f32 %v456, %v504
  %v506 = vpop.f32.mrb[0].mxu0
  %507 = vmatprep.mubr.bf16.mxu0 0
  %508 = vmatmul.mubr.bf16.gmra.mrb[0].mxu0 %v367
  %v509 = vpop.f32.mrb[0].mxu0
  %v510 = vadd.f32 %v461, %v509
  %v511 = vpop.f32.mrb[0].mxu0
  %v512 = vpop.f32.mrb[0].mxu0
  %v513 = vadd.f32 %v464, %v512
  %v514 = vpop.f32.mrb[0].mxu0
  %515 = vdwg.mxu0
  %516 = vst [vmem:[%s2] sm:$0xff] %v502
  %517 = vst [vmem:[%s2 + $0x8] sm:$0xff] %v505
  %518 = vst [vmem:[%s2 + $0x10] sm:$0xff] %v510
  %519 = vst [vmem:[%s2 + $0x18] sm:$0xff] %v513
  // Predicated region
  $region10: #{generator_forward.32} parent=0 // pred_check
    _
  $region11: #{generator_forward.32} parent=0 // pred_check_branch
    %521 = sbr.rel (0) target = $region13
  $region12: #{generator_forward.32} parent=0 // pred_region
    _
  $region13: #{generator_forward.32} parent=0 // pred_fallthru
    _
  // Predicated region
  $region14: #{generator_forward.32} parent=0 // pred_check
    _
  $region15: #{generator_forward.32} parent=0 // pred_check_branch
    %523 = sbr.rel (0) target = $region17
  $region16: #{generator_forward.32} parent=0 // pred_region
    _
  $region17: #{generator_forward.32} parent=0 // pred_fallthru
    _

// kernel: generator_forward.33
$region0: #{generator_forward.33}
  #allocation0 [shape = 'u32[]', space=smem, size = 0x4, offset = 0x4, fixed_abs, tag = 'smem constant byte address 0x4 - core index']
  #allocation1 [shape = 'u32[144,128]{1,0:T(1,128)}', space=vmem, size = 0x12000, scoped, tag = 'internal scratch']
  %s0 = inlined_call_operand.vmem [shape: bf16[32,384], index: 0, kind: input, shape index: {}]
  %s1 = inlined_call_operand.vmem [shape: bf16[384,128], index: 1, kind: input, shape index: {}]
  %s2 = inlined_call_operand.vmem [shape: f32[32,128], index: 2, kind: output, shape index: {}]
  %s3 = sld [smem:[#allocation0]]
  $region18: #{generator_forward.33} parent=0
    _
  %s5 = ssub.s32 1, %s3
  %s6 = scalar_select 0, %s5, %s3
  // Predicated region
  $region2: #{generator_forward.33} parent=0 // pred_check
    _
  $region3: #{generator_forward.33} parent=0 // pred_check_branch
    %8 = sbr.rel (0) target = $region5
  $region4: #{generator_forward.33} parent=0 // pred_region
    _
  $region5: #{generator_forward.33} parent=0 // pred_fallthru
    _
  // Predicated region
  $region6: #{generator_forward.33} parent=0 // pred_check
    _
  $region7: #{generator_forward.33} parent=0 // pred_check_branch
    %10 = sbr.rel (0) target = $region9
  $region8: #{generator_forward.33} parent=0 // pred_region
    _
  $region9: #{generator_forward.33} parent=0 // pred_fallthru
    _
  %v12 = vld [vmem:[%s0] sm:$0xff]
  %v13 = vld [vmem:[%s0 + $0x8] sm:$0xf]
  %v14 = vld [vmem:[%s0 + $0xc] sm:$0xff]
  %v15 = vld [vmem:[%s0 + $0x14] sm:$0xf]
  %v16 = vld [vmem:[%s0 + $0x18] sm:$0xff]
  %v17 = vld [vmem:[%s0 + $0x20] sm:$0xf]
  %v18 = vld [vmem:[%s0 + $0x24] sm:$0xff]
  %v19 = vld [vmem:[%s0 + $0x2c] sm:$0xf]
  %v20 = vld [vmem:[%s1] sm:$0xf]
  %v21 = vld [vmem:[%s1 + $0x4] sm:$0xf]
  %v22 = vld [vmem:[%s1 + $0x8] sm:$0xf]
  %v23 = vld [vmem:[%s1 + $0xc] sm:$0xf]
  %v24 = vld [vmem:[%s1 + $0x10] sm:$0xf]
  %v25 = vld [vmem:[%s1 + $0x14] sm:$0xf]
  %v26 = vld [vmem:[%s1 + $0x18] sm:$0xf]
  %v27 = vld [vmem:[%s1 + $0x1c] sm:$0xf]
  %v28 = vld [vmem:[%s1 + $0x20] sm:$0xf]
  %v29 = vld [vmem:[%s1 + $0x24] sm:$0xf]
  %v30 = vld [vmem:[%s1 + $0x28] sm:$0xf]
  %v31 = vld [vmem:[%s1 + $0x2c] sm:$0xf]
  %v32 = vld [vmem:[%s1 + $0x30] sm:$0xf]
  %v33 = vld [vmem:[%s1 + $0x34] sm:$0xf]
  %v34 = vld [vmem:[%s1 + $0x38] sm:$0xf]
  %v35 = vld [vmem:[%s1 + $0x3c] sm:$0xf]
  %v36 = vld [vmem:[%s1 + $0x40] sm:$0xf]
  %v37 = vld [vmem:[%s1 + $0x44] sm:$0xf]
  %v38 = vld [vmem:[%s1 + $0x48] sm:$0xf]
  %v39 = vld [vmem:[%s1 + $0x4c] sm:$0xf]
  %v40 = vld [vmem:[%s1 + $0x50] sm:$0xf]
  %v41 = vld [vmem:[%s1 + $0x54] sm:$0xf]
  %v42 = vld [vmem:[%s1 + $0x58] sm:$0xf]
  %v43 = vld [vmem:[%s1 + $0x5c] sm:$0xf]
  %v44 = vld [vmem:[%s1 + $0x60] sm:$0xf]
  %v45 = vld [vmem:[%s1 + $0x64] sm:$0xf]
  %v46 = vld [vmem:[%s1 + $0x68] sm:$0xf]
  %v47 = vld [vmem:[%s1 + $0x6c] sm:$0xf]
  %v48 = vld [vmem:[%s1 + $0x70] sm:$0xf]
  %v49 = vld [vmem:[%s1 + $0x74] sm:$0xf]
  %v50 = vld [vmem:[%s1 + $0x78] sm:$0xf]
  %v51 = vld [vmem:[%s1 + $0x7c] sm:$0xf]
  %v52 = vld [vmem:[%s1 + $0x80] sm:$0xf]
  %v53 = vld [vmem:[%s1 + $0x84] sm:$0xf]
  %v54 = vld [vmem:[%s1 + $0x88] sm:$0xf]
  %v55 = vld [vmem:[%s1 + $0x8c] sm:$0xf]
  %v56 = vld [vmem:[%s1 + $0x90] sm:$0xf]
  %v57 = vld [vmem:[%s1 + $0x94] sm:$0xf]
  %v58 = vld [vmem:[%s1 + $0x98] sm:$0xf]
  %v59 = vld [vmem:[%s1 + $0x9c] sm:$0xf]
  %v60 = vld [vmem:[%s1 + $0xa0] sm:$0xf]
  %v61 = vld [vmem:[%s1 + $0xa4] sm:$0xf]
  %v62 = vld [vmem:[%s1 + $0xa8] sm:$0xf]
  %v63 = vld [vmem:[%s1 + $0xac] sm:$0xf]
  %v64 = vld [vmem:[%s1 + $0xb0] sm:$0xf]
  %v65 = vld [vmem:[%s1 + $0xb4] sm:$0xf]
  %v66 = vld [vmem:[%s1 + $0xb8] sm:$0xf]
  %v67 = vld [vmem:[%s1 + $0xbc] sm:$0xf]
  %v76 = vunpack.c.l.b16 %v12
  %v77 = vunpack.c.h.b16 %v12
  %v78 = vunpack.c.l.b16 %v13
  %v79 = vunpack.c.l.b16 %v14
  %v80 = vunpack.c.h.b16 %v14
  %v81 = vunpack.c.l.b16 %v15
  %v82 = vunpack.c.l.b16 %v16
  %v83 = vunpack.c.h.b16 %v16
  %v84 = vunpack.c.l.b16 %v17
  %v85 = vunpack.c.l.b16 %v18
  %v86 = vunpack.c.h.b16 %v18
  %v87 = vunpack.c.l.b16 %v19
  %v88 = vpack.c.b16 %v79, %v76
  %v89 = vpack.c.b16 %v80, %v77
  %v90 = vpack.c.b16 %v81, %v78
  %v91 = vpack.c.b16 %v85, %v82
  %v92 = vpack.c.b16 %v86, %v83
  %v93 = vpack.c.b16 %v87, %v84
  %v148 = vunpack.c.l.b16 %v20
  %v149 = vunpack.c.l.b16 %v21
  %v150 = vunpack.c.l.b16 %v22
  %v151 = vunpack.c.l.b16 %v23
  %v152 = vunpack.c.l.b16 %v24
  %v153 = vunpack.c.l.b16 %v25
  %v154 = vunpack.c.l.b16 %v26
  %v155 = vunpack.c.l.b16 %v27
  %v156 = vunpack.c.l.b16 %v28
  %v157 = vunpack.c.l.b16 %v29
  %v158 = vunpack.c.l.b16 %v30
  %v159 = vunpack.c.l.b16 %v31
  %v160 = vunpack.c.l.b16 %v32
  %v161 = vunpack.c.l.b16 %v33
  %v162 = vunpack.c.l.b16 %v34
  %v163 = vunpack.c.l.b16 %v35
  %v164 = vunpack.c.l.b16 %v36
  %v165 = vunpack.c.l.b16 %v37
  %v166 = vunpack.c.l.b16 %v38
  %v167 = vunpack.c.l.b16 %v39
  %v168 = vunpack.c.l.b16 %v40
  %v169 = vunpack.c.l.b16 %v41
  %v170 = vunpack.c.l.b16 %v42
  %v171 = vunpack.c.l.b16 %v43
  %v172 = vunpack.c.l.b16 %v44
  %v173 = vunpack.c.l.b16 %v45
  %v174 = vunpack.c.l.b16 %v46
  %v175 = vunpack.c.l.b16 %v47
  %v176 = vunpack.c.l.b16 %v48
  %v177 = vunpack.c.l.b16 %v49
  %v178 = vunpack.c.l.b16 %v50
  %v179 = vunpack.c.l.b16 %v51
  %v180 = vunpack.c.l.b16 %v52
  %v181 = vunpack.c.l.b16 %v53
  %v182 = vunpack.c.l.b16 %v54
  %v183 = vunpack.c.l.b16 %v55
  %v184 = vunpack.c.l.b16 %v56
  %v185 = vunpack.c.l.b16 %v57
  %v186 = vunpack.c.l.b16 %v58
  %v187 = vunpack.c.l.b16 %v59
  %v188 = vunpack.c.l.b16 %v60
  %v189 = vunpack.c.l.b16 %v61
  %v190 = vunpack.c.l.b16 %v62
  %v191 = vunpack.c.l.b16 %v63
  %v192 = vunpack.c.l.b16 %v64
  %v193 = vunpack.c.l.b16 %v65
  %v194 = vunpack.c.l.b16 %v66
  %v195 = vunpack.c.l.b16 %v67
  %v196 = vpack.c.b16 %v149, %v148
  %v197 = vpack.c.b16 %v151, %v150
  %v198 = vpack.c.b16 %v153, %v152
  %v199 = vpack.c.b16 %v155, %v154
  %v200 = vpack.c.b16 %v157, %v156
  %v201 = vpack.c.b16 %v159, %v158
  %v202 = vpack.c.b16 %v161, %v160
  %v203 = vpack.c.b16 %v163, %v162
  %v204 = vpack.c.b16 %v165, %v164
  %v205 = vpack.c.b16 %v167, %v166
  %v206 = vpack.c.b16 %v169, %v168
  %v207 = vpack.c.b16 %v171, %v170
  %v208 = vpack.c.b16 %v173, %v172
  %v209 = vpack.c.b16 %v175, %v174
  %v210 = vpack.c.b16 %v177, %v176
  %v211 = vpack.c.b16 %v179, %v178
  %v212 = vpack.c.b16 %v181, %v180
  %v213 = vpack.c.b16 %v183, %v182
  %v214 = vpack.c.b16 %v185, %v184
  %v215 = vpack.c.b16 %v187, %v186
  %v216 = vpack.c.b16 %v189, %v188
  %v217 = vpack.c.b16 %v191, %v190
  %v218 = vpack.c.b16 %v193, %v192
  %v219 = vpack.c.b16 %v195, %v194
  %244 = vmatprep.subr.bf16.mxu0 0
  %245 = vmatpush1.bf16.msra.mxu0 %v196
  %246 = vmatprep.subr.bf16.mxu0 0
  %247 = vmatpush1.bf16.msra.mxu0 %v197
  %248 = vmatprep.subr.bf16.mxu0 0
  %249 = vmatpush1.bf16.msra.mxu0 %v198
  %250 = vmatprep.subr.bf16.mxu0 0
  %251 = vmatpush1.bf16.msra.mxu0 %v199
  %252 = vmatprep.subr.bf16.mxu0 0
  %253 = vmatpush1.bf16.msra.mxu0 %v200
  %254 = vmatprep.subr.bf16.mxu0 0
  %255 = vmatpush1.bf16.msra.mxu0 %v201
  %256 = vmatprep.subr.bf16.mxu0 0
  %257 = vmatpush1.bf16.msra.mxu0 %v202
  %258 = vmatprep.subr.bf16.mxu0 0
  %259 = vmatpush1.bf16.msra.mxu0 %v203
  %260 = vmatprep.subr.bf16.mxu0 0
  %261 = vmatpush1.bf16.msra.mxu0 %v204
  %262 = vmatprep.subr.bf16.mxu0 0
  %263 = vmatpush1.bf16.msra.mxu0 %v205
  %264 = vmatprep.subr.bf16.mxu0 0
  %265 = vmatpush1.bf16.msra.mxu0 %v206
  %266 = vmatprep.subr.bf16.mxu0 0
  %267 = vmatpush1.bf16.msra.mxu0 %v207
  %268 = vmatprep.subr.bf16.mxu0 0
  %269 = vmatpush1.bf16.msra.mxu0 %v208
  %270 = vmatprep.subr.bf16.mxu0 0
  %271 = vmatpush1.bf16.msra.mxu0 %v209
  %272 = vmatprep.subr.bf16.mxu0 0
  %273 = vmatpush1.bf16.msra.mxu0 %v210
  %274 = vmatprep.subr.bf16.mxu0 0
  %275 = vmatpush1.bf16.msra.mxu0 %v211
  %276 = vmatprep.mubr.bf16.mxu0 %v89
  %277 = vmatmul.mubr.bf16.gmra.mrb[0].mxu0 %v88
  %v278 = vpop.f32.mrb[0].mxu0
  %v279 = vadd.f32 0.0, %v278
  %v280 = vpop.f32.mrb[0].mxu0
  %v281 = vpop.f32.mrb[0].mxu0
  %v282 = vadd.f32 0.0, %v281
  %v283 = vpop.f32.mrb[0].mxu0
  %284 = vmatprep.mubr.bf16.mxu0 %v92
  %285 = vmatmul.mubr.bf16.gmra.mrb[0].mxu0 %v91
  %v286 = vpop.f32.mrb[0].mxu0
  %v287 = vadd.f32 0.0, %v286
  %v288 = vpop.f32.mrb[0].mxu0
  %v289 = vpop.f32.mrb[0].mxu0
  %v290 = vadd.f32 0.0, %v289
  %v291 = vpop.f32.mrb[0].mxu0
  %292 = vdwg.mxu0
  %293 = vmatprep.subr.bf16.mxu0 0
  %294 = vmatpush1.bf16.msra.mxu0 %v212
  %295 = vmatprep.subr.bf16.mxu0 0
  %296 = vmatpush1.bf16.msra.mxu0 %v213
  %297 = vmatprep.subr.bf16.mxu0 0
  %298 = vmatpush1.bf16.msra.mxu0 %v214
  %299 = vmatprep.subr.bf16.mxu0 0
  %300 = vmatpush1.bf16.msra.mxu0 %v215
  %301 = vmatprep.subr.bf16.mxu0 0
  %302 = vmatpush1.bf16.msra.mxu0 %v216
  %303 = vmatprep.subr.bf16.mxu0 0
  %304 = vmatpush1.bf16.msra.mxu0 %v217
  %305 = vmatprep.subr.bf16.mxu0 0
  %306 = vmatpush1.bf16.msra.mxu0 %v218
  %307 = vmatprep.subr.bf16.mxu0 0
  %308 = vmatpush1.bf16.msra.mxu0 %v219
  %309 = vmatprep.subr.bf16.mxu0 0
  %310 = vmatpush1.bf16.msra.mxu0 0
  %311 = vmatprep.subr.bf16.mxu0 0
  %312 = vmatpush1.bf16.msra.mxu0 0
  %313 = vmatprep.subr.bf16.mxu0 0
  %314 = vmatpush1.bf16.msra.mxu0 0
  %315 = vmatprep.subr.bf16.mxu0 0
  %316 = vmatpush1.bf16.msra.mxu0 0
  %317 = vmatprep.subr.bf16.mxu0 0
  %318 = vmatpush1.bf16.msra.mxu0 0
  %319 = vmatprep.subr.bf16.mxu0 0
  %320 = vmatpush1.bf16.msra.mxu0 0
  %321 = vmatprep.subr.bf16.mxu0 0
  %322 = vmatpush1.bf16.msra.mxu0 0
  %323 = vmatprep.subr.bf16.mxu0 0
  %324 = vmatpush1.bf16.msra.mxu0 0
  %325 = vmatprep.mubr.bf16.mxu0 0
  %326 = vmatmul.mubr.bf16.gmra.mrb[0].mxu0 %v90
  %v327 = vpop.f32.mrb[0].mxu0
  %v328 = vadd.f32 %v279, %v327
  %v329 = vpop.f32.mrb[0].mxu0
  %v330 = vpop.f32.mrb[0].mxu0
  %v331 = vadd.f32 %v282, %v330
  %v332 = vpop.f32.mrb[0].mxu0
  %333 = vmatprep.mubr.bf16.mxu0 0
  %334 = vmatmul.mubr.bf16.gmra.mrb[0].mxu0 %v93
  %v335 = vpop.f32.mrb[0].mxu0
  %v336 = vadd.f32 %v287, %v335
  %v337 = vpop.f32.mrb[0].mxu0
  %v338 = vpop.f32.mrb[0].mxu0
  %v339 = vadd.f32 %v290, %v338
  %v340 = vpop.f32.mrb[0].mxu0
  %341 = vdwg.mxu0
  %342 = vst [vmem:[%s2] sm:$0xff] %v328
  %343 = vst [vmem:[%s2 + $0x8] sm:$0xff] %v331
  %344 = vst [vmem:[%s2 + $0x10] sm:$0xff] %v336
  %345 = vst [vmem:[%s2 + $0x18] sm:$0xff] %v339
  // Predicated region
  $region10: #{generator_forward.33} parent=0 // pred_check
    _
  $region11: #{generator_forward.33} parent=0 // pred_check_branch
    %347 = sbr.rel (0) target = $region13
  $region12: #{generator_forward.33} parent=0 // pred_region
    _
  $region13: #{generator_forward.33} parent=0 // pred_fallthru
    _
  // Predicated region
  $region14: #{generator_forward.33} parent=0 // pred_check
    _
  $region15: #{generator_forward.33} parent=0 // pred_check_branch
    %349 = sbr.rel (0) target = $region17
  $region16: #{generator_forward.33} parent=0 // pred_region
    _
  $region17: #{generator_forward.33} parent=0 // pred_fallthru
    _

// kernel: generator_forward.35
$region0: #{generator_forward.35}
  #allocation0 [shape = 'u32[]', space=smem, size = 0x4, offset = 0x4, fixed_abs, tag = 'smem constant byte address 0x4 - core index']
  #allocation1 [shape = 'u32[144,128]{1,0:T(1,128)}', space=vmem, size = 0x12000, scoped, tag = 'internal scratch']
  %s0 = inlined_call_operand.vmem [shape: bf16[32,256], index: 0, kind: input, shape index: {}]
  %s1 = inlined_call_operand.vmem [shape: bf16[256,128], index: 1, kind: input, shape index: {}]
  %s2 = inlined_call_operand.vmem [shape: f32[32,128], index: 2, kind: output, shape index: {}]
  %s3 = sld [smem:[#allocation0]]
  $region18: #{generator_forward.35} parent=0
    _
  %s5 = ssub.s32 1, %s3
  %s6 = scalar_select 0, %s5, %s3
  // Predicated region
  $region2: #{generator_forward.35} parent=0 // pred_check
    _
  $region3: #{generator_forward.35} parent=0 // pred_check_branch
    %8 = sbr.rel (0) target = $region5
  $region4: #{generator_forward.35} parent=0 // pred_region
    _
  $region5: #{generator_forward.35} parent=0 // pred_fallthru
    _
  // Predicated region
  $region6: #{generator_forward.35} parent=0 // pred_check
    _
  $region7: #{generator_forward.35} parent=0 // pred_check_branch
    %10 = sbr.rel (0) target = $region9
  $region8: #{generator_forward.35} parent=0 // pred_region
    _
  $region9: #{generator_forward.35} parent=0 // pred_fallthru
    _
  %v12 = vld [vmem:[%s0] sm:$0xff]
  %v13 = vld [vmem:[%s0 + $0x8] sm:$0xff]
  %v14 = vld [vmem:[%s0 + $0x10] sm:$0xff]
  %v15 = vld [vmem:[%s0 + $0x18] sm:$0xff]
  %v16 = vld [vmem:[%s1] sm:$0xf]
  %v17 = vld [vmem:[%s1 + $0x4] sm:$0xf]
  %v18 = vld [vmem:[%s1 + $0x8] sm:$0xf]
  %v19 = vld [vmem:[%s1 + $0xc] sm:$0xf]
  %v20 = vld [vmem:[%s1 + $0x10] sm:$0xf]
  %v21 = vld [vmem:[%s1 + $0x14] sm:$0xf]
  %v22 = vld [vmem:[%s1 + $0x18] sm:$0xf]
  %v23 = vld [vmem:[%s1 + $0x1c] sm:$0xf]
  %v24 = vld [vmem:[%s1 + $0x20] sm:$0xf]
  %v25 = vld [vmem:[%s1 + $0x24] sm:$0xf]
  %v26 = vld [vmem:[%s1 + $0x28] sm:$0xf]
  %v27 = vld [vmem:[%s1 + $0x2c] sm:$0xf]
  %v28 = vld [vmem:[%s1 + $0x30] sm:$0xf]
  %v29 = vld [vmem:[%s1 + $0x34] sm:$0xf]
  %v30 = vld [vmem:[%s1 + $0x38] sm:$0xf]
  %v31 = vld [vmem:[%s1 + $0x3c] sm:$0xf]
  %v32 = vld [vmem:[%s1 + $0x40] sm:$0xf]
  %v33 = vld [vmem:[%s1 + $0x44] sm:$0xf]
  %v34 = vld [vmem:[%s1 + $0x48] sm:$0xf]
  %v35 = vld [vmem:[%s1 + $0x4c] sm:$0xf]
  %v36 = vld [vmem:[%s1 + $0x50] sm:$0xf]
  %v37 = vld [vmem:[%s1 + $0x54] sm:$0xf]
  %v38 = vld [vmem:[%s1 + $0x58] sm:$0xf]
  %v39 = vld [vmem:[%s1 + $0x5c] sm:$0xf]
  %v40 = vld [vmem:[%s1 + $0x60] sm:$0xf]
  %v41 = vld [vmem:[%s1 + $0x64] sm:$0xf]
  %v42 = vld [vmem:[%s1 + $0x68] sm:$0xf]
  %v43 = vld [vmem:[%s1 + $0x6c] sm:$0xf]
  %v44 = vld [vmem:[%s1 + $0x70] sm:$0xf]
  %v45 = vld [vmem:[%s1 + $0x74] sm:$0xf]
  %v46 = vld [vmem:[%s1 + $0x78] sm:$0xf]
  %v47 = vld [vmem:[%s1 + $0x7c] sm:$0xf]
  %v52 = vunpack.c.l.b16 %v12
  %v53 = vunpack.c.h.b16 %v12
  %v54 = vunpack.c.l.b16 %v13
  %v55 = vunpack.c.h.b16 %v13
  %v56 = vunpack.c.l.b16 %v14
  %v57 = vunpack.c.h.b16 %v14
  %v58 = vunpack.c.l.b16 %v15
  %v59 = vunpack.c.h.b16 %v15
  %v60 = vpack.c.b16 %v54, %v52
  %v61 = vpack.c.b16 %v55, %v53
  %v62 = vpack.c.b16 %v58, %v56
  %v63 = vpack.c.b16 %v59, %v57
  %v100 = vunpack.c.l.b16 %v16
  %v101 = vunpack.c.l.b16 %v17
  %v102 = vunpack.c.l.b16 %v18
  %v103 = vunpack.c.l.b16 %v19
  %v104 = vunpack.c.l.b16 %v20
  %v105 = vunpack.c.l.b16 %v21
  %v106 = vunpack.c.l.b16 %v22
  %v107 = vunpack.c.l.b16 %v23
  %v108 = vunpack.c.l.b16 %v24
  %v109 = vunpack.c.l.b16 %v25
  %v110 = vunpack.c.l.b16 %v26
  %v111 = vunpack.c.l.b16 %v27
  %v112 = vunpack.c.l.b16 %v28
  %v113 = vunpack.c.l.b16 %v29
  %v114 = vunpack.c.l.b16 %v30
  %v115 = vunpack.c.l.b16 %v31
  %v116 = vunpack.c.l.b16 %v32
  %v117 = vunpack.c.l.b16 %v33
  %v118 = vunpack.c.l.b16 %v34
  %v119 = vunpack.c.l.b16 %v35
  %v120 = vunpack.c.l.b16 %v36
  %v121 = vunpack.c.l.b16 %v37
  %v122 = vunpack.c.l.b16 %v38
  %v123 = vunpack.c.l.b16 %v39
  %v124 = vunpack.c.l.b16 %v40
  %v125 = vunpack.c.l.b16 %v41
  %v126 = vunpack.c.l.b16 %v42
  %v127 = vunpack.c.l.b16 %v43
  %v128 = vunpack.c.l.b16 %v44
  %v129 = vunpack.c.l.b16 %v45
  %v130 = vunpack.c.l.b16 %v46
  %v131 = vunpack.c.l.b16 %v47
  %v132 = vpack.c.b16 %v101, %v100
  %v133 = vpack.c.b16 %v103, %v102
  %v134 = vpack.c.b16 %v105, %v104
  %v135 = vpack.c.b16 %v107, %v106
  %v136 = vpack.c.b16 %v109, %v108
  %v137 = vpack.c.b16 %v111, %v110
  %v138 = vpack.c.b16 %v113, %v112
  %v139 = vpack.c.b16 %v115, %v114
  %v140 = vpack.c.b16 %v117, %v116
  %v141 = vpack.c.b16 %v119, %v118
  %v142 = vpack.c.b16 %v121, %v120
  %v143 = vpack.c.b16 %v123, %v122
  %v144 = vpack.c.b16 %v125, %v124
  %v145 = vpack.c.b16 %v127, %v126
  %v146 = vpack.c.b16 %v129, %v128
  %v147 = vpack.c.b16 %v131, %v130
  %164 = vmatprep.subr.bf16.mxu0 0
  %165 = vmatpush1.bf16.msra.mxu0 %v132
  %166 = vmatprep.subr.bf16.mxu0 0
  %167 = vmatpush1.bf16.msra.mxu0 %v133
  %168 = vmatprep.subr.bf16.mxu0 0
  %169 = vmatpush1.bf16.msra.mxu0 %v134
  %170 = vmatprep.subr.bf16.mxu0 0
  %171 = vmatpush1.bf16.msra.mxu0 %v135
  %172 = vmatprep.subr.bf16.mxu0 0
  %173 = vmatpush1.bf16.msra.mxu0 %v136
  %174 = vmatprep.subr.bf16.mxu0 0
  %175 = vmatpush1.bf16.msra.mxu0 %v137
  %176 = vmatprep.subr.bf16.mxu0 0
  %177 = vmatpush1.bf16.msra.mxu0 %v138
  %178 = vmatprep.subr.bf16.mxu0 0
  %179 = vmatpush1.bf16.msra.mxu0 %v139
  %180 = vmatprep.subr.bf16.mxu0 0
  %181 = vmatpush1.bf16.msra.mxu0 %v140
  %182 = vmatprep.subr.bf16.mxu0 0
  %183 = vmatpush1.bf16.msra.mxu0 %v141
  %184 = vmatprep.subr.bf16.mxu0 0
  %185 = vmatpush1.bf16.msra.mxu0 %v142
  %186 = vmatprep.subr.bf16.mxu0 0
  %187 = vmatpush1.bf16.msra.mxu0 %v143
  %188 = vmatprep.subr.bf16.mxu0 0
  %189 = vmatpush1.bf16.msra.mxu0 %v144
  %190 = vmatprep.subr.bf16.mxu0 0
  %191 = vmatpush1.bf16.msra.mxu0 %v145
  %192 = vmatprep.subr.bf16.mxu0 0
  %193 = vmatpush1.bf16.msra.mxu0 %v146
  %194 = vmatprep.subr.bf16.mxu0 0
  %195 = vmatpush1.bf16.msra.mxu0 %v147
  %196 = vmatprep.mubr.bf16.mxu0 %v61
  %197 = vmatmul.mubr.bf16.gmra.mrb[0].mxu0 %v60
  %v198 = vpop.f32.mrb[0].mxu0
  %v199 = vadd.f32 0.0, %v198
  %v200 = vpop.f32.mrb[0].mxu0
  %v201 = vpop.f32.mrb[0].mxu0
  %v202 = vadd.f32 0.0, %v201
  %v203 = vpop.f32.mrb[0].mxu0
  %204 = vmatprep.mubr.bf16.mxu0 %v63
  %205 = vmatmul.mubr.bf16.gmra.mrb[0].mxu0 %v62
  %v206 = vpop.f32.mrb[0].mxu0
  %v207 = vadd.f32 0.0, %v206
  %v208 = vpop.f32.mrb[0].mxu0
  %v209 = vpop.f32.mrb[0].mxu0
  %v210 = vadd.f32 0.0, %v209
  %v211 = vpop.f32.mrb[0].mxu0
  %212 = vdwg.mxu0
  %213 = vst [vmem:[%s2] sm:$0xff] %v199
  %214 = vst [vmem:[%s2 + $0x8] sm:$0xff] %v202
  %215 = vst [vmem:[%s2 + $0x10] sm:$0xff] %v207
  %216 = vst [vmem:[%s2 + $0x18] sm:$0xff] %v210
  // Predicated region
  $region10: #{generator_forward.35} parent=0 // pred_check
    _
  $region11: #{generator_forward.35} parent=0 // pred_check_branch
    %218 = sbr.rel (0) target = $region13
  $region12: #{generator_forward.35} parent=0 // pred_region
    _
  $region13: #{generator_forward.35} parent=0 // pred_fallthru
    _
  // Predicated region
  $region14: #{generator_forward.35} parent=0 // pred_check
    _
  $region15: #{generator_forward.35} parent=0 // pred_check_branch
    %220 = sbr.rel (0) target = $region17
  $region16: #{generator_forward.35} parent=0 // pred_region
    _
  $region17: #{generator_forward.35} parent=0 // pred_fallthru
    _

// kernel: generator_forward.36
$region0: #{generator_forward.36}
  #allocation0 [shape = 'u32[]', space=smem, size = 0x4, offset = 0x4, fixed_abs, tag = 'smem constant byte address 0x4 - core index']
  #allocation1 [shape = 'u32[144,128]{1,0:T(1,128)}', space=vmem, size = 0x12000, scoped, tag = 'internal scratch']
  %s0 = inlined_call_operand.vmem [shape: f32[32,512], index: 0, kind: input, shape index: {}]
  %s1 = inlined_call_operand.vmem [shape: f32[32,1], index: 1, kind: output, shape index: {0}]
  %s2 = inlined_call_operand.vmem [shape: f32[32,1], index: 2, kind: output, shape index: {1}]
  %3 = xla_tuple %s1, %s2
  %s4 = sld [smem:[#allocation0]]
  $region72: #{generator_forward.36} parent=0
    _
  %s6 = ssub.s32 1, %s4
  %s7 = scalar_select 0, %s6, %s4
  $region1: #{generator_forward.36} parent=0
    #allocation2 [shape = 'u8[65536]{0}', space=vmem, size = 0x10000, scoped, tag = 'input window, operand 0']
    loop: start=0, step=1, limit=4
    $region2: #{generator_forward.36} parent=1 // loop_pre_header
      _
    $region3: #{generator_forward.36} parent=1 // loop_header
      %s9 = sphi 0, %s13
      %p10 = scmp.ge.s32.totalorder %s9, 4
      %s19 = sphi 0, %s21
      %s22 = sphi 0, %s19
      %s23 = sphi 0, %s22
      %s39 = sphi 0, %s23
      %s43 = sphi 0, %s43
      %s45 = sphi 0, %s43
      %s46 = sphi 0, %s45
      %s60 = sphi 0, %s46
      %s64 = sphi 0, %s64
      %s66 = sphi 0, %s64
      %s67 = sphi 0, %s66
      %s81 = sphi 0, %s67
    $region4: #{generator_forward.36} parent=1 // loop_header_branch
      %12 = sbr.rel (%p10) target = $region8
    $region5: #{generator_forward.36} parent=1 // loop_body
      %s14 = ssub.s32 %s9, 1
      %s15 = ssub.s32 %s9, 2
      %s16 = sadd.s32 %s9, 1
      %s17 = ssub.s32 %s9, %s16
      %p18 = scmp.eq.s32.totalorder %s17, 0
      %s20 = sadd.s32 %s19, 1
      %s21 = scalar_select %p18, %s19, %s20
      %p24 = pneg %p18
      %p25 = scmp.eq.s32.totalorder %s9, 1
      %p26 = por %p24, %p25
      %p27 = scmp.ne.s32.totalorder %s19, %s22
      %p28 = scmp.eq.s32.totalorder %s9, 0
      %p29 = por %p27, %p28
      %p30 = scmp.ne.s32.totalorder %s19, %s22
      %p31 = scmp.eq.s32.totalorder %s14, 1
      %p32 = por %p30, %p31
      %p33 = scmp.ne.s32.totalorder %s22, %s23
      %p34 = scmp.eq.s32.totalorder %s14, 0
      %p35 = por %p33, %p34
      %p36 = scmp.ne.s32.totalorder %s22, %s23
      %p37 = scmp.eq.s32.totalorder %s15, 1
      %p38 = por %p36, %p37
      %p40 = scmp.ne.s32.totalorder %s23, %s39
      %p41 = scmp.eq.s32.totalorder %s15, 0
      %p42 = por %p40, %p41
      %s44 = sadd.s32 %s43, 1
      %p47 = scmp.eq.s32.totalorder %s9, 1
      %p48 = scmp.ne.s32.totalorder %s43, %s45
      %p49 = scmp.eq.s32.totalorder %s9, 0
      %p50 = por %p48, %p49
      %p51 = scmp.ne.s32.totalorder %s43, %s45
      %p52 = scmp.eq.s32.totalorder %s14, 1
      %p53 = por %p51, %p52
      %p54 = scmp.ne.s32.totalorder %s45, %s46
      %p55 = scmp.eq.s32.totalorder %s14, 0
      %p56 = por %p54, %p55
      %p57 = scmp.ne.s32.totalorder %s45, %s46
      %p58 = scmp.eq.s32.totalorder %s15, 1
      %p59 = por %p57, %p58
      %p61 = scmp.ne.s32.totalorder %s46, %s60
      %p62 = scmp.eq.s32.totalorder %s15, 0
      %p63 = por %p61, %p62
      %s65 = sadd.s32 %s64, 1
      %p68 = scmp.eq.s32.totalorder %s9, 1
      %p69 = scmp.ne.s32.totalorder %s64, %s66
      %p70 = scmp.eq.s32.totalorder %s9, 0
      %p71 = por %p69, %p70
      %p72 = scmp.ne.s32.totalorder %s64, %s66
      %p73 = scmp.eq.s32.totalorder %s14, 1
      %p74 = por %p72, %p73
      %p75 = scmp.ne.s32.totalorder %s66, %s67
      %p76 = scmp.eq.s32.totalorder %s14, 0
      %p77 = por %p75, %p76
      %p78 = scmp.ne.s32.totalorder %s66, %s67
      %p79 = scmp.eq.s32.totalorder %s15, 1
      %p80 = por %p78, %p79
      %p82 = scmp.ne.s32.totalorder %s67, %s81
      %p83 = scmp.eq.s32.totalorder %s15, 0
      %p84 = por %p82, %p83
      %p85 = scmp.le.s32.totalorder 1, %s9
      %p86 = scmp.lt.s32.totalorder %s9, 3
      %p87 = pnand %p85, %p86
      %p88 = pneg %p87
      // Predicated region
      $region9: #{generator_forward.36} parent=5 // pred_check
        _
      $region10: #{generator_forward.36} parent=5 // pred_check_branch
        %90 = sbr.rel (%p87) target = $region12
      $region11: #{generator_forward.36} parent=5 // pred_region
        %s91 = ssub.s32 %s9, 1
      $region12: #{generator_forward.36} parent=5 // pred_fallthru
        _
      %p92 = scmp.lt.s32.totalorder %s9, 2
      // Predicated region
      $region13: #{generator_forward.36} parent=5 // pred_check
        %p93 = pneg %p92
      $region14: #{generator_forward.36} parent=5 // pred_check_branch
        %95 = sbr.rel (%p93) target = $region16
      $region15: #{generator_forward.36} parent=5 // pred_region
        // Predicated region
        $region17: #{generator_forward.36} parent=15 // pred_check
          %p96 = pneg %p29
        $region18: #{generator_forward.36} parent=15 // pred_check_branch
          %98 = sbr.rel (%p96) target = $region20
        $region19: #{generator_forward.36} parent=15 // pred_region
          %s99 = sand.u32 %s19, 1
          %s100 = sand.u32 %s19, 1
          %s101 = smul.addr %s100, 64
          %s102 = scalar_lea.vmem [#allocation2], %s101
          %s103 = smul.u32 2, %s9
          %s104 = smul.addr %s103, 8
          %s105 = scalar_lea.vmem %s0, %s104
          // Predicated region
          $region21: #{generator_forward.36} parent=19 // pred_check
            _
          $region22: #{generator_forward.36} parent=19 // pred_check_branch
            %107 = sbr.rel (0) target = $region24
          $region23: #{generator_forward.36} parent=19 // pred_region
            // Predicated region
            $region25: #{generator_forward.36} parent=23 // pred_check
              _
            $region26: #{generator_forward.36} parent=23 // pred_check_branch
              %109 = sbr.rel (0) target = $region28
            $region27: #{generator_forward.36} parent=23 // pred_region
              loop: start=0, step=1, limit=1
              $region29: #{generator_forward.36} parent=27 // loop_pre_header
                _
              $region30: #{generator_forward.36} parent=27 // loop_header
                %s111 = sphi 0, %s115
                %p112 = scmp.ge.s32.totalorder %s111, 1
                %s116 = sphi %s105, %s105
                %s117 = sphi %s102, %s102
              $region31: #{generator_forward.36} parent=27 // loop_header_branch
                %114 = sbr.rel (%p112) target = $region35
              $region32: #{generator_forward.36} parent=27 // loop_body
                %v118 = vld [vmem:[%s116] sm:$0xff]
                %119 = vst [vmem:[%s117] sm:$0xff] %v118
                %v120 = vld [vmem:[%s116 + $0x8] sm:$0xff]
                %121 = vst [vmem:[%s117 + $0x8] sm:$0xff] %v120
                %v122 = vld [vmem:[%s116 + $0x20] sm:$0xff]
                %123 = vst [vmem:[%s117 + $0x10] sm:$0xff] %v122
                %v124 = vld [vmem:[%s116 + $0x28] sm:$0xff]
                %125 = vst [vmem:[%s117 + $0x18] sm:$0xff] %v124
                %v126 = vld [vmem:[%s116 + $0x40] sm:$0xff]
                %127 = vst [vmem:[%s117 + $0x20] sm:$0xff] %v126
                %v128 = vld [vmem:[%s116 + $0x48] sm:$0xff]
                %129 = vst [vmem:[%s117 + $0x28] sm:$0xff] %v128
                %v130 = vld [vmem:[%s116 + $0x60] sm:$0xff]
                %131 = vst [vmem:[%s117 + $0x30] sm:$0xff] %v130
                %v132 = vld [vmem:[%s116 + $0x68] sm:$0xff]
                %133 = vst [vmem:[%s117 + $0x38] sm:$0xff] %v132
              $region33: #{generator_forward.36} parent=27 // loop_footer
                %s115 = sadd.s32 1, %s111
              $region34: #{generator_forward.36} parent=27 // loop_footer_branch
                %110 = sbr.rel target = $region30
              $region35: #{generator_forward.36} parent=27 // loop_exit
                _
            $region28: #{generator_forward.36} parent=23 // pred_fallthru
              _
            // Predicated region
            $region36: #{generator_forward.36} parent=23 // pred_check
              _
            $region37: #{generator_forward.36} parent=23 // pred_check_branch
              %135 = sbr.rel target = $region39
            $region38: #{generator_forward.36} parent=23 // pred_region
              _
            $region39: #{generator_forward.36} parent=23 // pred_fallthru
              _
          $region24: #{generator_forward.36} parent=19 // pred_fallthru
            _
          %136 = vnop
        $region20: #{generator_forward.36} parent=15 // pred_fallthru
          _
      $region16: #{generator_forward.36} parent=5 // pred_fallthru
        _
      %p137 = scmp.le.s32.totalorder 1, %s9
      %p138 = scmp.lt.s32.totalorder %s9, 3
      %p139 = pnand %p137, %p138
      %p140 = pneg %p139
      // Predicated region
      $region40: #{generator_forward.36} parent=5 // pred_check
        _
      $region41: #{generator_forward.36} parent=5 // pred_check_branch
        %142 = sbr.rel (%p139) target = $region43
      $region42: #{generator_forward.36} parent=5 // pred_region
        %s143 = ssub.s32 %s9, 1
        %s144 = sand.u32 %s22, 1
        %s145 = sand.u32 %s22, 1
        %s146 = smul.addr %s145, 64
        %s147 = scalar_lea.vmem [#allocation2], %s146
        // Predicated region
        $region44: #{generator_forward.36} parent=42 // pred_check
          %p148 = pneg %p35
        $region45: #{generator_forward.36} parent=42 // pred_check_branch
          %150 = sbr.rel (%p148) target = $region47
        $region46: #{generator_forward.36} parent=42 // pred_region
          _
        $region47: #{generator_forward.36} parent=42 // pred_fallthru
          _
        %s151 = sand.u32 %s22, 1
        %s152 = sand.u32 %s22, 1
        %s153 = smul.addr %s152, 64
        %s154 = scalar_lea.vmem [#allocation2], %s153
        %p155 = pneg %p35
        %p156 = pneg %p32
        %p157 = pneg %p56
        %p158 = pneg %p53
        %p159 = pneg %p77
        %p160 = pneg %p74
        %s161 = smul.u32 2, %s14
        %p162 = scmp.eq.s32.totalorder %s14, 0
        // Predicated region
        $region48: #{generator_forward.36} parent=42 // pred_check
          %p163 = pneg %p162
        $region49: #{generator_forward.36} parent=42 // pred_check_branch
          %165 = sbr.rel (%p163) target = $region51
        $region50: #{generator_forward.36} parent=42 // pred_region
          %vm166 = vcmask 7168
          %167 = vst.msk [vmem:[%s1] sm:$0xff] %vm166, 0.0
          %168 = vst.msk [vmem:[%s1 + $0x8] sm:$0xff] %vm166, 0.0
          %169 = vst.msk [vmem:[%s1 + $0x10] sm:$0xff] %vm166, 0.0
          %170 = vst.msk [vmem:[%s1 + $0x18] sm:$0xff] %vm166, 0.0
          %171 = vst.msk [vmem:[%s2] sm:$0xff] %vm166, 0.0
          %172 = vst.msk [vmem:[%s2 + $0x8] sm:$0xff] %vm166, 0.0
          %173 = vst.msk [vmem:[%s2 + $0x10] sm:$0xff] %vm166, 0.0
          %174 = vst.msk [vmem:[%s2 + $0x18] sm:$0xff] %vm166, 0.0
        $region51: #{generator_forward.36} parent=42 // pred_fallthru
          _
        %v175 = vld [vmem:[%s147] sm:$0xff]
        %v176 = vld [vmem:[%s147 + $0x8] sm:$0xff]
        %v177 = vld [vmem:[%s147 + $0x10] sm:$0xff]
        %v178 = vld [vmem:[%s147 + $0x18] sm:$0xff]
        %v179 = vld [vmem:[%s147 + $0x20] sm:$0xff]
        %v180 = vld [vmem:[%s147 + $0x28] sm:$0xff]
        %v181 = vld [vmem:[%s147 + $0x30] sm:$0xff]
        %v182 = vld [vmem:[%s147 + $0x38] sm:$0xff]
        %v183 = vld [vmem:[%s1] sm:$0xff]
        %v184 = vld [vmem:[%s1 + $0x8] sm:$0xff]
        %v185 = vld [vmem:[%s1 + $0x10] sm:$0xff]
        %v186 = vld [vmem:[%s1 + $0x18] sm:$0xff]
        %v187 = vadd.f32 %v175, %v176
        %188 = vadd.xlane.f32.xlu0 %v187
        %v189 = vpop.xlane.xlu0 %188
        %v190 = vadd.f32 %v177, %v178
        %191 = vadd.xlane.f32.xlu0 %v190
        %v192 = vpop.xlane.xlu0 %191
        %v193 = vadd.f32 %v179, %v180
        %194 = vadd.xlane.f32.xlu0 %v193
        %v195 = vpop.xlane.xlu0 %194
        %v196 = vadd.f32 %v181, %v182
        %197 = vadd.xlane.f32.xlu0 %v196
        %v198 = vpop.xlane.xlu0 %197
        %v199 = vadd.f32 %v183, %v189
        %v200 = vadd.f32 %v184, %v192
        %v201 = vadd.f32 %v185, %v195
        %v202 = vadd.f32 %v186, %v198
        %vm203 = vcmask 7168
        %204 = vst.msk [vmem:[%s1] sm:$0xff] %vm203, %v199
        %205 = vst.msk [vmem:[%s1 + $0x8] sm:$0xff] %vm203, %v200
        %206 = vst.msk [vmem:[%s1 + $0x10] sm:$0xff] %vm203, %v201
        %207 = vst.msk [vmem:[%s1 + $0x18] sm:$0xff] %vm203, %v202
        %v208 = vld [vmem:[%s2] sm:$0xff]
        %v209 = vld [vmem:[%s2 + $0x8] sm:$0xff]
        %v210 = vld [vmem:[%s2 + $0x10] sm:$0xff]
        %v211 = vld [vmem:[%s2 + $0x18] sm:$0xff]
        %v212 = vmul.f32 %v175, %v175
        %v213 = vmul.f32 %v176, %v176
        %v214 = vmul.f32 %v177, %v177
        %v215 = vmul.f32 %v178, %v178
        %v216 = vmul.f32 %v179, %v179
        %v217 = vmul.f32 %v180, %v180
        %v218 = vmul.f32 %v181, %v181
        %v219 = vmul.f32 %v182, %v182
        %v220 = vadd.f32 %v212, %v213
        %221 = vadd.xlane.f32.xlu0 %v220
        %v222 = vpop.xlane.xlu0 %221
        %v223 = vadd.f32 %v214, %v215
        %224 = vadd.xlane.f32.xlu0 %v223
        %v225 = vpop.xlane.xlu0 %224
        %v226 = vadd.f32 %v216, %v217
        %227 = vadd.xlane.f32.xlu0 %v226
        %v228 = vpop.xlane.xlu0 %227
        %v229 = vadd.f32 %v218, %v219
        %230 = vadd.xlane.f32.xlu0 %v229
        %v231 = vpop.xlane.xlu0 %230
        %v232 = vadd.f32 %v208, %v222
        %v233 = vadd.f32 %v209, %v225
        %v234 = vadd.f32 %v210, %v228
        %v235 = vadd.f32 %v211, %v231
        %236 = vst.msk [vmem:[%s2] sm:$0xff] %vm203, %v232
        %237 = vst.msk [vmem:[%s2 + $0x8] sm:$0xff] %vm203, %v233
        %238 = vst.msk [vmem:[%s2 + $0x10] sm:$0xff] %vm203, %v234
        %239 = vst.msk [vmem:[%s2 + $0x18] sm:$0xff] %vm203, %v235
        // Predicated region
        $region52: #{generator_forward.36} parent=42 // pred_check
          %p240 = pneg %p53
        $region53: #{generator_forward.36} parent=42 // pred_check_branch
          %242 = sbr.rel (%p240) target = $region55
        $region54: #{generator_forward.36} parent=42 // pred_region
          _
        $region55: #{generator_forward.36} parent=42 // pred_fallthru
          _
        // Predicated region
        $region56: #{generator_forward.36} parent=42 // pred_check
          %p243 = pneg %p74
        $region57: #{generator_forward.36} parent=42 // pred_check_branch
          %245 = sbr.rel (%p243) target = $region59
        $region58: #{generator_forward.36} parent=42 // pred_region
          _
        $region59: #{generator_forward.36} parent=42 // pred_fallthru
          _
        // Predicated region
        $region60: #{generator_forward.36} parent=42 // pred_check
          %p246 = pneg %p53
        $region61: #{generator_forward.36} parent=42 // pred_check_branch
          %248 = sbr.rel (%p246) target = $region63
        $region62: #{generator_forward.36} parent=42 // pred_region
          _
        $region63: #{generator_forward.36} parent=42 // pred_fallthru
          _
        // Predicated region
        $region64: #{generator_forward.36} parent=42 // pred_check
          %p249 = pneg %p74
        $region65: #{generator_forward.36} parent=42 // pred_check_branch
          %251 = sbr.rel (%p249) target = $region67
        $region66: #{generator_forward.36} parent=42 // pred_region
          _
        $region67: #{generator_forward.36} parent=42 // pred_fallthru
          _
      $region43: #{generator_forward.36} parent=5 // pred_fallthru
        _
      %p252 = scmp.le.s32.totalorder 2, %s9
      // Predicated region
      $region68: #{generator_forward.36} parent=5 // pred_check
        %p253 = pneg %p252
      $region69: #{generator_forward.36} parent=5 // pred_check_branch
        %255 = sbr.rel (%p253) target = $region71
      $region70: #{generator_forward.36} parent=5 // pred_region
        %s256 = ssub.s32 %s9, 2
      $region71: #{generator_forward.36} parent=5 // pred_fallthru
        _
    $region6: #{generator_forward.36} parent=1 // loop_footer
      %s13 = sadd.s32 1, %s9
    $region7: #{generator_forward.36} parent=1 // loop_footer_branch
      %8 = sbr.rel target = $region3
    $region8: #{generator_forward.36} parent=1 // loop_exit
      _

// kernel: generator_forward.37
$region0: #{generator_forward.37}
  #allocation0 [shape = 'u32[]', space=smem, size = 0x4, offset = 0x4, fixed_abs, tag = 'smem constant byte address 0x4 - core index']
  #allocation1 [shape = 'u32[144,128]{1,0:T(1,128)}', space=vmem, size = 0x12000, scoped, tag = 'internal scratch']
  %s0 = inlined_call_operand.vmem [shape: f32[32,512], index: 0, kind: input, shape index: {}]
  %s1 = inlined_call_operand.vmem [shape: f32[32,1], index: 1, kind: input, shape index: {}]
  %s2 = inlined_call_operand.vmem [shape: f32[32,1], index: 2, kind: input, shape index: {}]
  %s3 = inlined_call_operand.vmem [shape: bf16[32,512], index: 3, kind: output, shape index: {}]
  %s4 = sld [smem:[#allocation0]]
  $region102: #{generator_forward.37} parent=0
    _
  %s6 = ssub.s32 1, %s4
  %s7 = scalar_select 0, %s6, %s4
  $region1: #{generator_forward.37} parent=0
    #allocation2 [shape = 'u8[65536]{0}', space=vmem, size = 0x10000, scoped, tag = 'input window, operand 0']
    #allocation3 [shape = 'u8[32768]{0}', space=vmem, size = 0x8000, scoped, tag = 'output window, operand 0']
    loop: start=0, step=1, limit=4
    $region2: #{generator_forward.37} parent=1 // loop_pre_header
      _
    $region3: #{generator_forward.37} parent=1 // loop_header
      %s9 = sphi 0, %s13
      %p10 = scmp.ge.s32.totalorder %s9, 4
      %s19 = sphi 0, %s21
      %s22 = sphi 0, %s19
      %s23 = sphi 0, %s22
      %s39 = sphi 0, %s23
      %s43 = sphi 0, %s43
      %s45 = sphi 0, %s43
      %s46 = sphi 0, %s45
      %s60 = sphi 0, %s46
      %s64 = sphi 0, %s64
      %s66 = sphi 0, %s64
      %s67 = sphi 0, %s66
      %s81 = sphi 0, %s67
      %s87 = sphi 0, %s89
      %s90 = sphi 0, %s87
      %s91 = sphi 0, %s90
      %s107 = sphi 0, %s91
    $region4: #{generator_forward.37} parent=1 // loop_header_branch
      %12 = sbr.rel (%p10) target = $region8
    $region5: #{generator_forward.37} parent=1 // loop_body
      %s14 = ssub.s32 %s9, 1
      %s15 = ssub.s32 %s9, 2
      %s16 = sadd.s32 %s9, 1
      %s17 = ssub.s32 %s9, %s16
      %p18 = scmp.eq.s32.totalorder %s17, 0
      %s20 = sadd.s32 %s19, 1
      %s21 = scalar_select %p18, %s19, %s20
      %p24 = pneg %p18
      %p25 = scmp.eq.s32.totalorder %s9, 1
      %p26 = por %p24, %p25
      %p27 = scmp.ne.s32.totalorder %s19, %s22
      %p28 = scmp.eq.s32.totalorder %s9, 0
      %p29 = por %p27, %p28
      %p30 = scmp.ne.s32.totalorder %s19, %s22
      %p31 = scmp.eq.s32.totalorder %s14, 1
      %p32 = por %p30, %p31
      %p33 = scmp.ne.s32.totalorder %s22, %s23
      %p34 = scmp.eq.s32.totalorder %s14, 0
      %p35 = por %p33, %p34
      %p36 = scmp.ne.s32.totalorder %s22, %s23
      %p37 = scmp.eq.s32.totalorder %s15, 1
      %p38 = por %p36, %p37
      %p40 = scmp.ne.s32.totalorder %s23, %s39
      %p41 = scmp.eq.s32.totalorder %s15, 0
      %p42 = por %p40, %p41
      %s44 = sadd.s32 %s43, 1
      %p47 = scmp.eq.s32.totalorder %s9, 1
      %p48 = scmp.ne.s32.totalorder %s43, %s45
      %p49 = scmp.eq.s32.totalorder %s9, 0
      %p50 = por %p48, %p49
      %p51 = scmp.ne.s32.totalorder %s43, %s45
      %p52 = scmp.eq.s32.totalorder %s14, 1
      %p53 = por %p51, %p52
      %p54 = scmp.ne.s32.totalorder %s45, %s46
      %p55 = scmp.eq.s32.totalorder %s14, 0
      %p56 = por %p54, %p55
      %p57 = scmp.ne.s32.totalorder %s45, %s46
      %p58 = scmp.eq.s32.totalorder %s15, 1
      %p59 = por %p57, %p58
      %p61 = scmp.ne.s32.totalorder %s46, %s60
      %p62 = scmp.eq.s32.totalorder %s15, 0
      %p63 = por %p61, %p62
      %s65 = sadd.s32 %s64, 1
      %p68 = scmp.eq.s32.totalorder %s9, 1
      %p69 = scmp.ne.s32.totalorder %s64, %s66
      %p70 = scmp.eq.s32.totalorder %s9, 0
      %p71 = por %p69, %p70
      %p72 = scmp.ne.s32.totalorder %s64, %s66
      %p73 = scmp.eq.s32.totalorder %s14, 1
      %p74 = por %p72, %p73
      %p75 = scmp.ne.s32.totalorder %s66, %s67
      %p76 = scmp.eq.s32.totalorder %s14, 0
      %p77 = por %p75, %p76
      %p78 = scmp.ne.s32.totalorder %s66, %s67
      %p79 = scmp.eq.s32.totalorder %s15, 1
      %p80 = por %p78, %p79
      %p82 = scmp.ne.s32.totalorder %s67, %s81
      %p83 = scmp.eq.s32.totalorder %s15, 0
      %p84 = por %p82, %p83
      %s85 = ssub.s32 %s9, %s16
      %p86 = scmp.eq.s32.totalorder %s85, 0
      %s88 = sadd.s32 %s87, 1
      %s89 = scalar_select %p86, %s87, %s88
      %p92 = pneg %p86
      %p93 = scmp.eq.s32.totalorder %s9, 1
      %p94 = por %p92, %p93
      %p95 = scmp.ne.s32.totalorder %s87, %s90
      %p96 = scmp.eq.s32.totalorder %s9, 0
      %p97 = por %p95, %p96
      %p98 = scmp.ne.s32.totalorder %s87, %s90
      %p99 = scmp.eq.s32.totalorder %s14, 1
      %p100 = por %p98, %p99
      %p101 = scmp.ne.s32.totalorder %s90, %s91
      %p102 = scmp.eq.s32.totalorder %s14, 0
      %p103 = por %p101, %p102
      %p104 = scmp.ne.s32.totalorder %s90, %s91
      %p105 = scmp.eq.s32.totalorder %s15, 1
      %p106 = por %p104, %p105
      %p108 = scmp.ne.s32.totalorder %s91, %s107
      %p109 = scmp.eq.s32.totalorder %s15, 0
      %p110 = por %p108, %p109
      %p111 = scmp.le.s32.totalorder 1, %s9
      %p112 = scmp.lt.s32.totalorder %s9, 3
      %p113 = pnand %p111, %p112
      %p114 = pneg %p113
      // Predicated region
      $region9: #{generator_forward.37} parent=5 // pred_check
        _
      $region10: #{generator_forward.37} parent=5 // pred_check_branch
        %116 = sbr.rel (%p113) target = $region12
      $region11: #{generator_forward.37} parent=5 // pred_region
        %s117 = ssub.s32 %s9, 1
        // Predicated region
        $region13: #{generator_forward.37} parent=11 // pred_check
          %p118 = pneg %p56
        $region14: #{generator_forward.37} parent=11 // pred_check_branch
          %120 = sbr.rel (%p118) target = $region16
        $region15: #{generator_forward.37} parent=11 // pred_region
          _
        $region16: #{generator_forward.37} parent=11 // pred_fallthru
          _
        // Predicated region
        $region17: #{generator_forward.37} parent=11 // pred_check
          %p121 = pneg %p77
        $region18: #{generator_forward.37} parent=11 // pred_check_branch
          %123 = sbr.rel (%p121) target = $region20
        $region19: #{generator_forward.37} parent=11 // pred_region
          _
        $region20: #{generator_forward.37} parent=11 // pred_fallthru
          _
      $region12: #{generator_forward.37} parent=5 // pred_fallthru
        _
      %p124 = scmp.lt.s32.totalorder %s9, 2
      // Predicated region
      $region21: #{generator_forward.37} parent=5 // pred_check
        %p125 = pneg %p124
      $region22: #{generator_forward.37} parent=5 // pred_check_branch
        %127 = sbr.rel (%p125) target = $region24
      $region23: #{generator_forward.37} parent=5 // pred_region
        // Predicated region
        $region25: #{generator_forward.37} parent=23 // pred_check
          %p128 = pneg %p29
        $region26: #{generator_forward.37} parent=23 // pred_check_branch
          %130 = sbr.rel (%p128) target = $region28
        $region27: #{generator_forward.37} parent=23 // pred_region
          %s131 = sand.u32 %s19, 1
          %s132 = sand.u32 %s19, 1
          %s133 = smul.addr %s132, 64
          %s134 = scalar_lea.vmem [#allocation2], %s133
          %s135 = smul.u32 2, %s9
          %s136 = smul.addr %s135, 8
          %s137 = scalar_lea.vmem %s0, %s136
          // Predicated region
          $region29: #{generator_forward.37} parent=27 // pred_check
            _
          $region30: #{generator_forward.37} parent=27 // pred_check_branch
            %139 = sbr.rel (0) target = $region32
          $region31: #{generator_forward.37} parent=27 // pred_region
            // Predicated region
            $region33: #{generator_forward.37} parent=31 // pred_check
              _
            $region34: #{generator_forward.37} parent=31 // pred_check_branch
              %141 = sbr.rel (0) target = $region36
            $region35: #{generator_forward.37} parent=31 // pred_region
              loop: start=0, step=1, limit=1
              $region37: #{generator_forward.37} parent=35 // loop_pre_header
                _
              $region38: #{generator_forward.37} parent=35 // loop_header
                %s143 = sphi 0, %s147
                %p144 = scmp.ge.s32.totalorder %s143, 1
                %s148 = sphi %s137, %s137
                %s149 = sphi %s134, %s134
              $region39: #{generator_forward.37} parent=35 // loop_header_branch
                %146 = sbr.rel (%p144) target = $region43
              $region40: #{generator_forward.37} parent=35 // loop_body
                %v150 = vld [vmem:[%s148] sm:$0xff]
                %151 = vst [vmem:[%s149] sm:$0xff] %v150
                %v152 = vld [vmem:[%s148 + $0x8] sm:$0xff]
                %153 = vst [vmem:[%s149 + $0x8] sm:$0xff] %v152
                %v154 = vld [vmem:[%s148 + $0x20] sm:$0xff]
                %155 = vst [vmem:[%s149 + $0x10] sm:$0xff] %v154
                %v156 = vld [vmem:[%s148 + $0x28] sm:$0xff]
                %157 = vst [vmem:[%s149 + $0x18] sm:$0xff] %v156
                %v158 = vld [vmem:[%s148 + $0x40] sm:$0xff]
                %159 = vst [vmem:[%s149 + $0x20] sm:$0xff] %v158
                %v160 = vld [vmem:[%s148 + $0x48] sm:$0xff]
                %161 = vst [vmem:[%s149 + $0x28] sm:$0xff] %v160
                %v162 = vld [vmem:[%s148 + $0x60] sm:$0xff]
                %163 = vst [vmem:[%s149 + $0x30] sm:$0xff] %v162
                %v164 = vld [vmem:[%s148 + $0x68] sm:$0xff]
                %165 = vst [vmem:[%s149 + $0x38] sm:$0xff] %v164
              $region41: #{generator_forward.37} parent=35 // loop_footer
                %s147 = sadd.s32 1, %s143
              $region42: #{generator_forward.37} parent=35 // loop_footer_branch
                %142 = sbr.rel target = $region38
              $region43: #{generator_forward.37} parent=35 // loop_exit
                _
            $region36: #{generator_forward.37} parent=31 // pred_fallthru
              _
            // Predicated region
            $region44: #{generator_forward.37} parent=31 // pred_check
              _
            $region45: #{generator_forward.37} parent=31 // pred_check_branch
              %167 = sbr.rel target = $region47
            $region46: #{generator_forward.37} parent=31 // pred_region
              _
            $region47: #{generator_forward.37} parent=31 // pred_fallthru
              _
          $region32: #{generator_forward.37} parent=27 // pred_fallthru
            _
          %168 = vnop
        $region28: #{generator_forward.37} parent=23 // pred_fallthru
          _
      $region24: #{generator_forward.37} parent=5 // pred_fallthru
        _
      %p169 = scmp.le.s32.totalorder 1, %s9
      %p170 = scmp.lt.s32.totalorder %s9, 3
      %p171 = pnand %p169, %p170
      %p172 = pneg %p171
      // Predicated region
      $region48: #{generator_forward.37} parent=5 // pred_check
        _
      $region49: #{generator_forward.37} parent=5 // pred_check_branch
        %174 = sbr.rel (%p171) target = $region51
      $region50: #{generator_forward.37} parent=5 // pred_region
        %s175 = ssub.s32 %s9, 1
        %s176 = sand.u32 %s22, 1
        %s177 = sand.u32 %s22, 1
        %s178 = smul.addr %s177, 64
        %s179 = scalar_lea.vmem [#allocation2], %s178
        // Predicated region
        $region52: #{generator_forward.37} parent=50 // pred_check
          %p180 = pneg %p35
        $region53: #{generator_forward.37} parent=50 // pred_check_branch
          %182 = sbr.rel (%p180) target = $region55
        $region54: #{generator_forward.37} parent=50 // pred_region
          _
        $region55: #{generator_forward.37} parent=50 // pred_fallthru
          _
        %s183 = sand.u32 %s22, 1
        %s184 = sand.u32 %s22, 1
        %s185 = smul.addr %s184, 64
        %s186 = scalar_lea.vmem [#allocation2], %s185
        %p187 = pneg %p35
        %p188 = pneg %p32
        %p189 = pneg %p56
        %p190 = pneg %p53
        %p191 = pneg %p77
        %p192 = pneg %p74
        %p193 = pneg %p103
        %p194 = pneg %p100
        %s195 = sand.u32 %s90, 1
        %s196 = sand.u32 %s90, 1
        %s197 = smul.addr %s196, 32
        %s198 = scalar_lea.vmem [#allocation3], %s197
        %s199 = smul.u32 2, %s14
        %s200 = smul.u32 2, %s14
        %v201 = vld [vmem:[%s179] sm:$0xff]
        %v202 = vld [vmem:[%s179 + $0x8] sm:$0xff]
        %v203 = vld [vmem:[%s179 + $0x10] sm:$0xff]
        %v204 = vld [vmem:[%s179 + $0x18] sm:$0xff]
        %v205 = vld [vmem:[%s179 + $0x20] sm:$0xff]
        %v206 = vld [vmem:[%s179 + $0x28] sm:$0xff]
        %v207 = vld [vmem:[%s179 + $0x30] sm:$0xff]
        %v208 = vld [vmem:[%s179 + $0x38] sm:$0xff]
        %v209 = vld [vmem:[%s1] sm:$0xff]
        %v210 = vld [vmem:[%s1 + $0x8] sm:$0xff]
        %v211 = vld [vmem:[%s1 + $0x10] sm:$0xff]
        %v212 = vld [vmem:[%s1 + $0x18] sm:$0xff]
        %214 = vset.pattern.permute.xlu0 0
        %215 = vperm.xlu0 %214, %v209
        %v216 = vpop.permute.xlu0 %215
        %219 = vset.pattern.permute.xlu0 0
        %220 = vperm.xlu0 %219, %v210
        %v221 = vpop.permute.xlu0 %220
        %224 = vset.pattern.permute.xlu0 0
        %225 = vperm.xlu0 %224, %v211
        %v226 = vpop.permute.xlu0 %225
        %229 = vset.pattern.permute.xlu0 0
        %230 = vperm.xlu0 %229, %v212
        %v231 = vpop.permute.xlu0 %230
        %v233 = vmul.f32 %v201, %v216
        %v234 = vmul.f32 %v202, %v216
        %v235 = vmul.f32 %v203, %v221
        %v236 = vmul.f32 %v204, %v221
        %v237 = vmul.f32 %v205, %v226
        %v238 = vmul.f32 %v206, %v226
        %v239 = vmul.f32 %v207, %v231
        %v240 = vmul.f32 %v208, %v231
        %v241 = vld [vmem:[%s2] sm:$0xff]
        %v242 = vld [vmem:[%s2 + $0x8] sm:$0xff]
        %v243 = vld [vmem:[%s2 + $0x10] sm:$0xff]
        %v244 = vld [vmem:[%s2 + $0x18] sm:$0xff]
        %246 = vset.pattern.permute.xlu0 0
        %247 = vperm.xlu0 %246, %v241
        %v248 = vpop.permute.xlu0 %247
        %251 = vset.pattern.permute.xlu0 0
        %252 = vperm.xlu0 %251, %v242
        %v253 = vpop.permute.xlu0 %252
        %256 = vset.pattern.permute.xlu0 0
        %257 = vperm.xlu0 %256, %v243
        %v258 = vpop.permute.xlu0 %257
        %261 = vset.pattern.permute.xlu0 0
        %262 = vperm.xlu0 %261, %v244
        %v263 = vpop.permute.xlu0 %262
        %v265 = vadd.f32 %v233, %v248
        %v266 = vadd.f32 %v234, %v248
        %v267 = vadd.f32 %v235, %v253
        %v268 = vadd.f32 %v236, %v253
        %v269 = vadd.f32 %v237, %v258
        %v270 = vadd.f32 %v238, %v258
        %v271 = vadd.f32 %v239, %v263
        %v272 = vadd.f32 %v240, %v263
        %v273 = vmax.f32 %v265, 0.0
        %v274 = vmax.f32 %v266, 0.0
        %v275 = vmax.f32 %v267, 0.0
        %v276 = vmax.f32 %v268, 0.0
        %v277 = vmax.f32 %v269, 0.0
        %v278 = vmax.f32 %v270, 0.0
        %v279 = vmax.f32 %v271, 0.0
        %v280 = vmax.f32 %v272, 0.0
        %v281 = vpack.c.bf16 %v275, %v273
        %v282 = vpack.c.bf16 %v276, %v274
        %v283 = vpack.c.bf16 %v279, %v277
        %v284 = vpack.c.bf16 %v280, %v278
        %v289 = vunpack.c.l.b16 %v281
        %v290 = vunpack.c.l.b16 %v282
        %v291 = vunpack.c.h.b16 %v281
        %v292 = vunpack.c.h.b16 %v282
        %v293 = vunpack.c.l.b16 %v283
        %v294 = vunpack.c.l.b16 %v284
        %v295 = vunpack.c.h.b16 %v283
        %v296 = vunpack.c.h.b16 %v284
        %v297 = vpack.c.b16 %v290, %v289
        %v298 = vpack.c.b16 %v292, %v291
        %v299 = vpack.c.b16 %v294, %v293
        %v300 = vpack.c.b16 %v296, %v295
        %305 = vst [vmem:[%s198] sm:$0xff] %v297
        %306 = vst [vmem:[%s198 + $0x8] sm:$0xff] %v298
        %307 = vst [vmem:[%s198 + $0x10] sm:$0xff] %v299
        %308 = vst [vmem:[%s198 + $0x18] sm:$0xff] %v300
        %s309 = sand.u32 %s90, 1
        %s310 = sand.u32 %s90, 1
        %s311 = smul.addr %s310, 32
        %s312 = scalar_lea.vmem [#allocation3], %s311
        // Predicated region
        $region56: #{generator_forward.37} parent=50 // pred_check
          %p313 = pneg %p100
        $region57: #{generator_forward.37} parent=50 // pred_check_branch
          %315 = sbr.rel (%p313) target = $region59
        $region58: #{generator_forward.37} parent=50 // pred_region
          %s316 = smul.u32 2, %s14
          %s317 = smul.addr %s316, 4
          %s318 = scalar_lea.vmem %s3, %s317
          // Predicated region
          $region60: #{generator_forward.37} parent=58 // pred_check
            _
          $region61: #{generator_forward.37} parent=58 // pred_check_branch
            %320 = sbr.rel (0) target = $region63
          $region62: #{generator_forward.37} parent=58 // pred_region
            // Predicated region
            $region64: #{generator_forward.37} parent=62 // pred_check
              _
            $region65: #{generator_forward.37} parent=62 // pred_check_branch
              %322 = sbr.rel (0) target = $region67
            $region66: #{generator_forward.37} parent=62 // pred_region
              // Predicated region
              $region79: #{generator_forward.37} parent=66 // pred_check
                _
              $region80: #{generator_forward.37} parent=66 // pred_check_branch
                %343 = sbr.rel (0) target = $region82
              $region81: #{generator_forward.37} parent=66 // pred_region
                loop: start=0, step=1, limit=1
                $region83: #{generator_forward.37} parent=81 // loop_pre_header
                  _
                $region84: #{generator_forward.37} parent=81 // loop_header
                  %s345 = sphi 0, %s349
                  %p346 = scmp.ge.s32.totalorder %s345, 1
                  %s350 = sphi %s312, %s312
                  %s351 = sphi %s318, %s318
                $region85: #{generator_forward.37} parent=81 // loop_header_branch
                  %348 = sbr.rel (%p346) target = $region89
                $region86: #{generator_forward.37} parent=81 // loop_body
                  %v352 = vld [vmem:[%s350] sm:$0xff]
                  %353 = vst [vmem:[%s351] sm:$0xff] %v352
                  %v354 = vld [vmem:[%s350 + $0x8] sm:$0xff]
                  %355 = vst [vmem:[%s351 + $0x10] sm:$0xff] %v354
                  %v356 = vld [vmem:[%s350 + $0x10] sm:$0xff]
                  %357 = vst [vmem:[%s351 + $0x20] sm:$0xff] %v356
                  %v358 = vld [vmem:[%s350 + $0x18] sm:$0xff]
                  %359 = vst [vmem:[%s351 + $0x30] sm:$0xff] %v358
                $region87: #{generator_forward.37} parent=81 // loop_footer
                  %s349 = sadd.s32 1, %s345
                $region88: #{generator_forward.37} parent=81 // loop_footer_branch
                  %344 = sbr.rel target = $region84
                $region89: #{generator_forward.37} parent=81 // loop_exit
                  _
              $region82: #{generator_forward.37} parent=66 // pred_fallthru
                _
              // Predicated region
              $region90: #{generator_forward.37} parent=66 // pred_check
                _
              $region91: #{generator_forward.37} parent=66 // pred_check_branch
                %361 = sbr.rel target = $region93
              $region92: #{generator_forward.37} parent=66 // pred_region
                _
              $region93: #{generator_forward.37} parent=66 // pred_fallthru
                _
            $region67: #{generator_forward.37} parent=62 // pred_fallthru
              _
            // Predicated region
            $region68: #{generator_forward.37} parent=62 // pred_check
              _
            $region69: #{generator_forward.37} parent=62 // pred_check_branch
              %324 = sbr.rel target = $region71
            $region70: #{generator_forward.37} parent=62 // pred_region
              loop: start=0, step=1, limit=1
              $region72: #{generator_forward.37} parent=70 // loop_pre_header
                _
              $region73: #{generator_forward.37} parent=70 // loop_header
                %s327 = sphi 0, %s331
                %p328 = scmp.ge.s32.totalorder %s327, 1
                %s332 = sphi %s312, %s312
                %s333 = sphi %s318, %s318
              $region74: #{generator_forward.37} parent=70 // loop_header_branch
                %330 = sbr.rel (%p328) target = $region78
              $region75: #{generator_forward.37} parent=70 // loop_body
                %v334 = vld [vmem:[%s332] sm:$0xff]
                %335 = vst [vmem:[%s333] sm:$0xff] %v334
                %v336 = vld [vmem:[%s332 + $0x8] sm:$0xff]
                %337 = vst [vmem:[%s333 + $0x10] sm:$0xff] %v336
                %v338 = vld [vmem:[%s332 + $0x10] sm:$0xff]
                %339 = vst [vmem:[%s333 + $0x20] sm:$0xff] %v338
                %v340 = vld [vmem:[%s332 + $0x18] sm:$0xff]
                %341 = vst [vmem:[%s333 + $0x30] sm:$0xff] %v340
              $region76: #{generator_forward.37} parent=70 // loop_footer
                %s331 = sadd.s32 1, %s327
              $region77: #{generator_forward.37} parent=70 // loop_footer_branch
                %326 = sbr.rel target = $region73
              $region78: #{generator_forward.37} parent=70 // loop_exit
                _
            $region71: #{generator_forward.37} parent=62 // pred_fallthru
              _
          $region63: #{generator_forward.37} parent=58 // pred_fallthru
            _
          %362 = vnop
        $region59: #{generator_forward.37} parent=50 // pred_fallthru
          _
      $region51: #{generator_forward.37} parent=5 // pred_fallthru
        _
      %p363 = scmp.le.s32.totalorder 2, %s9
      // Predicated region
      $region94: #{generator_forward.37} parent=5 // pred_check
        %p364 = pneg %p363
      $region95: #{generator_forward.37} parent=5 // pred_check_branch
        %366 = sbr.rel (%p364) target = $region97
      $region96: #{generator_forward.37} parent=5 // pred_region
        %s367 = ssub.s32 %s9, 2
        // Predicated region
        $region98: #{generator_forward.37} parent=96 // pred_check
          %p368 = pneg %p106
        $region99: #{generator_forward.37} parent=96 // pred_check_branch
          %370 = sbr.rel (%p368) target = $region101
        $region100: #{generator_forward.37} parent=96 // pred_region
          %s371 = sand.u32 %s91, 1
          %s372 = sand.u32 %s91, 1
          %s373 = smul.addr %s372, 32
          %s374 = scalar_lea.vmem [#allocation3], %s373
        $region101: #{generator_forward.37} parent=96 // pred_fallthru
          _
      $region97: #{generator_forward.37} parent=5 // pred_fallthru
        _
    $region6: #{generator_forward.37} parent=1 // loop_footer
      %s13 = sadd.s32 1, %s9
    $region7: #{generator_forward.37} parent=1 // loop_footer_branch
      %8 = sbr.rel target = $region3
    $region8: #{generator_forward.37} parent=1 // loop_exit
      _

// kernel: generator_forward.38
$region0: #{generator_forward.38}
  #allocation0 [shape = 'u32[]', space=smem, size = 0x4, offset = 0x4, fixed_abs, tag = 'smem constant byte address 0x4 - core index']
  #allocation1 [shape = 'u32[144,128]{1,0:T(1,128)}', space=vmem, size = 0x12000, scoped, tag = 'internal scratch']
  %s0 = inlined_call_operand.vmem [shape: bf16[16,288], index: 0, kind: input, shape index: {}]
  %s1 = inlined_call_operand.vmem [shape: bf16[288,512], index: 1, kind: input, shape index: {}]
  %s2 = inlined_call_operand.vmem [shape: f32[16,512], index: 2, kind: output, shape index: {}]
  %s3 = sld [smem:[#allocation0]]
  $region98: #{generator_forward.38} parent=0
    _
  %s5 = ssub.s32 1, %s3
  %s6 = scalar_select 0, %s5, %s3
  $region1: #{generator_forward.38} parent=0
    #allocation2 [shape = 'u8[294912]{0}', space=vmem, size = 0x48000, scoped, tag = 'input window, operand 1']
    #allocation3 [shape = 'u8[32768]{0}', space=vmem, size = 0x8000, scoped, tag = 'output window, operand 0']
    loop: start=0, step=1, limit=4
    $region2: #{generator_forward.38} parent=1 // loop_pre_header
      _
    $region3: #{generator_forward.38} parent=1 // loop_header
      %s8 = sphi 0, %s12
      %p9 = scmp.ge.s32.totalorder %s8, 4
      %s16 = sphi 0, %s16
      %s18 = sphi 0, %s16
      %s19 = sphi 0, %s18
      %s33 = sphi 0, %s19
      %s39 = sphi 0, %s41
      %s42 = sphi 0, %s39
      %s43 = sphi 0, %s42
      %s59 = sphi 0, %s43
      %s65 = sphi 0, %s67
      %s68 = sphi 0, %s65
      %s69 = sphi 0, %s68
      %s85 = sphi 0, %s69
    $region4: #{generator_forward.38} parent=1 // loop_header_branch
      %11 = sbr.rel (%p9) target = $region8
    $region5: #{generator_forward.38} parent=1 // loop_body
      %s13 = ssub.s32 %s8, 1
      %s14 = ssub.s32 %s8, 2
      %s15 = sadd.s32 %s8, 1
      %s17 = sadd.s32 %s16, 1
      %p20 = scmp.eq.s32.totalorder %s8, 1
      %p21 = scmp.ne.s32.totalorder %s16, %s18
      %p22 = scmp.eq.s32.totalorder %s8, 0
      %p23 = por %p21, %p22
      %p24 = scmp.ne.s32.totalorder %s16, %s18
      %p25 = scmp.eq.s32.totalorder %s13, 1
      %p26 = por %p24, %p25
      %p27 = scmp.ne.s32.totalorder %s18, %s19
      %p28 = scmp.eq.s32.totalorder %s13, 0
      %p29 = por %p27, %p28
      %p30 = scmp.ne.s32.totalorder %s18, %s19
      %p31 = scmp.eq.s32.totalorder %s14, 1
      %p32 = por %p30, %p31
      %p34 = scmp.ne.s32.totalorder %s19, %s33
      %p35 = scmp.eq.s32.totalorder %s14, 0
      %p36 = por %p34, %p35
      %s37 = ssub.s32 %s8, %s15
      %p38 = scmp.eq.s32.totalorder %s37, 0
      %s40 = sadd.s32 %s39, 1
      %s41 = scalar_select %p38, %s39, %s40
      %p44 = pneg %p38
      %p45 = scmp.eq.s32.totalorder %s8, 1
      %p46 = por %p44, %p45
      %p47 = scmp.ne.s32.totalorder %s39, %s42
      %p48 = scmp.eq.s32.totalorder %s8, 0
      %p49 = por %p47, %p48
      %p50 = scmp.ne.s32.totalorder %s39, %s42
      %p51 = scmp.eq.s32.totalorder %s13, 1
      %p52 = por %p50, %p51
      %p53 = scmp.ne.s32.totalorder %s42, %s43
      %p54 = scmp.eq.s32.totalorder %s13, 0
      %p55 = por %p53, %p54
      %p56 = scmp.ne.s32.totalorder %s42, %s43
      %p57 = scmp.eq.s32.totalorder %s14, 1
      %p58 = por %p56, %p57
      %p60 = scmp.ne.s32.totalorder %s43, %s59
      %p61 = scmp.eq.s32.totalorder %s14, 0
      %p62 = por %p60, %p61
      %s63 = ssub.s32 %s8, %s15
      %p64 = scmp.eq.s32.totalorder %s63, 0
      %s66 = sadd.s32 %s65, 1
      %s67 = scalar_select %p64, %s65, %s66
      %p70 = pneg %p64
      %p71 = scmp.eq.s32.totalorder %s8, 1
      %p72 = por %p70, %p71
      %p73 = scmp.ne.s32.totalorder %s65, %s68
      %p74 = scmp.eq.s32.totalorder %s8, 0
      %p75 = por %p73, %p74
      %p76 = scmp.ne.s32.totalorder %s65, %s68
      %p77 = scmp.eq.s32.totalorder %s13, 1
      %p78 = por %p76, %p77
      %p79 = scmp.ne.s32.totalorder %s68, %s69
      %p80 = scmp.eq.s32.totalorder %s13, 0
      %p81 = por %p79, %p80
      %p82 = scmp.ne.s32.totalorder %s68, %s69
      %p83 = scmp.eq.s32.totalorder %s14, 1
      %p84 = por %p82, %p83
      %p86 = scmp.ne.s32.totalorder %s69, %s85
      %p87 = scmp.eq.s32.totalorder %s14, 0
      %p88 = por %p86, %p87
      %p89 = scmp.le.s32.totalorder 1, %s8
      %p90 = scmp.lt.s32.totalorder %s8, 3
      %p91 = pnand %p89, %p90
      %p92 = pneg %p91
      // Predicated region
      $region9: #{generator_forward.38} parent=5 // pred_check
        _
      $region10: #{generator_forward.38} parent=5 // pred_check_branch
        %94 = sbr.rel (%p91) target = $region12
      $region11: #{generator_forward.38} parent=5 // pred_region
        %s95 = ssub.s32 %s8, 1
        // Predicated region
        $region13: #{generator_forward.38} parent=11 // pred_check
          %p96 = pneg %p29
        $region14: #{generator_forward.38} parent=11 // pred_check_branch
          %98 = sbr.rel (%p96) target = $region16
        $region15: #{generator_forward.38} parent=11 // pred_region
          _
        $region16: #{generator_forward.38} parent=11 // pred_fallthru
          _
      $region12: #{generator_forward.38} parent=5 // pred_fallthru
        _
      %p99 = scmp.lt.s32.totalorder %s8, 2
      // Predicated region
      $region17: #{generator_forward.38} parent=5 // pred_check
        %p100 = pneg %p99
      $region18: #{generator_forward.38} parent=5 // pred_check_branch
        %102 = sbr.rel (%p100) target = $region20
      $region19: #{generator_forward.38} parent=5 // pred_region
        // Predicated region
        $region21: #{generator_forward.38} parent=19 // pred_check
          %p103 = pneg %p49
        $region22: #{generator_forward.38} parent=19 // pred_check_branch
          %105 = sbr.rel (%p103) target = $region24
        $region23: #{generator_forward.38} parent=19 // pred_region
          %s106 = sand.u32 %s39, 1
          %s107 = sand.u32 %s39, 1
          %s108 = smul.addr %s107, 288
          %s109 = scalar_lea.vmem [#allocation2], %s108
          %s110 = smul.u32 2, %s8
          %s111 = smul.addr %s110, 4
          %s112 = scalar_lea.vmem %s1, %s111
          // Predicated region
          $region25: #{generator_forward.38} parent=23 // pred_check
            _
          $region26: #{generator_forward.38} parent=23 // pred_check_branch
            %114 = sbr.rel (0) target = $region28
          $region27: #{generator_forward.38} parent=23 // pred_region
            // Predicated region
            $region29: #{generator_forward.38} parent=27 // pred_check
              _
            $region30: #{generator_forward.38} parent=27 // pred_check_branch
              %116 = sbr.rel (0) target = $region32
            $region31: #{generator_forward.38} parent=27 // pred_region
              // Predicated region
              $region44: #{generator_forward.38} parent=31 // pred_check
                _
              $region45: #{generator_forward.38} parent=31 // pred_check_branch
                %201 = sbr.rel (0) target = $region47
              $region46: #{generator_forward.38} parent=31 // pred_region
                loop: start=0, step=1, limit=1
                $region48: #{generator_forward.38} parent=46 // loop_pre_header
                  _
                $region49: #{generator_forward.38} parent=46 // loop_header
                  %s203 = sphi 0, %s207
                  %p204 = scmp.ge.s32.totalorder %s203, 1
                  %s208 = sphi %s112, %s112
                  %s209 = sphi %s109, %s109
                $region50: #{generator_forward.38} parent=46 // loop_header_branch
                  %206 = sbr.rel (%p204) target = $region54
                $region51: #{generator_forward.38} parent=46 // loop_body
                  %v210 = vld [vmem:[%s208] sm:$0xff]
                  %211 = vst [vmem:[%s209] sm:$0xff] %v210
                  %v212 = vld [vmem:[%s208 + $0x10] sm:$0xff]
                  %213 = vst [vmem:[%s209 + $0x8] sm:$0xff] %v212
                  %v214 = vld [vmem:[%s208 + $0x20] sm:$0xff]
                  %215 = vst [vmem:[%s209 + $0x10] sm:$0xff] %v214
                  %v216 = vld [vmem:[%s208 + $0x30] sm:$0xff]
                  %217 = vst [vmem:[%s209 + $0x18] sm:$0xff] %v216
                  %v218 = vld [vmem:[%s208 + $0x40] sm:$0xff]
                  %219 = vst [vmem:[%s209 + $0x20] sm:$0xff] %v218
                  %v220 = vld [vmem:[%s208 + $0x50] sm:$0xff]
                  %221 = vst [vmem:[%s209 + $0x28] sm:$0xff] %v220
                  %v222 = vld [vmem:[%s208 + $0x60] sm:$0xff]
                  %223 = vst [vmem:[%s209 + $0x30] sm:$0xff] %v222
                  %v224 = vld [vmem:[%s208 + $0x70] sm:$0xff]
                  %225 = vst [vmem:[%s209 + $0x38] sm:$0xff] %v224
                  %v226 = vld [vmem:[%s208 + $0x80] sm:$0xff]
                  %227 = vst [vmem:[%s209 + $0x40] sm:$0xff] %v226
                  %v228 = vld [vmem:[%s208 + $0x90] sm:$0xff]
                  %229 = vst [vmem:[%s209 + $0x48] sm:$0xff] %v228
                  %v230 = vld [vmem:[%s208 + $0xa0] sm:$0xff]
                  %231 = vst [vmem:[%s209 + $0x50] sm:$0xff] %v230
                  %v232 = vld [vmem:[%s208 + $0xb0] sm:$0xff]
                  %233 = vst [vmem:[%s209 + $0x58] sm:$0xff] %v232
                  %v234 = vld [vmem:[%s208 + $0xc0] sm:$0xff]
                  %235 = vst [vmem:[%s209 + $0x60] sm:$0xff] %v234
                  %v236 = vld [vmem:[%s208 + $0xd0] sm:$0xff]
                  %237 = vst [vmem:[%s209 + $0x68] sm:$0xff] %v236
                  %v238 = vld [vmem:[%s208 + $0xe0] sm:$0xff]
                  %239 = vst [vmem:[%s209 + $0x70] sm:$0xff] %v238
                  %v240 = vld [vmem:[%s208 + $0xf0] sm:$0xff]
                  %241 = vst [vmem:[%s209 + $0x78] sm:$0xff] %v240
                  %v242 = vld [vmem:[%s208 + $0x100] sm:$0xff]
                  %243 = vst [vmem:[%s209 + $0x80] sm:$0xff] %v242
                  %v244 = vld [vmem:[%s208 + $0x110] sm:$0xff]
                  %245 = vst [vmem:[%s209 + $0x88] sm:$0xff] %v244
                  %v246 = vld [vmem:[%s208 + $0x120] sm:$0xff]
                  %247 = vst [vmem:[%s209 + $0x90] sm:$0xff] %v246
                  %v248 = vld [vmem:[%s208 + $0x130] sm:$0xff]
                  %249 = vst [vmem:[%s209 + $0x98] sm:$0xff] %v248
                  %v250 = vld [vmem:[%s208 + $0x140] sm:$0xff]
                  %251 = vst [vmem:[%s209 + $0xa0] sm:$0xff] %v250
                  %v252 = vld [vmem:[%s208 + $0x150] sm:$0xff]
                  %253 = vst [vmem:[%s209 + $0xa8] sm:$0xff] %v252
                  %v254 = vld [vmem:[%s208 + $0x160] sm:$0xff]
                  %255 = vst [vmem:[%s209 + $0xb0] sm:$0xff] %v254
                  %v256 = vld [vmem:[%s208 + $0x170] sm:$0xff]
                  %257 = vst [vmem:[%s209 + $0xb8] sm:$0xff] %v256
                  %v258 = vld [vmem:[%s208 + $0x180] sm:$0xff]
                  %259 = vst [vmem:[%s209 + $0xc0] sm:$0xff] %v258
                  %v260 = vld [vmem:[%s208 + $0x190] sm:$0xff]
                  %261 = vst [vmem:[%s209 + $0xc8] sm:$0xff] %v260
                  %v262 = vld [vmem:[%s208 + $0x1a0] sm:$0xff]
                  %263 = vst [vmem:[%s209 + $0xd0] sm:$0xff] %v262
                  %v264 = vld [vmem:[%s208 + $0x1b0] sm:$0xff]
                  %265 = vst [vmem:[%s209 + $0xd8] sm:$0xff] %v264
                  %v266 = vld [vmem:[%s208 + $0x1c0] sm:$0xff]
                  %267 = vst [vmem:[%s209 + $0xe0] sm:$0xff] %v266
                  %v268 = vld [vmem:[%s208 + $0x1d0] sm:$0xff]
                  %269 = vst [vmem:[%s209 + $0xe8] sm:$0xff] %v268
                  %v270 = vld [vmem:[%s208 + $0x1e0] sm:$0xff]
                  %271 = vst [vmem:[%s209 + $0xf0] sm:$0xff] %v270
                  %v272 = vld [vmem:[%s208 + $0x1f0] sm:$0xff]
                  %273 = vst [vmem:[%s209 + $0xf8] sm:$0xff] %v272
                  %v274 = vld [vmem:[%s208 + $0x200] sm:$0xff]
                  %275 = vst [vmem:[%s209 + $0x100] sm:$0xff] %v274
                  %v276 = vld [vmem:[%s208 + $0x210] sm:$0xff]
                  %277 = vst [vmem:[%s209 + $0x108] sm:$0xff] %v276
                  %v278 = vld [vmem:[%s208 + $0x220] sm:$0xff]
                  %279 = vst [vmem:[%s209 + $0x110] sm:$0xff] %v278
                  %v280 = vld [vmem:[%s208 + $0x230] sm:$0xff]
                  %281 = vst [vmem:[%s209 + $0x118] sm:$0xff] %v280
                $region52: #{generator_forward.38} parent=46 // loop_footer
                  %s207 = sadd.s32 1, %s203
                $region53: #{generator_forward.38} parent=46 // loop_footer_branch
                  %202 = sbr.rel target = $region49
                $region54: #{generator_forward.38} parent=46 // loop_exit
                  _
              $region47: #{generator_forward.38} parent=31 // pred_fallthru
                _
              // Predicated region
              $region55: #{generator_forward.38} parent=31 // pred_check
                _
              $region56: #{generator_forward.38} parent=31 // pred_check_branch
                %283 = sbr.rel target = $region58
              $region57: #{generator_forward.38} parent=31 // pred_region
                _
              $region58: #{generator_forward.38} parent=31 // pred_fallthru
                _
            $region32: #{generator_forward.38} parent=27 // pred_fallthru
              _
            // Predicated region
            $region33: #{generator_forward.38} parent=27 // pred_check
              _
            $region34: #{generator_forward.38} parent=27 // pred_check_branch
              %118 = sbr.rel target = $region36
            $region35: #{generator_forward.38} parent=27 // pred_region
              loop: start=0, step=1, limit=1
              $region37: #{generator_forward.38} parent=35 // loop_pre_header
                _
              $region38: #{generator_forward.38} parent=35 // loop_header
                %s121 = sphi 0, %s125
                %p122 = scmp.ge.s32.totalorder %s121, 1
                %s126 = sphi %s112, %s112
                %s127 = sphi %s109, %s109
              $region39: #{generator_forward.38} parent=35 // loop_header_branch
                %124 = sbr.rel (%p122) target = $region43
              $region40: #{generator_forward.38} parent=35 // loop_body
                %v128 = vld [vmem:[%s126] sm:$0xff]
                %129 = vst [vmem:[%s127] sm:$0xff] %v128
                %v130 = vld [vmem:[%s126 + $0x10] sm:$0xff]
                %131 = vst [vmem:[%s127 + $0x8] sm:$0xff] %v130
                %v132 = vld [vmem:[%s126 + $0x20] sm:$0xff]
                %133 = vst [vmem:[%s127 + $0x10] sm:$0xff] %v132
                %v134 = vld [vmem:[%s126 + $0x30] sm:$0xff]
                %135 = vst [vmem:[%s127 + $0x18] sm:$0xff] %v134
                %v136 = vld [vmem:[%s126 + $0x40] sm:$0xff]
                %137 = vst [vmem:[%s127 + $0x20] sm:$0xff] %v136
                %v138 = vld [vmem:[%s126 + $0x50] sm:$0xff]
                %139 = vst [vmem:[%s127 + $0x28] sm:$0xff] %v138
                %v140 = vld [vmem:[%s126 + $0x60] sm:$0xff]
                %141 = vst [vmem:[%s127 + $0x30] sm:$0xff] %v140
                %v142 = vld [vmem:[%s126 + $0x70] sm:$0xff]
                %143 = vst [vmem:[%s127 + $0x38] sm:$0xff] %v142
                %v144 = vld [vmem:[%s126 + $0x80] sm:$0xff]
                %145 = vst [vmem:[%s127 + $0x40] sm:$0xff] %v144
                %v146 = vld [vmem:[%s126 + $0x90] sm:$0xff]
                %147 = vst [vmem:[%s127 + $0x48] sm:$0xff] %v146
                %v148 = vld [vmem:[%s126 + $0xa0] sm:$0xff]
                %149 = vst [vmem:[%s127 + $0x50] sm:$0xff] %v148
                %v150 = vld [vmem:[%s126 + $0xb0] sm:$0xff]
                %151 = vst [vmem:[%s127 + $0x58] sm:$0xff] %v150
                %v152 = vld [vmem:[%s126 + $0xc0] sm:$0xff]
                %153 = vst [vmem:[%s127 + $0x60] sm:$0xff] %v152
                %v154 = vld [vmem:[%s126 + $0xd0] sm:$0xff]
                %155 = vst [vmem:[%s127 + $0x68] sm:$0xff] %v154
                %v156 = vld [vmem:[%s126 + $0xe0] sm:$0xff]
                %157 = vst [vmem:[%s127 + $0x70] sm:$0xff] %v156
                %v158 = vld [vmem:[%s126 + $0xf0] sm:$0xff]
                %159 = vst [vmem:[%s127 + $0x78] sm:$0xff] %v158
                %v160 = vld [vmem:[%s126 + $0x100] sm:$0xff]
                %161 = vst [vmem:[%s127 + $0x80] sm:$0xff] %v160
                %v162 = vld [vmem:[%s126 + $0x110] sm:$0xff]
                %163 = vst [vmem:[%s127 + $0x88] sm:$0xff] %v162
                %v164 = vld [vmem:[%s126 + $0x120] sm:$0xff]
                %165 = vst [vmem:[%s127 + $0x90] sm:$0xff] %v164
                %v166 = vld [vmem:[%s126 + $0x130] sm:$0xff]
                %167 = vst [vmem:[%s127 + $0x98] sm:$0xff] %v166
                %v168 = vld [vmem:[%s126 + $0x140] sm:$0xff]
                %169 = vst [vmem:[%s127 + $0xa0] sm:$0xff] %v168
                %v170 = vld [vmem:[%s126 + $0x150] sm:$0xff]
                %171 = vst [vmem:[%s127 + $0xa8] sm:$0xff] %v170
                %v172 = vld [vmem:[%s126 + $0x160] sm:$0xff]
                %173 = vst [vmem:[%s127 + $0xb0] sm:$0xff] %v172
                %v174 = vld [vmem:[%s126 + $0x170] sm:$0xff]
                %175 = vst [vmem:[%s127 + $0xb8] sm:$0xff] %v174
                %v176 = vld [vmem:[%s126 + $0x180] sm:$0xff]
                %177 = vst [vmem:[%s127 + $0xc0] sm:$0xff] %v176
                %v178 = vld [vmem:[%s126 + $0x190] sm:$0xff]
                %179 = vst [vmem:[%s127 + $0xc8] sm:$0xff] %v178
                %v180 = vld [vmem:[%s126 + $0x1a0] sm:$0xff]
                %181 = vst [vmem:[%s127 + $0xd0] sm:$0xff] %v180
                %v182 = vld [vmem:[%s126 + $0x1b0] sm:$0xff]
                %183 = vst [vmem:[%s127 + $0xd8] sm:$0xff] %v182
                %v184 = vld [vmem:[%s126 + $0x1c0] sm:$0xff]
                %185 = vst [vmem:[%s127 + $0xe0] sm:$0xff] %v184
                %v186 = vld [vmem:[%s126 + $0x1d0] sm:$0xff]
                %187 = vst [vmem:[%s127 + $0xe8] sm:$0xff] %v186
                %v188 = vld [vmem:[%s126 + $0x1e0] sm:$0xff]
                %189 = vst [vmem:[%s127 + $0xf0] sm:$0xff] %v188
                %v190 = vld [vmem:[%s126 + $0x1f0] sm:$0xff]
                %191 = vst [vmem:[%s127 + $0xf8] sm:$0xff] %v190
                %v192 = vld [vmem:[%s126 + $0x200] sm:$0xff]
                %193 = vst [vmem:[%s127 + $0x100] sm:$0xff] %v192
                %v194 = vld [vmem:[%s126 + $0x210] sm:$0xff]
                %195 = vst [vmem:[%s127 + $0x108] sm:$0xff] %v194
                %v196 = vld [vmem:[%s126 + $0x220] sm:$0xff]
                %197 = vst [vmem:[%s127 + $0x110] sm:$0xff] %v196
                %v198 = vld [vmem:[%s126 + $0x230] sm:$0xff]
                %199 = vst [vmem:[%s127 + $0x118] sm:$0xff] %v198
              $region41: #{generator_forward.38} parent=35 // loop_footer
                %s125 = sadd.s32 1, %s121
              $region42: #{generator_forward.38} parent=35 // loop_footer_branch
                %120 = sbr.rel target = $region38
              $region43: #{generator_forward.38} parent=35 // loop_exit
                _
            $region36: #{generator_forward.38} parent=27 // pred_fallthru
              _
          $region28: #{generator_forward.38} parent=23 // pred_fallthru
            _
          %284 = vnop
        $region24: #{generator_forward.38} parent=19 // pred_fallthru
          _
      $region20: #{generator_forward.38} parent=5 // pred_fallthru
        _
      %p285 = scmp.le.s32.totalorder 1, %s8
      %p286 = scmp.lt.s32.totalorder %s8, 3
      %p287 = pnand %p285, %p286
      %p288 = pneg %p287
      // Predicated region
      $region59: #{generator_forward.38} parent=5 // pred_check
        _
      $region60: #{generator_forward.38} parent=5 // pred_check_branch
        %290 = sbr.rel (%p287) target = $region62
      $region61: #{generator_forward.38} parent=5 // pred_region
        %s291 = ssub.s32 %s8, 1
        %s292 = sand.u32 %s42, 1
        %s293 = sand.u32 %s42, 1
        %s294 = smul.addr %s293, 288
        %s295 = scalar_lea.vmem [#allocation2], %s294
        // Predicated region
        $region63: #{generator_forward.38} parent=61 // pred_check
          %p296 = pneg %p55
        $region64: #{generator_forward.38} parent=61 // pred_check_branch
          %298 = sbr.rel (%p296) target = $region66
        $region65: #{generator_forward.38} parent=61 // pred_region
          _
        $region66: #{generator_forward.38} parent=61 // pred_fallthru
          _
        %p299 = pneg %p29
        %p300 = pneg %p26
        %s301 = sand.u32 %s42, 1
        %s302 = sand.u32 %s42, 1
        %s303 = smul.addr %s302, 288
        %s304 = scalar_lea.vmem [#allocation2], %s303
        %p305 = pneg %p55
        %p306 = pneg %p52
        %p307 = pneg %p81
        %p308 = pneg %p78
        %s309 = sand.u32 %s68, 1
        %s310 = sand.u32 %s68, 1
        %s311 = smul.addr %s310, 32
        %s312 = scalar_lea.vmem [#allocation3], %s311
        %s313 = smul.u32 2, %s13
        %s314 = smul.u32 2, %s13
        %v316 = vld [vmem:[%s0] sm:$0xff]
        %v317 = vld [vmem:[%s0 + $0x8] sm:$0xf]
        %v318 = vld [vmem:[%s0 + $0xc] sm:$0xff]
        %v319 = vld [vmem:[%s0 + $0x14] sm:$0xf]
        %v320 = vld [vmem:[%s295] sm:$0xff]
        %v321 = vld [vmem:[%s295 + $0x8] sm:$0xff]
        %v322 = vld [vmem:[%s295 + $0x10] sm:$0xff]
        %v323 = vld [vmem:[%s295 + $0x18] sm:$0xff]
        %v324 = vld [vmem:[%s295 + $0x20] sm:$0xff]
        %v325 = vld [vmem:[%s295 + $0x28] sm:$0xff]
        %v326 = vld [vmem:[%s295 + $0x30] sm:$0xff]
        %v327 = vld [vmem:[%s295 + $0x38] sm:$0xff]
        %v328 = vld [vmem:[%s295 + $0x40] sm:$0xff]
        %v329 = vld [vmem:[%s295 + $0x48] sm:$0xff]
        %v330 = vld [vmem:[%s295 + $0x50] sm:$0xff]
        %v331 = vld [vmem:[%s295 + $0x58] sm:$0xff]
        %v332 = vld [vmem:[%s295 + $0x60] sm:$0xff]
        %v333 = vld [vmem:[%s295 + $0x68] sm:$0xff]
        %v334 = vld [vmem:[%s295 + $0x70] sm:$0xff]
        %v335 = vld [vmem:[%s295 + $0x78] sm:$0xff]
        %v336 = vld [vmem:[%s295 + $0x80] sm:$0xff]
        %v337 = vld [vmem:[%s295 + $0x88] sm:$0xff]
        %v338 = vld [vmem:[%s295 + $0x90] sm:$0xff]
        %v339 = vld [vmem:[%s295 + $0x98] sm:$0xff]
        %v340 = vld [vmem:[%s295 + $0xa0] sm:$0xff]
        %v341 = vld [vmem:[%s295 + $0xa8] sm:$0xff]
        %v342 = vld [vmem:[%s295 + $0xb0] sm:$0xff]
        %v343 = vld [vmem:[%s295 + $0xb8] sm:$0xff]
        %v344 = vld [vmem:[%s295 + $0xc0] sm:$0xff]
        %v345 = vld [vmem:[%s295 + $0xc8] sm:$0xff]
        %v346 = vld [vmem:[%s295 + $0xd0] sm:$0xff]
        %v347 = vld [vmem:[%s295 + $0xd8] sm:$0xff]
        %v348 = vld [vmem:[%s295 + $0xe0] sm:$0xff]
        %v349 = vld [vmem:[%s295 + $0xe8] sm:$0xff]
        %v350 = vld [vmem:[%s295 + $0xf0] sm:$0xff]
        %v351 = vld [vmem:[%s295 + $0xf8] sm:$0xff]
        %v352 = vld [vmem:[%s295 + $0x100] sm:$0xff]
        %v353 = vld [vmem:[%s295 + $0x108] sm:$0xff]
        %v354 = vld [vmem:[%s295 + $0x110] sm:$0xff]
        %v355 = vld [vmem:[%s295 + $0x118] sm:$0xff]
        %v360 = vunpack.c.l.b16 %v316
        %v361 = vunpack.c.h.b16 %v316
        %v362 = vunpack.c.l.b16 %v317
        %v363 = vunpack.c.l.b16 %v318
        %v364 = vunpack.c.h.b16 %v318
        %v365 = vunpack.c.l.b16 %v319
        %v366 = vpack.c.b16 %v363, %v360
        %v367 = vpack.c.b16 %v364, %v361
        %v368 = vpack.c.b16 %v365, %v362
        %v407 = vunpack.c.l.b16 %v320
        %v408 = vunpack.c.h.b16 %v320
        %v409 = vunpack.c.l.b16 %v321
        %v410 = vunpack.c.h.b16 %v321
        %v411 = vunpack.c.l.b16 %v322
        %v412 = vunpack.c.h.b16 %v322
        %v413 = vunpack.c.l.b16 %v323
        %v414 = vunpack.c.h.b16 %v323
        %v415 = vunpack.c.l.b16 %v324
        %v416 = vunpack.c.h.b16 %v324
        %v417 = vunpack.c.l.b16 %v325
        %v418 = vunpack.c.h.b16 %v325
        %v419 = vunpack.c.l.b16 %v326
        %v420 = vunpack.c.h.b16 %v326
        %v421 = vunpack.c.l.b16 %v327
        %v422 = vunpack.c.h.b16 %v327
        %v423 = vunpack.c.l.b16 %v328
        %v424 = vunpack.c.h.b16 %v328
        %v425 = vunpack.c.l.b16 %v329
        %v426 = vunpack.c.h.b16 %v329
        %v427 = vunpack.c.l.b16 %v330
        %v428 = vunpack.c.h.b16 %v330
        %v429 = vunpack.c.l.b16 %v331
        %v430 = vunpack.c.h.b16 %v331
        %v431 = vunpack.c.l.b16 %v332
        %v432 = vunpack.c.h.b16 %v332
        %v433 = vunpack.c.l.b16 %v333
        %v434 = vunpack.c.h.b16 %v333
        %v435 = vunpack.c.l.b16 %v334
        %v436 = vunpack.c.h.b16 %v334
        %v437 = vunpack.c.l.b16 %v335
        %v438 = vunpack.c.h.b16 %v335
        %v439 = vunpack.c.l.b16 %v336
        %v440 = vunpack.c.h.b16 %v336
        %v441 = vunpack.c.l.b16 %v337
        %v442 = vunpack.c.h.b16 %v337
        %v443 = vunpack.c.l.b16 %v338
        %v444 = vunpack.c.h.b16 %v338
        %v445 = vunpack.c.l.b16 %v339
        %v446 = vunpack.c.h.b16 %v339
        %v447 = vunpack.c.l.b16 %v340
        %v448 = vunpack.c.h.b16 %v340
        %v449 = vunpack.c.l.b16 %v341
        %v450 = vunpack.c.h.b16 %v341
        %v451 = vunpack.c.l.b16 %v342
        %v452 = vunpack.c.h.b16 %v342
        %v453 = vunpack.c.l.b16 %v343
        %v454 = vunpack.c.h.b16 %v343
        %v455 = vunpack.c.l.b16 %v344
        %v456 = vunpack.c.h.b16 %v344
        %v457 = vunpack.c.l.b16 %v345
        %v458 = vunpack.c.h.b16 %v345
        %v459 = vunpack.c.l.b16 %v346
        %v460 = vunpack.c.h.b16 %v346
        %v461 = vunpack.c.l.b16 %v347
        %v462 = vunpack.c.h.b16 %v347
        %v463 = vunpack.c.l.b16 %v348
        %v464 = vunpack.c.h.b16 %v348
        %v465 = vunpack.c.l.b16 %v349
        %v466 = vunpack.c.h.b16 %v349
        %v467 = vunpack.c.l.b16 %v350
        %v468 = vunpack.c.h.b16 %v350
        %v469 = vunpack.c.l.b16 %v351
        %v470 = vunpack.c.h.b16 %v351
        %v471 = vunpack.c.l.b16 %v352
        %v472 = vunpack.c.h.b16 %v352
        %v473 = vunpack.c.l.b16 %v353
        %v474 = vunpack.c.h.b16 %v353
        %v475 = vunpack.c.l.b16 %v354
        %v476 = vunpack.c.h.b16 %v354
        %v477 = vunpack.c.l.b16 %v355
        %v478 = vunpack.c.h.b16 %v355
        %v479 = vpack.c.b16 %v409, %v407
        %v480 = vpack.c.b16 %v410, %v408
        %v481 = vpack.c.b16 %v413, %v411
        %v482 = vpack.c.b16 %v414, %v412
        %v483 = vpack.c.b16 %v417, %v415
        %v484 = vpack.c.b16 %v418, %v416
        %v485 = vpack.c.b16 %v421, %v419
        %v486 = vpack.c.b16 %v422, %v420
        %v487 = vpack.c.b16 %v425, %v423
        %v488 = vpack.c.b16 %v426, %v424
        %v489 = vpack.c.b16 %v429, %v427
        %v490 = vpack.c.b16 %v430, %v428
        %v491 = vpack.c.b16 %v433, %v431
        %v492 = vpack.c.b16 %v434, %v432
        %v493 = vpack.c.b16 %v437, %v435
        %v494 = vpack.c.b16 %v438, %v436
        %v495 = vpack.c.b16 %v441, %v439
        %v496 = vpack.c.b16 %v442, %v440
        %v497 = vpack.c.b16 %v445, %v443
        %v498 = vpack.c.b16 %v446, %v444
        %v499 = vpack.c.b16 %v449, %v447
        %v500 = vpack.c.b16 %v450, %v448
        %v501 = vpack.c.b16 %v453, %v451
        %v502 = vpack.c.b16 %v454, %v452
        %v503 = vpack.c.b16 %v457, %v455
        %v504 = vpack.c.b16 %v458, %v456
        %v505 = vpack.c.b16 %v461, %v459
        %v506 = vpack.c.b16 %v462, %v460
        %v507 = vpack.c.b16 %v465, %v463
        %v508 = vpack.c.b16 %v466, %v464
        %v509 = vpack.c.b16 %v469, %v467
        %v510 = vpack.c.b16 %v470, %v468
        %v511 = vpack.c.b16 %v473, %v471
        %v512 = vpack.c.b16 %v474, %v472
        %v513 = vpack.c.b16 %v477, %v475
        %v514 = vpack.c.b16 %v478, %v476
        %vm551 = vcmask 261120
        %v553 = vsel %vm551, %v368, 0
        %555 = vmatprep.subr.bf16.mxu0 %v480
        %556 = vmatpush1.bf16.msra.mxu0 %v479
        %557 = vmatprep.subr.bf16.mxu0 %v482
        %558 = vmatpush1.bf16.msra.mxu0 %v481
        %559 = vmatprep.subr.bf16.mxu0 %v484
        %560 = vmatpush1.bf16.msra.mxu0 %v483
        %561 = vmatprep.subr.bf16.mxu0 %v486
        %562 = vmatpush1.bf16.msra.mxu0 %v485
        %563 = vmatprep.subr.bf16.mxu0 %v488
        %564 = vmatpush1.bf16.msra.mxu0 %v487
        %565 = vmatprep.subr.bf16.mxu0 %v490
        %566 = vmatpush1.bf16.msra.mxu0 %v489
        %567 = vmatprep.subr.bf16.mxu0 %v492
        %568 = vmatpush1.bf16.msra.mxu0 %v491
        %569 = vmatprep.subr.bf16.mxu0 %v494
        %570 = vmatpush1.bf16.msra.mxu0 %v493
        %571 = vmatprep.subr.bf16.mxu0 %v496
        %572 = vmatpush1.bf16.msra.mxu0 %v495
        %573 = vmatprep.subr.bf16.mxu0 %v498
        %574 = vmatpush1.bf16.msra.mxu0 %v497
        %575 = vmatprep.subr.bf16.mxu0 %v500
        %576 = vmatpush1.bf16.msra.mxu0 %v499
        %577 = vmatprep.subr.bf16.mxu0 %v502
        %578 = vmatpush1.bf16.msra.mxu0 %v501
        %579 = vmatprep.subr.bf16.mxu0 %v504
        %580 = vmatpush1.bf16.msra.mxu0 %v503
        %581 = vmatprep.subr.bf16.mxu0 %v506
        %582 = vmatpush1.bf16.msra.mxu0 %v505
        %583 = vmatprep.subr.bf16.mxu0 %v508
        %584 = vmatpush1.bf16.msra.mxu0 %v507
        %585 = vmatprep.subr.bf16.mxu0 %v510
        %586 = vmatpush1.bf16.msra.mxu0 %v509
        %587 = vmatprep.mubr.bf16.mxu0 %v367
        %588 = vmatmul.mubr.bf16.gmra.mrb[0].mxu0 %v366
        %v589 = vpop.f32.mrb[0].mxu0
        %v590 = vadd.f32 0.0, %v589
        %v591 = vpop.f32.mrb[0].mxu0
        %v592 = vadd.f32 0.0, %v591
        %v593 = vpop.f32.mrb[0].mxu0
        %v594 = vadd.f32 0.0, %v593
        %v595 = vpop.f32.mrb[0].mxu0
        %v596 = vadd.f32 0.0, %v595
        %597 = vdwg.mxu0
        %598 = vmatprep.subr.bf16.mxu0 %v512
        %599 = vmatpush1.bf16.msra.mxu0 %v511
        %600 = vmatprep.subr.bf16.mxu0 %v514
        %601 = vmatpush1.bf16.msra.mxu0 %v513
        %602 = vmatprep.subr.bf16.mxu0 0
        %603 = vmatpush1.bf16.msra.mxu0 0
        %604 = vmatprep.subr.bf16.mxu0 0
        %605 = vmatpush1.bf16.msra.mxu0 0
        %606 = vmatprep.subr.bf16.mxu0 0
        %607 = vmatpush1.bf16.msra.mxu0 0
        %608 = vmatprep.subr.bf16.mxu0 0
        %609 = vmatpush1.bf16.msra.mxu0 0
        %610 = vmatprep.subr.bf16.mxu0 0
        %611 = vmatpush1.bf16.msra.mxu0 0
        %612 = vmatprep.subr.bf16.mxu0 0
        %613 = vmatpush1.bf16.msra.mxu0 0
        %614 = vmatprep.subr.bf16.mxu0 0
        %615 = vmatpush1.bf16.msra.mxu0 0
        %616 = vmatprep.subr.bf16.mxu0 0
        %617 = vmatpush1.bf16.msra.mxu0 0
        %618 = vmatprep.subr.bf16.mxu0 0
        %619 = vmatpush1.bf16.msra.mxu0 0
        %620 = vmatprep.subr.bf16.mxu0 0
        %621 = vmatpush1.bf16.msra.mxu0 0
        %622 = vmatprep.subr.bf16.mxu0 0
        %623 = vmatpush1.bf16.msra.mxu0 0
        %624 = vmatprep.subr.bf16.mxu0 0
        %625 = vmatpush1.bf16.msra.mxu0 0
        %626 = vmatprep.subr.bf16.mxu0 0
        %627 = vmatpush1.bf16.msra.mxu0 0
        %628 = vmatprep.subr.bf16.mxu0 0
        %629 = vmatpush1.bf16.msra.mxu0 0
        %630 = vmatprep.mubr.bf16.mxu0 0
        %631 = vmatmul.mubr.bf16.gmra.mrb[0].mxu0 %v553
        %v632 = vpop.f32.mrb[0].mxu0
        %v633 = vadd.f32 %v590, %v632
        %v634 = vpop.f32.mrb[0].mxu0
        %v635 = vadd.f32 %v592, %v634
        %v636 = vpop.f32.mrb[0].mxu0
        %v637 = vadd.f32 %v594, %v636
        %v638 = vpop.f32.mrb[0].mxu0
        %v639 = vadd.f32 %v596, %v638
        %640 = vdwg.mxu0
        %641 = vst [vmem:[%s312] sm:$0xff] %v633
        %642 = vst [vmem:[%s312 + $0x8] sm:$0xff] %v635
        %643 = vst [vmem:[%s312 + $0x10] sm:$0xff] %v637
        %644 = vst [vmem:[%s312 + $0x18] sm:$0xff] %v639
        %s645 = sand.u32 %s68, 1
        %s646 = sand.u32 %s68, 1
        %s647 = smul.addr %s646, 32
        %s648 = scalar_lea.vmem [#allocation3], %s647
        // Predicated region
        $region67: #{generator_forward.38} parent=61 // pred_check
          %p649 = pneg %p78
        $region68: #{generator_forward.38} parent=61 // pred_check_branch
          %651 = sbr.rel (%p649) target = $region70
        $region69: #{generator_forward.38} parent=61 // pred_region
          %s652 = smul.u32 2, %s13
          %s653 = smul.addr %s652, 8
          %s654 = scalar_lea.vmem %s2, %s653
          // Predicated region
          $region71: #{generator_forward.38} parent=69 // pred_check
            _
          $region72: #{generator_forward.38} parent=69 // pred_check_branch
            %656 = sbr.rel (0) target = $region74
          $region73: #{generator_forward.38} parent=69 // pred_region
            // Predicated region
            $region75: #{generator_forward.38} parent=73 // pred_check
              _
            $region76: #{generator_forward.38} parent=73 // pred_check_branch
              %658 = sbr.rel (0) target = $region78
            $region77: #{generator_forward.38} parent=73 // pred_region
              loop: start=0, step=1, limit=1
              $region79: #{generator_forward.38} parent=77 // loop_pre_header
                _
              $region80: #{generator_forward.38} parent=77 // loop_header
                %s660 = sphi 0, %s664
                %p661 = scmp.ge.s32.totalorder %s660, 1
                %s665 = sphi %s648, %s648
                %s666 = sphi %s654, %s654
              $region81: #{generator_forward.38} parent=77 // loop_header_branch
                %663 = sbr.rel (%p661) target = $region85
              $region82: #{generator_forward.38} parent=77 // loop_body
                %v667 = vld [vmem:[%s665] sm:$0xff]
                %668 = vst [vmem:[%s666] sm:$0xff] %v667
                %v669 = vld [vmem:[%s665 + $0x8] sm:$0xff]
                %670 = vst [vmem:[%s666 + $0x8] sm:$0xff] %v669
                %v671 = vld [vmem:[%s665 + $0x10] sm:$0xff]
                %672 = vst [vmem:[%s666 + $0x20] sm:$0xff] %v671
                %v673 = vld [vmem:[%s665 + $0x18] sm:$0xff]
                %674 = vst [vmem:[%s666 + $0x28] sm:$0xff] %v673
              $region83: #{generator_forward.38} parent=77 // loop_footer
                %s664 = sadd.s32 1, %s660
              $region84: #{generator_forward.38} parent=77 // loop_footer_branch
                %659 = sbr.rel target = $region80
              $region85: #{generator_forward.38} parent=77 // loop_exit
                _
            $region78: #{generator_forward.38} parent=73 // pred_fallthru
              _
            // Predicated region
            $region86: #{generator_forward.38} parent=73 // pred_check
              _
            $region87: #{generator_forward.38} parent=73 // pred_check_branch
              %676 = sbr.rel target = $region89
            $region88: #{generator_forward.38} parent=73 // pred_region
              _
            $region89: #{generator_forward.38} parent=73 // pred_fallthru
              _
          $region74: #{generator_forward.38} parent=69 // pred_fallthru
            _
          %677 = vnop
        $region70: #{generator_forward.38} parent=61 // pred_fallthru
          _
      $region62: #{generator_forward.38} parent=5 // pred_fallthru
        _
      %p678 = scmp.le.s32.totalorder 2, %s8
      // Predicated region
      $region90: #{generator_forward.38} parent=5 // pred_check
        %p679 = pneg %p678
      $region91: #{generator_forward.38} parent=5 // pred_check_branch
        %681 = sbr.rel (%p679) target = $region93
      $region92: #{generator_forward.38} parent=5 // pred_region
        %s682 = ssub.s32 %s8, 2
        // Predicated region
        $region94: #{generator_forward.38} parent=92 // pred_check
          %p683 = pneg %p84
        $region95: #{generator_forward.38} parent=92 // pred_check_branch
          %685 = sbr.rel (%p683) target = $region97
        $region96: #{generator_forward.38} parent=92 // pred_region
          %s686 = sand.u32 %s69, 1
          %s687 = sand.u32 %s69, 1
          %s688 = smul.addr %s687, 32
          %s689 = scalar_lea.vmem [#allocation3], %s688
        $region97: #{generator_forward.38} parent=92 // pred_fallthru
          _
      $region93: #{generator_forward.38} parent=5 // pred_fallthru
        _
    $region6: #{generator_forward.38} parent=1 // loop_footer
      %s12 = sadd.s32 1, %s8
    $region7: #{generator_forward.38} parent=1 // loop_footer_branch
      %7 = sbr.rel target = $region3
    $region8: #{generator_forward.38} parent=1 // loop_exit
      _

// kernel: generator_forward.39
$region0: #{generator_forward.39}
  #allocation0 [shape = 'u32[]', space=smem, size = 0x4, offset = 0x4, fixed_abs, tag = 'smem constant byte address 0x4 - core index']
  #allocation1 [shape = 'u32[144,128]{1,0:T(1,128)}', space=vmem, size = 0x12000, scoped, tag = 'internal scratch']
  %s0 = inlined_call_operand.vmem [shape: bf16[16,192], index: 0, kind: input, shape index: {}]
  %s1 = inlined_call_operand.vmem [shape: bf16[192,512], index: 1, kind: input, shape index: {}]
  %s2 = inlined_call_operand.vmem [shape: f32[16,512], index: 2, kind: output, shape index: {}]
  %s3 = sld [smem:[#allocation0]]
  $region98: #{generator_forward.39} parent=0
    _
  %s5 = ssub.s32 1, %s3
  %s6 = scalar_select 0, %s5, %s3
  $region1: #{generator_forward.39} parent=0
    #allocation2 [shape = 'u8[196608]{0}', space=vmem, size = 0x30000, scoped, tag = 'input window, operand 1']
    #allocation3 [shape = 'u8[32768]{0}', space=vmem, size = 0x8000, scoped, tag = 'output window, operand 0']
    loop: start=0, step=1, limit=4
    $region2: #{generator_forward.39} parent=1 // loop_pre_header
      _
    $region3: #{generator_forward.39} parent=1 // loop_header
      %s8 = sphi 0, %s12
      %p9 = scmp.ge.s32.totalorder %s8, 4
      %s16 = sphi 0, %s16
      %s18 = sphi 0, %s16
      %s19 = sphi 0, %s18
      %s33 = sphi 0, %s19
      %s39 = sphi 0, %s41
      %s42 = sphi 0, %s39
      %s43 = sphi 0, %s42
      %s59 = sphi 0, %s43
      %s65 = sphi 0, %s67
      %s68 = sphi 0, %s65
      %s69 = sphi 0, %s68
      %s85 = sphi 0, %s69
    $region4: #{generator_forward.39} parent=1 // loop_header_branch
      %11 = sbr.rel (%p9) target = $region8
    $region5: #{generator_forward.39} parent=1 // loop_body
      %s13 = ssub.s32 %s8, 1
      %s14 = ssub.s32 %s8, 2
      %s15 = sadd.s32 %s8, 1
      %s17 = sadd.s32 %s16, 1
      %p20 = scmp.eq.s32.totalorder %s8, 1
      %p21 = scmp.ne.s32.totalorder %s16, %s18
      %p22 = scmp.eq.s32.totalorder %s8, 0
      %p23 = por %p21, %p22
      %p24 = scmp.ne.s32.totalorder %s16, %s18
      %p25 = scmp.eq.s32.totalorder %s13, 1
      %p26 = por %p24, %p25
      %p27 = scmp.ne.s32.totalorder %s18, %s19
      %p28 = scmp.eq.s32.totalorder %s13, 0
      %p29 = por %p27, %p28
      %p30 = scmp.ne.s32.totalorder %s18, %s19
      %p31 = scmp.eq.s32.totalorder %s14, 1
      %p32 = por %p30, %p31
      %p34 = scmp.ne.s32.totalorder %s19, %s33
      %p35 = scmp.eq.s32.totalorder %s14, 0
      %p36 = por %p34, %p35
      %s37 = ssub.s32 %s8, %s15
      %p38 = scmp.eq.s32.totalorder %s37, 0
      %s40 = sadd.s32 %s39, 1
      %s41 = scalar_select %p38, %s39, %s40
      %p44 = pneg %p38
      %p45 = scmp.eq.s32.totalorder %s8, 1
      %p46 = por %p44, %p45
      %p47 = scmp.ne.s32.totalorder %s39, %s42
      %p48 = scmp.eq.s32.totalorder %s8, 0
      %p49 = por %p47, %p48
      %p50 = scmp.ne.s32.totalorder %s39, %s42
      %p51 = scmp.eq.s32.totalorder %s13, 1
      %p52 = por %p50, %p51
      %p53 = scmp.ne.s32.totalorder %s42, %s43
      %p54 = scmp.eq.s32.totalorder %s13, 0
      %p55 = por %p53, %p54
      %p56 = scmp.ne.s32.totalorder %s42, %s43
      %p57 = scmp.eq.s32.totalorder %s14, 1
      %p58 = por %p56, %p57
      %p60 = scmp.ne.s32.totalorder %s43, %s59
      %p61 = scmp.eq.s32.totalorder %s14, 0
      %p62 = por %p60, %p61
      %s63 = ssub.s32 %s8, %s15
      %p64 = scmp.eq.s32.totalorder %s63, 0
      %s66 = sadd.s32 %s65, 1
      %s67 = scalar_select %p64, %s65, %s66
      %p70 = pneg %p64
      %p71 = scmp.eq.s32.totalorder %s8, 1
      %p72 = por %p70, %p71
      %p73 = scmp.ne.s32.totalorder %s65, %s68
      %p74 = scmp.eq.s32.totalorder %s8, 0
      %p75 = por %p73, %p74
      %p76 = scmp.ne.s32.totalorder %s65, %s68
      %p77 = scmp.eq.s32.totalorder %s13, 1
      %p78 = por %p76, %p77
      %p79 = scmp.ne.s32.totalorder %s68, %s69
      %p80 = scmp.eq.s32.totalorder %s13, 0
      %p81 = por %p79, %p80
      %p82 = scmp.ne.s32.totalorder %s68, %s69
      %p83 = scmp.eq.s32.totalorder %s14, 1
      %p84 = por %p82, %p83
      %p86 = scmp.ne.s32.totalorder %s69, %s85
      %p87 = scmp.eq.s32.totalorder %s14, 0
      %p88 = por %p86, %p87
      %p89 = scmp.le.s32.totalorder 1, %s8
      %p90 = scmp.lt.s32.totalorder %s8, 3
      %p91 = pnand %p89, %p90
      %p92 = pneg %p91
      // Predicated region
      $region9: #{generator_forward.39} parent=5 // pred_check
        _
      $region10: #{generator_forward.39} parent=5 // pred_check_branch
        %94 = sbr.rel (%p91) target = $region12
      $region11: #{generator_forward.39} parent=5 // pred_region
        %s95 = ssub.s32 %s8, 1
        // Predicated region
        $region13: #{generator_forward.39} parent=11 // pred_check
          %p96 = pneg %p29
        $region14: #{generator_forward.39} parent=11 // pred_check_branch
          %98 = sbr.rel (%p96) target = $region16
        $region15: #{generator_forward.39} parent=11 // pred_region
          _
        $region16: #{generator_forward.39} parent=11 // pred_fallthru
          _
      $region12: #{generator_forward.39} parent=5 // pred_fallthru
        _
      %p99 = scmp.lt.s32.totalorder %s8, 2
      // Predicated region
      $region17: #{generator_forward.39} parent=5 // pred_check
        %p100 = pneg %p99
      $region18: #{generator_forward.39} parent=5 // pred_check_branch
        %102 = sbr.rel (%p100) target = $region20
      $region19: #{generator_forward.39} parent=5 // pred_region
        // Predicated region
        $region21: #{generator_forward.39} parent=19 // pred_check
          %p103 = pneg %p49
        $region22: #{generator_forward.39} parent=19 // pred_check_branch
          %105 = sbr.rel (%p103) target = $region24
        $region23: #{generator_forward.39} parent=19 // pred_region
          %s106 = sand.u32 %s39, 1
          %s107 = sand.u32 %s39, 1
          %s108 = smul.addr %s107, 192
          %s109 = scalar_lea.vmem [#allocation2], %s108
          %s110 = smul.u32 2, %s8
          %s111 = smul.addr %s110, 4
          %s112 = scalar_lea.vmem %s1, %s111
          // Predicated region
          $region25: #{generator_forward.39} parent=23 // pred_check
            _
          $region26: #{generator_forward.39} parent=23 // pred_check_branch
            %114 = sbr.rel (0) target = $region28
          $region27: #{generator_forward.39} parent=23 // pred_region
            // Predicated region
            $region29: #{generator_forward.39} parent=27 // pred_check
              _
            $region30: #{generator_forward.39} parent=27 // pred_check_branch
              %116 = sbr.rel (0) target = $region32
            $region31: #{generator_forward.39} parent=27 // pred_region
              // Predicated region
              $region44: #{generator_forward.39} parent=31 // pred_check
                _
              $region45: #{generator_forward.39} parent=31 // pred_check_branch
                %177 = sbr.rel (0) target = $region47
              $region46: #{generator_forward.39} parent=31 // pred_region
                loop: start=0, step=1, limit=1
                $region48: #{generator_forward.39} parent=46 // loop_pre_header
                  _
                $region49: #{generator_forward.39} parent=46 // loop_header
                  %s179 = sphi 0, %s183
                  %p180 = scmp.ge.s32.totalorder %s179, 1
                  %s184 = sphi %s112, %s112
                  %s185 = sphi %s109, %s109
                $region50: #{generator_forward.39} parent=46 // loop_header_branch
                  %182 = sbr.rel (%p180) target = $region54
                $region51: #{generator_forward.39} parent=46 // loop_body
                  %v186 = vld [vmem:[%s184] sm:$0xff]
                  %187 = vst [vmem:[%s185] sm:$0xff] %v186
                  %v188 = vld [vmem:[%s184 + $0x10] sm:$0xff]
                  %189 = vst [vmem:[%s185 + $0x8] sm:$0xff] %v188
                  %v190 = vld [vmem:[%s184 + $0x20] sm:$0xff]
                  %191 = vst [vmem:[%s185 + $0x10] sm:$0xff] %v190
                  %v192 = vld [vmem:[%s184 + $0x30] sm:$0xff]
                  %193 = vst [vmem:[%s185 + $0x18] sm:$0xff] %v192
                  %v194 = vld [vmem:[%s184 + $0x40] sm:$0xff]
                  %195 = vst [vmem:[%s185 + $0x20] sm:$0xff] %v194
                  %v196 = vld [vmem:[%s184 + $0x50] sm:$0xff]
                  %197 = vst [vmem:[%s185 + $0x28] sm:$0xff] %v196
                  %v198 = vld [vmem:[%s184 + $0x60] sm:$0xff]
                  %199 = vst [vmem:[%s185 + $0x30] sm:$0xff] %v198
                  %v200 = vld [vmem:[%s184 + $0x70] sm:$0xff]
                  %201 = vst [vmem:[%s185 + $0x38] sm:$0xff] %v200
                  %v202 = vld [vmem:[%s184 + $0x80] sm:$0xff]
                  %203 = vst [vmem:[%s185 + $0x40] sm:$0xff] %v202
                  %v204 = vld [vmem:[%s184 + $0x90] sm:$0xff]
                  %205 = vst [vmem:[%s185 + $0x48] sm:$0xff] %v204
                  %v206 = vld [vmem:[%s184 + $0xa0] sm:$0xff]
                  %207 = vst [vmem:[%s185 + $0x50] sm:$0xff] %v206
                  %v208 = vld [vmem:[%s184 + $0xb0] sm:$0xff]
                  %209 = vst [vmem:[%s185 + $0x58] sm:$0xff] %v208
                  %v210 = vld [vmem:[%s184 + $0xc0] sm:$0xff]
                  %211 = vst [vmem:[%s185 + $0x60] sm:$0xff] %v210
                  %v212 = vld [vmem:[%s184 + $0xd0] sm:$0xff]
                  %213 = vst [vmem:[%s185 + $0x68] sm:$0xff] %v212
                  %v214 = vld [vmem:[%s184 + $0xe0] sm:$0xff]
                  %215 = vst [vmem:[%s185 + $0x70] sm:$0xff] %v214
                  %v216 = vld [vmem:[%s184 + $0xf0] sm:$0xff]
                  %217 = vst [vmem:[%s185 + $0x78] sm:$0xff] %v216
                  %v218 = vld [vmem:[%s184 + $0x100] sm:$0xff]
                  %219 = vst [vmem:[%s185 + $0x80] sm:$0xff] %v218
                  %v220 = vld [vmem:[%s184 + $0x110] sm:$0xff]
                  %221 = vst [vmem:[%s185 + $0x88] sm:$0xff] %v220
                  %v222 = vld [vmem:[%s184 + $0x120] sm:$0xff]
                  %223 = vst [vmem:[%s185 + $0x90] sm:$0xff] %v222
                  %v224 = vld [vmem:[%s184 + $0x130] sm:$0xff]
                  %225 = vst [vmem:[%s185 + $0x98] sm:$0xff] %v224
                  %v226 = vld [vmem:[%s184 + $0x140] sm:$0xff]
                  %227 = vst [vmem:[%s185 + $0xa0] sm:$0xff] %v226
                  %v228 = vld [vmem:[%s184 + $0x150] sm:$0xff]
                  %229 = vst [vmem:[%s185 + $0xa8] sm:$0xff] %v228
                  %v230 = vld [vmem:[%s184 + $0x160] sm:$0xff]
                  %231 = vst [vmem:[%s185 + $0xb0] sm:$0xff] %v230
                  %v232 = vld [vmem:[%s184 + $0x170] sm:$0xff]
                  %233 = vst [vmem:[%s185 + $0xb8] sm:$0xff] %v232
                $region52: #{generator_forward.39} parent=46 // loop_footer
                  %s183 = sadd.s32 1, %s179
                $region53: #{generator_forward.39} parent=46 // loop_footer_branch
                  %178 = sbr.rel target = $region49
                $region54: #{generator_forward.39} parent=46 // loop_exit
                  _
              $region47: #{generator_forward.39} parent=31 // pred_fallthru
                _
              // Predicated region
              $region55: #{generator_forward.39} parent=31 // pred_check
                _
              $region56: #{generator_forward.39} parent=31 // pred_check_branch
                %235 = sbr.rel target = $region58
              $region57: #{generator_forward.39} parent=31 // pred_region
                _
              $region58: #{generator_forward.39} parent=31 // pred_fallthru
                _
            $region32: #{generator_forward.39} parent=27 // pred_fallthru
              _
            // Predicated region
            $region33: #{generator_forward.39} parent=27 // pred_check
              _
            $region34: #{generator_forward.39} parent=27 // pred_check_branch
              %118 = sbr.rel target = $region36
            $region35: #{generator_forward.39} parent=27 // pred_region
              loop: start=0, step=1, limit=1
              $region37: #{generator_forward.39} parent=35 // loop_pre_header
                _
              $region38: #{generator_forward.39} parent=35 // loop_header
                %s121 = sphi 0, %s125
                %p122 = scmp.ge.s32.totalorder %s121, 1
                %s126 = sphi %s112, %s112
                %s127 = sphi %s109, %s109
              $region39: #{generator_forward.39} parent=35 // loop_header_branch
                %124 = sbr.rel (%p122) target = $region43
              $region40: #{generator_forward.39} parent=35 // loop_body
                %v128 = vld [vmem:[%s126] sm:$0xff]
                %129 = vst [vmem:[%s127] sm:$0xff] %v128
                %v130 = vld [vmem:[%s126 + $0x10] sm:$0xff]
                %131 = vst [vmem:[%s127 + $0x8] sm:$0xff] %v130
                %v132 = vld [vmem:[%s126 + $0x20] sm:$0xff]
                %133 = vst [vmem:[%s127 + $0x10] sm:$0xff] %v132
                %v134 = vld [vmem:[%s126 + $0x30] sm:$0xff]
                %135 = vst [vmem:[%s127 + $0x18] sm:$0xff] %v134
                %v136 = vld [vmem:[%s126 + $0x40] sm:$0xff]
                %137 = vst [vmem:[%s127 + $0x20] sm:$0xff] %v136
                %v138 = vld [vmem:[%s126 + $0x50] sm:$0xff]
                %139 = vst [vmem:[%s127 + $0x28] sm:$0xff] %v138
                %v140 = vld [vmem:[%s126 + $0x60] sm:$0xff]
                %141 = vst [vmem:[%s127 + $0x30] sm:$0xff] %v140
                %v142 = vld [vmem:[%s126 + $0x70] sm:$0xff]
                %143 = vst [vmem:[%s127 + $0x38] sm:$0xff] %v142
                %v144 = vld [vmem:[%s126 + $0x80] sm:$0xff]
                %145 = vst [vmem:[%s127 + $0x40] sm:$0xff] %v144
                %v146 = vld [vmem:[%s126 + $0x90] sm:$0xff]
                %147 = vst [vmem:[%s127 + $0x48] sm:$0xff] %v146
                %v148 = vld [vmem:[%s126 + $0xa0] sm:$0xff]
                %149 = vst [vmem:[%s127 + $0x50] sm:$0xff] %v148
                %v150 = vld [vmem:[%s126 + $0xb0] sm:$0xff]
                %151 = vst [vmem:[%s127 + $0x58] sm:$0xff] %v150
                %v152 = vld [vmem:[%s126 + $0xc0] sm:$0xff]
                %153 = vst [vmem:[%s127 + $0x60] sm:$0xff] %v152
                %v154 = vld [vmem:[%s126 + $0xd0] sm:$0xff]
                %155 = vst [vmem:[%s127 + $0x68] sm:$0xff] %v154
                %v156 = vld [vmem:[%s126 + $0xe0] sm:$0xff]
                %157 = vst [vmem:[%s127 + $0x70] sm:$0xff] %v156
                %v158 = vld [vmem:[%s126 + $0xf0] sm:$0xff]
                %159 = vst [vmem:[%s127 + $0x78] sm:$0xff] %v158
                %v160 = vld [vmem:[%s126 + $0x100] sm:$0xff]
                %161 = vst [vmem:[%s127 + $0x80] sm:$0xff] %v160
                %v162 = vld [vmem:[%s126 + $0x110] sm:$0xff]
                %163 = vst [vmem:[%s127 + $0x88] sm:$0xff] %v162
                %v164 = vld [vmem:[%s126 + $0x120] sm:$0xff]
                %165 = vst [vmem:[%s127 + $0x90] sm:$0xff] %v164
                %v166 = vld [vmem:[%s126 + $0x130] sm:$0xff]
                %167 = vst [vmem:[%s127 + $0x98] sm:$0xff] %v166
                %v168 = vld [vmem:[%s126 + $0x140] sm:$0xff]
                %169 = vst [vmem:[%s127 + $0xa0] sm:$0xff] %v168
                %v170 = vld [vmem:[%s126 + $0x150] sm:$0xff]
                %171 = vst [vmem:[%s127 + $0xa8] sm:$0xff] %v170
                %v172 = vld [vmem:[%s126 + $0x160] sm:$0xff]
                %173 = vst [vmem:[%s127 + $0xb0] sm:$0xff] %v172
                %v174 = vld [vmem:[%s126 + $0x170] sm:$0xff]
                %175 = vst [vmem:[%s127 + $0xb8] sm:$0xff] %v174
              $region41: #{generator_forward.39} parent=35 // loop_footer
                %s125 = sadd.s32 1, %s121
              $region42: #{generator_forward.39} parent=35 // loop_footer_branch
                %120 = sbr.rel target = $region38
              $region43: #{generator_forward.39} parent=35 // loop_exit
                _
            $region36: #{generator_forward.39} parent=27 // pred_fallthru
              _
          $region28: #{generator_forward.39} parent=23 // pred_fallthru
            _
          %236 = vnop
        $region24: #{generator_forward.39} parent=19 // pred_fallthru
          _
      $region20: #{generator_forward.39} parent=5 // pred_fallthru
        _
      %p237 = scmp.le.s32.totalorder 1, %s8
      %p238 = scmp.lt.s32.totalorder %s8, 3
      %p239 = pnand %p237, %p238
      %p240 = pneg %p239
      // Predicated region
      $region59: #{generator_forward.39} parent=5 // pred_check
        _
      $region60: #{generator_forward.39} parent=5 // pred_check_branch
        %242 = sbr.rel (%p239) target = $region62
      $region61: #{generator_forward.39} parent=5 // pred_region
        %s243 = ssub.s32 %s8, 1
        %s244 = sand.u32 %s42, 1
        %s245 = sand.u32 %s42, 1
        %s246 = smul.addr %s245, 192
        %s247 = scalar_lea.vmem [#allocation2], %s246
        // Predicated region
        $region63: #{generator_forward.39} parent=61 // pred_check
          %p248 = pneg %p55
        $region64: #{generator_forward.39} parent=61 // pred_check_branch
          %250 = sbr.rel (%p248) target = $region66
        $region65: #{generator_forward.39} parent=61 // pred_region
          _
        $region66: #{generator_forward.39} parent=61 // pred_fallthru
          _
        %p251 = pneg %p29
        %p252 = pneg %p26
        %s253 = sand.u32 %s42, 1
        %s254 = sand.u32 %s42, 1
        %s255 = smul.addr %s254, 192
        %s256 = scalar_lea.vmem [#allocation2], %s255
        %p257 = pneg %p55
        %p258 = pneg %p52
        %p259 = pneg %p81
        %p260 = pneg %p78
        %s261 = sand.u32 %s68, 1
        %s262 = sand.u32 %s68, 1
        %s263 = smul.addr %s262, 32
        %s264 = scalar_lea.vmem [#allocation3], %s263
        %s265 = smul.u32 2, %s13
        %s266 = smul.u32 2, %s13
        %v268 = vld [vmem:[%s0] sm:$0xff]
        %v269 = vld [vmem:[%s0 + $0x8] sm:$0xff]
        %v270 = vld [vmem:[%s247] sm:$0xff]
        %v271 = vld [vmem:[%s247 + $0x8] sm:$0xff]
        %v272 = vld [vmem:[%s247 + $0x10] sm:$0xff]
        %v273 = vld [vmem:[%s247 + $0x18] sm:$0xff]
        %v274 = vld [vmem:[%s247 + $0x20] sm:$0xff]
        %v275 = vld [vmem:[%s247 + $0x28] sm:$0xff]
        %v276 = vld [vmem:[%s247 + $0x30] sm:$0xff]
        %v277 = vld [vmem:[%s247 + $0x38] sm:$0xff]
        %v278 = vld [vmem:[%s247 + $0x40] sm:$0xff]
        %v279 = vld [vmem:[%s247 + $0x48] sm:$0xff]
        %v280 = vld [vmem:[%s247 + $0x50] sm:$0xff]
        %v281 = vld [vmem:[%s247 + $0x58] sm:$0xff]
        %v282 = vld [vmem:[%s247 + $0x60] sm:$0xff]
        %v283 = vld [vmem:[%s247 + $0x68] sm:$0xff]
        %v284 = vld [vmem:[%s247 + $0x70] sm:$0xff]
        %v285 = vld [vmem:[%s247 + $0x78] sm:$0xff]
        %v286 = vld [vmem:[%s247 + $0x80] sm:$0xff]
        %v287 = vld [vmem:[%s247 + $0x88] sm:$0xff]
        %v288 = vld [vmem:[%s247 + $0x90] sm:$0xff]
        %v289 = vld [vmem:[%s247 + $0x98] sm:$0xff]
        %v290 = vld [vmem:[%s247 + $0xa0] sm:$0xff]
        %v291 = vld [vmem:[%s247 + $0xa8] sm:$0xff]
        %v292 = vld [vmem:[%s247 + $0xb0] sm:$0xff]
        %v293 = vld [vmem:[%s247 + $0xb8] sm:$0xff]
        %v296 = vunpack.c.l.b16 %v268
        %v297 = vunpack.c.h.b16 %v268
        %v298 = vunpack.c.l.b16 %v269
        %v299 = vunpack.c.h.b16 %v269
        %v300 = vpack.c.b16 %v298, %v296
        %v301 = vpack.c.b16 %v299, %v297
        %v327 = vunpack.c.l.b16 %v270
        %v328 = vunpack.c.h.b16 %v270
        %v329 = vunpack.c.l.b16 %v271
        %v330 = vunpack.c.h.b16 %v271
        %v331 = vunpack.c.l.b16 %v272
        %v332 = vunpack.c.h.b16 %v272
        %v333 = vunpack.c.l.b16 %v273
        %v334 = vunpack.c.h.b16 %v273
        %v335 = vunpack.c.l.b16 %v274
        %v336 = vunpack.c.h.b16 %v274
        %v337 = vunpack.c.l.b16 %v275
        %v338 = vunpack.c.h.b16 %v275
        %v339 = vunpack.c.l.b16 %v276
        %v340 = vunpack.c.h.b16 %v276
        %v341 = vunpack.c.l.b16 %v277
        %v342 = vunpack.c.h.b16 %v277
        %v343 = vunpack.c.l.b16 %v278
        %v344 = vunpack.c.h.b16 %v278
        %v345 = vunpack.c.l.b16 %v279
        %v346 = vunpack.c.h.b16 %v279
        %v347 = vunpack.c.l.b16 %v280
        %v348 = vunpack.c.h.b16 %v280
        %v349 = vunpack.c.l.b16 %v281
        %v350 = vunpack.c.h.b16 %v281
        %v351 = vunpack.c.l.b16 %v282
        %v352 = vunpack.c.h.b16 %v282
        %v353 = vunpack.c.l.b16 %v283
        %v354 = vunpack.c.h.b16 %v283
        %v355 = vunpack.c.l.b16 %v284
        %v356 = vunpack.c.h.b16 %v284
        %v357 = vunpack.c.l.b16 %v285
        %v358 = vunpack.c.h.b16 %v285
        %v359 = vunpack.c.l.b16 %v286
        %v360 = vunpack.c.h.b16 %v286
        %v361 = vunpack.c.l.b16 %v287
        %v362 = vunpack.c.h.b16 %v287
        %v363 = vunpack.c.l.b16 %v288
        %v364 = vunpack.c.h.b16 %v288
        %v365 = vunpack.c.l.b16 %v289
        %v366 = vunpack.c.h.b16 %v289
        %v367 = vunpack.c.l.b16 %v290
        %v368 = vunpack.c.h.b16 %v290
        %v369 = vunpack.c.l.b16 %v291
        %v370 = vunpack.c.h.b16 %v291
        %v371 = vunpack.c.l.b16 %v292
        %v372 = vunpack.c.h.b16 %v292
        %v373 = vunpack.c.l.b16 %v293
        %v374 = vunpack.c.h.b16 %v293
        %v375 = vpack.c.b16 %v329, %v327
        %v376 = vpack.c.b16 %v330, %v328
        %v377 = vpack.c.b16 %v333, %v331
        %v378 = vpack.c.b16 %v334, %v332
        %v379 = vpack.c.b16 %v337, %v335
        %v380 = vpack.c.b16 %v338, %v336
        %v381 = vpack.c.b16 %v341, %v339
        %v382 = vpack.c.b16 %v342, %v340
        %v383 = vpack.c.b16 %v345, %v343
        %v384 = vpack.c.b16 %v346, %v344
        %v385 = vpack.c.b16 %v349, %v347
        %v386 = vpack.c.b16 %v350, %v348
        %v387 = vpack.c.b16 %v353, %v351
        %v388 = vpack.c.b16 %v354, %v352
        %v389 = vpack.c.b16 %v357, %v355
        %v390 = vpack.c.b16 %v358, %v356
        %v391 = vpack.c.b16 %v361, %v359
        %v392 = vpack.c.b16 %v362, %v360
        %v393 = vpack.c.b16 %v365, %v363
        %v394 = vpack.c.b16 %v366, %v364
        %v395 = vpack.c.b16 %v369, %v367
        %v396 = vpack.c.b16 %v370, %v368
        %v397 = vpack.c.b16 %v373, %v371
        %v398 = vpack.c.b16 %v374, %v372
        %vm423 = vcmask 523264
        %v425 = vsel %vm423, %v301, 0
        %427 = vmatprep.subr.bf16.mxu0 %v376
        %428 = vmatpush1.bf16.msra.mxu0 %v375
        %429 = vmatprep.subr.bf16.mxu0 %v378
        %430 = vmatpush1.bf16.msra.mxu0 %v377
        %431 = vmatprep.subr.bf16.mxu0 %v380
        %432 = vmatpush1.bf16.msra.mxu0 %v379
        %433 = vmatprep.subr.bf16.mxu0 %v382
        %434 = vmatpush1.bf16.msra.mxu0 %v381
        %435 = vmatprep.subr.bf16.mxu0 %v384
        %436 = vmatpush1.bf16.msra.mxu0 %v383
        %437 = vmatprep.subr.bf16.mxu0 %v386
        %438 = vmatpush1.bf16.msra.mxu0 %v385
        %439 = vmatprep.subr.bf16.mxu0 %v388
        %440 = vmatpush1.bf16.msra.mxu0 %v387
        %441 = vmatprep.subr.bf16.mxu0 %v390
        %442 = vmatpush1.bf16.msra.mxu0 %v389
        %443 = vmatprep.subr.bf16.mxu0 %v392
        %444 = vmatpush1.bf16.msra.mxu0 %v391
        %445 = vmatprep.subr.bf16.mxu0 %v394
        %446 = vmatpush1.bf16.msra.mxu0 %v393
        %447 = vmatprep.subr.bf16.mxu0 %v396
        %448 = vmatpush1.bf16.msra.mxu0 %v395
        %449 = vmatprep.subr.bf16.mxu0 %v398
        %450 = vmatpush1.bf16.msra.mxu0 %v397
        %451 = vmatprep.subr.bf16.mxu0 0
        %452 = vmatpush1.bf16.msra.mxu0 0
        %453 = vmatprep.subr.bf16.mxu0 0
        %454 = vmatpush1.bf16.msra.mxu0 0
        %455 = vmatprep.subr.bf16.mxu0 0
        %456 = vmatpush1.bf16.msra.mxu0 0
        %457 = vmatprep.subr.bf16.mxu0 0
        %458 = vmatpush1.bf16.msra.mxu0 0
        %459 = vmatprep.mubr.bf16.mxu0 %v425
        %460 = vmatmul.mubr.bf16.gmra.mrb[0].mxu0 %v300
        %v461 = vpop.f32.mrb[0].mxu0
        %v462 = vadd.f32 0.0, %v461
        %v463 = vpop.f32.mrb[0].mxu0
        %v464 = vadd.f32 0.0, %v463
        %v465 = vpop.f32.mrb[0].mxu0
        %v466 = vadd.f32 0.0, %v465
        %v467 = vpop.f32.mrb[0].mxu0
        %v468 = vadd.f32 0.0, %v467
        %469 = vdwg.mxu0
        %470 = vst [vmem:[%s264] sm:$0xff] %v462
        %471 = vst [vmem:[%s264 + $0x8] sm:$0xff] %v464
        %472 = vst [vmem:[%s264 + $0x10] sm:$0xff] %v466
        %473 = vst [vmem:[%s264 + $0x18] sm:$0xff] %v468
        %s474 = sand.u32 %s68, 1
        %s475 = sand.u32 %s68, 1
        %s476 = smul.addr %s475, 32
        %s477 = scalar_lea.vmem [#allocation3], %s476
        // Predicated region
        $region67: #{generator_forward.39} parent=61 // pred_check
          %p478 = pneg %p78
        $region68: #{generator_forward.39} parent=61 // pred_check_branch
          %480 = sbr.rel (%p478) target = $region70
        $region69: #{generator_forward.39} parent=61 // pred_region
          %s481 = smul.u32 2, %s13
          %s482 = smul.addr %s481, 8
          %s483 = scalar_lea.vmem %s2, %s482
          // Predicated region
          $region71: #{generator_forward.39} parent=69 // pred_check
            _
          $region72: #{generator_forward.39} parent=69 // pred_check_branch
            %485 = sbr.rel (0) target = $region74
          $region73: #{generator_forward.39} parent=69 // pred_region
            // Predicated region
            $region75: #{generator_forward.39} parent=73 // pred_check
              _
            $region76: #{generator_forward.39} parent=73 // pred_check_branch
              %487 = sbr.rel (0) target = $region78
            $region77: #{generator_forward.39} parent=73 // pred_region
              loop: start=0, step=1, limit=1
              $region79: #{generator_forward.39} parent=77 // loop_pre_header
                _
              $region80: #{generator_forward.39} parent=77 // loop_header
                %s489 = sphi 0, %s493
                %p490 = scmp.ge.s32.totalorder %s489, 1
                %s494 = sphi %s477, %s477
                %s495 = sphi %s483, %s483
              $region81: #{generator_forward.39} parent=77 // loop_header_branch
                %492 = sbr.rel (%p490) target = $region85
              $region82: #{generator_forward.39} parent=77 // loop_body
                %v496 = vld [vmem:[%s494] sm:$0xff]
                %497 = vst [vmem:[%s495] sm:$0xff] %v496
                %v498 = vld [vmem:[%s494 + $0x8] sm:$0xff]
                %499 = vst [vmem:[%s495 + $0x8] sm:$0xff] %v498
                %v500 = vld [vmem:[%s494 + $0x10] sm:$0xff]
                %501 = vst [vmem:[%s495 + $0x20] sm:$0xff] %v500
                %v502 = vld [vmem:[%s494 + $0x18] sm:$0xff]
                %503 = vst [vmem:[%s495 + $0x28] sm:$0xff] %v502
              $region83: #{generator_forward.39} parent=77 // loop_footer
                %s493 = sadd.s32 1, %s489
              $region84: #{generator_forward.39} parent=77 // loop_footer_branch
                %488 = sbr.rel target = $region80
              $region85: #{generator_forward.39} parent=77 // loop_exit
                _
            $region78: #{generator_forward.39} parent=73 // pred_fallthru
              _
            // Predicated region
            $region86: #{generator_forward.39} parent=73 // pred_check
              _
            $region87: #{generator_forward.39} parent=73 // pred_check_branch
              %505 = sbr.rel target = $region89
            $region88: #{generator_forward.39} parent=73 // pred_region
              _
            $region89: #{generator_forward.39} parent=73 // pred_fallthru
              _
          $region74: #{generator_forward.39} parent=69 // pred_fallthru
            _
          %506 = vnop
        $region70: #{generator_forward.39} parent=61 // pred_fallthru
          _
      $region62: #{generator_forward.39} parent=5 // pred_fallthru
        _
      %p507 = scmp.le.s32.totalorder 2, %s8
      // Predicated region
      $region90: #{generator_forward.39} parent=5 // pred_check
        %p508 = pneg %p507
      $region91: #{generator_forward.39} parent=5 // pred_check_branch
        %510 = sbr.rel (%p508) target = $region93
      $region92: #{generator_forward.39} parent=5 // pred_region
        %s511 = ssub.s32 %s8, 2
        // Predicated region
        $region94: #{generator_forward.39} parent=92 // pred_check
          %p512 = pneg %p84
        $region95: #{generator_forward.39} parent=92 // pred_check_branch
          %514 = sbr.rel (%p512) target = $region97
        $region96: #{generator_forward.39} parent=92 // pred_region
          %s515 = sand.u32 %s69, 1
          %s516 = sand.u32 %s69, 1
          %s517 = smul.addr %s516, 32
          %s518 = scalar_lea.vmem [#allocation3], %s517
        $region97: #{generator_forward.39} parent=92 // pred_fallthru
          _
      $region93: #{generator_forward.39} parent=5 // pred_fallthru
        _
    $region6: #{generator_forward.39} parent=1 // loop_footer
      %s12 = sadd.s32 1, %s8
    $region7: #{generator_forward.39} parent=1 // loop_footer_branch
      %7 = sbr.rel target = $region3
    $region8: #{generator_forward.39} parent=1 // loop_exit
      _

// kernel: generator_forward.41
$region0: #{generator_forward.41}
  #allocation0 [shape = 'u32[]', space=smem, size = 0x4, offset = 0x4, fixed_abs, tag = 'smem constant byte address 0x4 - core index']
  #allocation1 [shape = 'u32[144,128]{1,0:T(1,128)}', space=vmem, size = 0x12000, scoped, tag = 'internal scratch']
  %s0 = inlined_call_operand.vmem [shape: bf16[16,128], index: 0, kind: input, shape index: {}]
  %s1 = inlined_call_operand.vmem [shape: bf16[128,512], index: 1, kind: input, shape index: {}]
  %s2 = inlined_call_operand.vmem [shape: f32[16,512], index: 2, kind: output, shape index: {}]
  %s3 = sld [smem:[#allocation0]]
  $region98: #{generator_forward.41} parent=0
    _
  %s5 = ssub.s32 1, %s3
  %s6 = scalar_select 0, %s5, %s3
  $region1: #{generator_forward.41} parent=0
    #allocation2 [shape = 'u8[131072]{0}', space=vmem, size = 0x20000, scoped, tag = 'input window, operand 1']
    #allocation3 [shape = 'u8[32768]{0}', space=vmem, size = 0x8000, scoped, tag = 'output window, operand 0']
    loop: start=0, step=1, limit=4
    $region2: #{generator_forward.41} parent=1 // loop_pre_header
      _
    $region3: #{generator_forward.41} parent=1 // loop_header
      %s8 = sphi 0, %s12
      %p9 = scmp.ge.s32.totalorder %s8, 4
      %s16 = sphi 0, %s16
      %s18 = sphi 0, %s16
      %s19 = sphi 0, %s18
      %s33 = sphi 0, %s19
      %s39 = sphi 0, %s41
      %s42 = sphi 0, %s39
      %s43 = sphi 0, %s42
      %s59 = sphi 0, %s43
      %s65 = sphi 0, %s67
      %s68 = sphi 0, %s65
      %s69 = sphi 0, %s68
      %s85 = sphi 0, %s69
    $region4: #{generator_forward.41} parent=1 // loop_header_branch
      %11 = sbr.rel (%p9) target = $region8
    $region5: #{generator_forward.41} parent=1 // loop_body
      %s13 = ssub.s32 %s8, 1
      %s14 = ssub.s32 %s8, 2
      %s15 = sadd.s32 %s8, 1
      %s17 = sadd.s32 %s16, 1
      %p20 = scmp.eq.s32.totalorder %s8, 1
      %p21 = scmp.ne.s32.totalorder %s16, %s18
      %p22 = scmp.eq.s32.totalorder %s8, 0
      %p23 = por %p21, %p22
      %p24 = scmp.ne.s32.totalorder %s16, %s18
      %p25 = scmp.eq.s32.totalorder %s13, 1
      %p26 = por %p24, %p25
      %p27 = scmp.ne.s32.totalorder %s18, %s19
      %p28 = scmp.eq.s32.totalorder %s13, 0
      %p29 = por %p27, %p28
      %p30 = scmp.ne.s32.totalorder %s18, %s19
      %p31 = scmp.eq.s32.totalorder %s14, 1
      %p32 = por %p30, %p31
      %p34 = scmp.ne.s32.totalorder %s19, %s33
      %p35 = scmp.eq.s32.totalorder %s14, 0
      %p36 = por %p34, %p35
      %s37 = ssub.s32 %s8, %s15
      %p38 = scmp.eq.s32.totalorder %s37, 0
      %s40 = sadd.s32 %s39, 1
      %s41 = scalar_select %p38, %s39, %s40
      %p44 = pneg %p38
      %p45 = scmp.eq.s32.totalorder %s8, 1
      %p46 = por %p44, %p45
      %p47 = scmp.ne.s32.totalorder %s39, %s42
      %p48 = scmp.eq.s32.totalorder %s8, 0
      %p49 = por %p47, %p48
      %p50 = scmp.ne.s32.totalorder %s39, %s42
      %p51 = scmp.eq.s32.totalorder %s13, 1
      %p52 = por %p50, %p51
      %p53 = scmp.ne.s32.totalorder %s42, %s43
      %p54 = scmp.eq.s32.totalorder %s13, 0
      %p55 = por %p53, %p54
      %p56 = scmp.ne.s32.totalorder %s42, %s43
      %p57 = scmp.eq.s32.totalorder %s14, 1
      %p58 = por %p56, %p57
      %p60 = scmp.ne.s32.totalorder %s43, %s59
      %p61 = scmp.eq.s32.totalorder %s14, 0
      %p62 = por %p60, %p61
      %s63 = ssub.s32 %s8, %s15
      %p64 = scmp.eq.s32.totalorder %s63, 0
      %s66 = sadd.s32 %s65, 1
      %s67 = scalar_select %p64, %s65, %s66
      %p70 = pneg %p64
      %p71 = scmp.eq.s32.totalorder %s8, 1
      %p72 = por %p70, %p71
      %p73 = scmp.ne.s32.totalorder %s65, %s68
      %p74 = scmp.eq.s32.totalorder %s8, 0
      %p75 = por %p73, %p74
      %p76 = scmp.ne.s32.totalorder %s65, %s68
      %p77 = scmp.eq.s32.totalorder %s13, 1
      %p78 = por %p76, %p77
      %p79 = scmp.ne.s32.totalorder %s68, %s69
      %p80 = scmp.eq.s32.totalorder %s13, 0
      %p81 = por %p79, %p80
      %p82 = scmp.ne.s32.totalorder %s68, %s69
      %p83 = scmp.eq.s32.totalorder %s14, 1
      %p84 = por %p82, %p83
      %p86 = scmp.ne.s32.totalorder %s69, %s85
      %p87 = scmp.eq.s32.totalorder %s14, 0
      %p88 = por %p86, %p87
      %p89 = scmp.le.s32.totalorder 1, %s8
      %p90 = scmp.lt.s32.totalorder %s8, 3
      %p91 = pnand %p89, %p90
      %p92 = pneg %p91
      // Predicated region
      $region9: #{generator_forward.41} parent=5 // pred_check
        _
      $region10: #{generator_forward.41} parent=5 // pred_check_branch
        %94 = sbr.rel (%p91) target = $region12
      $region11: #{generator_forward.41} parent=5 // pred_region
        %s95 = ssub.s32 %s8, 1
        // Predicated region
        $region13: #{generator_forward.41} parent=11 // pred_check
          %p96 = pneg %p29
        $region14: #{generator_forward.41} parent=11 // pred_check_branch
          %98 = sbr.rel (%p96) target = $region16
        $region15: #{generator_forward.41} parent=11 // pred_region
          _
        $region16: #{generator_forward.41} parent=11 // pred_fallthru
          _
      $region12: #{generator_forward.41} parent=5 // pred_fallthru
        _
      %p99 = scmp.lt.s32.totalorder %s8, 2
      // Predicated region
      $region17: #{generator_forward.41} parent=5 // pred_check
        %p100 = pneg %p99
      $region18: #{generator_forward.41} parent=5 // pred_check_branch
        %102 = sbr.rel (%p100) target = $region20
      $region19: #{generator_forward.41} parent=5 // pred_region
        // Predicated region
        $region21: #{generator_forward.41} parent=19 // pred_check
          %p103 = pneg %p49
        $region22: #{generator_forward.41} parent=19 // pred_check_branch
          %105 = sbr.rel (%p103) target = $region24
        $region23: #{generator_forward.41} parent=19 // pred_region
          %s106 = sand.u32 %s39, 1
          %s107 = sand.u32 %s39, 1
          %s108 = smul.addr %s107, 128
          %s109 = scalar_lea.vmem [#allocation2], %s108
          %s110 = smul.u32 2, %s8
          %s111 = smul.addr %s110, 4
          %s112 = scalar_lea.vmem %s1, %s111
          // Predicated region
          $region25: #{generator_forward.41} parent=23 // pred_check
            _
          $region26: #{generator_forward.41} parent=23 // pred_check_branch
            %114 = sbr.rel (0) target = $region28
          $region27: #{generator_forward.41} parent=23 // pred_region
            // Predicated region
            $region29: #{generator_forward.41} parent=27 // pred_check
              _
            $region30: #{generator_forward.41} parent=27 // pred_check_branch
              %116 = sbr.rel (0) target = $region32
            $region31: #{generator_forward.41} parent=27 // pred_region
              // Predicated region
              $region44: #{generator_forward.41} parent=31 // pred_check
                _
              $region45: #{generator_forward.41} parent=31 // pred_check_branch
                %161 = sbr.rel (0) target = $region47
              $region46: #{generator_forward.41} parent=31 // pred_region
                loop: start=0, step=1, limit=1
                $region48: #{generator_forward.41} parent=46 // loop_pre_header
                  _
                $region49: #{generator_forward.41} parent=46 // loop_header
                  %s163 = sphi 0, %s167
                  %p164 = scmp.ge.s32.totalorder %s163, 1
                  %s168 = sphi %s112, %s112
                  %s169 = sphi %s109, %s109
                $region50: #{generator_forward.41} parent=46 // loop_header_branch
                  %166 = sbr.rel (%p164) target = $region54
                $region51: #{generator_forward.41} parent=46 // loop_body
                  %v170 = vld [vmem:[%s168] sm:$0xff]
                  %171 = vst [vmem:[%s169] sm:$0xff] %v170
                  %v172 = vld [vmem:[%s168 + $0x10] sm:$0xff]
                  %173 = vst [vmem:[%s169 + $0x8] sm:$0xff] %v172
                  %v174 = vld [vmem:[%s168 + $0x20] sm:$0xff]
                  %175 = vst [vmem:[%s169 + $0x10] sm:$0xff] %v174
                  %v176 = vld [vmem:[%s168 + $0x30] sm:$0xff]
                  %177 = vst [vmem:[%s169 + $0x18] sm:$0xff] %v176
                  %v178 = vld [vmem:[%s168 + $0x40] sm:$0xff]
                  %179 = vst [vmem:[%s169 + $0x20] sm:$0xff] %v178
                  %v180 = vld [vmem:[%s168 + $0x50] sm:$0xff]
                  %181 = vst [vmem:[%s169 + $0x28] sm:$0xff] %v180
                  %v182 = vld [vmem:[%s168 + $0x60] sm:$0xff]
                  %183 = vst [vmem:[%s169 + $0x30] sm:$0xff] %v182
                  %v184 = vld [vmem:[%s168 + $0x70] sm:$0xff]
                  %185 = vst [vmem:[%s169 + $0x38] sm:$0xff] %v184
                  %v186 = vld [vmem:[%s168 + $0x80] sm:$0xff]
                  %187 = vst [vmem:[%s169 + $0x40] sm:$0xff] %v186
                  %v188 = vld [vmem:[%s168 + $0x90] sm:$0xff]
                  %189 = vst [vmem:[%s169 + $0x48] sm:$0xff] %v188
                  %v190 = vld [vmem:[%s168 + $0xa0] sm:$0xff]
                  %191 = vst [vmem:[%s169 + $0x50] sm:$0xff] %v190
                  %v192 = vld [vmem:[%s168 + $0xb0] sm:$0xff]
                  %193 = vst [vmem:[%s169 + $0x58] sm:$0xff] %v192
                  %v194 = vld [vmem:[%s168 + $0xc0] sm:$0xff]
                  %195 = vst [vmem:[%s169 + $0x60] sm:$0xff] %v194
                  %v196 = vld [vmem:[%s168 + $0xd0] sm:$0xff]
                  %197 = vst [vmem:[%s169 + $0x68] sm:$0xff] %v196
                  %v198 = vld [vmem:[%s168 + $0xe0] sm:$0xff]
                  %199 = vst [vmem:[%s169 + $0x70] sm:$0xff] %v198
                  %v200 = vld [vmem:[%s168 + $0xf0] sm:$0xff]
                  %201 = vst [vmem:[%s169 + $0x78] sm:$0xff] %v200
                $region52: #{generator_forward.41} parent=46 // loop_footer
                  %s167 = sadd.s32 1, %s163
                $region53: #{generator_forward.41} parent=46 // loop_footer_branch
                  %162 = sbr.rel target = $region49
                $region54: #{generator_forward.41} parent=46 // loop_exit
                  _
              $region47: #{generator_forward.41} parent=31 // pred_fallthru
                _
              // Predicated region
              $region55: #{generator_forward.41} parent=31 // pred_check
                _
              $region56: #{generator_forward.41} parent=31 // pred_check_branch
                %203 = sbr.rel target = $region58
              $region57: #{generator_forward.41} parent=31 // pred_region
                _
              $region58: #{generator_forward.41} parent=31 // pred_fallthru
                _
            $region32: #{generator_forward.41} parent=27 // pred_fallthru
              _
            // Predicated region
            $region33: #{generator_forward.41} parent=27 // pred_check
              _
            $region34: #{generator_forward.41} parent=27 // pred_check_branch
              %118 = sbr.rel target = $region36
            $region35: #{generator_forward.41} parent=27 // pred_region
              loop: start=0, step=1, limit=1
              $region37: #{generator_forward.41} parent=35 // loop_pre_header
                _
              $region38: #{generator_forward.41} parent=35 // loop_header
                %s121 = sphi 0, %s125
                %p122 = scmp.ge.s32.totalorder %s121, 1
                %s126 = sphi %s112, %s112
                %s127 = sphi %s109, %s109
              $region39: #{generator_forward.41} parent=35 // loop_header_branch
                %124 = sbr.rel (%p122) target = $region43
              $region40: #{generator_forward.41} parent=35 // loop_body
                %v128 = vld [vmem:[%s126] sm:$0xff]
                %129 = vst [vmem:[%s127] sm:$0xff] %v128
                %v130 = vld [vmem:[%s126 + $0x10] sm:$0xff]
                %131 = vst [vmem:[%s127 + $0x8] sm:$0xff] %v130
                %v132 = vld [vmem:[%s126 + $0x20] sm:$0xff]
                %133 = vst [vmem:[%s127 + $0x10] sm:$0xff] %v132
                %v134 = vld [vmem:[%s126 + $0x30] sm:$0xff]
                %135 = vst [vmem:[%s127 + $0x18] sm:$0xff] %v134
                %v136 = vld [vmem:[%s126 + $0x40] sm:$0xff]
                %137 = vst [vmem:[%s127 + $0x20] sm:$0xff] %v136
                %v138 = vld [vmem:[%s126 + $0x50] sm:$0xff]
                %139 = vst [vmem:[%s127 + $0x28] sm:$0xff] %v138
                %v140 = vld [vmem:[%s126 + $0x60] sm:$0xff]
                %141 = vst [vmem:[%s127 + $0x30] sm:$0xff] %v140
                %v142 = vld [vmem:[%s126 + $0x70] sm:$0xff]
                %143 = vst [vmem:[%s127 + $0x38] sm:$0xff] %v142
                %v144 = vld [vmem:[%s126 + $0x80] sm:$0xff]
                %145 = vst [vmem:[%s127 + $0x40] sm:$0xff] %v144
                %v146 = vld [vmem:[%s126 + $0x90] sm:$0xff]
                %147 = vst [vmem:[%s127 + $0x48] sm:$0xff] %v146
                %v148 = vld [vmem:[%s126 + $0xa0] sm:$0xff]
                %149 = vst [vmem:[%s127 + $0x50] sm:$0xff] %v148
                %v150 = vld [vmem:[%s126 + $0xb0] sm:$0xff]
                %151 = vst [vmem:[%s127 + $0x58] sm:$0xff] %v150
                %v152 = vld [vmem:[%s126 + $0xc0] sm:$0xff]
                %153 = vst [vmem:[%s127 + $0x60] sm:$0xff] %v152
                %v154 = vld [vmem:[%s126 + $0xd0] sm:$0xff]
                %155 = vst [vmem:[%s127 + $0x68] sm:$0xff] %v154
                %v156 = vld [vmem:[%s126 + $0xe0] sm:$0xff]
                %157 = vst [vmem:[%s127 + $0x70] sm:$0xff] %v156
                %v158 = vld [vmem:[%s126 + $0xf0] sm:$0xff]
                %159 = vst [vmem:[%s127 + $0x78] sm:$0xff] %v158
              $region41: #{generator_forward.41} parent=35 // loop_footer
                %s125 = sadd.s32 1, %s121
              $region42: #{generator_forward.41} parent=35 // loop_footer_branch
                %120 = sbr.rel target = $region38
              $region43: #{generator_forward.41} parent=35 // loop_exit
                _
            $region36: #{generator_forward.41} parent=27 // pred_fallthru
              _
          $region28: #{generator_forward.41} parent=23 // pred_fallthru
            _
          %204 = vnop
        $region24: #{generator_forward.41} parent=19 // pred_fallthru
          _
      $region20: #{generator_forward.41} parent=5 // pred_fallthru
        _
      %p205 = scmp.le.s32.totalorder 1, %s8
      %p206 = scmp.lt.s32.totalorder %s8, 3
      %p207 = pnand %p205, %p206
      %p208 = pneg %p207
      // Predicated region
      $region59: #{generator_forward.41} parent=5 // pred_check
        _
      $region60: #{generator_forward.41} parent=5 // pred_check_branch
        %210 = sbr.rel (%p207) target = $region62
      $region61: #{generator_forward.41} parent=5 // pred_region
        %s211 = ssub.s32 %s8, 1
        %s212 = sand.u32 %s42, 1
        %s213 = sand.u32 %s42, 1
        %s214 = smul.addr %s213, 128
        %s215 = scalar_lea.vmem [#allocation2], %s214
        // Predicated region
        $region63: #{generator_forward.41} parent=61 // pred_check
          %p216 = pneg %p55
        $region64: #{generator_forward.41} parent=61 // pred_check_branch
          %218 = sbr.rel (%p216) target = $region66
        $region65: #{generator_forward.41} parent=61 // pred_region
          _
        $region66: #{generator_forward.41} parent=61 // pred_fallthru
          _
        %p219 = pneg %p29
        %p220 = pneg %p26
        %s221 = sand.u32 %s42, 1
        %s222 = sand.u32 %s42, 1
        %s223 = smul.addr %s222, 128
        %s224 = scalar_lea.vmem [#allocation2], %s223
        %p225 = pneg %p55
        %p226 = pneg %p52
        %p227 = pneg %p81
        %p228 = pneg %p78
        %s229 = sand.u32 %s68, 1
        %s230 = sand.u32 %s68, 1
        %s231 = smul.addr %s230, 32
        %s232 = scalar_lea.vmem [#allocation3], %s231
        %s233 = smul.u32 2, %s13
        %s234 = smul.u32 2, %s13
        %v236 = vld [vmem:[%s0] sm:$0xf]
        %v237 = vld [vmem:[%s0 + $0x4] sm:$0xf]
        %v238 = vld [vmem:[%s215] sm:$0xff]
        %v239 = vld [vmem:[%s215 + $0x8] sm:$0xff]
        %v240 = vld [vmem:[%s215 + $0x10] sm:$0xff]
        %v241 = vld [vmem:[%s215 + $0x18] sm:$0xff]
        %v242 = vld [vmem:[%s215 + $0x20] sm:$0xff]
        %v243 = vld [vmem:[%s215 + $0x28] sm:$0xff]
        %v244 = vld [vmem:[%s215 + $0x30] sm:$0xff]
        %v245 = vld [vmem:[%s215 + $0x38] sm:$0xff]
        %v246 = vld [vmem:[%s215 + $0x40] sm:$0xff]
        %v247 = vld [vmem:[%s215 + $0x48] sm:$0xff]
        %v248 = vld [vmem:[%s215 + $0x50] sm:$0xff]
        %v249 = vld [vmem:[%s215 + $0x58] sm:$0xff]
        %v250 = vld [vmem:[%s215 + $0x60] sm:$0xff]
        %v251 = vld [vmem:[%s215 + $0x68] sm:$0xff]
        %v252 = vld [vmem:[%s215 + $0x70] sm:$0xff]
        %v253 = vld [vmem:[%s215 + $0x78] sm:$0xff]
        %v256 = vunpack.c.l.b16 %v236
        %v257 = vunpack.c.l.b16 %v237
        %v258 = vpack.c.b16 %v257, %v256
        %v276 = vunpack.c.l.b16 %v238
        %v277 = vunpack.c.h.b16 %v238
        %v278 = vunpack.c.l.b16 %v239
        %v279 = vunpack.c.h.b16 %v239
        %v280 = vunpack.c.l.b16 %v240
        %v281 = vunpack.c.h.b16 %v240
        %v282 = vunpack.c.l.b16 %v241
        %v283 = vunpack.c.h.b16 %v241
        %v284 = vunpack.c.l.b16 %v242
        %v285 = vunpack.c.h.b16 %v242
        %v286 = vunpack.c.l.b16 %v243
        %v287 = vunpack.c.h.b16 %v243
        %v288 = vunpack.c.l.b16 %v244
        %v289 = vunpack.c.h.b16 %v244
        %v290 = vunpack.c.l.b16 %v245
        %v291 = vunpack.c.h.b16 %v245
        %v292 = vunpack.c.l.b16 %v246
        %v293 = vunpack.c.h.b16 %v246
        %v294 = vunpack.c.l.b16 %v247
        %v295 = vunpack.c.h.b16 %v247
        %v296 = vunpack.c.l.b16 %v248
        %v297 = vunpack.c.h.b16 %v248
        %v298 = vunpack.c.l.b16 %v249
        %v299 = vunpack.c.h.b16 %v249
        %v300 = vunpack.c.l.b16 %v250
        %v301 = vunpack.c.h.b16 %v250
        %v302 = vunpack.c.l.b16 %v251
        %v303 = vunpack.c.h.b16 %v251
        %v304 = vunpack.c.l.b16 %v252
        %v305 = vunpack.c.h.b16 %v252
        %v306 = vunpack.c.l.b16 %v253
        %v307 = vunpack.c.h.b16 %v253
        %v308 = vpack.c.b16 %v278, %v276
        %v309 = vpack.c.b16 %v279, %v277
        %v310 = vpack.c.b16 %v282, %v280
        %v311 = vpack.c.b16 %v283, %v281
        %v312 = vpack.c.b16 %v286, %v284
        %v313 = vpack.c.b16 %v287, %v285
        %v314 = vpack.c.b16 %v290, %v288
        %v315 = vpack.c.b16 %v291, %v289
        %v316 = vpack.c.b16 %v294, %v292
        %v317 = vpack.c.b16 %v295, %v293
        %v318 = vpack.c.b16 %v298, %v296
        %v319 = vpack.c.b16 %v299, %v297
        %v320 = vpack.c.b16 %v302, %v300
        %v321 = vpack.c.b16 %v303, %v301
        %v322 = vpack.c.b16 %v306, %v304
        %v323 = vpack.c.b16 %v307, %v305
        %340 = vmatprep.subr.bf16.mxu0 %v309
        %341 = vmatpush1.bf16.msra.mxu0 %v308
        %342 = vmatprep.subr.bf16.mxu0 %v311
        %343 = vmatpush1.bf16.msra.mxu0 %v310
        %344 = vmatprep.subr.bf16.mxu0 %v313
        %345 = vmatpush1.bf16.msra.mxu0 %v312
        %346 = vmatprep.subr.bf16.mxu0 %v315
        %347 = vmatpush1.bf16.msra.mxu0 %v314
        %348 = vmatprep.subr.bf16.mxu0 %v317
        %349 = vmatpush1.bf16.msra.mxu0 %v316
        %350 = vmatprep.subr.bf16.mxu0 %v319
        %351 = vmatpush1.bf16.msra.mxu0 %v318
        %352 = vmatprep.subr.bf16.mxu0 %v321
        %353 = vmatpush1.bf16.msra.mxu0 %v320
        %354 = vmatprep.subr.bf16.mxu0 %v323
        %355 = vmatpush1.bf16.msra.mxu0 %v322
        %356 = vmatprep.subr.bf16.mxu0 0
        %357 = vmatpush1.bf16.msra.mxu0 0
        %358 = vmatprep.subr.bf16.mxu0 0
        %359 = vmatpush1.bf16.msra.mxu0 0
        %360 = vmatprep.subr.bf16.mxu0 0
        %361 = vmatpush1.bf16.msra.mxu0 0
        %362 = vmatprep.subr.bf16.mxu0 0
        %363 = vmatpush1.bf16.msra.mxu0 0
        %364 = vmatprep.subr.bf16.mxu0 0
        %365 = vmatpush1.bf16.msra.mxu0 0
        %366 = vmatprep.subr.bf16.mxu0 0
        %367 = vmatpush1.bf16.msra.mxu0 0
        %368 = vmatprep.subr.bf16.mxu0 0
        %369 = vmatpush1.bf16.msra.mxu0 0
        %370 = vmatprep.subr.bf16.mxu0 0
        %371 = vmatpush1.bf16.msra.mxu0 0
        %372 = vmatprep.mubr.bf16.mxu0 0
        %373 = vmatmul.mubr.bf16.gmra.mrb[0].mxu0 %v258
        %v374 = vpop.f32.mrb[0].mxu0
        %v375 = vadd.f32 0.0, %v374
        %v376 = vpop.f32.mrb[0].mxu0
        %v377 = vadd.f32 0.0, %v376
        %v378 = vpop.f32.mrb[0].mxu0
        %v379 = vadd.f32 0.0, %v378
        %v380 = vpop.f32.mrb[0].mxu0
        %v381 = vadd.f32 0.0, %v380
        %382 = vdwg.mxu0
        %383 = vst [vmem:[%s232] sm:$0xff] %v375
        %384 = vst [vmem:[%s232 + $0x8] sm:$0xff] %v377
        %385 = vst [vmem:[%s232 + $0x10] sm:$0xff] %v379
        %386 = vst [vmem:[%s232 + $0x18] sm:$0xff] %v381
        %s387 = sand.u32 %s68, 1
        %s388 = sand.u32 %s68, 1
        %s389 = smul.addr %s388, 32
        %s390 = scalar_lea.vmem [#allocation3], %s389
        // Predicated region
        $region67: #{generator_forward.41} parent=61 // pred_check
          %p391 = pneg %p78
        $region68: #{generator_forward.41} parent=61 // pred_check_branch
          %393 = sbr.rel (%p391) target = $region70
        $region69: #{generator_forward.41} parent=61 // pred_region
          %s394 = smul.u32 2, %s13
          %s395 = smul.addr %s394, 8
          %s396 = scalar_lea.vmem %s2, %s395
          // Predicated region
          $region71: #{generator_forward.41} parent=69 // pred_check
            _
          $region72: #{generator_forward.41} parent=69 // pred_check_branch
            %398 = sbr.rel (0) target = $region74
          $region73: #{generator_forward.41} parent=69 // pred_region
            // Predicated region
            $region75: #{generator_forward.41} parent=73 // pred_check
              _
            $region76: #{generator_forward.41} parent=73 // pred_check_branch
              %400 = sbr.rel (0) target = $region78
            $region77: #{generator_forward.41} parent=73 // pred_region
              loop: start=0, step=1, limit=1
              $region79: #{generator_forward.41} parent=77 // loop_pre_header
                _
              $region80: #{generator_forward.41} parent=77 // loop_header
                %s402 = sphi 0, %s406
                %p403 = scmp.ge.s32.totalorder %s402, 1
                %s407 = sphi %s390, %s390
                %s408 = sphi %s396, %s396
              $region81: #{generator_forward.41} parent=77 // loop_header_branch
                %405 = sbr.rel (%p403) target = $region85
              $region82: #{generator_forward.41} parent=77 // loop_body
                %v409 = vld [vmem:[%s407] sm:$0xff]
                %410 = vst [vmem:[%s408] sm:$0xff] %v409
                %v411 = vld [vmem:[%s407 + $0x8] sm:$0xff]
                %412 = vst [vmem:[%s408 + $0x8] sm:$0xff] %v411
                %v413 = vld [vmem:[%s407 + $0x10] sm:$0xff]
                %414 = vst [vmem:[%s408 + $0x20] sm:$0xff] %v413
                %v415 = vld [vmem:[%s407 + $0x18] sm:$0xff]
                %416 = vst [vmem:[%s408 + $0x28] sm:$0xff] %v415
              $region83: #{generator_forward.41} parent=77 // loop_footer
                %s406 = sadd.s32 1, %s402
              $region84: #{generator_forward.41} parent=77 // loop_footer_branch
                %401 = sbr.rel target = $region80
              $region85: #{generator_forward.41} parent=77 // loop_exit
                _
            $region78: #{generator_forward.41} parent=73 // pred_fallthru
              _
            // Predicated region
            $region86: #{generator_forward.41} parent=73 // pred_check
              _
            $region87: #{generator_forward.41} parent=73 // pred_check_branch
              %418 = sbr.rel target = $region89
            $region88: #{generator_forward.41} parent=73 // pred_region
              _
            $region89: #{generator_forward.41} parent=73 // pred_fallthru
              _
          $region74: #{generator_forward.41} parent=69 // pred_fallthru
            _
          %419 = vnop
        $region70: #{generator_forward.41} parent=61 // pred_fallthru
          _
      $region62: #{generator_forward.41} parent=5 // pred_fallthru
        _
      %p420 = scmp.le.s32.totalorder 2, %s8
      // Predicated region
      $region90: #{generator_forward.41} parent=5 // pred_check
        %p421 = pneg %p420
      $region91: #{generator_forward.41} parent=5 // pred_check_branch
        %423 = sbr.rel (%p421) target = $region93
      $region92: #{generator_forward.41} parent=5 // pred_region
        %s424 = ssub.s32 %s8, 2
        // Predicated region
        $region94: #{generator_forward.41} parent=92 // pred_check
          %p425 = pneg %p84
        $region95: #{generator_forward.41} parent=92 // pred_check_branch
          %427 = sbr.rel (%p425) target = $region97
        $region96: #{generator_forward.41} parent=92 // pred_region
          %s428 = sand.u32 %s69, 1
          %s429 = sand.u32 %s69, 1
          %s430 = smul.addr %s429, 32
          %s431 = scalar_lea.vmem [#allocation3], %s430
        $region97: #{generator_forward.41} parent=92 // pred_fallthru
          _
      $region93: #{generator_forward.41} parent=5 // pred_fallthru
        _
    $region6: #{generator_forward.41} parent=1 // loop_footer
      %s12 = sadd.s32 1, %s8
    $region7: #{generator_forward.41} parent=1 // loop_footer_branch
      %7 = sbr.rel target = $region3
    $region8: #{generator_forward.41} parent=1 // loop_exit
      _

// kernel: generator_forward.42
$region0: #{generator_forward.42}
  #allocation0 [shape = 'u32[]', space=smem, size = 0x4, offset = 0x4, fixed_abs, tag = 'smem constant byte address 0x4 - core index']
  #allocation1 [shape = 'u32[144,128]{1,0:T(1,128)}', space=vmem, size = 0x12000, scoped, tag = 'internal scratch']
  %s0 = inlined_call_operand.vmem [shape: f32[16,2048], index: 0, kind: input, shape index: {}]
  %s1 = inlined_call_operand.vmem [shape: f32[16,1], index: 1, kind: output, shape index: {0}]
  %s2 = inlined_call_operand.vmem [shape: f32[16,1], index: 2, kind: output, shape index: {1}]
  %3 = xla_tuple %s1, %s2
  %s4 = sld [smem:[#allocation0]]
  $region72: #{generator_forward.42} parent=0
    _
  %s6 = ssub.s32 1, %s4
  %s7 = scalar_select 0, %s6, %s4
  $region1: #{generator_forward.42} parent=0
    #allocation2 [shape = 'u8[65536]{0}', space=vmem, size = 0x10000, scoped, tag = 'input window, operand 0']
    loop: start=0, step=1, limit=6
    $region2: #{generator_forward.42} parent=1 // loop_pre_header
      _
    $region3: #{generator_forward.42} parent=1 // loop_header
      %s9 = sphi 0, %s13
      %p10 = scmp.ge.s32.totalorder %s9, 6
      %s19 = sphi 0, %s21
      %s22 = sphi 0, %s19
      %s23 = sphi 0, %s22
      %s39 = sphi 0, %s23
      %s43 = sphi 0, %s43
      %s45 = sphi 0, %s43
      %s46 = sphi 0, %s45
      %s60 = sphi 0, %s46
      %s64 = sphi 0, %s64
      %s66 = sphi 0, %s64
      %s67 = sphi 0, %s66
      %s81 = sphi 0, %s67
    $region4: #{generator_forward.42} parent=1 // loop_header_branch
      %12 = sbr.rel (%p10) target = $region8
    $region5: #{generator_forward.42} parent=1 // loop_body
      %s14 = ssub.s32 %s9, 1
      %s15 = ssub.s32 %s9, 2
      %s16 = sadd.s32 %s9, 1
      %s17 = ssub.s32 %s9, %s16
      %p18 = scmp.eq.s32.totalorder %s17, 0
      %s20 = sadd.s32 %s19, 1
      %s21 = scalar_select %p18, %s19, %s20
      %p24 = pneg %p18
      %p25 = scmp.eq.s32.totalorder %s9, 3
      %p26 = por %p24, %p25
      %p27 = scmp.ne.s32.totalorder %s19, %s22
      %p28 = scmp.eq.s32.totalorder %s9, 0
      %p29 = por %p27, %p28
      %p30 = scmp.ne.s32.totalorder %s19, %s22
      %p31 = scmp.eq.s32.totalorder %s14, 3
      %p32 = por %p30, %p31
      %p33 = scmp.ne.s32.totalorder %s22, %s23
      %p34 = scmp.eq.s32.totalorder %s14, 0
      %p35 = por %p33, %p34
      %p36 = scmp.ne.s32.totalorder %s22, %s23
      %p37 = scmp.eq.s32.totalorder %s15, 3
      %p38 = por %p36, %p37
      %p40 = scmp.ne.s32.totalorder %s23, %s39
      %p41 = scmp.eq.s32.totalorder %s15, 0
      %p42 = por %p40, %p41
      %s44 = sadd.s32 %s43, 1
      %p47 = scmp.eq.s32.totalorder %s9, 3
      %p48 = scmp.ne.s32.totalorder %s43, %s45
      %p49 = scmp.eq.s32.totalorder %s9, 0
      %p50 = por %p48, %p49
      %p51 = scmp.ne.s32.totalorder %s43, %s45
      %p52 = scmp.eq.s32.totalorder %s14, 3
      %p53 = por %p51, %p52
      %p54 = scmp.ne.s32.totalorder %s45, %s46
      %p55 = scmp.eq.s32.totalorder %s14, 0
      %p56 = por %p54, %p55
      %p57 = scmp.ne.s32.totalorder %s45, %s46
      %p58 = scmp.eq.s32.totalorder %s15, 3
      %p59 = por %p57, %p58
      %p61 = scmp.ne.s32.totalorder %s46, %s60
      %p62 = scmp.eq.s32.totalorder %s15, 0
      %p63 = por %p61, %p62
      %s65 = sadd.s32 %s64, 1
      %p68 = scmp.eq.s32.totalorder %s9, 3
      %p69 = scmp.ne.s32.totalorder %s64, %s66
      %p70 = scmp.eq.s32.totalorder %s9, 0
      %p71 = por %p69, %p70
      %p72 = scmp.ne.s32.totalorder %s64, %s66
      %p73 = scmp.eq.s32.totalorder %s14, 3
      %p74 = por %p72, %p73
      %p75 = scmp.ne.s32.totalorder %s66, %s67
      %p76 = scmp.eq.s32.totalorder %s14, 0
      %p77 = por %p75, %p76
      %p78 = scmp.ne.s32.totalorder %s66, %s67
      %p79 = scmp.eq.s32.totalorder %s15, 3
      %p80 = por %p78, %p79
      %p82 = scmp.ne.s32.totalorder %s67, %s81
      %p83 = scmp.eq.s32.totalorder %s15, 0
      %p84 = por %p82, %p83
      %p85 = scmp.le.s32.totalorder 1, %s9
      %p86 = scmp.lt.s32.totalorder %s9, 5
      %p87 = pnand %p85, %p86
      %p88 = pneg %p87
      // Predicated region
      $region9: #{generator_forward.42} parent=5 // pred_check
        _
      $region10: #{generator_forward.42} parent=5 // pred_check_branch
        %90 = sbr.rel (%p87) target = $region12
      $region11: #{generator_forward.42} parent=5 // pred_region
        %s91 = ssub.s32 %s9, 1
      $region12: #{generator_forward.42} parent=5 // pred_fallthru
        _
      %p92 = scmp.lt.s32.totalorder %s9, 4
      // Predicated region
      $region13: #{generator_forward.42} parent=5 // pred_check
        %p93 = pneg %p92
      $region14: #{generator_forward.42} parent=5 // pred_check_branch
        %95 = sbr.rel (%p93) target = $region16
      $region15: #{generator_forward.42} parent=5 // pred_region
        // Predicated region
        $region17: #{generator_forward.42} parent=15 // pred_check
          %p96 = pneg %p29
        $region18: #{generator_forward.42} parent=15 // pred_check_branch
          %98 = sbr.rel (%p96) target = $region20
        $region19: #{generator_forward.42} parent=15 // pred_region
          %s99 = sand.u32 %s19, 1
          %s100 = sand.u32 %s19, 1
          %s101 = smul.addr %s100, 64
          %s102 = scalar_lea.vmem [#allocation2], %s101
          %s103 = smul.u32 4, %s9
          %s104 = smul.addr %s103, 8
          %s105 = scalar_lea.vmem %s0, %s104
          // Predicated region
          $region21: #{generator_forward.42} parent=19 // pred_check
            _
          $region22: #{generator_forward.42} parent=19 // pred_check_branch
            %107 = sbr.rel (0) target = $region24
          $region23: #{generator_forward.42} parent=19 // pred_region
            // Predicated region
            $region25: #{generator_forward.42} parent=23 // pred_check
              _
            $region26: #{generator_forward.42} parent=23 // pred_check_branch
              %109 = sbr.rel (0) target = $region28
            $region27: #{generator_forward.42} parent=23 // pred_region
              loop: start=0, step=1, limit=1
              $region29: #{generator_forward.42} parent=27 // loop_pre_header
                _
              $region30: #{generator_forward.42} parent=27 // loop_header
                %s111 = sphi 0, %s115
                %p112 = scmp.ge.s32.totalorder %s111, 1
                %s116 = sphi %s105, %s105
                %s117 = sphi %s102, %s102
              $region31: #{generator_forward.42} parent=27 // loop_header_branch
                %114 = sbr.rel (%p112) target = $region35
              $region32: #{generator_forward.42} parent=27 // loop_body
                %v118 = vld [vmem:[%s116] sm:$0xff]
                %119 = vst [vmem:[%s117] sm:$0xff] %v118
                %v120 = vld [vmem:[%s116 + $0x8] sm:$0xff]
                %121 = vst [vmem:[%s117 + $0x8] sm:$0xff] %v120
                %v122 = vld [vmem:[%s116 + $0x10] sm:$0xff]
                %123 = vst [vmem:[%s117 + $0x10] sm:$0xff] %v122
                %v124 = vld [vmem:[%s116 + $0x18] sm:$0xff]
                %125 = vst [vmem:[%s117 + $0x18] sm:$0xff] %v124
                %v126 = vld [vmem:[%s116 + $0x80] sm:$0xff]
                %127 = vst [vmem:[%s117 + $0x20] sm:$0xff] %v126
                %v128 = vld [vmem:[%s116 + $0x88] sm:$0xff]
                %129 = vst [vmem:[%s117 + $0x28] sm:$0xff] %v128
                %v130 = vld [vmem:[%s116 + $0x90] sm:$0xff]
                %131 = vst [vmem:[%s117 + $0x30] sm:$0xff] %v130
                %v132 = vld [vmem:[%s116 + $0x98] sm:$0xff]
                %133 = vst [vmem:[%s117 + $0x38] sm:$0xff] %v132
              $region33: #{generator_forward.42} parent=27 // loop_footer
                %s115 = sadd.s32 1, %s111
              $region34: #{generator_forward.42} parent=27 // loop_footer_branch
                %110 = sbr.rel target = $region30
              $region35: #{generator_forward.42} parent=27 // loop_exit
                _
            $region28: #{generator_forward.42} parent=23 // pred_fallthru
              _
            // Predicated region
            $region36: #{generator_forward.42} parent=23 // pred_check
              _
            $region37: #{generator_forward.42} parent=23 // pred_check_branch
              %135 = sbr.rel target = $region39
            $region38: #{generator_forward.42} parent=23 // pred_region
              _
            $region39: #{generator_forward.42} parent=23 // pred_fallthru
              _
          $region24: #{generator_forward.42} parent=19 // pred_fallthru
            _
          %136 = vnop
        $region20: #{generator_forward.42} parent=15 // pred_fallthru
          _
      $region16: #{generator_forward.42} parent=5 // pred_fallthru
        _
      %p137 = scmp.le.s32.totalorder 1, %s9
      %p138 = scmp.lt.s32.totalorder %s9, 5
      %p139 = pnand %p137, %p138
      %p140 = pneg %p139
      // Predicated region
      $region40: #{generator_forward.42} parent=5 // pred_check
        _
      $region41: #{generator_forward.42} parent=5 // pred_check_branch
        %142 = sbr.rel (%p139) target = $region43
      $region42: #{generator_forward.42} parent=5 // pred_region
        %s143 = ssub.s32 %s9, 1
        %s144 = sand.u32 %s22, 1
        %s145 = sand.u32 %s22, 1
        %s146 = smul.addr %s145, 64
        %s147 = scalar_lea.vmem [#allocation2], %s146
        // Predicated region
        $region44: #{generator_forward.42} parent=42 // pred_check
          %p148 = pneg %p35
        $region45: #{generator_forward.42} parent=42 // pred_check_branch
          %150 = sbr.rel (%p148) target = $region47
        $region46: #{generator_forward.42} parent=42 // pred_region
          _
        $region47: #{generator_forward.42} parent=42 // pred_fallthru
          _
        %s151 = sand.u32 %s22, 1
        %s152 = sand.u32 %s22, 1
        %s153 = smul.addr %s152, 64
        %s154 = scalar_lea.vmem [#allocation2], %s153
        %p155 = pneg %p35
        %p156 = pneg %p32
        %p157 = pneg %p56
        %p158 = pneg %p53
        %p159 = pneg %p77
        %p160 = pneg %p74
        %s161 = smul.u32 4, %s14
        %p162 = scmp.eq.s32.totalorder %s14, 0
        // Predicated region
        $region48: #{generator_forward.42} parent=42 // pred_check
          %p163 = pneg %p162
        $region49: #{generator_forward.42} parent=42 // pred_check_branch
          %165 = sbr.rel (%p163) target = $region51
        $region50: #{generator_forward.42} parent=42 // pred_region
          %vm166 = vcmask 7168
          %167 = vst.msk [vmem:[%s1] sm:$0xff] %vm166, 0.0
          %168 = vst.msk [vmem:[%s1 + $0x8] sm:$0xff] %vm166, 0.0
          %169 = vst.msk [vmem:[%s2] sm:$0xff] %vm166, 0.0
          %170 = vst.msk [vmem:[%s2 + $0x8] sm:$0xff] %vm166, 0.0
        $region51: #{generator_forward.42} parent=42 // pred_fallthru
          _
        %v171 = vld [vmem:[%s147] sm:$0xff]
        %v172 = vld [vmem:[%s147 + $0x8] sm:$0xff]
        %v173 = vld [vmem:[%s147 + $0x10] sm:$0xff]
        %v174 = vld [vmem:[%s147 + $0x18] sm:$0xff]
        %v175 = vld [vmem:[%s147 + $0x20] sm:$0xff]
        %v176 = vld [vmem:[%s147 + $0x28] sm:$0xff]
        %v177 = vld [vmem:[%s147 + $0x30] sm:$0xff]
        %v178 = vld [vmem:[%s147 + $0x38] sm:$0xff]
        %v179 = vld [vmem:[%s1] sm:$0xff]
        %v180 = vld [vmem:[%s1 + $0x8] sm:$0xff]
        %v181 = vadd.f32 %v171, %v172
        %v182 = vadd.f32 %v181, %v173
        %v183 = vadd.f32 %v182, %v174
        %184 = vadd.xlane.f32.xlu0 %v183
        %v185 = vpop.xlane.xlu0 %184
        %v186 = vadd.f32 %v175, %v176
        %v187 = vadd.f32 %v186, %v177
        %v188 = vadd.f32 %v187, %v178
        %189 = vadd.xlane.f32.xlu0 %v188
        %v190 = vpop.xlane.xlu0 %189
        %v191 = vadd.f32 %v179, %v185
        %v192 = vadd.f32 %v180, %v190
        %vm193 = vcmask 7168
        %194 = vst.msk [vmem:[%s1] sm:$0xff] %vm193, %v191
        %195 = vst.msk [vmem:[%s1 + $0x8] sm:$0xff] %vm193, %v192
        %v196 = vld [vmem:[%s2] sm:$0xff]
        %v197 = vld [vmem:[%s2 + $0x8] sm:$0xff]
        %v198 = vmul.f32 %v171, %v171
        %v199 = vmul.f32 %v172, %v172
        %v200 = vmul.f32 %v173, %v173
        %v201 = vmul.f32 %v174, %v174
        %v202 = vmul.f32 %v175, %v175
        %v203 = vmul.f32 %v176, %v176
        %v204 = vmul.f32 %v177, %v177
        %v205 = vmul.f32 %v178, %v178
        %v206 = vadd.f32 %v198, %v199
        %v207 = vadd.f32 %v206, %v200
        %v208 = vadd.f32 %v207, %v201
        %209 = vadd.xlane.f32.xlu0 %v208
        %v210 = vpop.xlane.xlu0 %209
        %v211 = vadd.f32 %v202, %v203
        %v212 = vadd.f32 %v211, %v204
        %v213 = vadd.f32 %v212, %v205
        %214 = vadd.xlane.f32.xlu0 %v213
        %v215 = vpop.xlane.xlu0 %214
        %v216 = vadd.f32 %v196, %v210
        %v217 = vadd.f32 %v197, %v215
        %218 = vst.msk [vmem:[%s2] sm:$0xff] %vm193, %v216
        %219 = vst.msk [vmem:[%s2 + $0x8] sm:$0xff] %vm193, %v217
        // Predicated region
        $region52: #{generator_forward.42} parent=42 // pred_check
          %p220 = pneg %p53
        $region53: #{generator_forward.42} parent=42 // pred_check_branch
          %222 = sbr.rel (%p220) target = $region55
        $region54: #{generator_forward.42} parent=42 // pred_region
          _
        $region55: #{generator_forward.42} parent=42 // pred_fallthru
          _
        // Predicated region
        $region56: #{generator_forward.42} parent=42 // pred_check
          %p223 = pneg %p74
        $region57: #{generator_forward.42} parent=42 // pred_check_branch
          %225 = sbr.rel (%p223) target = $region59
        $region58: #{generator_forward.42} parent=42 // pred_region
          _
        $region59: #{generator_forward.42} parent=42 // pred_fallthru
          _
        // Predicated region
        $region60: #{generator_forward.42} parent=42 // pred_check
          %p226 = pneg %p53
        $region61: #{generator_forward.42} parent=42 // pred_check_branch
          %228 = sbr.rel (%p226) target = $region63
        $region62: #{generator_forward.42} parent=42 // pred_region
          _
        $region63: #{generator_forward.42} parent=42 // pred_fallthru
          _
        // Predicated region
        $region64: #{generator_forward.42} parent=42 // pred_check
          %p229 = pneg %p74
        $region65: #{generator_forward.42} parent=42 // pred_check_branch
          %231 = sbr.rel (%p229) target = $region67
        $region66: #{generator_forward.42} parent=42 // pred_region
          _
        $region67: #{generator_forward.42} parent=42 // pred_fallthru
          _
      $region43: #{generator_forward.42} parent=5 // pred_fallthru
        _
      %p232 = scmp.le.s32.totalorder 2, %s9
      // Predicated region
      $region68: #{generator_forward.42} parent=5 // pred_check
        %p233 = pneg %p232
      $region69: #{generator_forward.42} parent=5 // pred_check_branch
        %235 = sbr.rel (%p233) target = $region71
      $region70: #{generator_forward.42} parent=5 // pred_region
        %s236 = ssub.s32 %s9, 2
      $region71: #{generator_forward.42} parent=5 // pred_fallthru
        _
    $region6: #{generator_forward.42} parent=1 // loop_footer
      %s13 = sadd.s32 1, %s9
    $region7: #{generator_forward.42} parent=1 // loop_footer_branch
      %8 = sbr.rel target = $region3
    $region8: #{generator_forward.42} parent=1 // loop_exit
      _

// kernel: generator_forward.43
$region0: #{generator_forward.43}
  #allocation0 [shape = 'u32[]', space=smem, size = 0x4, offset = 0x4, fixed_abs, tag = 'smem constant byte address 0x4 - core index']
  #allocation1 [shape = 'u32[144,128]{1,0:T(1,128)}', space=vmem, size = 0x12000, scoped, tag = 'internal scratch']
  %s0 = inlined_call_operand.vmem [shape: f32[16,2048], index: 0, kind: input, shape index: {}]
  %s1 = inlined_call_operand.vmem [shape: f32[16,1], index: 1, kind: input, shape index: {}]
  %s2 = inlined_call_operand.vmem [shape: f32[16,1], index: 2, kind: input, shape index: {}]
  %s3 = inlined_call_operand.vmem [shape: bf16[16,2048], index: 3, kind: output, shape index: {}]
  %s4 = sld [smem:[#allocation0]]
  $region87: #{generator_forward.43} parent=0
    _
  %s6 = ssub.s32 1, %s4
  %s7 = scalar_select 0, %s6, %s4
  $region1: #{generator_forward.43} parent=0
    #allocation2 [shape = 'u8[65536]{0}', space=vmem, size = 0x10000, scoped, tag = 'input window, operand 0']
    #allocation3 [shape = 'u8[32768]{0}', space=vmem, size = 0x8000, scoped, tag = 'output window, operand 0']
    loop: start=0, step=1, limit=6
    $region2: #{generator_forward.43} parent=1 // loop_pre_header
      _
    $region3: #{generator_forward.43} parent=1 // loop_header
      %s9 = sphi 0, %s13
      %p10 = scmp.ge.s32.totalorder %s9, 6
      %s19 = sphi 0, %s21
      %s22 = sphi 0, %s19
      %s23 = sphi 0, %s22
      %s39 = sphi 0, %s23
      %s43 = sphi 0, %s43
      %s45 = sphi 0, %s43
      %s46 = sphi 0, %s45
      %s60 = sphi 0, %s46
      %s64 = sphi 0, %s64
      %s66 = sphi 0, %s64
      %s67 = sphi 0, %s66
      %s81 = sphi 0, %s67
      %s87 = sphi 0, %s89
      %s90 = sphi 0, %s87
      %s91 = sphi 0, %s90
      %s107 = sphi 0, %s91
    $region4: #{generator_forward.43} parent=1 // loop_header_branch
      %12 = sbr.rel (%p10) target = $region8
    $region5: #{generator_forward.43} parent=1 // loop_body
      %s14 = ssub.s32 %s9, 1
      %s15 = ssub.s32 %s9, 2
      %s16 = sadd.s32 %s9, 1
      %s17 = ssub.s32 %s9, %s16
      %p18 = scmp.eq.s32.totalorder %s17, 0
      %s20 = sadd.s32 %s19, 1
      %s21 = scalar_select %p18, %s19, %s20
      %p24 = pneg %p18
      %p25 = scmp.eq.s32.totalorder %s9, 3
      %p26 = por %p24, %p25
      %p27 = scmp.ne.s32.totalorder %s19, %s22
      %p28 = scmp.eq.s32.totalorder %s9, 0
      %p29 = por %p27, %p28
      %p30 = scmp.ne.s32.totalorder %s19, %s22
      %p31 = scmp.eq.s32.totalorder %s14, 3
      %p32 = por %p30, %p31
      %p33 = scmp.ne.s32.totalorder %s22, %s23
      %p34 = scmp.eq.s32.totalorder %s14, 0
      %p35 = por %p33, %p34
      %p36 = scmp.ne.s32.totalorder %s22, %s23
      %p37 = scmp.eq.s32.totalorder %s15, 3
      %p38 = por %p36, %p37
      %p40 = scmp.ne.s32.totalorder %s23, %s39
      %p41 = scmp.eq.s32.totalorder %s15, 0
      %p42 = por %p40, %p41
      %s44 = sadd.s32 %s43, 1
      %p47 = scmp.eq.s32.totalorder %s9, 3
      %p48 = scmp.ne.s32.totalorder %s43, %s45
      %p49 = scmp.eq.s32.totalorder %s9, 0
      %p50 = por %p48, %p49
      %p51 = scmp.ne.s32.totalorder %s43, %s45
      %p52 = scmp.eq.s32.totalorder %s14, 3
      %p53 = por %p51, %p52
      %p54 = scmp.ne.s32.totalorder %s45, %s46
      %p55 = scmp.eq.s32.totalorder %s14, 0
      %p56 = por %p54, %p55
      %p57 = scmp.ne.s32.totalorder %s45, %s46
      %p58 = scmp.eq.s32.totalorder %s15, 3
      %p59 = por %p57, %p58
      %p61 = scmp.ne.s32.totalorder %s46, %s60
      %p62 = scmp.eq.s32.totalorder %s15, 0
      %p63 = por %p61, %p62
      %s65 = sadd.s32 %s64, 1
      %p68 = scmp.eq.s32.totalorder %s9, 3
      %p69 = scmp.ne.s32.totalorder %s64, %s66
      %p70 = scmp.eq.s32.totalorder %s9, 0
      %p71 = por %p69, %p70
      %p72 = scmp.ne.s32.totalorder %s64, %s66
      %p73 = scmp.eq.s32.totalorder %s14, 3
      %p74 = por %p72, %p73
      %p75 = scmp.ne.s32.totalorder %s66, %s67
      %p76 = scmp.eq.s32.totalorder %s14, 0
      %p77 = por %p75, %p76
      %p78 = scmp.ne.s32.totalorder %s66, %s67
      %p79 = scmp.eq.s32.totalorder %s15, 3
      %p80 = por %p78, %p79
      %p82 = scmp.ne.s32.totalorder %s67, %s81
      %p83 = scmp.eq.s32.totalorder %s15, 0
      %p84 = por %p82, %p83
      %s85 = ssub.s32 %s9, %s16
      %p86 = scmp.eq.s32.totalorder %s85, 0
      %s88 = sadd.s32 %s87, 1
      %s89 = scalar_select %p86, %s87, %s88
      %p92 = pneg %p86
      %p93 = scmp.eq.s32.totalorder %s9, 3
      %p94 = por %p92, %p93
      %p95 = scmp.ne.s32.totalorder %s87, %s90
      %p96 = scmp.eq.s32.totalorder %s9, 0
      %p97 = por %p95, %p96
      %p98 = scmp.ne.s32.totalorder %s87, %s90
      %p99 = scmp.eq.s32.totalorder %s14, 3
      %p100 = por %p98, %p99
      %p101 = scmp.ne.s32.totalorder %s90, %s91
      %p102 = scmp.eq.s32.totalorder %s14, 0
      %p103 = por %p101, %p102
      %p104 = scmp.ne.s32.totalorder %s90, %s91
      %p105 = scmp.eq.s32.totalorder %s15, 3
      %p106 = por %p104, %p105
      %p108 = scmp.ne.s32.totalorder %s91, %s107
      %p109 = scmp.eq.s32.totalorder %s15, 0
      %p110 = por %p108, %p109
      %p111 = scmp.le.s32.totalorder 1, %s9
      %p112 = scmp.lt.s32.totalorder %s9, 5
      %p113 = pnand %p111, %p112
      %p114 = pneg %p113
      // Predicated region
      $region9: #{generator_forward.43} parent=5 // pred_check
        _
      $region10: #{generator_forward.43} parent=5 // pred_check_branch
        %116 = sbr.rel (%p113) target = $region12
      $region11: #{generator_forward.43} parent=5 // pred_region
        %s117 = ssub.s32 %s9, 1
        // Predicated region
        $region13: #{generator_forward.43} parent=11 // pred_check
          %p118 = pneg %p56
        $region14: #{generator_forward.43} parent=11 // pred_check_branch
          %120 = sbr.rel (%p118) target = $region16
        $region15: #{generator_forward.43} parent=11 // pred_region
          _
        $region16: #{generator_forward.43} parent=11 // pred_fallthru
          _
        // Predicated region
        $region17: #{generator_forward.43} parent=11 // pred_check
          %p121 = pneg %p77
        $region18: #{generator_forward.43} parent=11 // pred_check_branch
          %123 = sbr.rel (%p121) target = $region20
        $region19: #{generator_forward.43} parent=11 // pred_region
          _
        $region20: #{generator_forward.43} parent=11 // pred_fallthru
          _
      $region12: #{generator_forward.43} parent=5 // pred_fallthru
        _
      %p124 = scmp.lt.s32.totalorder %s9, 4
      // Predicated region
      $region21: #{generator_forward.43} parent=5 // pred_check
        %p125 = pneg %p124
      $region22: #{generator_forward.43} parent=5 // pred_check_branch
        %127 = sbr.rel (%p125) target = $region24
      $region23: #{generator_forward.43} parent=5 // pred_region
        // Predicated region
        $region25: #{generator_forward.43} parent=23 // pred_check
          %p128 = pneg %p29
        $region26: #{generator_forward.43} parent=23 // pred_check_branch
          %130 = sbr.rel (%p128) target = $region28
        $region27: #{generator_forward.43} parent=23 // pred_region
          %s131 = sand.u32 %s19, 1
          %s132 = sand.u32 %s19, 1
          %s133 = smul.addr %s132, 64
          %s134 = scalar_lea.vmem [#allocation2], %s133
          %s135 = smul.u32 4, %s9
          %s136 = smul.addr %s135, 8
          %s137 = scalar_lea.vmem %s0, %s136
          // Predicated region
          $region29: #{generator_forward.43} parent=27 // pred_check
            _
          $region30: #{generator_forward.43} parent=27 // pred_check_branch
            %139 = sbr.rel (0) target = $region32
          $region31: #{generator_forward.43} parent=27 // pred_region
            // Predicated region
            $region33: #{generator_forward.43} parent=31 // pred_check
              _
            $region34: #{generator_forward.43} parent=31 // pred_check_branch
              %141 = sbr.rel (0) target = $region36
            $region35: #{generator_forward.43} parent=31 // pred_region
              loop: start=0, step=1, limit=1
              $region37: #{generator_forward.43} parent=35 // loop_pre_header
                _
              $region38: #{generator_forward.43} parent=35 // loop_header
                %s143 = sphi 0, %s147
                %p144 = scmp.ge.s32.totalorder %s143, 1
                %s148 = sphi %s137, %s137
                %s149 = sphi %s134, %s134
              $region39: #{generator_forward.43} parent=35 // loop_header_branch
                %146 = sbr.rel (%p144) target = $region43
              $region40: #{generator_forward.43} parent=35 // loop_body
                %v150 = vld [vmem:[%s148] sm:$0xff]
                %151 = vst [vmem:[%s149] sm:$0xff] %v150
                %v152 = vld [vmem:[%s148 + $0x8] sm:$0xff]
                %153 = vst [vmem:[%s149 + $0x8] sm:$0xff] %v152
                %v154 = vld [vmem:[%s148 + $0x10] sm:$0xff]
                %155 = vst [vmem:[%s149 + $0x10] sm:$0xff] %v154
                %v156 = vld [vmem:[%s148 + $0x18] sm:$0xff]
                %157 = vst [vmem:[%s149 + $0x18] sm:$0xff] %v156
                %v158 = vld [vmem:[%s148 + $0x80] sm:$0xff]
                %159 = vst [vmem:[%s149 + $0x20] sm:$0xff] %v158
                %v160 = vld [vmem:[%s148 + $0x88] sm:$0xff]
                %161 = vst [vmem:[%s149 + $0x28] sm:$0xff] %v160
                %v162 = vld [vmem:[%s148 + $0x90] sm:$0xff]
                %163 = vst [vmem:[%s149 + $0x30] sm:$0xff] %v162
                %v164 = vld [vmem:[%s148 + $0x98] sm:$0xff]
                %165 = vst [vmem:[%s149 + $0x38] sm:$0xff] %v164
              $region41: #{generator_forward.43} parent=35 // loop_footer
                %s147 = sadd.s32 1, %s143
              $region42: #{generator_forward.43} parent=35 // loop_footer_branch
                %142 = sbr.rel target = $region38
              $region43: #{generator_forward.43} parent=35 // loop_exit
                _
            $region36: #{generator_forward.43} parent=31 // pred_fallthru
              _
            // Predicated region
            $region44: #{generator_forward.43} parent=31 // pred_check
              _
            $region45: #{generator_forward.43} parent=31 // pred_check_branch
              %167 = sbr.rel target = $region47
            $region46: #{generator_forward.43} parent=31 // pred_region
              _
            $region47: #{generator_forward.43} parent=31 // pred_fallthru
              _
          $region32: #{generator_forward.43} parent=27 // pred_fallthru
            _
          %168 = vnop
        $region28: #{generator_forward.43} parent=23 // pred_fallthru
          _
      $region24: #{generator_forward.43} parent=5 // pred_fallthru
        _
      %p169 = scmp.le.s32.totalorder 1, %s9
      %p170 = scmp.lt.s32.totalorder %s9, 5
      %p171 = pnand %p169, %p170
      %p172 = pneg %p171
      // Predicated region
      $region48: #{generator_forward.43} parent=5 // pred_check
        _
      $region49: #{generator_forward.43} parent=5 // pred_check_branch
        %174 = sbr.rel (%p171) target = $region51
      $region50: #{generator_forward.43} parent=5 // pred_region
        %s175 = ssub.s32 %s9, 1
        %s176 = sand.u32 %s22, 1
        %s177 = sand.u32 %s22, 1
        %s178 = smul.addr %s177, 64
        %s179 = scalar_lea.vmem [#allocation2], %s178
        // Predicated region
        $region52: #{generator_forward.43} parent=50 // pred_check
          %p180 = pneg %p35
        $region53: #{generator_forward.43} parent=50 // pred_check_branch
          %182 = sbr.rel (%p180) target = $region55
        $region54: #{generator_forward.43} parent=50 // pred_region
          _
        $region55: #{generator_forward.43} parent=50 // pred_fallthru
          _
        %s183 = sand.u32 %s22, 1
        %s184 = sand.u32 %s22, 1
        %s185 = smul.addr %s184, 64
        %s186 = scalar_lea.vmem [#allocation2], %s185
        %p187 = pneg %p35
        %p188 = pneg %p32
        %p189 = pneg %p56
        %p190 = pneg %p53
        %p191 = pneg %p77
        %p192 = pneg %p74
        %p193 = pneg %p103
        %p194 = pneg %p100
        %s195 = sand.u32 %s90, 1
        %s196 = sand.u32 %s90, 1
        %s197 = smul.addr %s196, 32
        %s198 = scalar_lea.vmem [#allocation3], %s197
        %s199 = smul.u32 4, %s14
        %s200 = smul.u32 4, %s14
        %v201 = vld [vmem:[%s179] sm:$0xff]
        %v202 = vld [vmem:[%s179 + $0x8] sm:$0xff]
        %v203 = vld [vmem:[%s179 + $0x10] sm:$0xff]
        %v204 = vld [vmem:[%s179 + $0x18] sm:$0xff]
        %v205 = vld [vmem:[%s179 + $0x20] sm:$0xff]
        %v206 = vld [vmem:[%s179 + $0x28] sm:$0xff]
        %v207 = vld [vmem:[%s179 + $0x30] sm:$0xff]
        %v208 = vld [vmem:[%s179 + $0x38] sm:$0xff]
        %v209 = vld [vmem:[%s1] sm:$0xff]
        %v210 = vld [vmem:[%s1 + $0x8] sm:$0xff]
        %212 = vset.pattern.permute.xlu0 0
        %213 = vperm.xlu0 %212, %v209
        %v214 = vpop.permute.xlu0 %213
        %217 = vset.pattern.permute.xlu0 0
        %218 = vperm.xlu0 %217, %v210
        %v219 = vpop.permute.xlu0 %218
        %v221 = vmul.f32 %v201, %v214
        %v222 = vmul.f32 %v202, %v214
        %v223 = vmul.f32 %v203, %v214
        %v224 = vmul.f32 %v204, %v214
        %v225 = vmul.f32 %v205, %v219
        %v226 = vmul.f32 %v206, %v219
        %v227 = vmul.f32 %v207, %v219
        %v228 = vmul.f32 %v208, %v219
        %v229 = vld [vmem:[%s2] sm:$0xff]
        %v230 = vld [vmem:[%s2 + $0x8] sm:$0xff]
        %232 = vset.pattern.permute.xlu0 0
        %233 = vperm.xlu0 %232, %v229
        %v234 = vpop.permute.xlu0 %233
        %237 = vset.pattern.permute.xlu0 0
        %238 = vperm.xlu0 %237, %v230
        %v239 = vpop.permute.xlu0 %238
        %v241 = vadd.f32 %v221, %v234
        %v242 = vadd.f32 %v222, %v234
        %v243 = vadd.f32 %v223, %v234
        %v244 = vadd.f32 %v224, %v234
        %v245 = vadd.f32 %v225, %v239
        %v246 = vadd.f32 %v226, %v239
        %v247 = vadd.f32 %v227, %v239
        %v248 = vadd.f32 %v228, %v239
        %v249 = vmax.f32 %v241, 0.0
        %v250 = vmax.f32 %v242, 0.0
        %v251 = vmax.f32 %v243, 0.0
        %v252 = vmax.f32 %v244, 0.0
        %v253 = vmax.f32 %v245, 0.0
        %v254 = vmax.f32 %v246, 0.0
        %v255 = vmax.f32 %v247, 0.0
        %v256 = vmax.f32 %v248, 0.0
        %v257 = vpack.c.bf16 %v253, %v249
        %v258 = vpack.c.bf16 %v254, %v250
        %v259 = vpack.c.bf16 %v255, %v251
        %v260 = vpack.c.bf16 %v256, %v252
        %v265 = vunpack.c.l.b16 %v257
        %v266 = vunpack.c.l.b16 %v258
        %v267 = vunpack.c.l.b16 %v259
        %v268 = vunpack.c.l.b16 %v260
        %v269 = vunpack.c.h.b16 %v257
        %v270 = vunpack.c.h.b16 %v258
        %v271 = vunpack.c.h.b16 %v259
        %v272 = vunpack.c.h.b16 %v260
        %v273 = vpack.c.b16 %v266, %v265
        %v274 = vpack.c.b16 %v268, %v267
        %v275 = vpack.c.b16 %v270, %v269
        %v276 = vpack.c.b16 %v272, %v271
        %281 = vst [vmem:[%s198] sm:$0xff] %v273
        %282 = vst [vmem:[%s198 + $0x8] sm:$0xff] %v274
        %283 = vst [vmem:[%s198 + $0x10] sm:$0xff] %v275
        %284 = vst [vmem:[%s198 + $0x18] sm:$0xff] %v276
        %s285 = sand.u32 %s90, 1
        %s286 = sand.u32 %s90, 1
        %s287 = smul.addr %s286, 32
        %s288 = scalar_lea.vmem [#allocation3], %s287
        // Predicated region
        $region56: #{generator_forward.43} parent=50 // pred_check
          %p289 = pneg %p100
        $region57: #{generator_forward.43} parent=50 // pred_check_branch
          %291 = sbr.rel (%p289) target = $region59
        $region58: #{generator_forward.43} parent=50 // pred_region
          %s292 = smul.u32 4, %s14
          %s293 = smul.addr %s292, 4
          %s294 = scalar_lea.vmem %s3, %s293
          // Predicated region
          $region60: #{generator_forward.43} parent=58 // pred_check
            _
          $region61: #{generator_forward.43} parent=58 // pred_check_branch
            %296 = sbr.rel (0) target = $region63
          $region62: #{generator_forward.43} parent=58 // pred_region
            // Predicated region
            $region64: #{generator_forward.43} parent=62 // pred_check
              _
            $region65: #{generator_forward.43} parent=62 // pred_check_branch
              %298 = sbr.rel (0) target = $region67
            $region66: #{generator_forward.43} parent=62 // pred_region
              loop: start=0, step=1, limit=1
              $region68: #{generator_forward.43} parent=66 // loop_pre_header
                _
              $region69: #{generator_forward.43} parent=66 // loop_header
                %s300 = sphi 0, %s304
                %p301 = scmp.ge.s32.totalorder %s300, 1
                %s305 = sphi %s288, %s288
                %s306 = sphi %s294, %s294
              $region70: #{generator_forward.43} parent=66 // loop_header_branch
                %303 = sbr.rel (%p301) target = $region74
              $region71: #{generator_forward.43} parent=66 // loop_body
                %v307 = vld [vmem:[%s305] sm:$0xff]
                %308 = vst [vmem:[%s306] sm:$0xff] %v307
                %v309 = vld [vmem:[%s305 + $0x8] sm:$0xff]
                %310 = vst [vmem:[%s306 + $0x8] sm:$0xff] %v309
                %v311 = vld [vmem:[%s305 + $0x10] sm:$0xff]
                %312 = vst [vmem:[%s306 + $0x40] sm:$0xff] %v311
                %v313 = vld [vmem:[%s305 + $0x18] sm:$0xff]
                %314 = vst [vmem:[%s306 + $0x48] sm:$0xff] %v313
              $region72: #{generator_forward.43} parent=66 // loop_footer
                %s304 = sadd.s32 1, %s300
              $region73: #{generator_forward.43} parent=66 // loop_footer_branch
                %299 = sbr.rel target = $region69
              $region74: #{generator_forward.43} parent=66 // loop_exit
                _
            $region67: #{generator_forward.43} parent=62 // pred_fallthru
              _
            // Predicated region
            $region75: #{generator_forward.43} parent=62 // pred_check
              _
            $region76: #{generator_forward.43} parent=62 // pred_check_branch
              %316 = sbr.rel target = $region78
            $region77: #{generator_forward.43} parent=62 // pred_region
              _
            $region78: #{generator_forward.43} parent=62 // pred_fallthru
              _
          $region63: #{generator_forward.43} parent=58 // pred_fallthru
            _
          %317 = vnop
        $region59: #{generator_forward.43} parent=50 // pred_fallthru
          _
      $region51: #{generator_forward.43} parent=5 // pred_fallthru
        _
      %p318 = scmp.le.s32.totalorder 2, %s9
      // Predicated region
      $region79: #{generator_forward.43} parent=5 // pred_check
        %p319 = pneg %p318
      $region80: #{generator_forward.43} parent=5 // pred_check_branch
        %321 = sbr.rel (%p319) target = $region82
      $region81: #{generator_forward.43} parent=5 // pred_region
        %s322 = ssub.s32 %s9, 2
        // Predicated region
        $region83: #{generator_forward.43} parent=81 // pred_check
          %p323 = pneg %p106
        $region84: #{generator_forward.43} parent=81 // pred_check_branch
          %325 = sbr.rel (%p323) target = $region86
        $region85: #{generator_forward.43} parent=81 // pred_region
          %s326 = sand.u32 %s91, 1
          %s327 = sand.u32 %s91, 1
          %s328 = smul.addr %s327, 32
          %s329 = scalar_lea.vmem [#allocation3], %s328
        $region86: #{generator_forward.43} parent=81 // pred_fallthru
          _
      $region82: #{generator_forward.43} parent=5 // pred_fallthru
        _
    $region6: #{generator_forward.43} parent=1 // loop_footer
      %s13 = sadd.s32 1, %s9
    $region7: #{generator_forward.43} parent=1 // loop_footer_branch
      %8 = sbr.rel target = $region3
    $region8: #{generator_forward.43} parent=1 // loop_exit
      _

// kernel: generator_forward.44
$region0: #{generator_forward.44}
  #allocation0 [shape = 'u32[]', space=smem, size = 0x4, offset = 0x4, fixed_abs, tag = 'smem constant byte address 0x4 - core index']
  #allocation1 [shape = 'u32[144,128]{1,0:T(1,128)}', space=vmem, size = 0x12000, scoped, tag = 'internal scratch']
  %s0 = inlined_call_operand.vmem [shape: bf16[3,144], index: 0, kind: input, shape index: {}]
  %s1 = inlined_call_operand.vmem [shape: bf16[144,2048], index: 1, kind: input, shape index: {}]
  %s2 = inlined_call_operand.vmem [shape: f32[3,1], index: 2, kind: input, shape index: {}]
  %s3 = inlined_call_operand.vmem [shape: f32[3,2048], index: 3, kind: output, shape index: {}]
  %s4 = sld [smem:[#allocation0]]
  $region68: #{generator_forward.44} parent=0
    _
  %s6 = ssub.s32 1, %s4
  %s7 = scalar_select 0, %s6, %s4
  $region1: #{generator_forward.44} parent=0
    #allocation2 [shape = 'u8[294912]{0}', space=vmem, size = 0x48000, scoped, tag = 'input window, operand 1']
    loop: start=0, step=1, limit=6
    $region2: #{generator_forward.44} parent=1 // loop_pre_header
      _
    $region3: #{generator_forward.44} parent=1 // loop_header
      %s9 = sphi 0, %s13
      %p10 = scmp.ge.s32.totalorder %s9, 6
      %s17 = sphi 0, %s17
      %s19 = sphi 0, %s17
      %s20 = sphi 0, %s19
      %s34 = sphi 0, %s20
      %s40 = sphi 0, %s42
      %s43 = sphi 0, %s40
      %s44 = sphi 0, %s43
      %s60 = sphi 0, %s44
      %s64 = sphi 0, %s64
      %s66 = sphi 0, %s64
      %s67 = sphi 0, %s66
      %s81 = sphi 0, %s67
      %s87 = sphi 0, %s89
      %s90 = sphi 0, %s87
      %s91 = sphi 0, %s90
      %s107 = sphi 0, %s91
    $region4: #{generator_forward.44} parent=1 // loop_header_branch
      %12 = sbr.rel (%p10) target = $region8
    $region5: #{generator_forward.44} parent=1 // loop_body
      %s14 = ssub.s32 %s9, 1
      %s15 = ssub.s32 %s9, 2
      %s16 = sadd.s32 %s9, 1
      %s18 = sadd.s32 %s17, 1
      %p21 = scmp.eq.s32.totalorder %s9, 3
      %p22 = scmp.ne.s32.totalorder %s17, %s19
      %p23 = scmp.eq.s32.totalorder %s9, 0
      %p24 = por %p22, %p23
      %p25 = scmp.ne.s32.totalorder %s17, %s19
      %p26 = scmp.eq.s32.totalorder %s14, 3
      %p27 = por %p25, %p26
      %p28 = scmp.ne.s32.totalorder %s19, %s20
      %p29 = scmp.eq.s32.totalorder %s14, 0
      %p30 = por %p28, %p29
      %p31 = scmp.ne.s32.totalorder %s19, %s20
      %p32 = scmp.eq.s32.totalorder %s15, 3
      %p33 = por %p31, %p32
      %p35 = scmp.ne.s32.totalorder %s20, %s34
      %p36 = scmp.eq.s32.totalorder %s15, 0
      %p37 = por %p35, %p36
      %s38 = ssub.s32 %s9, %s16
      %p39 = scmp.eq.s32.totalorder %s38, 0
      %s41 = sadd.s32 %s40, 1
      %s42 = scalar_select %p39, %s40, %s41
      %p45 = pneg %p39
      %p46 = scmp.eq.s32.totalorder %s9, 3
      %p47 = por %p45, %p46
      %p48 = scmp.ne.s32.totalorder %s40, %s43
      %p49 = scmp.eq.s32.totalorder %s9, 0
      %p50 = por %p48, %p49
      %p51 = scmp.ne.s32.totalorder %s40, %s43
      %p52 = scmp.eq.s32.totalorder %s14, 3
      %p53 = por %p51, %p52
      %p54 = scmp.ne.s32.totalorder %s43, %s44
      %p55 = scmp.eq.s32.totalorder %s14, 0
      %p56 = por %p54, %p55
      %p57 = scmp.ne.s32.totalorder %s43, %s44
      %p58 = scmp.eq.s32.totalorder %s15, 3
      %p59 = por %p57, %p58
      %p61 = scmp.ne.s32.totalorder %s44, %s60
      %p62 = scmp.eq.s32.totalorder %s15, 0
      %p63 = por %p61, %p62
      %s65 = sadd.s32 %s64, 1
      %p68 = scmp.eq.s32.totalorder %s9, 3
      %p69 = scmp.ne.s32.totalorder %s64, %s66
      %p70 = scmp.eq.s32.totalorder %s9, 0
      %p71 = por %p69, %p70
      %p72 = scmp.ne.s32.totalorder %s64, %s66
      %p73 = scmp.eq.s32.totalorder %s14, 3
      %p74 = por %p72, %p73
      %p75 = scmp.ne.s32.totalorder %s66, %s67
      %p76 = scmp.eq.s32.totalorder %s14, 0
      %p77 = por %p75, %p76
      %p78 = scmp.ne.s32.totalorder %s66, %s67
      %p79 = scmp.eq.s32.totalorder %s15, 3
      %p80 = por %p78, %p79
      %p82 = scmp.ne.s32.totalorder %s67, %s81
      %p83 = scmp.eq.s32.totalorder %s15, 0
      %p84 = por %p82, %p83
      %s85 = ssub.s32 %s9, %s16
      %p86 = scmp.eq.s32.totalorder %s85, 0
      %s88 = sadd.s32 %s87, 1
      %s89 = scalar_select %p86, %s87, %s88
      %p92 = pneg %p86
      %p93 = scmp.eq.s32.totalorder %s9, 3
      %p94 = por %p92, %p93
      %p95 = scmp.ne.s32.totalorder %s87, %s90
      %p96 = scmp.eq.s32.totalorder %s9, 0
      %p97 = por %p95, %p96
      %p98 = scmp.ne.s32.totalorder %s87, %s90
      %p99 = scmp.eq.s32.totalorder %s14, 3
      %p100 = por %p98, %p99
      %p101 = scmp.ne.s32.totalorder %s90, %s91
      %p102 = scmp.eq.s32.totalorder %s14, 0
      %p103 = por %p101, %p102
      %p104 = scmp.ne.s32.totalorder %s90, %s91
      %p105 = scmp.eq.s32.totalorder %s15, 3
      %p106 = por %p104, %p105
      %p108 = scmp.ne.s32.totalorder %s91, %s107
      %p109 = scmp.eq.s32.totalorder %s15, 0
      %p110 = por %p108, %p109
      %p111 = scmp.le.s32.totalorder 1, %s9
      %p112 = scmp.lt.s32.totalorder %s9, 5
      %p113 = pnand %p111, %p112
      %p114 = pneg %p113
      // Predicated region
      $region9: #{generator_forward.44} parent=5 // pred_check
        _
      $region10: #{generator_forward.44} parent=5 // pred_check_branch
        %116 = sbr.rel (%p113) target = $region12
      $region11: #{generator_forward.44} parent=5 // pred_region
        %s117 = ssub.s32 %s9, 1
        // Predicated region
        $region13: #{generator_forward.44} parent=11 // pred_check
          %p118 = pneg %p30
        $region14: #{generator_forward.44} parent=11 // pred_check_branch
          %120 = sbr.rel (%p118) target = $region16
        $region15: #{generator_forward.44} parent=11 // pred_region
          _
        $region16: #{generator_forward.44} parent=11 // pred_fallthru
          _
        // Predicated region
        $region17: #{generator_forward.44} parent=11 // pred_check
          %p121 = pneg %p77
        $region18: #{generator_forward.44} parent=11 // pred_check_branch
          %123 = sbr.rel (%p121) target = $region20
        $region19: #{generator_forward.44} parent=11 // pred_region
          _
        $region20: #{generator_forward.44} parent=11 // pred_fallthru
          _
      $region12: #{generator_forward.44} parent=5 // pred_fallthru
        _
      %p124 = scmp.lt.s32.totalorder %s9, 4
      // Predicated region
      $region21: #{generator_forward.44} parent=5 // pred_check
        %p125 = pneg %p124
      $region22: #{generator_forward.44} parent=5 // pred_check_branch
        %127 = sbr.rel (%p125) target = $region24
      $region23: #{generator_forward.44} parent=5 // pred_region
        // Predicated region
        $region25: #{generator_forward.44} parent=23 // pred_check
          %p128 = pneg %p50
        $region26: #{generator_forward.44} parent=23 // pred_check_branch
          %130 = sbr.rel (%p128) target = $region28
        $region27: #{generator_forward.44} parent=23 // pred_region
          %s131 = sand.u32 %s40, 1
          %s132 = sand.u32 %s40, 1
          %s133 = smul.addr %s132, 288
          %s134 = scalar_lea.vmem [#allocation2], %s133
          %s135 = smul.u32 4, %s9
          %s136 = smul.addr %s135, 4
          %s137 = scalar_lea.vmem %s1, %s136
          // Predicated region
          $region29: #{generator_forward.44} parent=27 // pred_check
            _
          $region30: #{generator_forward.44} parent=27 // pred_check_branch
            %139 = sbr.rel (0) target = $region32
          $region31: #{generator_forward.44} parent=27 // pred_region
            // Predicated region
            $region33: #{generator_forward.44} parent=31 // pred_check
              _
            $region34: #{generator_forward.44} parent=31 // pred_check_branch
              %141 = sbr.rel (0) target = $region36
            $region35: #{generator_forward.44} parent=31 // pred_region
              loop: start=0, step=1, limit=1
              $region37: #{generator_forward.44} parent=35 // loop_pre_header
                _
              $region38: #{generator_forward.44} parent=35 // loop_header
                %s143 = sphi 0, %s147
                %p144 = scmp.ge.s32.totalorder %s143, 1
                %s148 = sphi %s137, %s137
                %s149 = sphi %s134, %s134
              $region39: #{generator_forward.44} parent=35 // loop_header_branch
                %146 = sbr.rel (%p144) target = $region43
              $region40: #{generator_forward.44} parent=35 // loop_body
                %v150 = vld [vmem:[%s148] sm:$0xff]
                %151 = vst [vmem:[%s149] sm:$0xff] %v150
                %v152 = vld [vmem:[%s148 + $0x8] sm:$0xff]
                %153 = vst [vmem:[%s149 + $0x8] sm:$0xff] %v152
                %v154 = vld [vmem:[%s148 + $0x40] sm:$0xff]
                %155 = vst [vmem:[%s149 + $0x10] sm:$0xff] %v154
                %v156 = vld [vmem:[%s148 + $0x48] sm:$0xff]
                %157 = vst [vmem:[%s149 + $0x18] sm:$0xff] %v156
                %v158 = vld [vmem:[%s148 + $0x80] sm:$0xff]
                %159 = vst [vmem:[%s149 + $0x20] sm:$0xff] %v158
                %v160 = vld [vmem:[%s148 + $0x88] sm:$0xff]
                %161 = vst [vmem:[%s149 + $0x28] sm:$0xff] %v160
                %v162 = vld [vmem:[%s148 + $0xc0] sm:$0xff]
                %163 = vst [vmem:[%s149 + $0x30] sm:$0xff] %v162
                %v164 = vld [vmem:[%s148 + $0xc8] sm:$0xff]
                %165 = vst [vmem:[%s149 + $0x38] sm:$0xff] %v164
                %v166 = vld [vmem:[%s148 + $0x100] sm:$0xff]
                %167 = vst [vmem:[%s149 + $0x40] sm:$0xff] %v166
                %v168 = vld [vmem:[%s148 + $0x108] sm:$0xff]
                %169 = vst [vmem:[%s149 + $0x48] sm:$0xff] %v168
                %v170 = vld [vmem:[%s148 + $0x140] sm:$0xff]
                %171 = vst [vmem:[%s149 + $0x50] sm:$0xff] %v170
                %v172 = vld [vmem:[%s148 + $0x148] sm:$0xff]
                %173 = vst [vmem:[%s149 + $0x58] sm:$0xff] %v172
                %v174 = vld [vmem:[%s148 + $0x180] sm:$0xff]
                %175 = vst [vmem:[%s149 + $0x60] sm:$0xff] %v174
                %v176 = vld [vmem:[%s148 + $0x188] sm:$0xff]
                %177 = vst [vmem:[%s149 + $0x68] sm:$0xff] %v176
                %v178 = vld [vmem:[%s148 + $0x1c0] sm:$0xff]
                %179 = vst [vmem:[%s149 + $0x70] sm:$0xff] %v178
                %v180 = vld [vmem:[%s148 + $0x1c8] sm:$0xff]
                %181 = vst [vmem:[%s149 + $0x78] sm:$0xff] %v180
                %v182 = vld [vmem:[%s148 + $0x200] sm:$0xff]
                %183 = vst [vmem:[%s149 + $0x80] sm:$0xff] %v182
                %v184 = vld [vmem:[%s148 + $0x208] sm:$0xff]
                %185 = vst [vmem:[%s149 + $0x88] sm:$0xff] %v184
                %v186 = vld [vmem:[%s148 + $0x240] sm:$0xff]
                %187 = vst [vmem:[%s149 + $0x90] sm:$0xff] %v186
                %v188 = vld [vmem:[%s148 + $0x248] sm:$0xff]
                %189 = vst [vmem:[%s149 + $0x98] sm:$0xff] %v188
                %v190 = vld [vmem:[%s148 + $0x280] sm:$0xff]
                %191 = vst [vmem:[%s149 + $0xa0] sm:$0xff] %v190
                %v192 = vld [vmem:[%s148 + $0x288] sm:$0xff]
                %193 = vst [vmem:[%s149 + $0xa8] sm:$0xff] %v192
                %v194 = vld [vmem:[%s148 + $0x2c0] sm:$0xff]
                %195 = vst [vmem:[%s149 + $0xb0] sm:$0xff] %v194
                %v196 = vld [vmem:[%s148 + $0x2c8] sm:$0xff]
                %197 = vst [vmem:[%s149 + $0xb8] sm:$0xff] %v196
                %v198 = vld [vmem:[%s148 + $0x300] sm:$0xff]
                %199 = vst [vmem:[%s149 + $0xc0] sm:$0xff] %v198
                %v200 = vld [vmem:[%s148 + $0x308] sm:$0xff]
                %201 = vst [vmem:[%s149 + $0xc8] sm:$0xff] %v200
                %v202 = vld [vmem:[%s148 + $0x340] sm:$0xff]
                %203 = vst [vmem:[%s149 + $0xd0] sm:$0xff] %v202
                %v204 = vld [vmem:[%s148 + $0x348] sm:$0xff]
                %205 = vst [vmem:[%s149 + $0xd8] sm:$0xff] %v204
                %v206 = vld [vmem:[%s148 + $0x380] sm:$0xff]
                %207 = vst [vmem:[%s149 + $0xe0] sm:$0xff] %v206
                %v208 = vld [vmem:[%s148 + $0x388] sm:$0xff]
                %209 = vst [vmem:[%s149 + $0xe8] sm:$0xff] %v208
                %v210 = vld [vmem:[%s148 + $0x3c0] sm:$0xff]
                %211 = vst [vmem:[%s149 + $0xf0] sm:$0xff] %v210
                %v212 = vld [vmem:[%s148 + $0x3c8] sm:$0xff]
                %213 = vst [vmem:[%s149 + $0xf8] sm:$0xff] %v212
                %v214 = vld [vmem:[%s148 + $0x400] sm:$0xff]
                %215 = vst [vmem:[%s149 + $0x100] sm:$0xff] %v214
                %v216 = vld [vmem:[%s148 + $0x408] sm:$0xff]
                %217 = vst [vmem:[%s149 + $0x108] sm:$0xff] %v216
                %v218 = vld [vmem:[%s148 + $0x440] sm:$0xff]
                %219 = vst [vmem:[%s149 + $0x110] sm:$0xff] %v218
                %v220 = vld [vmem:[%s148 + $0x448] sm:$0xff]
                %221 = vst [vmem:[%s149 + $0x118] sm:$0xff] %v220
              $region41: #{generator_forward.44} parent=35 // loop_footer
                %s147 = sadd.s32 1, %s143
              $region42: #{generator_forward.44} parent=35 // loop_footer_branch
                %142 = sbr.rel target = $region38
              $region43: #{generator_forward.44} parent=35 // loop_exit
                _
            $region36: #{generator_forward.44} parent=31 // pred_fallthru
              _
            // Predicated region
            $region44: #{generator_forward.44} parent=31 // pred_check
              _
            $region45: #{generator_forward.44} parent=31 // pred_check_branch
              %223 = sbr.rel target = $region47
            $region46: #{generator_forward.44} parent=31 // pred_region
              _
            $region47: #{generator_forward.44} parent=31 // pred_fallthru
              _
          $region32: #{generator_forward.44} parent=27 // pred_fallthru
            _
          %224 = vnop
        $region28: #{generator_forward.44} parent=23 // pred_fallthru
          _
      $region24: #{generator_forward.44} parent=5 // pred_fallthru
        _
      %p225 = scmp.le.s32.totalorder 1, %s9
      %p226 = scmp.lt.s32.totalorder %s9, 5
      %p227 = pnand %p225, %p226
      %p228 = pneg %p227
      // Predicated region
      $region48: #{generator_forward.44} parent=5 // pred_check
        _
      $region49: #{generator_forward.44} parent=5 // pred_check_branch
        %230 = sbr.rel (%p227) target = $region51
      $region50: #{generator_forward.44} parent=5 // pred_region
        %s231 = ssub.s32 %s9, 1
        %s232 = sand.u32 %s43, 1
        %s233 = sand.u32 %s43, 1
        %s234 = smul.addr %s233, 288
        %s235 = scalar_lea.vmem [#allocation2], %s234
        // Predicated region
        $region52: #{generator_forward.44} parent=50 // pred_check
          %p236 = pneg %p56
        $region53: #{generator_forward.44} parent=50 // pred_check_branch
          %238 = sbr.rel (%p236) target = $region55
        $region54: #{generator_forward.44} parent=50 // pred_region
          _
        $region55: #{generator_forward.44} parent=50 // pred_fallthru
          _
        %p239 = pneg %p30
        %p240 = pneg %p27
        %s241 = sand.u32 %s43, 1
        %s242 = sand.u32 %s43, 1
        %s243 = smul.addr %s242, 288
        %s244 = scalar_lea.vmem [#allocation2], %s243
        %p245 = pneg %p56
        %p246 = pneg %p53
        %p247 = pneg %p77
        %p248 = pneg %p74
        %p249 = pneg %p103
        %p250 = pneg %p100
        %s251 = smul.u32 4, %s14
        %p252 = scmp.lt.s32.totalorder %s251, 15
        %s253 = scalar_select %p252, %s251, 15
        %s254 = smul.addr %s253, 4
        %s255 = scalar_lea.vmem %s3, %s254
        %s256 = smul.u32 4, %s14
        %s257 = smul.u32 4, %s14
        %p258 = scmp.lt.s32.totalorder %s257, 15
        %s259 = scalar_select %p258, %s257, 15
        %s260 = smul.addr %s259, 4
        %s261 = scalar_lea.vmem %s3, %s260
        %s262 = smul.u32 4, %s14
        %v264 = vld [vmem:[%s0] sm:$0xf]
        %v265 = vld [vmem:[%s235] sm:$0xff]
        %v266 = vld [vmem:[%s235 + $0x8] sm:$0xff]
        %v267 = vld [vmem:[%s235 + $0x10] sm:$0xff]
        %v268 = vld [vmem:[%s235 + $0x18] sm:$0xff]
        %v269 = vld [vmem:[%s235 + $0x20] sm:$0xff]
        %v270 = vld [vmem:[%s235 + $0x28] sm:$0xff]
        %v271 = vld [vmem:[%s235 + $0x30] sm:$0xff]
        %v272 = vld [vmem:[%s235 + $0x38] sm:$0xff]
        %v273 = vld [vmem:[%s235 + $0x40] sm:$0xff]
        %v274 = vld [vmem:[%s235 + $0x48] sm:$0xff]
        %v275 = vld [vmem:[%s235 + $0x50] sm:$0xff]
        %v276 = vld [vmem:[%s235 + $0x58] sm:$0xff]
        %v277 = vld [vmem:[%s235 + $0x60] sm:$0xff]
        %v278 = vld [vmem:[%s235 + $0x68] sm:$0xff]
        %v279 = vld [vmem:[%s235 + $0x70] sm:$0xff]
        %v280 = vld [vmem:[%s235 + $0x78] sm:$0xff]
        %v281 = vld [vmem:[%s235 + $0x80] sm:$0xff]
        %v282 = vld [vmem:[%s235 + $0x88] sm:$0xff]
        %v283 = vld [vmem:[%s235 + $0x90] sm:$0xff]
        %v284 = vld [vmem:[%s235 + $0x98] sm:$0xff]
        %v285 = vld [vmem:[%s235 + $0xa0] sm:$0xff]
        %v286 = vld [vmem:[%s235 + $0xa8] sm:$0xff]
        %v287 = vld [vmem:[%s235 + $0xb0] sm:$0xff]
        %v288 = vld [vmem:[%s235 + $0xb8] sm:$0xff]
        %v289 = vld [vmem:[%s235 + $0xc0] sm:$0xff]
        %v290 = vld [vmem:[%s235 + $0xc8] sm:$0xff]
        %v291 = vld [vmem:[%s235 + $0xd0] sm:$0xff]
        %v292 = vld [vmem:[%s235 + $0xd8] sm:$0xff]
        %v293 = vld [vmem:[%s235 + $0xe0] sm:$0xff]
        %v294 = vld [vmem:[%s235 + $0xe8] sm:$0xff]
        %v295 = vld [vmem:[%s235 + $0xf0] sm:$0xff]
        %v296 = vld [vmem:[%s235 + $0xf8] sm:$0xff]
        %v297 = vld [vmem:[%s235 + $0x100] sm:$0xff]
        %v298 = vld [vmem:[%s235 + $0x108] sm:$0xff]
        %v299 = vld [vmem:[%s235 + $0x110] sm:$0xff]
        %v300 = vld [vmem:[%s235 + $0x118] sm:$0xff]
        %v301 = vld [vmem:[%s2] sm:$0x7]
        %303 = vset.pattern.permute.xlu0 0
        %304 = vperm.xlu0 %303, %v301
        %v305 = vpop.permute.xlu0 %304
        %v309 = vunpack.c.l.s4 1983009808
        %v310 = vunpack.c.0.s8 %v309
        %v311 = vlaneseq
        %v312 = vshrl.u32 %v311, 7
        %v313 = vsub.s32 %v310, %v312
        %v314 = vrot.slane %v264, %v313
        %v315 = vcombine.high %v314, %v314
        %v353 = vunpack.c.l.b16 %v265
        %v354 = vunpack.c.h.b16 %v265
        %v355 = vunpack.c.l.b16 %v266
        %v356 = vunpack.c.h.b16 %v266
        %v357 = vunpack.c.l.b16 %v267
        %v358 = vunpack.c.h.b16 %v267
        %v359 = vunpack.c.l.b16 %v268
        %v360 = vunpack.c.h.b16 %v268
        %v361 = vunpack.c.l.b16 %v269
        %v362 = vunpack.c.h.b16 %v269
        %v363 = vunpack.c.l.b16 %v270
        %v364 = vunpack.c.h.b16 %v270
        %v365 = vunpack.c.l.b16 %v271
        %v366 = vunpack.c.h.b16 %v271
        %v367 = vunpack.c.l.b16 %v272
        %v368 = vunpack.c.h.b16 %v272
        %v369 = vunpack.c.l.b16 %v273
        %v370 = vunpack.c.h.b16 %v273
        %v371 = vunpack.c.l.b16 %v274
        %v372 = vunpack.c.h.b16 %v274
        %v373 = vunpack.c.l.b16 %v275
        %v374 = vunpack.c.h.b16 %v275
        %v375 = vunpack.c.l.b16 %v276
        %v376 = vunpack.c.h.b16 %v276
        %v377 = vunpack.c.l.b16 %v277
        %v378 = vunpack.c.h.b16 %v277
        %v379 = vunpack.c.l.b16 %v278
        %v380 = vunpack.c.h.b16 %v278
        %v381 = vunpack.c.l.b16 %v279
        %v382 = vunpack.c.h.b16 %v279
        %v383 = vunpack.c.l.b16 %v280
        %v384 = vunpack.c.h.b16 %v280
        %v385 = vunpack.c.l.b16 %v281
        %v386 = vunpack.c.h.b16 %v281
        %v387 = vunpack.c.l.b16 %v282
        %v388 = vunpack.c.h.b16 %v282
        %v389 = vunpack.c.l.b16 %v283
        %v390 = vunpack.c.h.b16 %v283
        %v391 = vunpack.c.l.b16 %v284
        %v392 = vunpack.c.h.b16 %v284
        %v393 = vunpack.c.l.b16 %v285
        %v394 = vunpack.c.h.b16 %v285
        %v395 = vunpack.c.l.b16 %v286
        %v396 = vunpack.c.h.b16 %v286
        %v397 = vunpack.c.l.b16 %v287
        %v398 = vunpack.c.h.b16 %v287
        %v399 = vunpack.c.l.b16 %v288
        %v400 = vunpack.c.h.b16 %v288
        %v401 = vunpack.c.l.b16 %v289
        %v402 = vunpack.c.h.b16 %v289
        %v403 = vunpack.c.l.b16 %v290
        %v404 = vunpack.c.h.b16 %v290
        %v405 = vunpack.c.l.b16 %v291
        %v406 = vunpack.c.h.b16 %v291
        %v407 = vunpack.c.l.b16 %v292
        %v408 = vunpack.c.h.b16 %v292
        %v409 = vunpack.c.l.b16 %v293
        %v410 = vunpack.c.h.b16 %v293
        %v411 = vunpack.c.l.b16 %v294
        %v412 = vunpack.c.h.b16 %v294
        %v413 = vunpack.c.l.b16 %v295
        %v414 = vunpack.c.h.b16 %v295
        %v415 = vunpack.c.l.b16 %v296
        %v416 = vunpack.c.h.b16 %v296
        %v417 = vunpack.c.l.b16 %v297
        %v418 = vunpack.c.h.b16 %v297
        %v419 = vunpack.c.l.b16 %v298
        %v420 = vunpack.c.h.b16 %v298
        %v421 = vunpack.c.l.b16 %v299
        %v422 = vunpack.c.h.b16 %v299
        %v423 = vunpack.c.l.b16 %v300
        %v424 = vunpack.c.h.b16 %v300
        %v425 = vpack.c.b16 %v357, %v353
        %v426 = vpack.c.b16 %v358, %v354
        %v427 = vpack.c.b16 %v359, %v355
        %v428 = vpack.c.b16 %v360, %v356
        %v429 = vpack.c.b16 %v365, %v361
        %v430 = vpack.c.b16 %v366, %v362
        %v431 = vpack.c.b16 %v367, %v363
        %v432 = vpack.c.b16 %v368, %v364
        %v433 = vpack.c.b16 %v373, %v369
        %v434 = vpack.c.b16 %v374, %v370
        %v435 = vpack.c.b16 %v375, %v371
        %v436 = vpack.c.b16 %v376, %v372
        %v437 = vpack.c.b16 %v381, %v377
        %v438 = vpack.c.b16 %v382, %v378
        %v439 = vpack.c.b16 %v383, %v379
        %v440 = vpack.c.b16 %v384, %v380
        %v441 = vpack.c.b16 %v389, %v385
        %v442 = vpack.c.b16 %v390, %v386
        %v443 = vpack.c.b16 %v391, %v387
        %v444 = vpack.c.b16 %v392, %v388
        %v445 = vpack.c.b16 %v397, %v393
        %v446 = vpack.c.b16 %v398, %v394
        %v447 = vpack.c.b16 %v399, %v395
        %v448 = vpack.c.b16 %v400, %v396
        %v449 = vpack.c.b16 %v405, %v401
        %v450 = vpack.c.b16 %v406, %v402
        %v451 = vpack.c.b16 %v407, %v403
        %v452 = vpack.c.b16 %v408, %v404
        %v453 = vpack.c.b16 %v413, %v409
        %v454 = vpack.c.b16 %v414, %v410
        %v455 = vpack.c.b16 %v415, %v411
        %v456 = vpack.c.b16 %v416, %v412
        %v457 = vpack.c.b16 %v421, %v417
        %v458 = vpack.c.b16 %v422, %v418
        %v459 = vpack.c.b16 %v423, %v419
        %v460 = vpack.c.b16 %v424, %v420
        %vm497 = vcmask 130048
        %v499 = vsel %vm497, %v315, 0
        %501 = vmatprep.subr.bf16.mxu0 %v426
        %502 = vmatpush1.bf16.msra.mxu0 %v425
        %503 = vmatprep.subr.bf16.mxu0 %v430
        %504 = vmatpush1.bf16.msra.mxu0 %v429
        %505 = vmatprep.subr.bf16.mxu0 %v434
        %506 = vmatpush1.bf16.msra.mxu0 %v433
        %507 = vmatprep.subr.bf16.mxu0 %v438
        %508 = vmatpush1.bf16.msra.mxu0 %v437
        %509 = vmatprep.subr.bf16.mxu0 %v442
        %510 = vmatpush1.bf16.msra.mxu0 %v441
        %511 = vmatprep.subr.bf16.mxu0 %v446
        %512 = vmatpush1.bf16.msra.mxu0 %v445
        %513 = vmatprep.subr.bf16.mxu0 %v450
        %514 = vmatpush1.bf16.msra.mxu0 %v449
        %515 = vmatprep.subr.bf16.mxu0 %v454
        %516 = vmatpush1.bf16.msra.mxu0 %v453
        %517 = vmatprep.subr.bf16.mxu0 %v458
        %518 = vmatpush1.bf16.msra.mxu0 %v457
        %519 = vmatprep.subr.bf16.mxu0 0
        %520 = vmatpush1.bf16.msra.mxu0 0
        %521 = vmatprep.subr.bf16.mxu0 0
        %522 = vmatpush1.bf16.msra.mxu0 0
        %523 = vmatprep.subr.bf16.mxu0 0
        %524 = vmatpush1.bf16.msra.mxu0 0
        %525 = vmatprep.subr.bf16.mxu0 0
        %526 = vmatpush1.bf16.msra.mxu0 0
        %527 = vmatprep.subr.bf16.mxu0 0
        %528 = vmatpush1.bf16.msra.mxu0 0
        %529 = vmatprep.subr.bf16.mxu0 0
        %530 = vmatpush1.bf16.msra.mxu0 0
        %531 = vmatprep.subr.bf16.mxu0 0
        %532 = vmatpush1.bf16.msra.mxu0 0
        %533 = vmatprep.mubr.bf16.mxu0 %v499
        %534 = vmatmul.mubr.bf16.gmra.mrb[0].mxu0 %v314
        %v535 = vpop.f32.mrb[0].mxu0
        %v536 = vadd.f32 %v305, %v535
        %v537 = vpop.f32.mrb[0].mxu0
        %v538 = vadd.f32 %v305, %v537
        %v539 = vpop.f32.mrb[0].mxu0
        %v540 = vpop.f32.mrb[0].mxu0
        %541 = vdwg.mxu0
        %542 = vmatprep.subr.bf16.mxu0 %v428
        %543 = vmatpush1.bf16.msra.mxu0 %v427
        %544 = vmatprep.subr.bf16.mxu0 %v432
        %545 = vmatpush1.bf16.msra.mxu0 %v431
        %546 = vmatprep.subr.bf16.mxu0 %v436
        %547 = vmatpush1.bf16.msra.mxu0 %v435
        %548 = vmatprep.subr.bf16.mxu0 %v440
        %549 = vmatpush1.bf16.msra.mxu0 %v439
        %550 = vmatprep.subr.bf16.mxu0 %v444
        %551 = vmatpush1.bf16.msra.mxu0 %v443
        %552 = vmatprep.subr.bf16.mxu0 %v448
        %553 = vmatpush1.bf16.msra.mxu0 %v447
        %554 = vmatprep.subr.bf16.mxu0 %v452
        %555 = vmatpush1.bf16.msra.mxu0 %v451
        %556 = vmatprep.subr.bf16.mxu0 %v456
        %557 = vmatpush1.bf16.msra.mxu0 %v455
        %558 = vmatprep.subr.bf16.mxu0 %v460
        %559 = vmatpush1.bf16.msra.mxu0 %v459
        %560 = vmatprep.subr.bf16.mxu0 0
        %561 = vmatpush1.bf16.msra.mxu0 0
        %562 = vmatprep.subr.bf16.mxu0 0
        %563 = vmatpush1.bf16.msra.mxu0 0
        %564 = vmatprep.subr.bf16.mxu0 0
        %565 = vmatpush1.bf16.msra.mxu0 0
        %566 = vmatprep.subr.bf16.mxu0 0
        %567 = vmatpush1.bf16.msra.mxu0 0
        %568 = vmatprep.subr.bf16.mxu0 0
        %569 = vmatpush1.bf16.msra.mxu0 0
        %570 = vmatprep.subr.bf16.mxu0 0
        %571 = vmatpush1.bf16.msra.mxu0 0
        %572 = vmatprep.subr.bf16.mxu0 0
        %573 = vmatpush1.bf16.msra.mxu0 0
        %574 = vmatprep.mubr.bf16.mxu0 %v499
        %575 = vmatmul.mubr.bf16.gmra.mrb[0].mxu0 %v314
        %v576 = vpop.f32.mrb[0].mxu0
        %v577 = vadd.f32 %v305, %v576
        %v578 = vpop.f32.mrb[0].mxu0
        %v579 = vadd.f32 %v305, %v578
        %v580 = vpop.f32.mrb[0].mxu0
        %v581 = vpop.f32.mrb[0].mxu0
        %582 = vdwg.mxu0
        %v583 = vtanh.pop %v536
        %v584 = vtanh.pop %v538
        %v585 = vtanh.pop %v577
        %v586 = vtanh.pop %v579
        %v591 = vcombine.low %v583, %v584
        %v592 = vcombine.low %v585, %v586
        %595 = vst [vmem:[%s261] sm:$0x77] %v591
        %596 = vst [vmem:[%s261 + $0x8] sm:$0x77] %v592
        %s597 = smul.u32 4, %s14
        %p598 = scmp.lt.s32.totalorder %s597, 15
        %s599 = scalar_select %p598, %s597, 15
        %s600 = smul.addr %s599, 4
        %s601 = scalar_lea.vmem %s3, %s600
        // Predicated region
        $region56: #{generator_forward.44} parent=50 // pred_check
          %p602 = pneg %p100
        $region57: #{generator_forward.44} parent=50 // pred_check_branch
          %604 = sbr.rel (%p602) target = $region59
        $region58: #{generator_forward.44} parent=50 // pred_region
          %s605 = smul.u32 4, %s14
        $region59: #{generator_forward.44} parent=50 // pred_fallthru
          _
      $region51: #{generator_forward.44} parent=5 // pred_fallthru
        _
      %p606 = scmp.le.s32.totalorder 2, %s9
      // Predicated region
      $region60: #{generator_forward.44} parent=5 // pred_check
        %p607 = pneg %p606
      $region61: #{generator_forward.44} parent=5 // pred_check_branch
        %609 = sbr.rel (%p607) target = $region63
      $region62: #{generator_forward.44} parent=5 // pred_region
        %s610 = ssub.s32 %s9, 2
        // Predicated region
        $region64: #{generator_forward.44} parent=62 // pred_check
          %p611 = pneg %p106
        $region65: #{generator_forward.44} parent=62 // pred_check_branch
          %613 = sbr.rel (%p611) target = $region67
        $region66: #{generator_forward.44} parent=62 // pred_region
          %s614 = smul.u32 4, %s15
          %p615 = scmp.lt.s32.totalorder %s614, 15
          %s616 = scalar_select %p615, %s614, 15
          %s617 = smul.addr %s616, 4
          %s618 = scalar_lea.vmem %s3, %s617
        $region67: #{generator_forward.44} parent=62 // pred_fallthru
          _
      $region63: #{generator_forward.44} parent=5 // pred_fallthru
        _
    $region6: #{generator_forward.44} parent=1 // loop_footer
      %s13 = sadd.s32 1, %s9
    $region7: #{generator_forward.44} parent=1 // loop_footer_branch
      %8 = sbr.rel target = $region3
    $region8: #{generator_forward.44} parent=1 // loop_exit
      _

// kernel: generator_forward.45
$region0: #{generator_forward.45}
  #allocation0 [shape = 'u32[]', space=smem, size = 0x4, offset = 0x4, fixed_abs, tag = 'smem constant byte address 0x4 - core index']
  #allocation1 [shape = 'u32[144,128]{1,0:T(1,128)}', space=vmem, size = 0x12000, scoped, tag = 'internal scratch']
  %s0 = inlined_call_operand.vmem [shape: bf16[3,96], index: 0, kind: input, shape index: {}]
  %s1 = inlined_call_operand.vmem [shape: bf16[96,2048], index: 1, kind: input, shape index: {}]
  %s2 = inlined_call_operand.vmem [shape: f32[3,1], index: 2, kind: input, shape index: {}]
  %s3 = inlined_call_operand.vmem [shape: f32[3,2048], index: 3, kind: output, shape index: {}]
  %s4 = sld [smem:[#allocation0]]
  $region68: #{generator_forward.45} parent=0
    _
  %s6 = ssub.s32 1, %s4
  %s7 = scalar_select 0, %s6, %s4
  $region1: #{generator_forward.45} parent=0
    #allocation2 [shape = 'u8[196608]{0}', space=vmem, size = 0x30000, scoped, tag = 'input window, operand 1']
    loop: start=0, step=1, limit=6
    $region2: #{generator_forward.45} parent=1 // loop_pre_header
      _
    $region3: #{generator_forward.45} parent=1 // loop_header
      %s9 = sphi 0, %s13
      %p10 = scmp.ge.s32.totalorder %s9, 6
      %s17 = sphi 0, %s17
      %s19 = sphi 0, %s17
      %s20 = sphi 0, %s19
      %s34 = sphi 0, %s20
      %s40 = sphi 0, %s42
      %s43 = sphi 0, %s40
      %s44 = sphi 0, %s43
      %s60 = sphi 0, %s44
      %s64 = sphi 0, %s64
      %s66 = sphi 0, %s64
      %s67 = sphi 0, %s66
      %s81 = sphi 0, %s67
      %s87 = sphi 0, %s89
      %s90 = sphi 0, %s87
      %s91 = sphi 0, %s90
      %s107 = sphi 0, %s91
    $region4: #{generator_forward.45} parent=1 // loop_header_branch
      %12 = sbr.rel (%p10) target = $region8
    $region5: #{generator_forward.45} parent=1 // loop_body
      %s14 = ssub.s32 %s9, 1
      %s15 = ssub.s32 %s9, 2
      %s16 = sadd.s32 %s9, 1
      %s18 = sadd.s32 %s17, 1
      %p21 = scmp.eq.s32.totalorder %s9, 3
      %p22 = scmp.ne.s32.totalorder %s17, %s19
      %p23 = scmp.eq.s32.totalorder %s9, 0
      %p24 = por %p22, %p23
      %p25 = scmp.ne.s32.totalorder %s17, %s19
      %p26 = scmp.eq.s32.totalorder %s14, 3
      %p27 = por %p25, %p26
      %p28 = scmp.ne.s32.totalorder %s19, %s20
      %p29 = scmp.eq.s32.totalorder %s14, 0
      %p30 = por %p28, %p29
      %p31 = scmp.ne.s32.totalorder %s19, %s20
      %p32 = scmp.eq.s32.totalorder %s15, 3
      %p33 = por %p31, %p32
      %p35 = scmp.ne.s32.totalorder %s20, %s34
      %p36 = scmp.eq.s32.totalorder %s15, 0
      %p37 = por %p35, %p36
      %s38 = ssub.s32 %s9, %s16
      %p39 = scmp.eq.s32.totalorder %s38, 0
      %s41 = sadd.s32 %s40, 1
      %s42 = scalar_select %p39, %s40, %s41
      %p45 = pneg %p39
      %p46 = scmp.eq.s32.totalorder %s9, 3
      %p47 = por %p45, %p46
      %p48 = scmp.ne.s32.totalorder %s40, %s43
      %p49 = scmp.eq.s32.totalorder %s9, 0
      %p50 = por %p48, %p49
      %p51 = scmp.ne.s32.totalorder %s40, %s43
      %p52 = scmp.eq.s32.totalorder %s14, 3
      %p53 = por %p51, %p52
      %p54 = scmp.ne.s32.totalorder %s43, %s44
      %p55 = scmp.eq.s32.totalorder %s14, 0
      %p56 = por %p54, %p55
      %p57 = scmp.ne.s32.totalorder %s43, %s44
      %p58 = scmp.eq.s32.totalorder %s15, 3
      %p59 = por %p57, %p58
      %p61 = scmp.ne.s32.totalorder %s44, %s60
      %p62 = scmp.eq.s32.totalorder %s15, 0
      %p63 = por %p61, %p62
      %s65 = sadd.s32 %s64, 1
      %p68 = scmp.eq.s32.totalorder %s9, 3
      %p69 = scmp.ne.s32.totalorder %s64, %s66
      %p70 = scmp.eq.s32.totalorder %s9, 0
      %p71 = por %p69, %p70
      %p72 = scmp.ne.s32.totalorder %s64, %s66
      %p73 = scmp.eq.s32.totalorder %s14, 3
      %p74 = por %p72, %p73
      %p75 = scmp.ne.s32.totalorder %s66, %s67
      %p76 = scmp.eq.s32.totalorder %s14, 0
      %p77 = por %p75, %p76
      %p78 = scmp.ne.s32.totalorder %s66, %s67
      %p79 = scmp.eq.s32.totalorder %s15, 3
      %p80 = por %p78, %p79
      %p82 = scmp.ne.s32.totalorder %s67, %s81
      %p83 = scmp.eq.s32.totalorder %s15, 0
      %p84 = por %p82, %p83
      %s85 = ssub.s32 %s9, %s16
      %p86 = scmp.eq.s32.totalorder %s85, 0
      %s88 = sadd.s32 %s87, 1
      %s89 = scalar_select %p86, %s87, %s88
      %p92 = pneg %p86
      %p93 = scmp.eq.s32.totalorder %s9, 3
      %p94 = por %p92, %p93
      %p95 = scmp.ne.s32.totalorder %s87, %s90
      %p96 = scmp.eq.s32.totalorder %s9, 0
      %p97 = por %p95, %p96
      %p98 = scmp.ne.s32.totalorder %s87, %s90
      %p99 = scmp.eq.s32.totalorder %s14, 3
      %p100 = por %p98, %p99
      %p101 = scmp.ne.s32.totalorder %s90, %s91
      %p102 = scmp.eq.s32.totalorder %s14, 0
      %p103 = por %p101, %p102
      %p104 = scmp.ne.s32.totalorder %s90, %s91
      %p105 = scmp.eq.s32.totalorder %s15, 3
      %p106 = por %p104, %p105
      %p108 = scmp.ne.s32.totalorder %s91, %s107
      %p109 = scmp.eq.s32.totalorder %s15, 0
      %p110 = por %p108, %p109
      %p111 = scmp.le.s32.totalorder 1, %s9
      %p112 = scmp.lt.s32.totalorder %s9, 5
      %p113 = pnand %p111, %p112
      %p114 = pneg %p113
      // Predicated region
      $region9: #{generator_forward.45} parent=5 // pred_check
        _
      $region10: #{generator_forward.45} parent=5 // pred_check_branch
        %116 = sbr.rel (%p113) target = $region12
      $region11: #{generator_forward.45} parent=5 // pred_region
        %s117 = ssub.s32 %s9, 1
        // Predicated region
        $region13: #{generator_forward.45} parent=11 // pred_check
          %p118 = pneg %p30
        $region14: #{generator_forward.45} parent=11 // pred_check_branch
          %120 = sbr.rel (%p118) target = $region16
        $region15: #{generator_forward.45} parent=11 // pred_region
          _
        $region16: #{generator_forward.45} parent=11 // pred_fallthru
          _
        // Predicated region
        $region17: #{generator_forward.45} parent=11 // pred_check
          %p121 = pneg %p77
        $region18: #{generator_forward.45} parent=11 // pred_check_branch
          %123 = sbr.rel (%p121) target = $region20
        $region19: #{generator_forward.45} parent=11 // pred_region
          _
        $region20: #{generator_forward.45} parent=11 // pred_fallthru
          _
      $region12: #{generator_forward.45} parent=5 // pred_fallthru
        _
      %p124 = scmp.lt.s32.totalorder %s9, 4
      // Predicated region
      $region21: #{generator_forward.45} parent=5 // pred_check
        %p125 = pneg %p124
      $region22: #{generator_forward.45} parent=5 // pred_check_branch
        %127 = sbr.rel (%p125) target = $region24
      $region23: #{generator_forward.45} parent=5 // pred_region
        // Predicated region
        $region25: #{generator_forward.45} parent=23 // pred_check
          %p128 = pneg %p50
        $region26: #{generator_forward.45} parent=23 // pred_check_branch
          %130 = sbr.rel (%p128) target = $region28
        $region27: #{generator_forward.45} parent=23 // pred_region
          %s131 = sand.u32 %s40, 1
          %s132 = sand.u32 %s40, 1
          %s133 = smul.addr %s132, 192
          %s134 = scalar_lea.vmem [#allocation2], %s133
          %s135 = smul.u32 4, %s9
          %s136 = smul.addr %s135, 4
          %s137 = scalar_lea.vmem %s1, %s136
          // Predicated region
          $region29: #{generator_forward.45} parent=27 // pred_check
            _
          $region30: #{generator_forward.45} parent=27 // pred_check_branch
            %139 = sbr.rel (0) target = $region32
          $region31: #{generator_forward.45} parent=27 // pred_region
            // Predicated region
            $region33: #{generator_forward.45} parent=31 // pred_check
              _
            $region34: #{generator_forward.45} parent=31 // pred_check_branch
              %141 = sbr.rel (0) target = $region36
            $region35: #{generator_forward.45} parent=31 // pred_region
              loop: start=0, step=1, limit=1
              $region37: #{generator_forward.45} parent=35 // loop_pre_header
                _
              $region38: #{generator_forward.45} parent=35 // loop_header
                %s143 = sphi 0, %s147
                %p144 = scmp.ge.s32.totalorder %s143, 1
                %s148 = sphi %s137, %s137
                %s149 = sphi %s134, %s134
              $region39: #{generator_forward.45} parent=35 // loop_header_branch
                %146 = sbr.rel (%p144) target = $region43
              $region40: #{generator_forward.45} parent=35 // loop_body
                %v150 = vld [vmem:[%s148] sm:$0xff]
                %151 = vst [vmem:[%s149] sm:$0xff] %v150
                %v152 = vld [vmem:[%s148 + $0x8] sm:$0xff]
                %153 = vst [vmem:[%s149 + $0x8] sm:$0xff] %v152
                %v154 = vld [vmem:[%s148 + $0x40] sm:$0xff]
                %155 = vst [vmem:[%s149 + $0x10] sm:$0xff] %v154
                %v156 = vld [vmem:[%s148 + $0x48] sm:$0xff]
                %157 = vst [vmem:[%s149 + $0x18] sm:$0xff] %v156
                %v158 = vld [vmem:[%s148 + $0x80] sm:$0xff]
                %159 = vst [vmem:[%s149 + $0x20] sm:$0xff] %v158
                %v160 = vld [vmem:[%s148 + $0x88] sm:$0xff]
                %161 = vst [vmem:[%s149 + $0x28] sm:$0xff] %v160
                %v162 = vld [vmem:[%s148 + $0xc0] sm:$0xff]
                %163 = vst [vmem:[%s149 + $0x30] sm:$0xff] %v162
                %v164 = vld [vmem:[%s148 + $0xc8] sm:$0xff]
                %165 = vst [vmem:[%s149 + $0x38] sm:$0xff] %v164
                %v166 = vld [vmem:[%s148 + $0x100] sm:$0xff]
                %167 = vst [vmem:[%s149 + $0x40] sm:$0xff] %v166
                %v168 = vld [vmem:[%s148 + $0x108] sm:$0xff]
                %169 = vst [vmem:[%s149 + $0x48] sm:$0xff] %v168
                %v170 = vld [vmem:[%s148 + $0x140] sm:$0xff]
                %171 = vst [vmem:[%s149 + $0x50] sm:$0xff] %v170
                %v172 = vld [vmem:[%s148 + $0x148] sm:$0xff]
                %173 = vst [vmem:[%s149 + $0x58] sm:$0xff] %v172
                %v174 = vld [vmem:[%s148 + $0x180] sm:$0xff]
                %175 = vst [vmem:[%s149 + $0x60] sm:$0xff] %v174
                %v176 = vld [vmem:[%s148 + $0x188] sm:$0xff]
                %177 = vst [vmem:[%s149 + $0x68] sm:$0xff] %v176
                %v178 = vld [vmem:[%s148 + $0x1c0] sm:$0xff]
                %179 = vst [vmem:[%s149 + $0x70] sm:$0xff] %v178
                %v180 = vld [vmem:[%s148 + $0x1c8] sm:$0xff]
                %181 = vst [vmem:[%s149 + $0x78] sm:$0xff] %v180
                %v182 = vld [vmem:[%s148 + $0x200] sm:$0xff]
                %183 = vst [vmem:[%s149 + $0x80] sm:$0xff] %v182
                %v184 = vld [vmem:[%s148 + $0x208] sm:$0xff]
                %185 = vst [vmem:[%s149 + $0x88] sm:$0xff] %v184
                %v186 = vld [vmem:[%s148 + $0x240] sm:$0xff]
                %187 = vst [vmem:[%s149 + $0x90] sm:$0xff] %v186
                %v188 = vld [vmem:[%s148 + $0x248] sm:$0xff]
                %189 = vst [vmem:[%s149 + $0x98] sm:$0xff] %v188
                %v190 = vld [vmem:[%s148 + $0x280] sm:$0xff]
                %191 = vst [vmem:[%s149 + $0xa0] sm:$0xff] %v190
                %v192 = vld [vmem:[%s148 + $0x288] sm:$0xff]
                %193 = vst [vmem:[%s149 + $0xa8] sm:$0xff] %v192
                %v194 = vld [vmem:[%s148 + $0x2c0] sm:$0xff]
                %195 = vst [vmem:[%s149 + $0xb0] sm:$0xff] %v194
                %v196 = vld [vmem:[%s148 + $0x2c8] sm:$0xff]
                %197 = vst [vmem:[%s149 + $0xb8] sm:$0xff] %v196
              $region41: #{generator_forward.45} parent=35 // loop_footer
                %s147 = sadd.s32 1, %s143
              $region42: #{generator_forward.45} parent=35 // loop_footer_branch
                %142 = sbr.rel target = $region38
              $region43: #{generator_forward.45} parent=35 // loop_exit
                _
            $region36: #{generator_forward.45} parent=31 // pred_fallthru
              _
            // Predicated region
            $region44: #{generator_forward.45} parent=31 // pred_check
              _
            $region45: #{generator_forward.45} parent=31 // pred_check_branch
              %199 = sbr.rel target = $region47
            $region46: #{generator_forward.45} parent=31 // pred_region
              _
            $region47: #{generator_forward.45} parent=31 // pred_fallthru
              _
          $region32: #{generator_forward.45} parent=27 // pred_fallthru
            _
          %200 = vnop
        $region28: #{generator_forward.45} parent=23 // pred_fallthru
          _
      $region24: #{generator_forward.45} parent=5 // pred_fallthru
        _
      %p201 = scmp.le.s32.totalorder 1, %s9
      %p202 = scmp.lt.s32.totalorder %s9, 5
      %p203 = pnand %p201, %p202
      %p204 = pneg %p203
      // Predicated region
      $region48: #{generator_forward.45} parent=5 // pred_check
        _
      $region49: #{generator_forward.45} parent=5 // pred_check_branch
        %206 = sbr.rel (%p203) target = $region51
      $region50: #{generator_forward.45} parent=5 // pred_region
        %s207 = ssub.s32 %s9, 1
        %s208 = sand.u32 %s43, 1
        %s209 = sand.u32 %s43, 1
        %s210 = smul.addr %s209, 192
        %s211 = scalar_lea.vmem [#allocation2], %s210
        // Predicated region
        $region52: #{generator_forward.45} parent=50 // pred_check
          %p212 = pneg %p56
        $region53: #{generator_forward.45} parent=50 // pred_check_branch
          %214 = sbr.rel (%p212) target = $region55
        $region54: #{generator_forward.45} parent=50 // pred_region
          _
        $region55: #{generator_forward.45} parent=50 // pred_fallthru
          _
        %p215 = pneg %p30
        %p216 = pneg %p27
        %s217 = sand.u32 %s43, 1
        %s218 = sand.u32 %s43, 1
        %s219 = smul.addr %s218, 192
        %s220 = scalar_lea.vmem [#allocation2], %s219
        %p221 = pneg %p56
        %p222 = pneg %p53
        %p223 = pneg %p77
        %p224 = pneg %p74
        %p225 = pneg %p103
        %p226 = pneg %p100
        %s227 = smul.u32 4, %s14
        %p228 = scmp.lt.s32.totalorder %s227, 15
        %s229 = scalar_select %p228, %s227, 15
        %s230 = smul.addr %s229, 4
        %s231 = scalar_lea.vmem %s3, %s230
        %s232 = smul.u32 4, %s14
        %s233 = smul.u32 4, %s14
        %p234 = scmp.lt.s32.totalorder %s233, 15
        %s235 = scalar_select %p234, %s233, 15
        %s236 = smul.addr %s235, 4
        %s237 = scalar_lea.vmem %s3, %s236
        %s238 = smul.u32 4, %s14
        %v240 = vld [vmem:[%s0] sm:$0x3]
        %v241 = vld [vmem:[%s211] sm:$0xff]
        %v242 = vld [vmem:[%s211 + $0x8] sm:$0xff]
        %v243 = vld [vmem:[%s211 + $0x10] sm:$0xff]
        %v244 = vld [vmem:[%s211 + $0x18] sm:$0xff]
        %v245 = vld [vmem:[%s211 + $0x20] sm:$0xff]
        %v246 = vld [vmem:[%s211 + $0x28] sm:$0xff]
        %v247 = vld [vmem:[%s211 + $0x30] sm:$0xff]
        %v248 = vld [vmem:[%s211 + $0x38] sm:$0xff]
        %v249 = vld [vmem:[%s211 + $0x40] sm:$0xff]
        %v250 = vld [vmem:[%s211 + $0x48] sm:$0xff]
        %v251 = vld [vmem:[%s211 + $0x50] sm:$0xff]
        %v252 = vld [vmem:[%s211 + $0x58] sm:$0xff]
        %v253 = vld [vmem:[%s211 + $0x60] sm:$0xff]
        %v254 = vld [vmem:[%s211 + $0x68] sm:$0xff]
        %v255 = vld [vmem:[%s211 + $0x70] sm:$0xff]
        %v256 = vld [vmem:[%s211 + $0x78] sm:$0xff]
        %v257 = vld [vmem:[%s211 + $0x80] sm:$0xff]
        %v258 = vld [vmem:[%s211 + $0x88] sm:$0xff]
        %v259 = vld [vmem:[%s211 + $0x90] sm:$0xff]
        %v260 = vld [vmem:[%s211 + $0x98] sm:$0xff]
        %v261 = vld [vmem:[%s211 + $0xa0] sm:$0xff]
        %v262 = vld [vmem:[%s211 + $0xa8] sm:$0xff]
        %v263 = vld [vmem:[%s211 + $0xb0] sm:$0xff]
        %v264 = vld [vmem:[%s211 + $0xb8] sm:$0xff]
        %v265 = vld [vmem:[%s2] sm:$0x7]
        %267 = vset.pattern.permute.xlu0 0
        %268 = vperm.xlu0 %267, %v265
        %v269 = vpop.permute.xlu0 %268
        %v295 = vunpack.c.l.b16 %v241
        %v296 = vunpack.c.h.b16 %v241
        %v297 = vunpack.c.l.b16 %v242
        %v298 = vunpack.c.h.b16 %v242
        %v299 = vunpack.c.l.b16 %v243
        %v300 = vunpack.c.h.b16 %v243
        %v301 = vunpack.c.l.b16 %v244
        %v302 = vunpack.c.h.b16 %v244
        %v303 = vunpack.c.l.b16 %v245
        %v304 = vunpack.c.h.b16 %v245
        %v305 = vunpack.c.l.b16 %v246
        %v306 = vunpack.c.h.b16 %v246
        %v307 = vunpack.c.l.b16 %v247
        %v308 = vunpack.c.h.b16 %v247
        %v309 = vunpack.c.l.b16 %v248
        %v310 = vunpack.c.h.b16 %v248
        %v311 = vunpack.c.l.b16 %v249
        %v312 = vunpack.c.h.b16 %v249
        %v313 = vunpack.c.l.b16 %v250
        %v314 = vunpack.c.h.b16 %v250
        %v315 = vunpack.c.l.b16 %v251
        %v316 = vunpack.c.h.b16 %v251
        %v317 = vunpack.c.l.b16 %v252
        %v318 = vunpack.c.h.b16 %v252
        %v319 = vunpack.c.l.b16 %v253
        %v320 = vunpack.c.h.b16 %v253
        %v321 = vunpack.c.l.b16 %v254
        %v322 = vunpack.c.h.b16 %v254
        %v323 = vunpack.c.l.b16 %v255
        %v324 = vunpack.c.h.b16 %v255
        %v325 = vunpack.c.l.b16 %v256
        %v326 = vunpack.c.h.b16 %v256
        %v327 = vunpack.c.l.b16 %v257
        %v328 = vunpack.c.h.b16 %v257
        %v329 = vunpack.c.l.b16 %v258
        %v330 = vunpack.c.h.b16 %v258
        %v331 = vunpack.c.l.b16 %v259
        %v332 = vunpack.c.h.b16 %v259
        %v333 = vunpack.c.l.b16 %v260
        %v334 = vunpack.c.h.b16 %v260
        %v335 = vunpack.c.l.b16 %v261
        %v336 = vunpack.c.h.b16 %v261
        %v337 = vunpack.c.l.b16 %v262
        %v338 = vunpack.c.h.b16 %v262
        %v339 = vunpack.c.l.b16 %v263
        %v340 = vunpack.c.h.b16 %v263
        %v341 = vunpack.c.l.b16 %v264
        %v342 = vunpack.c.h.b16 %v264
        %v343 = vpack.c.b16 %v299, %v295
        %v344 = vpack.c.b16 %v300, %v296
        %v345 = vpack.c.b16 %v301, %v297
        %v346 = vpack.c.b16 %v302, %v298
        %v347 = vpack.c.b16 %v307, %v303
        %v348 = vpack.c.b16 %v308, %v304
        %v349 = vpack.c.b16 %v309, %v305
        %v350 = vpack.c.b16 %v310, %v306
        %v351 = vpack.c.b16 %v315, %v311
        %v352 = vpack.c.b16 %v316, %v312
        %v353 = vpack.c.b16 %v317, %v313
        %v354 = vpack.c.b16 %v318, %v314
        %v355 = vpack.c.b16 %v323, %v319
        %v356 = vpack.c.b16 %v324, %v320
        %v357 = vpack.c.b16 %v325, %v321
        %v358 = vpack.c.b16 %v326, %v322
        %v359 = vpack.c.b16 %v331, %v327
        %v360 = vpack.c.b16 %v332, %v328
        %v361 = vpack.c.b16 %v333, %v329
        %v362 = vpack.c.b16 %v334, %v330
        %v363 = vpack.c.b16 %v339, %v335
        %v364 = vpack.c.b16 %v340, %v336
        %v365 = vpack.c.b16 %v341, %v337
        %v366 = vpack.c.b16 %v342, %v338
        %vm391 = vcmask 785408
        %v393 = vsel %vm391, %v240, 0
        %395 = vmatprep.subr.bf16.mxu0 %v344
        %396 = vmatpush1.bf16.msra.mxu0 %v343
        %397 = vmatprep.subr.bf16.mxu0 %v348
        %398 = vmatpush1.bf16.msra.mxu0 %v347
        %399 = vmatprep.subr.bf16.mxu0 %v352
        %400 = vmatpush1.bf16.msra.mxu0 %v351
        %401 = vmatprep.subr.bf16.mxu0 %v356
        %402 = vmatpush1.bf16.msra.mxu0 %v355
        %403 = vmatprep.subr.bf16.mxu0 %v360
        %404 = vmatpush1.bf16.msra.mxu0 %v359
        %405 = vmatprep.subr.bf16.mxu0 %v364
        %406 = vmatpush1.bf16.msra.mxu0 %v363
        %407 = vmatprep.subr.bf16.mxu0 0
        %408 = vmatpush1.bf16.msra.mxu0 0
        %409 = vmatprep.subr.bf16.mxu0 0
        %410 = vmatpush1.bf16.msra.mxu0 0
        %411 = vmatprep.subr.bf16.mxu0 0
        %412 = vmatpush1.bf16.msra.mxu0 0
        %413 = vmatprep.subr.bf16.mxu0 0
        %414 = vmatpush1.bf16.msra.mxu0 0
        %415 = vmatprep.subr.bf16.mxu0 0
        %416 = vmatpush1.bf16.msra.mxu0 0
        %417 = vmatprep.subr.bf16.mxu0 0
        %418 = vmatpush1.bf16.msra.mxu0 0
        %419 = vmatprep.subr.bf16.mxu0 0
        %420 = vmatpush1.bf16.msra.mxu0 0
        %421 = vmatprep.subr.bf16.mxu0 0
        %422 = vmatpush1.bf16.msra.mxu0 0
        %423 = vmatprep.subr.bf16.mxu0 0
        %424 = vmatpush1.bf16.msra.mxu0 0
        %425 = vmatprep.subr.bf16.mxu0 0
        %426 = vmatpush1.bf16.msra.mxu0 0
        %427 = vmatprep.mubr.bf16.mxu0 0
        %428 = vmatmul.mubr.bf16.gmra.mrb[0].mxu0 %v393
        %v429 = vpop.f32.mrb[0].mxu0
        %v430 = vadd.f32 %v269, %v429
        %v431 = vpop.f32.mrb[0].mxu0
        %v432 = vadd.f32 %v269, %v431
        %v433 = vpop.f32.mrb[0].mxu0
        %v434 = vpop.f32.mrb[0].mxu0
        %435 = vdwg.mxu0
        %436 = vmatprep.subr.bf16.mxu0 %v346
        %437 = vmatpush1.bf16.msra.mxu0 %v345
        %438 = vmatprep.subr.bf16.mxu0 %v350
        %439 = vmatpush1.bf16.msra.mxu0 %v349
        %440 = vmatprep.subr.bf16.mxu0 %v354
        %441 = vmatpush1.bf16.msra.mxu0 %v353
        %442 = vmatprep.subr.bf16.mxu0 %v358
        %443 = vmatpush1.bf16.msra.mxu0 %v357
        %444 = vmatprep.subr.bf16.mxu0 %v362
        %445 = vmatpush1.bf16.msra.mxu0 %v361
        %446 = vmatprep.subr.bf16.mxu0 %v366
        %447 = vmatpush1.bf16.msra.mxu0 %v365
        %448 = vmatprep.subr.bf16.mxu0 0
        %449 = vmatpush1.bf16.msra.mxu0 0
        %450 = vmatprep.subr.bf16.mxu0 0
        %451 = vmatpush1.bf16.msra.mxu0 0
        %452 = vmatprep.subr.bf16.mxu0 0
        %453 = vmatpush1.bf16.msra.mxu0 0
        %454 = vmatprep.subr.bf16.mxu0 0
        %455 = vmatpush1.bf16.msra.mxu0 0
        %456 = vmatprep.subr.bf16.mxu0 0
        %457 = vmatpush1.bf16.msra.mxu0 0
        %458 = vmatprep.subr.bf16.mxu0 0
        %459 = vmatpush1.bf16.msra.mxu0 0
        %460 = vmatprep.subr.bf16.mxu0 0
        %461 = vmatpush1.bf16.msra.mxu0 0
        %462 = vmatprep.subr.bf16.mxu0 0
        %463 = vmatpush1.bf16.msra.mxu0 0
        %464 = vmatprep.subr.bf16.mxu0 0
        %465 = vmatpush1.bf16.msra.mxu0 0
        %466 = vmatprep.subr.bf16.mxu0 0
        %467 = vmatpush1.bf16.msra.mxu0 0
        %468 = vmatprep.mubr.bf16.mxu0 0
        %469 = vmatmul.mubr.bf16.gmra.mrb[0].mxu0 %v393
        %v470 = vpop.f32.mrb[0].mxu0
        %v471 = vadd.f32 %v269, %v470
        %v472 = vpop.f32.mrb[0].mxu0
        %v473 = vadd.f32 %v269, %v472
        %v474 = vpop.f32.mrb[0].mxu0
        %v475 = vpop.f32.mrb[0].mxu0
        %476 = vdwg.mxu0
        %v477 = vtanh.pop %v430
        %v478 = vtanh.pop %v432
        %v479 = vtanh.pop %v471
        %v480 = vtanh.pop %v473
        %v485 = vcombine.low %v477, %v478
        %v486 = vcombine.low %v479, %v480
        %489 = vst [vmem:[%s237] sm:$0x77] %v485
        %490 = vst [vmem:[%s237 + $0x8] sm:$0x77] %v486
        %s491 = smul.u32 4, %s14
        %p492 = scmp.lt.s32.totalorder %s491, 15
        %s493 = scalar_select %p492, %s491, 15
        %s494 = smul.addr %s493, 4
        %s495 = scalar_lea.vmem %s3, %s494
        // Predicated region
        $region56: #{generator_forward.45} parent=50 // pred_check
          %p496 = pneg %p100
        $region57: #{generator_forward.45} parent=50 // pred_check_branch
          %498 = sbr.rel (%p496) target = $region59
        $region58: #{generator_forward.45} parent=50 // pred_region
          %s499 = smul.u32 4, %s14
        $region59: #{generator_forward.45} parent=50 // pred_fallthru
          _
      $region51: #{generator_forward.45} parent=5 // pred_fallthru
        _
      %p500 = scmp.le.s32.totalorder 2, %s9
      // Predicated region
      $region60: #{generator_forward.45} parent=5 // pred_check
        %p501 = pneg %p500
      $region61: #{generator_forward.45} parent=5 // pred_check_branch
        %503 = sbr.rel (%p501) target = $region63
      $region62: #{generator_forward.45} parent=5 // pred_region
        %s504 = ssub.s32 %s9, 2
        // Predicated region
        $region64: #{generator_forward.45} parent=62 // pred_check
          %p505 = pneg %p106
        $region65: #{generator_forward.45} parent=62 // pred_check_branch
          %507 = sbr.rel (%p505) target = $region67
        $region66: #{generator_forward.45} parent=62 // pred_region
          %s508 = smul.u32 4, %s15
          %p509 = scmp.lt.s32.totalorder %s508, 15
          %s510 = scalar_select %p509, %s508, 15
          %s511 = smul.addr %s510, 4
          %s512 = scalar_lea.vmem %s3, %s511
        $region67: #{generator_forward.45} parent=62 // pred_fallthru
          _
      $region63: #{generator_forward.45} parent=5 // pred_fallthru
        _
    $region6: #{generator_forward.45} parent=1 // loop_footer
      %s13 = sadd.s32 1, %s9
    $region7: #{generator_forward.45} parent=1 // loop_footer_branch
      %8 = sbr.rel target = $region3
    $region8: #{generator_forward.45} parent=1 // loop_exit
      _

// kernel: generator_forward.47
$region0: #{generator_forward.47}
  #allocation0 [shape = 'u32[]', space=smem, size = 0x4, offset = 0x4, fixed_abs, tag = 'smem constant byte address 0x4 - core index']
  #allocation1 [shape = 'u32[144,128]{1,0:T(1,128)}', space=vmem, size = 0x12000, scoped, tag = 'internal scratch']
  %s0 = inlined_call_operand.vmem [shape: bf16[3,64], index: 0, kind: input, shape index: {}]
  %s1 = inlined_call_operand.vmem [shape: bf16[64,2048], index: 1, kind: input, shape index: {}]
  %s2 = inlined_call_operand.vmem [shape: f32[3,1], index: 2, kind: input, shape index: {}]
  %s3 = inlined_call_operand.vmem [shape: f32[3,2048], index: 3, kind: output, shape index: {}]
  %s4 = sld [smem:[#allocation0]]
  $region68: #{generator_forward.47} parent=0
    _
  %s6 = ssub.s32 1, %s4
  %s7 = scalar_select 0, %s6, %s4
  $region1: #{generator_forward.47} parent=0
    #allocation2 [shape = 'u8[131072]{0}', space=vmem, size = 0x20000, scoped, tag = 'input window, operand 1']
    loop: start=0, step=1, limit=6
    $region2: #{generator_forward.47} parent=1 // loop_pre_header
      _
    $region3: #{generator_forward.47} parent=1 // loop_header
      %s9 = sphi 0, %s13
      %p10 = scmp.ge.s32.totalorder %s9, 6
      %s17 = sphi 0, %s17
      %s19 = sphi 0, %s17
      %s20 = sphi 0, %s19
      %s34 = sphi 0, %s20
      %s40 = sphi 0, %s42
      %s43 = sphi 0, %s40
      %s44 = sphi 0, %s43
      %s60 = sphi 0, %s44
      %s64 = sphi 0, %s64
      %s66 = sphi 0, %s64
      %s67 = sphi 0, %s66
      %s81 = sphi 0, %s67
      %s87 = sphi 0, %s89
      %s90 = sphi 0, %s87
      %s91 = sphi 0, %s90
      %s107 = sphi 0, %s91
    $region4: #{generator_forward.47} parent=1 // loop_header_branch
      %12 = sbr.rel (%p10) target = $region8
    $region5: #{generator_forward.47} parent=1 // loop_body
      %s14 = ssub.s32 %s9, 1
      %s15 = ssub.s32 %s9, 2
      %s16 = sadd.s32 %s9, 1
      %s18 = sadd.s32 %s17, 1
      %p21 = scmp.eq.s32.totalorder %s9, 3
      %p22 = scmp.ne.s32.totalorder %s17, %s19
      %p23 = scmp.eq.s32.totalorder %s9, 0
      %p24 = por %p22, %p23
      %p25 = scmp.ne.s32.totalorder %s17, %s19
      %p26 = scmp.eq.s32.totalorder %s14, 3
      %p27 = por %p25, %p26
      %p28 = scmp.ne.s32.totalorder %s19, %s20
      %p29 = scmp.eq.s32.totalorder %s14, 0
      %p30 = por %p28, %p29
      %p31 = scmp.ne.s32.totalorder %s19, %s20
      %p32 = scmp.eq.s32.totalorder %s15, 3
      %p33 = por %p31, %p32
      %p35 = scmp.ne.s32.totalorder %s20, %s34
      %p36 = scmp.eq.s32.totalorder %s15, 0
      %p37 = por %p35, %p36
      %s38 = ssub.s32 %s9, %s16
      %p39 = scmp.eq.s32.totalorder %s38, 0
      %s41 = sadd.s32 %s40, 1
      %s42 = scalar_select %p39, %s40, %s41
      %p45 = pneg %p39
      %p46 = scmp.eq.s32.totalorder %s9, 3
      %p47 = por %p45, %p46
      %p48 = scmp.ne.s32.totalorder %s40, %s43
      %p49 = scmp.eq.s32.totalorder %s9, 0
      %p50 = por %p48, %p49
      %p51 = scmp.ne.s32.totalorder %s40, %s43
      %p52 = scmp.eq.s32.totalorder %s14, 3
      %p53 = por %p51, %p52
      %p54 = scmp.ne.s32.totalorder %s43, %s44
      %p55 = scmp.eq.s32.totalorder %s14, 0
      %p56 = por %p54, %p55
      %p57 = scmp.ne.s32.totalorder %s43, %s44
      %p58 = scmp.eq.s32.totalorder %s15, 3
      %p59 = por %p57, %p58
      %p61 = scmp.ne.s32.totalorder %s44, %s60
      %p62 = scmp.eq.s32.totalorder %s15, 0
      %p63 = por %p61, %p62
      %s65 = sadd.s32 %s64, 1
      %p68 = scmp.eq.s32.totalorder %s9, 3
      %p69 = scmp.ne.s32.totalorder %s64, %s66
      %p70 = scmp.eq.s32.totalorder %s9, 0
      %p71 = por %p69, %p70
      %p72 = scmp.ne.s32.totalorder %s64, %s66
      %p73 = scmp.eq.s32.totalorder %s14, 3
      %p74 = por %p72, %p73
      %p75 = scmp.ne.s32.totalorder %s66, %s67
      %p76 = scmp.eq.s32.totalorder %s14, 0
      %p77 = por %p75, %p76
      %p78 = scmp.ne.s32.totalorder %s66, %s67
      %p79 = scmp.eq.s32.totalorder %s15, 3
      %p80 = por %p78, %p79
      %p82 = scmp.ne.s32.totalorder %s67, %s81
      %p83 = scmp.eq.s32.totalorder %s15, 0
      %p84 = por %p82, %p83
      %s85 = ssub.s32 %s9, %s16
      %p86 = scmp.eq.s32.totalorder %s85, 0
      %s88 = sadd.s32 %s87, 1
      %s89 = scalar_select %p86, %s87, %s88
      %p92 = pneg %p86
      %p93 = scmp.eq.s32.totalorder %s9, 3
      %p94 = por %p92, %p93
      %p95 = scmp.ne.s32.totalorder %s87, %s90
      %p96 = scmp.eq.s32.totalorder %s9, 0
      %p97 = por %p95, %p96
      %p98 = scmp.ne.s32.totalorder %s87, %s90
      %p99 = scmp.eq.s32.totalorder %s14, 3
      %p100 = por %p98, %p99
      %p101 = scmp.ne.s32.totalorder %s90, %s91
      %p102 = scmp.eq.s32.totalorder %s14, 0
      %p103 = por %p101, %p102
      %p104 = scmp.ne.s32.totalorder %s90, %s91
      %p105 = scmp.eq.s32.totalorder %s15, 3
      %p106 = por %p104, %p105
      %p108 = scmp.ne.s32.totalorder %s91, %s107
      %p109 = scmp.eq.s32.totalorder %s15, 0
      %p110 = por %p108, %p109
      %p111 = scmp.le.s32.totalorder 1, %s9
      %p112 = scmp.lt.s32.totalorder %s9, 5
      %p113 = pnand %p111, %p112
      %p114 = pneg %p113
      // Predicated region
      $region9: #{generator_forward.47} parent=5 // pred_check
        _
      $region10: #{generator_forward.47} parent=5 // pred_check_branch
        %116 = sbr.rel (%p113) target = $region12
      $region11: #{generator_forward.47} parent=5 // pred_region
        %s117 = ssub.s32 %s9, 1
        // Predicated region
        $region13: #{generator_forward.47} parent=11 // pred_check
          %p118 = pneg %p30
        $region14: #{generator_forward.47} parent=11 // pred_check_branch
          %120 = sbr.rel (%p118) target = $region16
        $region15: #{generator_forward.47} parent=11 // pred_region
          _
        $region16: #{generator_forward.47} parent=11 // pred_fallthru
          _
        // Predicated region
        $region17: #{generator_forward.47} parent=11 // pred_check
          %p121 = pneg %p77
        $region18: #{generator_forward.47} parent=11 // pred_check_branch
          %123 = sbr.rel (%p121) target = $region20
        $region19: #{generator_forward.47} parent=11 // pred_region
          _
        $region20: #{generator_forward.47} parent=11 // pred_fallthru
          _
      $region12: #{generator_forward.47} parent=5 // pred_fallthru
        _
      %p124 = scmp.lt.s32.totalorder %s9, 4
      // Predicated region
      $region21: #{generator_forward.47} parent=5 // pred_check
        %p125 = pneg %p124
      $region22: #{generator_forward.47} parent=5 // pred_check_branch
        %127 = sbr.rel (%p125) target = $region24
      $region23: #{generator_forward.47} parent=5 // pred_region
        // Predicated region
        $region25: #{generator_forward.47} parent=23 // pred_check
          %p128 = pneg %p50
        $region26: #{generator_forward.47} parent=23 // pred_check_branch
          %130 = sbr.rel (%p128) target = $region28
        $region27: #{generator_forward.47} parent=23 // pred_region
          %s131 = sand.u32 %s40, 1
          %s132 = sand.u32 %s40, 1
          %s133 = smul.addr %s132, 128
          %s134 = scalar_lea.vmem [#allocation2], %s133
          %s135 = smul.u32 4, %s9
          %s136 = smul.addr %s135, 4
          %s137 = scalar_lea.vmem %s1, %s136
          // Predicated region
          $region29: #{generator_forward.47} parent=27 // pred_check
            _
          $region30: #{generator_forward.47} parent=27 // pred_check_branch
            %139 = sbr.rel (0) target = $region32
          $region31: #{generator_forward.47} parent=27 // pred_region
            // Predicated region
            $region33: #{generator_forward.47} parent=31 // pred_check
              _
            $region34: #{generator_forward.47} parent=31 // pred_check_branch
              %141 = sbr.rel (0) target = $region36
            $region35: #{generator_forward.47} parent=31 // pred_region
              loop: start=0, step=1, limit=1
              $region37: #{generator_forward.47} parent=35 // loop_pre_header
                _
              $region38: #{generator_forward.47} parent=35 // loop_header
                %s143 = sphi 0, %s147
                %p144 = scmp.ge.s32.totalorder %s143, 1
                %s148 = sphi %s137, %s137
                %s149 = sphi %s134, %s134
              $region39: #{generator_forward.47} parent=35 // loop_header_branch
                %146 = sbr.rel (%p144) target = $region43
              $region40: #{generator_forward.47} parent=35 // loop_body
                %v150 = vld [vmem:[%s148] sm:$0xff]
                %151 = vst [vmem:[%s149] sm:$0xff] %v150
                %v152 = vld [vmem:[%s148 + $0x8] sm:$0xff]
                %153 = vst [vmem:[%s149 + $0x8] sm:$0xff] %v152
                %v154 = vld [vmem:[%s148 + $0x40] sm:$0xff]
                %155 = vst [vmem:[%s149 + $0x10] sm:$0xff] %v154
                %v156 = vld [vmem:[%s148 + $0x48] sm:$0xff]
                %157 = vst [vmem:[%s149 + $0x18] sm:$0xff] %v156
                %v158 = vld [vmem:[%s148 + $0x80] sm:$0xff]
                %159 = vst [vmem:[%s149 + $0x20] sm:$0xff] %v158
                %v160 = vld [vmem:[%s148 + $0x88] sm:$0xff]
                %161 = vst [vmem:[%s149 + $0x28] sm:$0xff] %v160
                %v162 = vld [vmem:[%s148 + $0xc0] sm:$0xff]
                %163 = vst [vmem:[%s149 + $0x30] sm:$0xff] %v162
                %v164 = vld [vmem:[%s148 + $0xc8] sm:$0xff]
                %165 = vst [vmem:[%s149 + $0x38] sm:$0xff] %v164
                %v166 = vld [vmem:[%s148 + $0x100] sm:$0xff]
                %167 = vst [vmem:[%s149 + $0x40] sm:$0xff] %v166
                %v168 = vld [vmem:[%s148 + $0x108] sm:$0xff]
                %169 = vst [vmem:[%s149 + $0x48] sm:$0xff] %v168
                %v170 = vld [vmem:[%s148 + $0x140] sm:$0xff]
                %171 = vst [vmem:[%s149 + $0x50] sm:$0xff] %v170
                %v172 = vld [vmem:[%s148 + $0x148] sm:$0xff]
                %173 = vst [vmem:[%s149 + $0x58] sm:$0xff] %v172
                %v174 = vld [vmem:[%s148 + $0x180] sm:$0xff]
                %175 = vst [vmem:[%s149 + $0x60] sm:$0xff] %v174
                %v176 = vld [vmem:[%s148 + $0x188] sm:$0xff]
                %177 = vst [vmem:[%s149 + $0x68] sm:$0xff] %v176
                %v178 = vld [vmem:[%s148 + $0x1c0] sm:$0xff]
                %179 = vst [vmem:[%s149 + $0x70] sm:$0xff] %v178
                %v180 = vld [vmem:[%s148 + $0x1c8] sm:$0xff]
                %181 = vst [vmem:[%s149 + $0x78] sm:$0xff] %v180
              $region41: #{generator_forward.47} parent=35 // loop_footer
                %s147 = sadd.s32 1, %s143
              $region42: #{generator_forward.47} parent=35 // loop_footer_branch
                %142 = sbr.rel target = $region38
              $region43: #{generator_forward.47} parent=35 // loop_exit
                _
            $region36: #{generator_forward.47} parent=31 // pred_fallthru
              _
            // Predicated region
            $region44: #{generator_forward.47} parent=31 // pred_check
              _
            $region45: #{generator_forward.47} parent=31 // pred_check_branch
              %183 = sbr.rel target = $region47
            $region46: #{generator_forward.47} parent=31 // pred_region
              _
            $region47: #{generator_forward.47} parent=31 // pred_fallthru
              _
          $region32: #{generator_forward.47} parent=27 // pred_fallthru
            _
          %184 = vnop
        $region28: #{generator_forward.47} parent=23 // pred_fallthru
          _
      $region24: #{generator_forward.47} parent=5 // pred_fallthru
        _
      %p185 = scmp.le.s32.totalorder 1, %s9
      %p186 = scmp.lt.s32.totalorder %s9, 5
      %p187 = pnand %p185, %p186
      %p188 = pneg %p187
      // Predicated region
      $region48: #{generator_forward.47} parent=5 // pred_check
        _
      $region49: #{generator_forward.47} parent=5 // pred_check_branch
        %190 = sbr.rel (%p187) target = $region51
      $region50: #{generator_forward.47} parent=5 // pred_region
        %s191 = ssub.s32 %s9, 1
        %s192 = sand.u32 %s43, 1
        %s193 = sand.u32 %s43, 1
        %s194 = smul.addr %s193, 128
        %s195 = scalar_lea.vmem [#allocation2], %s194
        // Predicated region
        $region52: #{generator_forward.47} parent=50 // pred_check
          %p196 = pneg %p56
        $region53: #{generator_forward.47} parent=50 // pred_check_branch
          %198 = sbr.rel (%p196) target = $region55
        $region54: #{generator_forward.47} parent=50 // pred_region
          _
        $region55: #{generator_forward.47} parent=50 // pred_fallthru
          _
        %p199 = pneg %p30
        %p200 = pneg %p27
        %s201 = sand.u32 %s43, 1
        %s202 = sand.u32 %s43, 1
        %s203 = smul.addr %s202, 128
        %s204 = scalar_lea.vmem [#allocation2], %s203
        %p205 = pneg %p56
        %p206 = pneg %p53
        %p207 = pneg %p77
        %p208 = pneg %p74
        %p209 = pneg %p103
        %p210 = pneg %p100
        %s211 = smul.u32 4, %s14
        %p212 = scmp.lt.s32.totalorder %s211, 15
        %s213 = scalar_select %p212, %s211, 15
        %s214 = smul.addr %s213, 4
        %s215 = scalar_lea.vmem %s3, %s214
        %s216 = smul.u32 4, %s14
        %s217 = smul.u32 4, %s14
        %p218 = scmp.lt.s32.totalorder %s217, 15
        %s219 = scalar_select %p218, %s217, 15
        %s220 = smul.addr %s219, 4
        %s221 = scalar_lea.vmem %s3, %s220
        %s222 = smul.u32 4, %s14
        %v224 = vld [vmem:[%s0] sm:$0x3]
        %v225 = vld [vmem:[%s195] sm:$0xff]
        %v226 = vld [vmem:[%s195 + $0x8] sm:$0xff]
        %v227 = vld [vmem:[%s195 + $0x10] sm:$0xff]
        %v228 = vld [vmem:[%s195 + $0x18] sm:$0xff]
        %v229 = vld [vmem:[%s195 + $0x20] sm:$0xff]
        %v230 = vld [vmem:[%s195 + $0x28] sm:$0xff]
        %v231 = vld [vmem:[%s195 + $0x30] sm:$0xff]
        %v232 = vld [vmem:[%s195 + $0x38] sm:$0xff]
        %v233 = vld [vmem:[%s195 + $0x40] sm:$0xff]
        %v234 = vld [vmem:[%s195 + $0x48] sm:$0xff]
        %v235 = vld [vmem:[%s195 + $0x50] sm:$0xff]
        %v236 = vld [vmem:[%s195 + $0x58] sm:$0xff]
        %v237 = vld [vmem:[%s195 + $0x60] sm:$0xff]
        %v238 = vld [vmem:[%s195 + $0x68] sm:$0xff]
        %v239 = vld [vmem:[%s195 + $0x70] sm:$0xff]
        %v240 = vld [vmem:[%s195 + $0x78] sm:$0xff]
        %v241 = vld [vmem:[%s2] sm:$0x7]
        %243 = vset.pattern.permute.xlu0 0
        %244 = vperm.xlu0 %243, %v241
        %v245 = vpop.permute.xlu0 %244
        %v263 = vunpack.c.l.b16 %v225
        %v264 = vunpack.c.h.b16 %v225
        %v265 = vunpack.c.l.b16 %v226
        %v266 = vunpack.c.h.b16 %v226
        %v267 = vunpack.c.l.b16 %v227
        %v268 = vunpack.c.h.b16 %v227
        %v269 = vunpack.c.l.b16 %v228
        %v270 = vunpack.c.h.b16 %v228
        %v271 = vunpack.c.l.b16 %v229
        %v272 = vunpack.c.h.b16 %v229
        %v273 = vunpack.c.l.b16 %v230
        %v274 = vunpack.c.h.b16 %v230
        %v275 = vunpack.c.l.b16 %v231
        %v276 = vunpack.c.h.b16 %v231
        %v277 = vunpack.c.l.b16 %v232
        %v278 = vunpack.c.h.b16 %v232
        %v279 = vunpack.c.l.b16 %v233
        %v280 = vunpack.c.h.b16 %v233
        %v281 = vunpack.c.l.b16 %v234
        %v282 = vunpack.c.h.b16 %v234
        %v283 = vunpack.c.l.b16 %v235
        %v284 = vunpack.c.h.b16 %v235
        %v285 = vunpack.c.l.b16 %v236
        %v286 = vunpack.c.h.b16 %v236
        %v287 = vunpack.c.l.b16 %v237
        %v288 = vunpack.c.h.b16 %v237
        %v289 = vunpack.c.l.b16 %v238
        %v290 = vunpack.c.h.b16 %v238
        %v291 = vunpack.c.l.b16 %v239
        %v292 = vunpack.c.h.b16 %v239
        %v293 = vunpack.c.l.b16 %v240
        %v294 = vunpack.c.h.b16 %v240
        %v295 = vpack.c.b16 %v267, %v263
        %v296 = vpack.c.b16 %v268, %v264
        %v297 = vpack.c.b16 %v269, %v265
        %v298 = vpack.c.b16 %v270, %v266
        %v299 = vpack.c.b16 %v275, %v271
        %v300 = vpack.c.b16 %v276, %v272
        %v301 = vpack.c.b16 %v277, %v273
        %v302 = vpack.c.b16 %v278, %v274
        %v303 = vpack.c.b16 %v283, %v279
        %v304 = vpack.c.b16 %v284, %v280
        %v305 = vpack.c.b16 %v285, %v281
        %v306 = vpack.c.b16 %v286, %v282
        %v307 = vpack.c.b16 %v291, %v287
        %v308 = vpack.c.b16 %v292, %v288
        %v309 = vpack.c.b16 %v293, %v289
        %v310 = vpack.c.b16 %v294, %v290
        %vm327 = vcmask 523264
        %v329 = vsel %vm327, %v224, 0
        %331 = vmatprep.subr.bf16.mxu0 %v296
        %332 = vmatpush1.bf16.msra.mxu0 %v295
        %333 = vmatprep.subr.bf16.mxu0 %v300
        %334 = vmatpush1.bf16.msra.mxu0 %v299
        %335 = vmatprep.subr.bf16.mxu0 %v304
        %336 = vmatpush1.bf16.msra.mxu0 %v303
        %337 = vmatprep.subr.bf16.mxu0 %v308
        %338 = vmatpush1.bf16.msra.mxu0 %v307
        %339 = vmatprep.subr.bf16.mxu0 0
        %340 = vmatpush1.bf16.msra.mxu0 0
        %341 = vmatprep.subr.bf16.mxu0 0
        %342 = vmatpush1.bf16.msra.mxu0 0
        %343 = vmatprep.subr.bf16.mxu0 0
        %344 = vmatpush1.bf16.msra.mxu0 0
        %345 = vmatprep.subr.bf16.mxu0 0
        %346 = vmatpush1.bf16.msra.mxu0 0
        %347 = vmatprep.subr.bf16.mxu0 0
        %348 = vmatpush1.bf16.msra.mxu0 0
        %349 = vmatprep.subr.bf16.mxu0 0
        %350 = vmatpush1.bf16.msra.mxu0 0
        %351 = vmatprep.subr.bf16.mxu0 0
        %352 = vmatpush1.bf16.msra.mxu0 0
        %353 = vmatprep.subr.bf16.mxu0 0
        %354 = vmatpush1.bf16.msra.mxu0 0
        %355 = vmatprep.subr.bf16.mxu0 0
        %356 = vmatpush1.bf16.msra.mxu0 0
        %357 = vmatprep.subr.bf16.mxu0 0
        %358 = vmatpush1.bf16.msra.mxu0 0
        %359 = vmatprep.subr.bf16.mxu0 0
        %360 = vmatpush1.bf16.msra.mxu0 0
        %361 = vmatprep.subr.bf16.mxu0 0
        %362 = vmatpush1.bf16.msra.mxu0 0
        %363 = vmatprep.mubr.bf16.mxu0 0
        %364 = vmatmul.mubr.bf16.gmra.mrb[0].mxu0 %v329
        %v365 = vpop.f32.mrb[0].mxu0
        %v366 = vadd.f32 %v245, %v365
        %v367 = vpop.f32.mrb[0].mxu0
        %v368 = vadd.f32 %v245, %v367
        %v369 = vpop.f32.mrb[0].mxu0
        %v370 = vpop.f32.mrb[0].mxu0
        %371 = vdwg.mxu0
        %372 = vmatprep.subr.bf16.mxu0 %v298
        %373 = vmatpush1.bf16.msra.mxu0 %v297
        %374 = vmatprep.subr.bf16.mxu0 %v302
        %375 = vmatpush1.bf16.msra.mxu0 %v301
        %376 = vmatprep.subr.bf16.mxu0 %v306
        %377 = vmatpush1.bf16.msra.mxu0 %v305
        %378 = vmatprep.subr.bf16.mxu0 %v310
        %379 = vmatpush1.bf16.msra.mxu0 %v309
        %380 = vmatprep.subr.bf16.mxu0 0
        %381 = vmatpush1.bf16.msra.mxu0 0
        %382 = vmatprep.subr.bf16.mxu0 0
        %383 = vmatpush1.bf16.msra.mxu0 0
        %384 = vmatprep.subr.bf16.mxu0 0
        %385 = vmatpush1.bf16.msra.mxu0 0
        %386 = vmatprep.subr.bf16.mxu0 0
        %387 = vmatpush1.bf16.msra.mxu0 0
        %388 = vmatprep.subr.bf16.mxu0 0
        %389 = vmatpush1.bf16.msra.mxu0 0
        %390 = vmatprep.subr.bf16.mxu0 0
        %391 = vmatpush1.bf16.msra.mxu0 0
        %392 = vmatprep.subr.bf16.mxu0 0
        %393 = vmatpush1.bf16.msra.mxu0 0
        %394 = vmatprep.subr.bf16.mxu0 0
        %395 = vmatpush1.bf16.msra.mxu0 0
        %396 = vmatprep.subr.bf16.mxu0 0
        %397 = vmatpush1.bf16.msra.mxu0 0
        %398 = vmatprep.subr.bf16.mxu0 0
        %399 = vmatpush1.bf16.msra.mxu0 0
        %400 = vmatprep.subr.bf16.mxu0 0
        %401 = vmatpush1.bf16.msra.mxu0 0
        %402 = vmatprep.subr.bf16.mxu0 0
        %403 = vmatpush1.bf16.msra.mxu0 0
        %404 = vmatprep.mubr.bf16.mxu0 0
        %405 = vmatmul.mubr.bf16.gmra.mrb[0].mxu0 %v329
        %v406 = vpop.f32.mrb[0].mxu0
        %v407 = vadd.f32 %v245, %v406
        %v408 = vpop.f32.mrb[0].mxu0
        %v409 = vadd.f32 %v245, %v408
        %v410 = vpop.f32.mrb[0].mxu0
        %v411 = vpop.f32.mrb[0].mxu0
        %412 = vdwg.mxu0
        %v413 = vtanh.pop %v366
        %v414 = vtanh.pop %v368
        %v415 = vtanh.pop %v407
        %v416 = vtanh.pop %v409
        %v421 = vcombine.low %v413, %v414
        %v422 = vcombine.low %v415, %v416
        %425 = vst [vmem:[%s221] sm:$0x77] %v421
        %426 = vst [vmem:[%s221 + $0x8] sm:$0x77] %v422
        %s427 = smul.u32 4, %s14
        %p428 = scmp.lt.s32.totalorder %s427, 15
        %s429 = scalar_select %p428, %s427, 15
        %s430 = smul.addr %s429, 4
        %s431 = scalar_lea.vmem %s3, %s430
        // Predicated region
        $region56: #{generator_forward.47} parent=50 // pred_check
          %p432 = pneg %p100
        $region57: #{generator_forward.47} parent=50 // pred_check_branch
          %434 = sbr.rel (%p432) target = $region59
        $region58: #{generator_forward.47} parent=50 // pred_region
          %s435 = smul.u32 4, %s14
        $region59: #{generator_forward.47} parent=50 // pred_fallthru
          _
      $region51: #{generator_forward.47} parent=5 // pred_fallthru
        _
      %p436 = scmp.le.s32.totalorder 2, %s9
      // Predicated region
      $region60: #{generator_forward.47} parent=5 // pred_check
        %p437 = pneg %p436
      $region61: #{generator_forward.47} parent=5 // pred_check_branch
        %439 = sbr.rel (%p437) target = $region63
      $region62: #{generator_forward.47} parent=5 // pred_region
        %s440 = ssub.s32 %s9, 2
        // Predicated region
        $region64: #{generator_forward.47} parent=62 // pred_check
          %p441 = pneg %p106
        $region65: #{generator_forward.47} parent=62 // pred_check_branch
          %443 = sbr.rel (%p441) target = $region67
        $region66: #{generator_forward.47} parent=62 // pred_region
          %s444 = smul.u32 4, %s15
          %p445 = scmp.lt.s32.totalorder %s444, 15
          %s446 = scalar_select %p445, %s444, 15
          %s447 = smul.addr %s446, 4
          %s448 = scalar_lea.vmem %s3, %s447
        $region67: #{generator_forward.47} parent=62 // pred_fallthru
          _
      $region63: #{generator_forward.47} parent=5 // pred_fallthru
        _
    $region6: #{generator_forward.47} parent=1 // loop_footer
      %s13 = sadd.s32 1, %s9
    $region7: #{generator_forward.47} parent=1 // loop_footer_branch
      %8 = sbr.rel target = $region3
    $region8: #{generator_forward.47} parent=1 // loop_exit
      _

</llo_original>
